<compile_context>
chip_gen: v7x
topology: tpu7x:2x2x1
jax: 0.10.0
libtpu: 0.0.40
codegen_flags: <defaults>
</compile_context>

<pallas_src>
import functools

import jax
import jax.numpy as jnp
import numpy as np
from jax.experimental import pallas as pl
from jax.experimental.pallas import tpu as pltpu


# ----------------------------------------------------------------------------
# Parameter-setup glue (plain JAX): 4-bit symmetric per-tensor weight quantization
# ----------------------------------------------------------------------------
def quantize_weights_4bitsym(w, quantscale=0.25):
    """4-bit symmetric (no zero code) per-tensor fake-quantization of weights."""
    mag = jnp.maximum(jnp.mean(jnp.abs(w)), 1e-5)
    scale = quantscale * 8.0 / mag
    u = jnp.clip(jnp.round(w * scale - 0.5) + 0.5, -7.5, 7.5)
    return (u / scale).astype(jnp.float32)


# ----------------------------------------------------------------------------
# Fused Pallas kernel
# ----------------------------------------------------------------------------
def _fused_kernel(x_ref, masks_ref,
                  wc1,
                  w10, b10, w11, b11, w12, b12, w13, b13,
                  w20, b20, w21, b21, w22, b22, w23, b23,
                  wc2, fcw,
                  o_ref, *, width):
    S = x_ref.shape[-1]  # flattened H*W, on the lane axis

    def conv3x3(xv, w_ref, b_ref=None, relu=False):
        # xv: (Cin, S) f32.  w_ref: (9, Cout, Cin) tap-major, BN scale pre-folded.
        # 3x3 / stride 1 / pad 1 conv as 9 lane-rolled, border-masked rank-Cin matmuls.
        # Output (Cout, S) is lane-dense.
        cout, cin = w_ref.shape[1], w_ref.shape[2]
        mask_input = cin <= cout            # mask the narrower operand (fewer VPU rows)
        acc = jnp.zeros((cout, S), jnp.float32)
        for t in range(9):
            dy, dx = divmod(t, 3)
            flat = (dy - 1) * width + (dx - 1)              # flat spatial shift of this tap
            xr = xv if flat == 0 else pltpu.roll(xv, (-flat) % S, axis=1)
            if flat != 0 and mask_input:
                xr = xr * masks_ref[t]                      # zero the zero-padding halo columns
            wt = w_ref[t]                                   # (Cout, Cin)
            if cin == 1:
                y = wt * xr                                 # outer product on the VPU
            else:
                y = jnp.dot(wt, xr, preferred_element_type=jnp.float32)
            if flat != 0 and not mask_input:
                y = y * masks_ref[t]
            acc = acc + y
        if b_ref is not None:
            acc = acc + b_ref[...]                          # folded-BN bias (Cout, 1)
        if relu:
            acc = jnp.maximum(acc, 0.0)
        return acc

    # TODO(synk): QAttn_BN_Block reconstructed as an attention-condenser with a sigmoid gate.
    def attn_block(xv, w0, b0, w1, b1, w2, b2, w3, b3):
        a = conv3x3(xv, w0, b0, relu=True)                  # 7  -> 14
        a = conv3x3(a, w1, b1, relu=True)                   # 14 -> 3
        a = conv3x3(a, w2, b2, relu=True)                   # 3  -> 6
        g = conv3x3(a, w3, b3, relu=False)                  # 6  -> 7
        return xv * jax.nn.sigmoid(g) + xv                  # selective-attention residual

    h = conv3x3(x_ref[0], wc1, None, relu=True)             # 1  -> 7
    h = attn_block(h, w10, b10, w11, b11, w12, b12, w13, b13)
    h = attn_block(h, w20, b20, w21, b21, w22, b22, w23, b23)
    h = conv3x3(h, wc2, None, relu=True)                    # 7  -> 17

    # Head fused in-kernel: global average pool -> RMS norm (BitLinear NormType='RMS') -> fc.
    pooled = jnp.sum(h, axis=1, keepdims=True) * (1.0 / S)          # (17, 1)
    msq = jnp.mean(pooled * pooled, axis=0, keepdims=True)          # (1, 1)
    normed = pooled * jax.lax.rsqrt(msq + 1e-6)                     # (17, 1)
    logits = jnp.sum(fcw[...] * normed, axis=0, keepdims=True)      # (17, NC) -> (1, NC)
    o_ref[0] = logits


# ----------------------------------------------------------------------------
# Wrappers (parameter folding, mask precompute, pallas_call plumbing)
# ----------------------------------------------------------------------------
def _conv_masks(h, w):
    """(9, 1, H*W) f32 validity masks for the 9 taps of a 3x3 / pad 1 conv on a flattened image."""
    s = h * w
    hh = np.arange(s) // w
    ww = np.arange(s) % w
    m = np.zeros((9, 1, s), np.float32)
    for t in range(9):
        dy, dx = divmod(t, 3)
        valid = ((hh + dy - 1 >= 0) & (hh + dy - 1 < h) &
                 (ww + dx - 1 >= 0) & (ww + dx - 1 < w))
        m[t, 0] = valid.astype(np.float32)
    return jnp.asarray(m)


def _fold_conv(w, scale=None, bias=None):
    """Torch-layout conv weight (Cout, Cin, 3, 3) -> tap-major (9, Cout, Cin) with BN scale folded."""
    cout, cin = w.shape[0], w.shape[1]
    w9 = jnp.transpose(w, (2, 3, 0, 1)).reshape(9, cout, cin).astype(jnp.float32)
    if scale is not None:
        w9 = w9 * scale.astype(jnp.float32)[None, :, None]
    b = None if bias is None else bias.astype(jnp.float32).reshape(cout, 1)
    return w9, b


def qtinyspeech_forward(x, params):
    """x: (B, 1, H, W) NCHW like the PyTorch reference. Returns logits (B, num_classes);
    softmax is NOT applied (matching QTinySpeechZ.forward)."""
    B, cin0, H, Wd = x.shape
    S = H * Wd
    NC = params["fc_w"].shape[0]

    x_cs = x.reshape(B, cin0, S).astype(jnp.float32)
    masks = _conv_masks(H, Wd)

    tensors = [x_cs, masks]
    w9, _ = _fold_conv(params["conv1_w"])
    tensors.append(w9)
    for bname in ("block1", "block2"):
        blk = params[bname]
        for i in range(4):
            w9, b = _fold_conv(blk[f"w{i}"], blk[f"s{i}"], blk[f"b{i}"])
            tensors += [w9, b]
    w9, _ = _fold_conv(params["conv2_w"])
    tensors.append(w9)
    tensors.append(jnp.transpose(params["fc_w"]).astype(jnp.float32))  # (17, num_classes)

    # Input is tiled over the batch grid; masks/weights use constant index maps so Pallas keeps
    # them resident in VMEM (DMA'd once, never re-fetched across grid steps).
    in_specs = [pl.BlockSpec((1, cin0, S), lambda b: (b, 0, 0))]
    in_specs += [pl.BlockSpec(t.shape, (lambda b, n=t.ndim: (0,) * n)) for t in tensors[1:]]

    out = pl.pallas_call(
        functools.partial(_fused_kernel, width=Wd),
        out_shape=jax.ShapeDtypeStruct((B, 1, NC), jnp.float32),
        grid=(B,),
        in_specs=in_specs,
        out_specs=pl.BlockSpec((1, 1, NC), lambda b: (b, 0, 0)),
        compiler_params=pltpu.CompilerParams(dimension_semantics=("parallel",)),
    )(*tensors)
    return out[:, 0, :]


# ----------------------------------------------------------------------------
# Deterministic parameter construction (torch layouts, quantized at init)
# ----------------------------------------------------------------------------
def init_params(key, num_classes, quantscale=0.25):
    kiter = iter(jax.random.split(key, 64))
    q = lambda w: quantize_weights_4bitsym(w, quantscale)

    def conv_w(cin, cout):
        k = next(kiter)
        return q(jax.random.normal(k, (cout, cin, 3, 3), jnp.float32) / jnp.sqrt(9.0 * cin))

    def bn_fold(c):
        kg, kb, km, kv = jax.random.split(next(kiter), 4)
        gamma = 1.0 + 0.1 * jax.random.normal(kg, (c,), jnp.float32)
        beta = 0.1 * jax.random.normal(kb, (c,), jnp.float32)
        mean = 0.1 * jax.random.normal(km, (c,), jnp.float32)
        var = 1.0 + 0.1 * jax.random.uniform(kv, (c,), jnp.float32)
        scale = gamma * jax.lax.rsqrt(var + 1e-5)
        return scale, beta - mean * scale

    def block():
        p = {}
        chain = [(7, 14), (14, 3), (3, 6), (6, 7)]
        for i, (ci, co) in enumerate(chain):
            p[f"w{i}"] = conv_w(ci, co)
            p[f"s{i}"], p[f"b{i}"] = bn_fold(co)
        return p

    return {
        "conv1_w": conv_w(1, 7),
        "block1": block(),
        "block2": block(),
        "conv2_w": conv_w(7, 17),
        # TODO(synk): BitLinear assumed bias-free (common in BitNet-style layers).
        "fc_w": q(jax.random.normal(next(kiter), (num_classes, 17), jnp.float32) / jnp.sqrt(17.0)),
    }


# ----------------------------------------------------------------------------
if __name__ == "__main__":
    num_classes = 10
    key = jax.random.PRNGKey(0)
    params = init_params(key, num_classes)

    # Small deterministic input, NCHW like the PyTorch reference: (B=2, C=1, H=16, W=16).
    x = jax.random.normal(jax.random.fold_in(key, 123), (2, 1, 16, 16), jnp.float32)

    fwd = jax.jit(qtinyspeech_forward)
    logits = jax.block_until_ready(fwd(x, params))

    assert logits.shape == (2, num_classes)
    assert bool(jnp.all(jnp.isfinite(logits)))
    print("KERNEL_OK")
</pallas_src>

<mosaic_0001>
module attributes {stable_mosaic.version = 11 : i64} {
  func.func @_fused_kernel(%arg0: i32, %arg1: memref<1x1x256xf32, #tpu.memory_space<vmem>>, %arg2: memref<9x1x256xf32, #tpu.memory_space<vmem>>, %arg3: memref<9x7x1xf32, #tpu.memory_space<vmem>>, %arg4: memref<9x14x7xf32, #tpu.memory_space<vmem>>, %arg5: memref<14x1xf32, #tpu.memory_space<vmem>>, %arg6: memref<9x3x14xf32, #tpu.memory_space<vmem>>, %arg7: memref<3x1xf32, #tpu.memory_space<vmem>>, %arg8: memref<9x6x3xf32, #tpu.memory_space<vmem>>, %arg9: memref<6x1xf32, #tpu.memory_space<vmem>>, %arg10: memref<9x7x6xf32, #tpu.memory_space<vmem>>, %arg11: memref<7x1xf32, #tpu.memory_space<vmem>>, %arg12: memref<9x14x7xf32, #tpu.memory_space<vmem>>, %arg13: memref<14x1xf32, #tpu.memory_space<vmem>>, %arg14: memref<9x3x14xf32, #tpu.memory_space<vmem>>, %arg15: memref<3x1xf32, #tpu.memory_space<vmem>>, %arg16: memref<9x6x3xf32, #tpu.memory_space<vmem>>, %arg17: memref<6x1xf32, #tpu.memory_space<vmem>>, %arg18: memref<9x7x6xf32, #tpu.memory_space<vmem>>, %arg19: memref<7x1xf32, #tpu.memory_space<vmem>>, %arg20: memref<9x17x7xf32, #tpu.memory_space<vmem>>, %arg21: memref<17x10xf32, #tpu.memory_space<vmem>>, %arg22: memref<1x1x10xf32, #tpu.memory_space<vmem>>) attributes {dimension_semantics = [#tpu.dimension_semantics<parallel>], iteration_bounds = array<i64: 2>, scalar_prefetch = 0 : i64, scratch_operands = 0 : i64, tpu.core_type = #tpu.core_type<tc>, window_params = [{transform_indices = @transform_0, window_bounds = array<i64: 1, 1, 256>}, {pipeline_mode = #tpu.pipeline_mode<synchronous>, transform_indices = @transform_1, window_bounds = array<i64: 9, 1, 256>}, {pipeline_mode = #tpu.pipeline_mode<synchronous>, transform_indices = @transform_2, window_bounds = array<i64: 9, 7, 1>}, {pipeline_mode = #tpu.pipeline_mode<synchronous>, transform_indices = @transform_3, window_bounds = array<i64: 9, 14, 7>}, {pipeline_mode = #tpu.pipeline_mode<synchronous>, transform_indices = @transform_4, window_bounds = array<i64: 14, 1>}, {pipeline_mode = #tpu.pipeline_mode<synchronous>, transform_indices = @transform_5, window_bounds = array<i64: 9, 3, 14>}, {pipeline_mode = #tpu.pipeline_mode<synchronous>, transform_indices = @transform_6, window_bounds = array<i64: 3, 1>}, {pipeline_mode = #tpu.pipeline_mode<synchronous>, transform_indices = @transform_7, window_bounds = array<i64: 9, 6, 3>}, {pipeline_mode = #tpu.pipeline_mode<synchronous>, transform_indices = @transform_8, window_bounds = array<i64: 6, 1>}, {pipeline_mode = #tpu.pipeline_mode<synchronous>, transform_indices = @transform_9, window_bounds = array<i64: 9, 7, 6>}, {pipeline_mode = #tpu.pipeline_mode<synchronous>, transform_indices = @transform_10, window_bounds = array<i64: 7, 1>}, {pipeline_mode = #tpu.pipeline_mode<synchronous>, transform_indices = @transform_11, window_bounds = array<i64: 9, 14, 7>}, {pipeline_mode = #tpu.pipeline_mode<synchronous>, transform_indices = @transform_12, window_bounds = array<i64: 14, 1>}, {pipeline_mode = #tpu.pipeline_mode<synchronous>, transform_indices = @transform_13, window_bounds = array<i64: 9, 3, 14>}, {pipeline_mode = #tpu.pipeline_mode<synchronous>, transform_indices = @transform_14, window_bounds = array<i64: 3, 1>}, {pipeline_mode = #tpu.pipeline_mode<synchronous>, transform_indices = @transform_15, window_bounds = array<i64: 9, 6, 3>}, {pipeline_mode = #tpu.pipeline_mode<synchronous>, transform_indices = @transform_16, window_bounds = array<i64: 6, 1>}, {pipeline_mode = #tpu.pipeline_mode<synchronous>, transform_indices = @transform_17, window_bounds = array<i64: 9, 7, 6>}, {pipeline_mode = #tpu.pipeline_mode<synchronous>, transform_indices = @transform_18, window_bounds = array<i64: 7, 1>}, {pipeline_mode = #tpu.pipeline_mode<synchronous>, transform_indices = @transform_19, window_bounds = array<i64: 9, 17, 7>}, {pipeline_mode = #tpu.pipeline_mode<synchronous>, transform_indices = @transform_20, window_bounds = array<i64: 17, 10>}, {transform_indices = @transform_21, window_bounds = array<i64: 1, 1, 10>}]} {
    %c0 = arith.constant 0 : index
    %c0_0 = arith.constant 0 : index
    %c0_1 = arith.constant 0 : index
    %0 = vector.load %arg1[%c0, %c0_0, %c0_1] : memref<1x1x256xf32, #tpu.memory_space<vmem>>, vector<1x1x256xf32>
    %1 = vector.shape_cast %0 : vector<1x1x256xf32> to vector<1x256xf32>
    %cst = arith.constant 0.000000e+00 : f32
    %2 = vector.broadcast %cst : f32 to vector<7x256xf32>
    %c17_i32 = arith.constant 17 : i32
    %3 = tpu.dynamic_rotate %1 by %c17_i32 dim 1 : vector<1x256xf32>, i32 -> vector<1x256xf32>
    %c0_2 = arith.constant 0 : index
    %c0_3 = arith.constant 0 : index
    %c0_4 = arith.constant 0 : index
    %4 = vector.load %arg2[%c0_2, %c0_3, %c0_4] : memref<9x1x256xf32, #tpu.memory_space<vmem>>, vector<1x1x256xf32>
    %5 = vector.shape_cast %4 : vector<1x1x256xf32> to vector<1x256xf32>
    %6 = arith.mulf %3, %5 : vector<1x256xf32>
    %c0_5 = arith.constant 0 : index
    %c0_6 = arith.constant 0 : index
    %c0_7 = arith.constant 0 : index
    %7 = vector.load %arg3[%c0_5, %c0_6, %c0_7] : memref<9x7x1xf32, #tpu.memory_space<vmem>>, vector<1x7x1xf32>
    %8 = vector.shape_cast %7 : vector<1x7x1xf32> to vector<7x1xf32>
    %9 = vector.broadcast %8 : vector<7x1xf32> to vector<7x256xf32>
    %10 = vector.broadcast %6 : vector<1x256xf32> to vector<7x256xf32>
    %11 = arith.mulf %9, %10 : vector<7x256xf32>
    %12 = arith.addf %2, %11 : vector<7x256xf32>
    %c16_i32 = arith.constant 16 : i32
    %13 = tpu.dynamic_rotate %1 by %c16_i32 dim 1 : vector<1x256xf32>, i32 -> vector<1x256xf32>
    %c1 = arith.constant 1 : index
    %c0_8 = arith.constant 0 : index
    %c0_9 = arith.constant 0 : index
    %14 = vector.load %arg2[%c1, %c0_8, %c0_9] : memref<9x1x256xf32, #tpu.memory_space<vmem>>, vector<1x1x256xf32>
    %15 = vector.shape_cast %14 : vector<1x1x256xf32> to vector<1x256xf32>
    %16 = arith.mulf %13, %15 : vector<1x256xf32>
    %c1_10 = arith.constant 1 : index
    %c0_11 = arith.constant 0 : index
    %c0_12 = arith.constant 0 : index
    %17 = vector.load %arg3[%c1_10, %c0_11, %c0_12] : memref<9x7x1xf32, #tpu.memory_space<vmem>>, vector<1x7x1xf32>
    %18 = vector.shape_cast %17 : vector<1x7x1xf32> to vector<7x1xf32>
    %19 = vector.broadcast %18 : vector<7x1xf32> to vector<7x256xf32>
    %20 = vector.broadcast %16 : vector<1x256xf32> to vector<7x256xf32>
    %21 = arith.mulf %19, %20 : vector<7x256xf32>
    %22 = arith.addf %12, %21 : vector<7x256xf32>
    %c15_i32 = arith.constant 15 : i32
    %23 = tpu.dynamic_rotate %1 by %c15_i32 dim 1 : vector<1x256xf32>, i32 -> vector<1x256xf32>
    %c2 = arith.constant 2 : index
    %c0_13 = arith.constant 0 : index
    %c0_14 = arith.constant 0 : index
    %24 = vector.load %arg2[%c2, %c0_13, %c0_14] : memref<9x1x256xf32, #tpu.memory_space<vmem>>, vector<1x1x256xf32>
    %25 = vector.shape_cast %24 : vector<1x1x256xf32> to vector<1x256xf32>
    %26 = arith.mulf %23, %25 : vector<1x256xf32>
    %c2_15 = arith.constant 2 : index
    %c0_16 = arith.constant 0 : index
    %c0_17 = arith.constant 0 : index
    %27 = vector.load %arg3[%c2_15, %c0_16, %c0_17] : memref<9x7x1xf32, #tpu.memory_space<vmem>>, vector<1x7x1xf32>
    %28 = vector.shape_cast %27 : vector<1x7x1xf32> to vector<7x1xf32>
    %29 = vector.broadcast %28 : vector<7x1xf32> to vector<7x256xf32>
    %30 = vector.broadcast %26 : vector<1x256xf32> to vector<7x256xf32>
    %31 = arith.mulf %29, %30 : vector<7x256xf32>
    %32 = arith.addf %22, %31 : vector<7x256xf32>
    %c1_i32 = arith.constant 1 : i32
    %33 = tpu.dynamic_rotate %1 by %c1_i32 dim 1 : vector<1x256xf32>, i32 -> vector<1x256xf32>
    %c3 = arith.constant 3 : index
    %c0_18 = arith.constant 0 : index
    %c0_19 = arith.constant 0 : index
    %34 = vector.load %arg2[%c3, %c0_18, %c0_19] : memref<9x1x256xf32, #tpu.memory_space<vmem>>, vector<1x1x256xf32>
    %35 = vector.shape_cast %34 : vector<1x1x256xf32> to vector<1x256xf32>
    %36 = arith.mulf %33, %35 : vector<1x256xf32>
    %c3_20 = arith.constant 3 : index
    %c0_21 = arith.constant 0 : index
    %c0_22 = arith.constant 0 : index
    %37 = vector.load %arg3[%c3_20, %c0_21, %c0_22] : memref<9x7x1xf32, #tpu.memory_space<vmem>>, vector<1x7x1xf32>
    %38 = vector.shape_cast %37 : vector<1x7x1xf32> to vector<7x1xf32>
    %39 = vector.broadcast %38 : vector<7x1xf32> to vector<7x256xf32>
    %40 = vector.broadcast %36 : vector<1x256xf32> to vector<7x256xf32>
    %41 = arith.mulf %39, %40 : vector<7x256xf32>
    %42 = arith.addf %32, %41 : vector<7x256xf32>
    %c4 = arith.constant 4 : index
    %c0_23 = arith.constant 0 : index
    %c0_24 = arith.constant 0 : index
    %43 = vector.load %arg3[%c4, %c0_23, %c0_24] : memref<9x7x1xf32, #tpu.memory_space<vmem>>, vector<1x7x1xf32>
    %44 = vector.shape_cast %43 : vector<1x7x1xf32> to vector<7x1xf32>
    %45 = vector.broadcast %44 : vector<7x1xf32> to vector<7x256xf32>
    %46 = vector.broadcast %1 : vector<1x256xf32> to vector<7x256xf32>
    %47 = arith.mulf %45, %46 : vector<7x256xf32>
    %48 = arith.addf %42, %47 : vector<7x256xf32>
    %c255_i32 = arith.constant 255 : i32
    %49 = tpu.dynamic_rotate %1 by %c255_i32 dim 1 : vector<1x256xf32>, i32 -> vector<1x256xf32>
    %c5 = arith.constant 5 : index
    %c0_25 = arith.constant 0 : index
    %c0_26 = arith.constant 0 : index
    %50 = vector.load %arg2[%c5, %c0_25, %c0_26] : memref<9x1x256xf32, #tpu.memory_space<vmem>>, vector<1x1x256xf32>
    %51 = vector.shape_cast %50 : vector<1x1x256xf32> to vector<1x256xf32>
    %52 = arith.mulf %49, %51 : vector<1x256xf32>
    %c5_27 = arith.constant 5 : index
    %c0_28 = arith.constant 0 : index
    %c0_29 = arith.constant 0 : index
    %53 = vector.load %arg3[%c5_27, %c0_28, %c0_29] : memref<9x7x1xf32, #tpu.memory_space<vmem>>, vector<1x7x1xf32>
    %54 = vector.shape_cast %53 : vector<1x7x1xf32> to vector<7x1xf32>
    %55 = vector.broadcast %54 : vector<7x1xf32> to vector<7x256xf32>
    %56 = vector.broadcast %52 : vector<1x256xf32> to vector<7x256xf32>
    %57 = arith.mulf %55, %56 : vector<7x256xf32>
    %58 = arith.addf %48, %57 : vector<7x256xf32>
    %c241_i32 = arith.constant 241 : i32
    %59 = tpu.dynamic_rotate %1 by %c241_i32 dim 1 : vector<1x256xf32>, i32 -> vector<1x256xf32>
    %c6 = arith.constant 6 : index
    %c0_30 = arith.constant 0 : index
    %c0_31 = arith.constant 0 : index
    %60 = vector.load %arg2[%c6, %c0_30, %c0_31] : memref<9x1x256xf32, #tpu.memory_space<vmem>>, vector<1x1x256xf32>
    %61 = vector.shape_cast %60 : vector<1x1x256xf32> to vector<1x256xf32>
    %62 = arith.mulf %59, %61 : vector<1x256xf32>
    %c6_32 = arith.constant 6 : index
    %c0_33 = arith.constant 0 : index
    %c0_34 = arith.constant 0 : index
    %63 = vector.load %arg3[%c6_32, %c0_33, %c0_34] : memref<9x7x1xf32, #tpu.memory_space<vmem>>, vector<1x7x1xf32>
    %64 = vector.shape_cast %63 : vector<1x7x1xf32> to vector<7x1xf32>
    %65 = vector.broadcast %64 : vector<7x1xf32> to vector<7x256xf32>
    %66 = vector.broadcast %62 : vector<1x256xf32> to vector<7x256xf32>
    %67 = arith.mulf %65, %66 : vector<7x256xf32>
    %68 = arith.addf %58, %67 : vector<7x256xf32>
    %c240_i32 = arith.constant 240 : i32
    %69 = tpu.dynamic_rotate %1 by %c240_i32 dim 1 : vector<1x256xf32>, i32 -> vector<1x256xf32>
    %c7 = arith.constant 7 : index
    %c0_35 = arith.constant 0 : index
    %c0_36 = arith.constant 0 : index
    %70 = vector.load %arg2[%c7, %c0_35, %c0_36] : memref<9x1x256xf32, #tpu.memory_space<vmem>>, vector<1x1x256xf32>
    %71 = vector.shape_cast %70 : vector<1x1x256xf32> to vector<1x256xf32>
    %72 = arith.mulf %69, %71 : vector<1x256xf32>
    %c7_37 = arith.constant 7 : index
    %c0_38 = arith.constant 0 : index
    %c0_39 = arith.constant 0 : index
    %73 = vector.load %arg3[%c7_37, %c0_38, %c0_39] : memref<9x7x1xf32, #tpu.memory_space<vmem>>, vector<1x7x1xf32>
    %74 = vector.shape_cast %73 : vector<1x7x1xf32> to vector<7x1xf32>
    %75 = vector.broadcast %74 : vector<7x1xf32> to vector<7x256xf32>
    %76 = vector.broadcast %72 : vector<1x256xf32> to vector<7x256xf32>
    %77 = arith.mulf %75, %76 : vector<7x256xf32>
    %78 = arith.addf %68, %77 : vector<7x256xf32>
    %c239_i32 = arith.constant 239 : i32
    %79 = tpu.dynamic_rotate %1 by %c239_i32 dim 1 : vector<1x256xf32>, i32 -> vector<1x256xf32>
    %c8 = arith.constant 8 : index
    %c0_40 = arith.constant 0 : index
    %c0_41 = arith.constant 0 : index
    %80 = vector.load %arg2[%c8, %c0_40, %c0_41] : memref<9x1x256xf32, #tpu.memory_space<vmem>>, vector<1x1x256xf32>
    %81 = vector.shape_cast %80 : vector<1x1x256xf32> to vector<1x256xf32>
    %82 = arith.mulf %79, %81 : vector<1x256xf32>
    %c8_42 = arith.constant 8 : index
    %c0_43 = arith.constant 0 : index
    %c0_44 = arith.constant 0 : index
    %83 = vector.load %arg3[%c8_42, %c0_43, %c0_44] : memref<9x7x1xf32, #tpu.memory_space<vmem>>, vector<1x7x1xf32>
    %84 = vector.shape_cast %83 : vector<1x7x1xf32> to vector<7x1xf32>
    %85 = vector.broadcast %84 : vector<7x1xf32> to vector<7x256xf32>
    %86 = vector.broadcast %82 : vector<1x256xf32> to vector<7x256xf32>
    %87 = arith.mulf %85, %86 : vector<7x256xf32>
    %88 = arith.addf %78, %87 : vector<7x256xf32>
    %cst_45 = arith.constant 0.000000e+00 : f32
    %89 = vector.broadcast %cst_45 : f32 to vector<7x256xf32>
    %90 = arith.maximumf %88, %89 : vector<7x256xf32>
    %cst_46 = arith.constant 0.000000e+00 : f32
    %91 = vector.broadcast %cst_46 : f32 to vector<14x256xf32>
    %c17_i32_47 = arith.constant 17 : i32
    %92 = tpu.dynamic_rotate %90 by %c17_i32_47 dim 1 : vector<7x256xf32>, i32 -> vector<7x256xf32>
    %c0_48 = arith.constant 0 : index
    %c0_49 = arith.constant 0 : index
    %c0_50 = arith.constant 0 : index
    %93 = vector.load %arg2[%c0_48, %c0_49, %c0_50] : memref<9x1x256xf32, #tpu.memory_space<vmem>>, vector<1x1x256xf32>
    %94 = vector.shape_cast %93 : vector<1x1x256xf32> to vector<1x256xf32>
    %95 = vector.broadcast %94 : vector<1x256xf32> to vector<7x256xf32>
    %96 = arith.mulf %92, %95 : vector<7x256xf32>
    %c0_51 = arith.constant 0 : index
    %c0_52 = arith.constant 0 : index
    %c0_53 = arith.constant 0 : index
    %97 = vector.load %arg4[%c0_51, %c0_52, %c0_53] : memref<9x14x7xf32, #tpu.memory_space<vmem>>, vector<1x14x7xf32>
    %98 = vector.shape_cast %97 : vector<1x14x7xf32> to vector<14x7xf32>
    %cst_54 = arith.constant dense<0.000000e+00> : vector<14x256xf32>
    %99 = tpu.matmul %98, %96, %cst_54 {dimension_numbers = #tpu.dot_dimension_numbers<[1], [0], [0], [1], [0, 0, 1, 1], [], []>} : vector<14x7xf32>, vector<7x256xf32>, vector<14x256xf32> -> vector<14x256xf32>
    %100 = arith.addf %91, %99 : vector<14x256xf32>
    %c16_i32_55 = arith.constant 16 : i32
    %101 = tpu.dynamic_rotate %90 by %c16_i32_55 dim 1 : vector<7x256xf32>, i32 -> vector<7x256xf32>
    %c1_56 = arith.constant 1 : index
    %c0_57 = arith.constant 0 : index
    %c0_58 = arith.constant 0 : index
    %102 = vector.load %arg2[%c1_56, %c0_57, %c0_58] : memref<9x1x256xf32, #tpu.memory_space<vmem>>, vector<1x1x256xf32>
    %103 = vector.shape_cast %102 : vector<1x1x256xf32> to vector<1x256xf32>
    %104 = vector.broadcast %103 : vector<1x256xf32> to vector<7x256xf32>
    %105 = arith.mulf %101, %104 : vector<7x256xf32>
    %c1_59 = arith.constant 1 : index
    %c0_60 = arith.constant 0 : index
    %c0_61 = arith.constant 0 : index
    %106 = vector.load %arg4[%c1_59, %c0_60, %c0_61] : memref<9x14x7xf32, #tpu.memory_space<vmem>>, vector<1x14x7xf32>
    %107 = vector.shape_cast %106 : vector<1x14x7xf32> to vector<14x7xf32>
    %cst_62 = arith.constant dense<0.000000e+00> : vector<14x256xf32>
    %108 = tpu.matmul %107, %105, %cst_62 {dimension_numbers = #tpu.dot_dimension_numbers<[1], [0], [0], [1], [0, 0, 1, 1], [], []>} : vector<14x7xf32>, vector<7x256xf32>, vector<14x256xf32> -> vector<14x256xf32>
    %109 = arith.addf %100, %108 : vector<14x256xf32>
    %c15_i32_63 = arith.constant 15 : i32
    %110 = tpu.dynamic_rotate %90 by %c15_i32_63 dim 1 : vector<7x256xf32>, i32 -> vector<7x256xf32>
    %c2_64 = arith.constant 2 : index
    %c0_65 = arith.constant 0 : index
    %c0_66 = arith.constant 0 : index
    %111 = vector.load %arg2[%c2_64, %c0_65, %c0_66] : memref<9x1x256xf32, #tpu.memory_space<vmem>>, vector<1x1x256xf32>
    %112 = vector.shape_cast %111 : vector<1x1x256xf32> to vector<1x256xf32>
    %113 = vector.broadcast %112 : vector<1x256xf32> to vector<7x256xf32>
    %114 = arith.mulf %110, %113 : vector<7x256xf32>
    %c2_67 = arith.constant 2 : index
    %c0_68 = arith.constant 0 : index
    %c0_69 = arith.constant 0 : index
    %115 = vector.load %arg4[%c2_67, %c0_68, %c0_69] : memref<9x14x7xf32, #tpu.memory_space<vmem>>, vector<1x14x7xf32>
    %116 = vector.shape_cast %115 : vector<1x14x7xf32> to vector<14x7xf32>
    %cst_70 = arith.constant dense<0.000000e+00> : vector<14x256xf32>
    %117 = tpu.matmul %116, %114, %cst_70 {dimension_numbers = #tpu.dot_dimension_numbers<[1], [0], [0], [1], [0, 0, 1, 1], [], []>} : vector<14x7xf32>, vector<7x256xf32>, vector<14x256xf32> -> vector<14x256xf32>
    %118 = arith.addf %109, %117 : vector<14x256xf32>
    %c1_i32_71 = arith.constant 1 : i32
    %119 = tpu.dynamic_rotate %90 by %c1_i32_71 dim 1 : vector<7x256xf32>, i32 -> vector<7x256xf32>
    %c3_72 = arith.constant 3 : index
    %c0_73 = arith.constant 0 : index
    %c0_74 = arith.constant 0 : index
    %120 = vector.load %arg2[%c3_72, %c0_73, %c0_74] : memref<9x1x256xf32, #tpu.memory_space<vmem>>, vector<1x1x256xf32>
    %121 = vector.shape_cast %120 : vector<1x1x256xf32> to vector<1x256xf32>
    %122 = vector.broadcast %121 : vector<1x256xf32> to vector<7x256xf32>
    %123 = arith.mulf %119, %122 : vector<7x256xf32>
    %c3_75 = arith.constant 3 : index
    %c0_76 = arith.constant 0 : index
    %c0_77 = arith.constant 0 : index
    %124 = vector.load %arg4[%c3_75, %c0_76, %c0_77] : memref<9x14x7xf32, #tpu.memory_space<vmem>>, vector<1x14x7xf32>
    %125 = vector.shape_cast %124 : vector<1x14x7xf32> to vector<14x7xf32>
    %cst_78 = arith.constant dense<0.000000e+00> : vector<14x256xf32>
    %126 = tpu.matmul %125, %123, %cst_78 {dimension_numbers = #tpu.dot_dimension_numbers<[1], [0], [0], [1], [0, 0, 1, 1], [], []>} : vector<14x7xf32>, vector<7x256xf32>, vector<14x256xf32> -> vector<14x256xf32>
    %127 = arith.addf %118, %126 : vector<14x256xf32>
    %c4_79 = arith.constant 4 : index
    %c0_80 = arith.constant 0 : index
    %c0_81 = arith.constant 0 : index
    %128 = vector.load %arg4[%c4_79, %c0_80, %c0_81] : memref<9x14x7xf32, #tpu.memory_space<vmem>>, vector<1x14x7xf32>
    %129 = vector.shape_cast %128 : vector<1x14x7xf32> to vector<14x7xf32>
    %cst_82 = arith.constant dense<0.000000e+00> : vector<14x256xf32>
    %130 = tpu.matmul %129, %90, %cst_82 {dimension_numbers = #tpu.dot_dimension_numbers<[1], [0], [0], [1], [0, 0, 1, 1], [], []>} : vector<14x7xf32>, vector<7x256xf32>, vector<14x256xf32> -> vector<14x256xf32>
    %131 = arith.addf %127, %130 : vector<14x256xf32>
    %c255_i32_83 = arith.constant 255 : i32
    %132 = tpu.dynamic_rotate %90 by %c255_i32_83 dim 1 : vector<7x256xf32>, i32 -> vector<7x256xf32>
    %c5_84 = arith.constant 5 : index
    %c0_85 = arith.constant 0 : index
    %c0_86 = arith.constant 0 : index
    %133 = vector.load %arg2[%c5_84, %c0_85, %c0_86] : memref<9x1x256xf32, #tpu.memory_space<vmem>>, vector<1x1x256xf32>
    %134 = vector.shape_cast %133 : vector<1x1x256xf32> to vector<1x256xf32>
    %135 = vector.broadcast %134 : vector<1x256xf32> to vector<7x256xf32>
    %136 = arith.mulf %132, %135 : vector<7x256xf32>
    %c5_87 = arith.constant 5 : index
    %c0_88 = arith.constant 0 : index
    %c0_89 = arith.constant 0 : index
    %137 = vector.load %arg4[%c5_87, %c0_88, %c0_89] : memref<9x14x7xf32, #tpu.memory_space<vmem>>, vector<1x14x7xf32>
    %138 = vector.shape_cast %137 : vector<1x14x7xf32> to vector<14x7xf32>
    %cst_90 = arith.constant dense<0.000000e+00> : vector<14x256xf32>
    %139 = tpu.matmul %138, %136, %cst_90 {dimension_numbers = #tpu.dot_dimension_numbers<[1], [0], [0], [1], [0, 0, 1, 1], [], []>} : vector<14x7xf32>, vector<7x256xf32>, vector<14x256xf32> -> vector<14x256xf32>
    %140 = arith.addf %131, %139 : vector<14x256xf32>
    %c241_i32_91 = arith.constant 241 : i32
    %141 = tpu.dynamic_rotate %90 by %c241_i32_91 dim 1 : vector<7x256xf32>, i32 -> vector<7x256xf32>
    %c6_92 = arith.constant 6 : index
    %c0_93 = arith.constant 0 : index
    %c0_94 = arith.constant 0 : index
    %142 = vector.load %arg2[%c6_92, %c0_93, %c0_94] : memref<9x1x256xf32, #tpu.memory_space<vmem>>, vector<1x1x256xf32>
    %143 = vector.shape_cast %142 : vector<1x1x256xf32> to vector<1x256xf32>
    %144 = vector.broadcast %143 : vector<1x256xf32> to vector<7x256xf32>
    %145 = arith.mulf %141, %144 : vector<7x256xf32>
    %c6_95 = arith.constant 6 : index
    %c0_96 = arith.constant 0 : index
    %c0_97 = arith.constant 0 : index
    %146 = vector.load %arg4[%c6_95, %c0_96, %c0_97] : memref<9x14x7xf32, #tpu.memory_space<vmem>>, vector<1x14x7xf32>
    %147 = vector.shape_cast %146 : vector<1x14x7xf32> to vector<14x7xf32>
    %cst_98 = arith.constant dense<0.000000e+00> : vector<14x256xf32>
    %148 = tpu.matmul %147, %145, %cst_98 {dimension_numbers = #tpu.dot_dimension_numbers<[1], [0], [0], [1], [0, 0, 1, 1], [], []>} : vector<14x7xf32>, vector<7x256xf32>, vector<14x256xf32> -> vector<14x256xf32>
    %149 = arith.addf %140, %148 : vector<14x256xf32>
    %c240_i32_99 = arith.constant 240 : i32
    %150 = tpu.dynamic_rotate %90 by %c240_i32_99 dim 1 : vector<7x256xf32>, i32 -> vector<7x256xf32>
    %c7_100 = arith.constant 7 : index
    %c0_101 = arith.constant 0 : index
    %c0_102 = arith.constant 0 : index
    %151 = vector.load %arg2[%c7_100, %c0_101, %c0_102] : memref<9x1x256xf32, #tpu.memory_space<vmem>>, vector<1x1x256xf32>
    %152 = vector.shape_cast %151 : vector<1x1x256xf32> to vector<1x256xf32>
    %153 = vector.broadcast %152 : vector<1x256xf32> to vector<7x256xf32>
    %154 = arith.mulf %150, %153 : vector<7x256xf32>
    %c7_103 = arith.constant 7 : index
    %c0_104 = arith.constant 0 : index
    %c0_105 = arith.constant 0 : index
    %155 = vector.load %arg4[%c7_103, %c0_104, %c0_105] : memref<9x14x7xf32, #tpu.memory_space<vmem>>, vector<1x14x7xf32>
    %156 = vector.shape_cast %155 : vector<1x14x7xf32> to vector<14x7xf32>
    %cst_106 = arith.constant dense<0.000000e+00> : vector<14x256xf32>
    %157 = tpu.matmul %156, %154, %cst_106 {dimension_numbers = #tpu.dot_dimension_numbers<[1], [0], [0], [1], [0, 0, 1, 1], [], []>} : vector<14x7xf32>, vector<7x256xf32>, vector<14x256xf32> -> vector<14x256xf32>
    %158 = arith.addf %149, %157 : vector<14x256xf32>
    %c239_i32_107 = arith.constant 239 : i32
    %159 = tpu.dynamic_rotate %90 by %c239_i32_107 dim 1 : vector<7x256xf32>, i32 -> vector<7x256xf32>
    %c8_108 = arith.constant 8 : index
    %c0_109 = arith.constant 0 : index
    %c0_110 = arith.constant 0 : index
    %160 = vector.load %arg2[%c8_108, %c0_109, %c0_110] : memref<9x1x256xf32, #tpu.memory_space<vmem>>, vector<1x1x256xf32>
    %161 = vector.shape_cast %160 : vector<1x1x256xf32> to vector<1x256xf32>
    %162 = vector.broadcast %161 : vector<1x256xf32> to vector<7x256xf32>
    %163 = arith.mulf %159, %162 : vector<7x256xf32>
    %c8_111 = arith.constant 8 : index
    %c0_112 = arith.constant 0 : index
    %c0_113 = arith.constant 0 : index
    %164 = vector.load %arg4[%c8_111, %c0_112, %c0_113] : memref<9x14x7xf32, #tpu.memory_space<vmem>>, vector<1x14x7xf32>
    %165 = vector.shape_cast %164 : vector<1x14x7xf32> to vector<14x7xf32>
    %cst_114 = arith.constant dense<0.000000e+00> : vector<14x256xf32>
    %166 = tpu.matmul %165, %163, %cst_114 {dimension_numbers = #tpu.dot_dimension_numbers<[1], [0], [0], [1], [0, 0, 1, 1], [], []>} : vector<14x7xf32>, vector<7x256xf32>, vector<14x256xf32> -> vector<14x256xf32>
    %167 = arith.addf %158, %166 : vector<14x256xf32>
    %c0_115 = arith.constant 0 : index
    %c0_116 = arith.constant 0 : index
    %168 = vector.load %arg5[%c0_115, %c0_116] : memref<14x1xf32, #tpu.memory_space<vmem>>, vector<14x1xf32>
    %169 = vector.broadcast %168 : vector<14x1xf32> to vector<14x256xf32>
    %170 = arith.addf %167, %169 : vector<14x256xf32>
    %cst_117 = arith.constant 0.000000e+00 : f32
    %171 = vector.broadcast %cst_117 : f32 to vector<14x256xf32>
    %172 = arith.maximumf %170, %171 : vector<14x256xf32>
    %cst_118 = arith.constant 0.000000e+00 : f32
    %173 = vector.broadcast %cst_118 : f32 to vector<3x256xf32>
    %c17_i32_119 = arith.constant 17 : i32
    %174 = tpu.dynamic_rotate %172 by %c17_i32_119 dim 1 : vector<14x256xf32>, i32 -> vector<14x256xf32>
    %c0_120 = arith.constant 0 : index
    %c0_121 = arith.constant 0 : index
    %c0_122 = arith.constant 0 : index
    %175 = vector.load %arg6[%c0_120, %c0_121, %c0_122] : memref<9x3x14xf32, #tpu.memory_space<vmem>>, vector<1x3x14xf32>
    %176 = vector.shape_cast %175 : vector<1x3x14xf32> to vector<3x14xf32>
    %cst_123 = arith.constant dense<0.000000e+00> : vector<3x256xf32>
    %177 = tpu.matmul %176, %174, %cst_123 {dimension_numbers = #tpu.dot_dimension_numbers<[1], [0], [0], [1], [0, 0, 1, 1], [], []>} : vector<3x14xf32>, vector<14x256xf32>, vector<3x256xf32> -> vector<3x256xf32>
    %c0_124 = arith.constant 0 : index
    %c0_125 = arith.constant 0 : index
    %c0_126 = arith.constant 0 : index
    %178 = vector.load %arg2[%c0_124, %c0_125, %c0_126] : memref<9x1x256xf32, #tpu.memory_space<vmem>>, vector<1x1x256xf32>
    %179 = vector.shape_cast %178 : vector<1x1x256xf32> to vector<1x256xf32>
    %180 = vector.broadcast %179 : vector<1x256xf32> to vector<3x256xf32>
    %181 = arith.mulf %177, %180 : vector<3x256xf32>
    %182 = arith.addf %173, %181 : vector<3x256xf32>
    %c16_i32_127 = arith.constant 16 : i32
    %183 = tpu.dynamic_rotate %172 by %c16_i32_127 dim 1 : vector<14x256xf32>, i32 -> vector<14x256xf32>
    %c1_128 = arith.constant 1 : index
    %c0_129 = arith.constant 0 : index
    %c0_130 = arith.constant 0 : index
    %184 = vector.load %arg6[%c1_128, %c0_129, %c0_130] : memref<9x3x14xf32, #tpu.memory_space<vmem>>, vector<1x3x14xf32>
    %185 = vector.shape_cast %184 : vector<1x3x14xf32> to vector<3x14xf32>
    %cst_131 = arith.constant dense<0.000000e+00> : vector<3x256xf32>
    %186 = tpu.matmul %185, %183, %cst_131 {dimension_numbers = #tpu.dot_dimension_numbers<[1], [0], [0], [1], [0, 0, 1, 1], [], []>} : vector<3x14xf32>, vector<14x256xf32>, vector<3x256xf32> -> vector<3x256xf32>
    %c1_132 = arith.constant 1 : index
    %c0_133 = arith.constant 0 : index
    %c0_134 = arith.constant 0 : index
    %187 = vector.load %arg2[%c1_132, %c0_133, %c0_134] : memref<9x1x256xf32, #tpu.memory_space<vmem>>, vector<1x1x256xf32>
    %188 = vector.shape_cast %187 : vector<1x1x256xf32> to vector<1x256xf32>
    %189 = vector.broadcast %188 : vector<1x256xf32> to vector<3x256xf32>
    %190 = arith.mulf %186, %189 : vector<3x256xf32>
    %191 = arith.addf %182, %190 : vector<3x256xf32>
    %c15_i32_135 = arith.constant 15 : i32
    %192 = tpu.dynamic_rotate %172 by %c15_i32_135 dim 1 : vector<14x256xf32>, i32 -> vector<14x256xf32>
    %c2_136 = arith.constant 2 : index
    %c0_137 = arith.constant 0 : index
    %c0_138 = arith.constant 0 : index
    %193 = vector.load %arg6[%c2_136, %c0_137, %c0_138] : memref<9x3x14xf32, #tpu.memory_space<vmem>>, vector<1x3x14xf32>
    %194 = vector.shape_cast %193 : vector<1x3x14xf32> to vector<3x14xf32>
    %cst_139 = arith.constant dense<0.000000e+00> : vector<3x256xf32>
    %195 = tpu.matmul %194, %192, %cst_139 {dimension_numbers = #tpu.dot_dimension_numbers<[1], [0], [0], [1], [0, 0, 1, 1], [], []>} : vector<3x14xf32>, vector<14x256xf32>, vector<3x256xf32> -> vector<3x256xf32>
    %c2_140 = arith.constant 2 : index
    %c0_141 = arith.constant 0 : index
    %c0_142 = arith.constant 0 : index
    %196 = vector.load %arg2[%c2_140, %c0_141, %c0_142] : memref<9x1x256xf32, #tpu.memory_space<vmem>>, vector<1x1x256xf32>
    %197 = vector.shape_cast %196 : vector<1x1x256xf32> to vector<1x256xf32>
    %198 = vector.broadcast %197 : vector<1x256xf32> to vector<3x256xf32>
    %199 = arith.mulf %195, %198 : vector<3x256xf32>
    %200 = arith.addf %191, %199 : vector<3x256xf32>
    %c1_i32_143 = arith.constant 1 : i32
    %201 = tpu.dynamic_rotate %172 by %c1_i32_143 dim 1 : vector<14x256xf32>, i32 -> vector<14x256xf32>
    %c3_144 = arith.constant 3 : index
    %c0_145 = arith.constant 0 : index
    %c0_146 = arith.constant 0 : index
    %202 = vector.load %arg6[%c3_144, %c0_145, %c0_146] : memref<9x3x14xf32, #tpu.memory_space<vmem>>, vector<1x3x14xf32>
    %203 = vector.shape_cast %202 : vector<1x3x14xf32> to vector<3x14xf32>
    %cst_147 = arith.constant dense<0.000000e+00> : vector<3x256xf32>
    %204 = tpu.matmul %203, %201, %cst_147 {dimension_numbers = #tpu.dot_dimension_numbers<[1], [0], [0], [1], [0, 0, 1, 1], [], []>} : vector<3x14xf32>, vector<14x256xf32>, vector<3x256xf32> -> vector<3x256xf32>
    %c3_148 = arith.constant 3 : index
    %c0_149 = arith.constant 0 : index
    %c0_150 = arith.constant 0 : index
    %205 = vector.load %arg2[%c3_148, %c0_149, %c0_150] : memref<9x1x256xf32, #tpu.memory_space<vmem>>, vector<1x1x256xf32>
    %206 = vector.shape_cast %205 : vector<1x1x256xf32> to vector<1x256xf32>
    %207 = vector.broadcast %206 : vector<1x256xf32> to vector<3x256xf32>
    %208 = arith.mulf %204, %207 : vector<3x256xf32>
    %209 = arith.addf %200, %208 : vector<3x256xf32>
    %c4_151 = arith.constant 4 : index
    %c0_152 = arith.constant 0 : index
    %c0_153 = arith.constant 0 : index
    %210 = vector.load %arg6[%c4_151, %c0_152, %c0_153] : memref<9x3x14xf32, #tpu.memory_space<vmem>>, vector<1x3x14xf32>
    %211 = vector.shape_cast %210 : vector<1x3x14xf32> to vector<3x14xf32>
    %cst_154 = arith.constant dense<0.000000e+00> : vector<3x256xf32>
    %212 = tpu.matmul %211, %172, %cst_154 {dimension_numbers = #tpu.dot_dimension_numbers<[1], [0], [0], [1], [0, 0, 1, 1], [], []>} : vector<3x14xf32>, vector<14x256xf32>, vector<3x256xf32> -> vector<3x256xf32>
    %213 = arith.addf %209, %212 : vector<3x256xf32>
    %c255_i32_155 = arith.constant 255 : i32
    %214 = tpu.dynamic_rotate %172 by %c255_i32_155 dim 1 : vector<14x256xf32>, i32 -> vector<14x256xf32>
    %c5_156 = arith.constant 5 : index
    %c0_157 = arith.constant 0 : index
    %c0_158 = arith.constant 0 : index
    %215 = vector.load %arg6[%c5_156, %c0_157, %c0_158] : memref<9x3x14xf32, #tpu.memory_space<vmem>>, vector<1x3x14xf32>
    %216 = vector.shape_cast %215 : vector<1x3x14xf32> to vector<3x14xf32>
    %cst_159 = arith.constant dense<0.000000e+00> : vector<3x256xf32>
    %217 = tpu.matmul %216, %214, %cst_159 {dimension_numbers = #tpu.dot_dimension_numbers<[1], [0], [0], [1], [0, 0, 1, 1], [], []>} : vector<3x14xf32>, vector<14x256xf32>, vector<3x256xf32> -> vector<3x256xf32>
    %c5_160 = arith.constant 5 : index
    %c0_161 = arith.constant 0 : index
    %c0_162 = arith.constant 0 : index
    %218 = vector.load %arg2[%c5_160, %c0_161, %c0_162] : memref<9x1x256xf32, #tpu.memory_space<vmem>>, vector<1x1x256xf32>
    %219 = vector.shape_cast %218 : vector<1x1x256xf32> to vector<1x256xf32>
    %220 = vector.broadcast %219 : vector<1x256xf32> to vector<3x256xf32>
    %221 = arith.mulf %217, %220 : vector<3x256xf32>
    %222 = arith.addf %213, %221 : vector<3x256xf32>
    %c241_i32_163 = arith.constant 241 : i32
    %223 = tpu.dynamic_rotate %172 by %c241_i32_163 dim 1 : vector<14x256xf32>, i32 -> vector<14x256xf32>
    %c6_164 = arith.constant 6 : index
    %c0_165 = arith.constant 0 : index
    %c0_166 = arith.constant 0 : index
    %224 = vector.load %arg6[%c6_164, %c0_165, %c0_166] : memref<9x3x14xf32, #tpu.memory_space<vmem>>, vector<1x3x14xf32>
    %225 = vector.shape_cast %224 : vector<1x3x14xf32> to vector<3x14xf32>
    %cst_167 = arith.constant dense<0.000000e+00> : vector<3x256xf32>
    %226 = tpu.matmul %225, %223, %cst_167 {dimension_numbers = #tpu.dot_dimension_numbers<[1], [0], [0], [1], [0, 0, 1, 1], [], []>} : vector<3x14xf32>, vector<14x256xf32>, vector<3x256xf32> -> vector<3x256xf32>
    %c6_168 = arith.constant 6 : index
    %c0_169 = arith.constant 0 : index
    %c0_170 = arith.constant 0 : index
    %227 = vector.load %arg2[%c6_168, %c0_169, %c0_170] : memref<9x1x256xf32, #tpu.memory_space<vmem>>, vector<1x1x256xf32>
    %228 = vector.shape_cast %227 : vector<1x1x256xf32> to vector<1x256xf32>
    %229 = vector.broadcast %228 : vector<1x256xf32> to vector<3x256xf32>
    %230 = arith.mulf %226, %229 : vector<3x256xf32>
    %231 = arith.addf %222, %230 : vector<3x256xf32>
    %c240_i32_171 = arith.constant 240 : i32
    %232 = tpu.dynamic_rotate %172 by %c240_i32_171 dim 1 : vector<14x256xf32>, i32 -> vector<14x256xf32>
    %c7_172 = arith.constant 7 : index
    %c0_173 = arith.constant 0 : index
    %c0_174 = arith.constant 0 : index
    %233 = vector.load %arg6[%c7_172, %c0_173, %c0_174] : memref<9x3x14xf32, #tpu.memory_space<vmem>>, vector<1x3x14xf32>
    %234 = vector.shape_cast %233 : vector<1x3x14xf32> to vector<3x14xf32>
    %cst_175 = arith.constant dense<0.000000e+00> : vector<3x256xf32>
    %235 = tpu.matmul %234, %232, %cst_175 {dimension_numbers = #tpu.dot_dimension_numbers<[1], [0], [0], [1], [0, 0, 1, 1], [], []>} : vector<3x14xf32>, vector<14x256xf32>, vector<3x256xf32> -> vector<3x256xf32>
    %c7_176 = arith.constant 7 : index
    %c0_177 = arith.constant 0 : index
    %c0_178 = arith.constant 0 : index
    %236 = vector.load %arg2[%c7_176, %c0_177, %c0_178] : memref<9x1x256xf32, #tpu.memory_space<vmem>>, vector<1x1x256xf32>
    %237 = vector.shape_cast %236 : vector<1x1x256xf32> to vector<1x256xf32>
    %238 = vector.broadcast %237 : vector<1x256xf32> to vector<3x256xf32>
    %239 = arith.mulf %235, %238 : vector<3x256xf32>
    %240 = arith.addf %231, %239 : vector<3x256xf32>
    %c239_i32_179 = arith.constant 239 : i32
    %241 = tpu.dynamic_rotate %172 by %c239_i32_179 dim 1 : vector<14x256xf32>, i32 -> vector<14x256xf32>
    %c8_180 = arith.constant 8 : index
    %c0_181 = arith.constant 0 : index
    %c0_182 = arith.constant 0 : index
    %242 = vector.load %arg6[%c8_180, %c0_181, %c0_182] : memref<9x3x14xf32, #tpu.memory_space<vmem>>, vector<1x3x14xf32>
    %243 = vector.shape_cast %242 : vector<1x3x14xf32> to vector<3x14xf32>
    %cst_183 = arith.constant dense<0.000000e+00> : vector<3x256xf32>
    %244 = tpu.matmul %243, %241, %cst_183 {dimension_numbers = #tpu.dot_dimension_numbers<[1], [0], [0], [1], [0, 0, 1, 1], [], []>} : vector<3x14xf32>, vector<14x256xf32>, vector<3x256xf32> -> vector<3x256xf32>
    %c8_184 = arith.constant 8 : index
    %c0_185 = arith.constant 0 : index
    %c0_186 = arith.constant 0 : index
    %245 = vector.load %arg2[%c8_184, %c0_185, %c0_186] : memref<9x1x256xf32, #tpu.memory_space<vmem>>, vector<1x1x256xf32>
    %246 = vector.shape_cast %245 : vector<1x1x256xf32> to vector<1x256xf32>
    %247 = vector.broadcast %246 : vector<1x256xf32> to vector<3x256xf32>
    %248 = arith.mulf %244, %247 : vector<3x256xf32>
    %249 = arith.addf %240, %248 : vector<3x256xf32>
    %c0_187 = arith.constant 0 : index
    %c0_188 = arith.constant 0 : index
    %250 = vector.load %arg7[%c0_187, %c0_188] : memref<3x1xf32, #tpu.memory_space<vmem>>, vector<3x1xf32>
    %251 = vector.broadcast %250 : vector<3x1xf32> to vector<3x256xf32>
    %252 = arith.addf %249, %251 : vector<3x256xf32>
    %cst_189 = arith.constant 0.000000e+00 : f32
    %253 = vector.broadcast %cst_189 : f32 to vector<3x256xf32>
    %254 = arith.maximumf %252, %253 : vector<3x256xf32>
    %cst_190 = arith.constant 0.000000e+00 : f32
    %255 = vector.broadcast %cst_190 : f32 to vector<6x256xf32>
    %c17_i32_191 = arith.constant 17 : i32
    %256 = tpu.dynamic_rotate %254 by %c17_i32_191 dim 1 : vector<3x256xf32>, i32 -> vector<3x256xf32>
    %c0_192 = arith.constant 0 : index
    %c0_193 = arith.constant 0 : index
    %c0_194 = arith.constant 0 : index
    %257 = vector.load %arg2[%c0_192, %c0_193, %c0_194] : memref<9x1x256xf32, #tpu.memory_space<vmem>>, vector<1x1x256xf32>
    %258 = vector.shape_cast %257 : vector<1x1x256xf32> to vector<1x256xf32>
    %259 = vector.broadcast %258 : vector<1x256xf32> to vector<3x256xf32>
    %260 = arith.mulf %256, %259 : vector<3x256xf32>
    %c0_195 = arith.constant 0 : index
    %c0_196 = arith.constant 0 : index
    %c0_197 = arith.constant 0 : index
    %261 = vector.load %arg8[%c0_195, %c0_196, %c0_197] : memref<9x6x3xf32, #tpu.memory_space<vmem>>, vector<1x6x3xf32>
    %262 = vector.shape_cast %261 : vector<1x6x3xf32> to vector<6x3xf32>
    %cst_198 = arith.constant dense<0.000000e+00> : vector<6x256xf32>
    %263 = tpu.matmul %262, %260, %cst_198 {dimension_numbers = #tpu.dot_dimension_numbers<[1], [0], [0], [1], [0, 0, 1, 1], [], []>} : vector<6x3xf32>, vector<3x256xf32>, vector<6x256xf32> -> vector<6x256xf32>
    %264 = arith.addf %255, %263 : vector<6x256xf32>
    %c16_i32_199 = arith.constant 16 : i32
    %265 = tpu.dynamic_rotate %254 by %c16_i32_199 dim 1 : vector<3x256xf32>, i32 -> vector<3x256xf32>
    %c1_200 = arith.constant 1 : index
    %c0_201 = arith.constant 0 : index
    %c0_202 = arith.constant 0 : index
    %266 = vector.load %arg2[%c1_200, %c0_201, %c0_202] : memref<9x1x256xf32, #tpu.memory_space<vmem>>, vector<1x1x256xf32>
    %267 = vector.shape_cast %266 : vector<1x1x256xf32> to vector<1x256xf32>
    %268 = vector.broadcast %267 : vector<1x256xf32> to vector<3x256xf32>
    %269 = arith.mulf %265, %268 : vector<3x256xf32>
    %c1_203 = arith.constant 1 : index
    %c0_204 = arith.constant 0 : index
    %c0_205 = arith.constant 0 : index
    %270 = vector.load %arg8[%c1_203, %c0_204, %c0_205] : memref<9x6x3xf32, #tpu.memory_space<vmem>>, vector<1x6x3xf32>
    %271 = vector.shape_cast %270 : vector<1x6x3xf32> to vector<6x3xf32>
    %cst_206 = arith.constant dense<0.000000e+00> : vector<6x256xf32>
    %272 = tpu.matmul %271, %269, %cst_206 {dimension_numbers = #tpu.dot_dimension_numbers<[1], [0], [0], [1], [0, 0, 1, 1], [], []>} : vector<6x3xf32>, vector<3x256xf32>, vector<6x256xf32> -> vector<6x256xf32>
    %273 = arith.addf %264, %272 : vector<6x256xf32>
    %c15_i32_207 = arith.constant 15 : i32
    %274 = tpu.dynamic_rotate %254 by %c15_i32_207 dim 1 : vector<3x256xf32>, i32 -> vector<3x256xf32>
    %c2_208 = arith.constant 2 : index
    %c0_209 = arith.constant 0 : index
    %c0_210 = arith.constant 0 : index
    %275 = vector.load %arg2[%c2_208, %c0_209, %c0_210] : memref<9x1x256xf32, #tpu.memory_space<vmem>>, vector<1x1x256xf32>
    %276 = vector.shape_cast %275 : vector<1x1x256xf32> to vector<1x256xf32>
    %277 = vector.broadcast %276 : vector<1x256xf32> to vector<3x256xf32>
    %278 = arith.mulf %274, %277 : vector<3x256xf32>
    %c2_211 = arith.constant 2 : index
    %c0_212 = arith.constant 0 : index
    %c0_213 = arith.constant 0 : index
    %279 = vector.load %arg8[%c2_211, %c0_212, %c0_213] : memref<9x6x3xf32, #tpu.memory_space<vmem>>, vector<1x6x3xf32>
    %280 = vector.shape_cast %279 : vector<1x6x3xf32> to vector<6x3xf32>
    %cst_214 = arith.constant dense<0.000000e+00> : vector<6x256xf32>
    %281 = tpu.matmul %280, %278, %cst_214 {dimension_numbers = #tpu.dot_dimension_numbers<[1], [0], [0], [1], [0, 0, 1, 1], [], []>} : vector<6x3xf32>, vector<3x256xf32>, vector<6x256xf32> -> vector<6x256xf32>
    %282 = arith.addf %273, %281 : vector<6x256xf32>
    %c1_i32_215 = arith.constant 1 : i32
    %283 = tpu.dynamic_rotate %254 by %c1_i32_215 dim 1 : vector<3x256xf32>, i32 -> vector<3x256xf32>
    %c3_216 = arith.constant 3 : index
    %c0_217 = arith.constant 0 : index
    %c0_218 = arith.constant 0 : index
    %284 = vector.load %arg2[%c3_216, %c0_217, %c0_218] : memref<9x1x256xf32, #tpu.memory_space<vmem>>, vector<1x1x256xf32>
    %285 = vector.shape_cast %284 : vector<1x1x256xf32> to vector<1x256xf32>
    %286 = vector.broadcast %285 : vector<1x256xf32> to vector<3x256xf32>
    %287 = arith.mulf %283, %286 : vector<3x256xf32>
    %c3_219 = arith.constant 3 : index
    %c0_220 = arith.constant 0 : index
    %c0_221 = arith.constant 0 : index
    %288 = vector.load %arg8[%c3_219, %c0_220, %c0_221] : memref<9x6x3xf32, #tpu.memory_space<vmem>>, vector<1x6x3xf32>
    %289 = vector.shape_cast %288 : vector<1x6x3xf32> to vector<6x3xf32>
    %cst_222 = arith.constant dense<0.000000e+00> : vector<6x256xf32>
    %290 = tpu.matmul %289, %287, %cst_222 {dimension_numbers = #tpu.dot_dimension_numbers<[1], [0], [0], [1], [0, 0, 1, 1], [], []>} : vector<6x3xf32>, vector<3x256xf32>, vector<6x256xf32> -> vector<6x256xf32>
    %291 = arith.addf %282, %290 : vector<6x256xf32>
    %c4_223 = arith.constant 4 : index
    %c0_224 = arith.constant 0 : index
    %c0_225 = arith.constant 0 : index
    %292 = vector.load %arg8[%c4_223, %c0_224, %c0_225] : memref<9x6x3xf32, #tpu.memory_space<vmem>>, vector<1x6x3xf32>
    %293 = vector.shape_cast %292 : vector<1x6x3xf32> to vector<6x3xf32>
    %cst_226 = arith.constant dense<0.000000e+00> : vector<6x256xf32>
    %294 = tpu.matmul %293, %254, %cst_226 {dimension_numbers = #tpu.dot_dimension_numbers<[1], [0], [0], [1], [0, 0, 1, 1], [], []>} : vector<6x3xf32>, vector<3x256xf32>, vector<6x256xf32> -> vector<6x256xf32>
    %295 = arith.addf %291, %294 : vector<6x256xf32>
    %c255_i32_227 = arith.constant 255 : i32
    %296 = tpu.dynamic_rotate %254 by %c255_i32_227 dim 1 : vector<3x256xf32>, i32 -> vector<3x256xf32>
    %c5_228 = arith.constant 5 : index
    %c0_229 = arith.constant 0 : index
    %c0_230 = arith.constant 0 : index
    %297 = vector.load %arg2[%c5_228, %c0_229, %c0_230] : memref<9x1x256xf32, #tpu.memory_space<vmem>>, vector<1x1x256xf32>
    %298 = vector.shape_cast %297 : vector<1x1x256xf32> to vector<1x256xf32>
    %299 = vector.broadcast %298 : vector<1x256xf32> to vector<3x256xf32>
    %300 = arith.mulf %296, %299 : vector<3x256xf32>
    %c5_231 = arith.constant 5 : index
    %c0_232 = arith.constant 0 : index
    %c0_233 = arith.constant 0 : index
    %301 = vector.load %arg8[%c5_231, %c0_232, %c0_233] : memref<9x6x3xf32, #tpu.memory_space<vmem>>, vector<1x6x3xf32>
    %302 = vector.shape_cast %301 : vector<1x6x3xf32> to vector<6x3xf32>
    %cst_234 = arith.constant dense<0.000000e+00> : vector<6x256xf32>
    %303 = tpu.matmul %302, %300, %cst_234 {dimension_numbers = #tpu.dot_dimension_numbers<[1], [0], [0], [1], [0, 0, 1, 1], [], []>} : vector<6x3xf32>, vector<3x256xf32>, vector<6x256xf32> -> vector<6x256xf32>
    %304 = arith.addf %295, %303 : vector<6x256xf32>
    %c241_i32_235 = arith.constant 241 : i32
    %305 = tpu.dynamic_rotate %254 by %c241_i32_235 dim 1 : vector<3x256xf32>, i32 -> vector<3x256xf32>
    %c6_236 = arith.constant 6 : index
    %c0_237 = arith.constant 0 : index
    %c0_238 = arith.constant 0 : index
    %306 = vector.load %arg2[%c6_236, %c0_237, %c0_238] : memref<9x1x256xf32, #tpu.memory_space<vmem>>, vector<1x1x256xf32>
    %307 = vector.shape_cast %306 : vector<1x1x256xf32> to vector<1x256xf32>
    %308 = vector.broadcast %307 : vector<1x256xf32> to vector<3x256xf32>
    %309 = arith.mulf %305, %308 : vector<3x256xf32>
    %c6_239 = arith.constant 6 : index
    %c0_240 = arith.constant 0 : index
    %c0_241 = arith.constant 0 : index
    %310 = vector.load %arg8[%c6_239, %c0_240, %c0_241] : memref<9x6x3xf32, #tpu.memory_space<vmem>>, vector<1x6x3xf32>
    %311 = vector.shape_cast %310 : vector<1x6x3xf32> to vector<6x3xf32>
    %cst_242 = arith.constant dense<0.000000e+00> : vector<6x256xf32>
    %312 = tpu.matmul %311, %309, %cst_242 {dimension_numbers = #tpu.dot_dimension_numbers<[1], [0], [0], [1], [0, 0, 1, 1], [], []>} : vector<6x3xf32>, vector<3x256xf32>, vector<6x256xf32> -> vector<6x256xf32>
    %313 = arith.addf %304, %312 : vector<6x256xf32>
    %c240_i32_243 = arith.constant 240 : i32
    %314 = tpu.dynamic_rotate %254 by %c240_i32_243 dim 1 : vector<3x256xf32>, i32 -> vector<3x256xf32>
    %c7_244 = arith.constant 7 : index
    %c0_245 = arith.constant 0 : index
    %c0_246 = arith.constant 0 : index
    %315 = vector.load %arg2[%c7_244, %c0_245, %c0_246] : memref<9x1x256xf32, #tpu.memory_space<vmem>>, vector<1x1x256xf32>
    %316 = vector.shape_cast %315 : vector<1x1x256xf32> to vector<1x256xf32>
    %317 = vector.broadcast %316 : vector<1x256xf32> to vector<3x256xf32>
    %318 = arith.mulf %314, %317 : vector<3x256xf32>
    %c7_247 = arith.constant 7 : index
    %c0_248 = arith.constant 0 : index
    %c0_249 = arith.constant 0 : index
    %319 = vector.load %arg8[%c7_247, %c0_248, %c0_249] : memref<9x6x3xf32, #tpu.memory_space<vmem>>, vector<1x6x3xf32>
    %320 = vector.shape_cast %319 : vector<1x6x3xf32> to vector<6x3xf32>
    %cst_250 = arith.constant dense<0.000000e+00> : vector<6x256xf32>
    %321 = tpu.matmul %320, %318, %cst_250 {dimension_numbers = #tpu.dot_dimension_numbers<[1], [0], [0], [1], [0, 0, 1, 1], [], []>} : vector<6x3xf32>, vector<3x256xf32>, vector<6x256xf32> -> vector<6x256xf32>
    %322 = arith.addf %313, %321 : vector<6x256xf32>
    %c239_i32_251 = arith.constant 239 : i32
    %323 = tpu.dynamic_rotate %254 by %c239_i32_251 dim 1 : vector<3x256xf32>, i32 -> vector<3x256xf32>
    %c8_252 = arith.constant 8 : index
    %c0_253 = arith.constant 0 : index
    %c0_254 = arith.constant 0 : index
    %324 = vector.load %arg2[%c8_252, %c0_253, %c0_254] : memref<9x1x256xf32, #tpu.memory_space<vmem>>, vector<1x1x256xf32>
    %325 = vector.shape_cast %324 : vector<1x1x256xf32> to vector<1x256xf32>
    %326 = vector.broadcast %325 : vector<1x256xf32> to vector<3x256xf32>
    %327 = arith.mulf %323, %326 : vector<3x256xf32>
    %c8_255 = arith.constant 8 : index
    %c0_256 = arith.constant 0 : index
    %c0_257 = arith.constant 0 : index
    %328 = vector.load %arg8[%c8_255, %c0_256, %c0_257] : memref<9x6x3xf32, #tpu.memory_space<vmem>>, vector<1x6x3xf32>
    %329 = vector.shape_cast %328 : vector<1x6x3xf32> to vector<6x3xf32>
    %cst_258 = arith.constant dense<0.000000e+00> : vector<6x256xf32>
    %330 = tpu.matmul %329, %327, %cst_258 {dimension_numbers = #tpu.dot_dimension_numbers<[1], [0], [0], [1], [0, 0, 1, 1], [], []>} : vector<6x3xf32>, vector<3x256xf32>, vector<6x256xf32> -> vector<6x256xf32>
    %331 = arith.addf %322, %330 : vector<6x256xf32>
    %c0_259 = arith.constant 0 : index
    %c0_260 = arith.constant 0 : index
    %332 = vector.load %arg9[%c0_259, %c0_260] : memref<6x1xf32, #tpu.memory_space<vmem>>, vector<6x1xf32>
    %333 = vector.broadcast %332 : vector<6x1xf32> to vector<6x256xf32>
    %334 = arith.addf %331, %333 : vector<6x256xf32>
    %cst_261 = arith.constant 0.000000e+00 : f32
    %335 = vector.broadcast %cst_261 : f32 to vector<6x256xf32>
    %336 = arith.maximumf %334, %335 : vector<6x256xf32>
    %cst_262 = arith.constant 0.000000e+00 : f32
    %337 = vector.broadcast %cst_262 : f32 to vector<7x256xf32>
    %c17_i32_263 = arith.constant 17 : i32
    %338 = tpu.dynamic_rotate %336 by %c17_i32_263 dim 1 : vector<6x256xf32>, i32 -> vector<6x256xf32>
    %c0_264 = arith.constant 0 : index
    %c0_265 = arith.constant 0 : index
    %c0_266 = arith.constant 0 : index
    %339 = vector.load %arg2[%c0_264, %c0_265, %c0_266] : memref<9x1x256xf32, #tpu.memory_space<vmem>>, vector<1x1x256xf32>
    %340 = vector.shape_cast %339 : vector<1x1x256xf32> to vector<1x256xf32>
    %341 = vector.broadcast %340 : vector<1x256xf32> to vector<6x256xf32>
    %342 = arith.mulf %338, %341 : vector<6x256xf32>
    %c0_267 = arith.constant 0 : index
    %c0_268 = arith.constant 0 : index
    %c0_269 = arith.constant 0 : index
    %343 = vector.load %arg10[%c0_267, %c0_268, %c0_269] : memref<9x7x6xf32, #tpu.memory_space<vmem>>, vector<1x7x6xf32>
    %344 = vector.shape_cast %343 : vector<1x7x6xf32> to vector<7x6xf32>
    %cst_270 = arith.constant dense<0.000000e+00> : vector<7x256xf32>
    %345 = tpu.matmul %344, %342, %cst_270 {dimension_numbers = #tpu.dot_dimension_numbers<[1], [0], [0], [1], [0, 0, 1, 1], [], []>} : vector<7x6xf32>, vector<6x256xf32>, vector<7x256xf32> -> vector<7x256xf32>
    %346 = arith.addf %337, %345 : vector<7x256xf32>
    %c16_i32_271 = arith.constant 16 : i32
    %347 = tpu.dynamic_rotate %336 by %c16_i32_271 dim 1 : vector<6x256xf32>, i32 -> vector<6x256xf32>
    %c1_272 = arith.constant 1 : index
    %c0_273 = arith.constant 0 : index
    %c0_274 = arith.constant 0 : index
    %348 = vector.load %arg2[%c1_272, %c0_273, %c0_274] : memref<9x1x256xf32, #tpu.memory_space<vmem>>, vector<1x1x256xf32>
    %349 = vector.shape_cast %348 : vector<1x1x256xf32> to vector<1x256xf32>
    %350 = vector.broadcast %349 : vector<1x256xf32> to vector<6x256xf32>
    %351 = arith.mulf %347, %350 : vector<6x256xf32>
    %c1_275 = arith.constant 1 : index
    %c0_276 = arith.constant 0 : index
    %c0_277 = arith.constant 0 : index
    %352 = vector.load %arg10[%c1_275, %c0_276, %c0_277] : memref<9x7x6xf32, #tpu.memory_space<vmem>>, vector<1x7x6xf32>
    %353 = vector.shape_cast %352 : vector<1x7x6xf32> to vector<7x6xf32>
    %cst_278 = arith.constant dense<0.000000e+00> : vector<7x256xf32>
    %354 = tpu.matmul %353, %351, %cst_278 {dimension_numbers = #tpu.dot_dimension_numbers<[1], [0], [0], [1], [0, 0, 1, 1], [], []>} : vector<7x6xf32>, vector<6x256xf32>, vector<7x256xf32> -> vector<7x256xf32>
    %355 = arith.addf %346, %354 : vector<7x256xf32>
    %c15_i32_279 = arith.constant 15 : i32
    %356 = tpu.dynamic_rotate %336 by %c15_i32_279 dim 1 : vector<6x256xf32>, i32 -> vector<6x256xf32>
    %c2_280 = arith.constant 2 : index
    %c0_281 = arith.constant 0 : index
    %c0_282 = arith.constant 0 : index
    %357 = vector.load %arg2[%c2_280, %c0_281, %c0_282] : memref<9x1x256xf32, #tpu.memory_space<vmem>>, vector<1x1x256xf32>
    %358 = vector.shape_cast %357 : vector<1x1x256xf32> to vector<1x256xf32>
    %359 = vector.broadcast %358 : vector<1x256xf32> to vector<6x256xf32>
    %360 = arith.mulf %356, %359 : vector<6x256xf32>
    %c2_283 = arith.constant 2 : index
    %c0_284 = arith.constant 0 : index
    %c0_285 = arith.constant 0 : index
    %361 = vector.load %arg10[%c2_283, %c0_284, %c0_285] : memref<9x7x6xf32, #tpu.memory_space<vmem>>, vector<1x7x6xf32>
    %362 = vector.shape_cast %361 : vector<1x7x6xf32> to vector<7x6xf32>
    %cst_286 = arith.constant dense<0.000000e+00> : vector<7x256xf32>
    %363 = tpu.matmul %362, %360, %cst_286 {dimension_numbers = #tpu.dot_dimension_numbers<[1], [0], [0], [1], [0, 0, 1, 1], [], []>} : vector<7x6xf32>, vector<6x256xf32>, vector<7x256xf32> -> vector<7x256xf32>
    %364 = arith.addf %355, %363 : vector<7x256xf32>
    %c1_i32_287 = arith.constant 1 : i32
    %365 = tpu.dynamic_rotate %336 by %c1_i32_287 dim 1 : vector<6x256xf32>, i32 -> vector<6x256xf32>
    %c3_288 = arith.constant 3 : index
    %c0_289 = arith.constant 0 : index
    %c0_290 = arith.constant 0 : index
    %366 = vector.load %arg2[%c3_288, %c0_289, %c0_290] : memref<9x1x256xf32, #tpu.memory_space<vmem>>, vector<1x1x256xf32>
    %367 = vector.shape_cast %366 : vector<1x1x256xf32> to vector<1x256xf32>
    %368 = vector.broadcast %367 : vector<1x256xf32> to vector<6x256xf32>
    %369 = arith.mulf %365, %368 : vector<6x256xf32>
    %c3_291 = arith.constant 3 : index
    %c0_292 = arith.constant 0 : index
    %c0_293 = arith.constant 0 : index
    %370 = vector.load %arg10[%c3_291, %c0_292, %c0_293] : memref<9x7x6xf32, #tpu.memory_space<vmem>>, vector<1x7x6xf32>
    %371 = vector.shape_cast %370 : vector<1x7x6xf32> to vector<7x6xf32>
    %cst_294 = arith.constant dense<0.000000e+00> : vector<7x256xf32>
    %372 = tpu.matmul %371, %369, %cst_294 {dimension_numbers = #tpu.dot_dimension_numbers<[1], [0], [0], [1], [0, 0, 1, 1], [], []>} : vector<7x6xf32>, vector<6x256xf32>, vector<7x256xf32> -> vector<7x256xf32>
    %373 = arith.addf %364, %372 : vector<7x256xf32>
    %c4_295 = arith.constant 4 : index
    %c0_296 = arith.constant 0 : index
    %c0_297 = arith.constant 0 : index
    %374 = vector.load %arg10[%c4_295, %c0_296, %c0_297] : memref<9x7x6xf32, #tpu.memory_space<vmem>>, vector<1x7x6xf32>
    %375 = vector.shape_cast %374 : vector<1x7x6xf32> to vector<7x6xf32>
    %cst_298 = arith.constant dense<0.000000e+00> : vector<7x256xf32>
    %376 = tpu.matmul %375, %336, %cst_298 {dimension_numbers = #tpu.dot_dimension_numbers<[1], [0], [0], [1], [0, 0, 1, 1], [], []>} : vector<7x6xf32>, vector<6x256xf32>, vector<7x256xf32> -> vector<7x256xf32>
    %377 = arith.addf %373, %376 : vector<7x256xf32>
    %c255_i32_299 = arith.constant 255 : i32
    %378 = tpu.dynamic_rotate %336 by %c255_i32_299 dim 1 : vector<6x256xf32>, i32 -> vector<6x256xf32>
    %c5_300 = arith.constant 5 : index
    %c0_301 = arith.constant 0 : index
    %c0_302 = arith.constant 0 : index
    %379 = vector.load %arg2[%c5_300, %c0_301, %c0_302] : memref<9x1x256xf32, #tpu.memory_space<vmem>>, vector<1x1x256xf32>
    %380 = vector.shape_cast %379 : vector<1x1x256xf32> to vector<1x256xf32>
    %381 = vector.broadcast %380 : vector<1x256xf32> to vector<6x256xf32>
    %382 = arith.mulf %378, %381 : vector<6x256xf32>
    %c5_303 = arith.constant 5 : index
    %c0_304 = arith.constant 0 : index
    %c0_305 = arith.constant 0 : index
    %383 = vector.load %arg10[%c5_303, %c0_304, %c0_305] : memref<9x7x6xf32, #tpu.memory_space<vmem>>, vector<1x7x6xf32>
    %384 = vector.shape_cast %383 : vector<1x7x6xf32> to vector<7x6xf32>
    %cst_306 = arith.constant dense<0.000000e+00> : vector<7x256xf32>
    %385 = tpu.matmul %384, %382, %cst_306 {dimension_numbers = #tpu.dot_dimension_numbers<[1], [0], [0], [1], [0, 0, 1, 1], [], []>} : vector<7x6xf32>, vector<6x256xf32>, vector<7x256xf32> -> vector<7x256xf32>
    %386 = arith.addf %377, %385 : vector<7x256xf32>
    %c241_i32_307 = arith.constant 241 : i32
    %387 = tpu.dynamic_rotate %336 by %c241_i32_307 dim 1 : vector<6x256xf32>, i32 -> vector<6x256xf32>
    %c6_308 = arith.constant 6 : index
    %c0_309 = arith.constant 0 : index
    %c0_310 = arith.constant 0 : index
    %388 = vector.load %arg2[%c6_308, %c0_309, %c0_310] : memref<9x1x256xf32, #tpu.memory_space<vmem>>, vector<1x1x256xf32>
    %389 = vector.shape_cast %388 : vector<1x1x256xf32> to vector<1x256xf32>
    %390 = vector.broadcast %389 : vector<1x256xf32> to vector<6x256xf32>
    %391 = arith.mulf %387, %390 : vector<6x256xf32>
    %c6_311 = arith.constant 6 : index
    %c0_312 = arith.constant 0 : index
    %c0_313 = arith.constant 0 : index
    %392 = vector.load %arg10[%c6_311, %c0_312, %c0_313] : memref<9x7x6xf32, #tpu.memory_space<vmem>>, vector<1x7x6xf32>
    %393 = vector.shape_cast %392 : vector<1x7x6xf32> to vector<7x6xf32>
    %cst_314 = arith.constant dense<0.000000e+00> : vector<7x256xf32>
    %394 = tpu.matmul %393, %391, %cst_314 {dimension_numbers = #tpu.dot_dimension_numbers<[1], [0], [0], [1], [0, 0, 1, 1], [], []>} : vector<7x6xf32>, vector<6x256xf32>, vector<7x256xf32> -> vector<7x256xf32>
    %395 = arith.addf %386, %394 : vector<7x256xf32>
    %c240_i32_315 = arith.constant 240 : i32
    %396 = tpu.dynamic_rotate %336 by %c240_i32_315 dim 1 : vector<6x256xf32>, i32 -> vector<6x256xf32>
    %c7_316 = arith.constant 7 : index
    %c0_317 = arith.constant 0 : index
    %c0_318 = arith.constant 0 : index
    %397 = vector.load %arg2[%c7_316, %c0_317, %c0_318] : memref<9x1x256xf32, #tpu.memory_space<vmem>>, vector<1x1x256xf32>
    %398 = vector.shape_cast %397 : vector<1x1x256xf32> to vector<1x256xf32>
    %399 = vector.broadcast %398 : vector<1x256xf32> to vector<6x256xf32>
    %400 = arith.mulf %396, %399 : vector<6x256xf32>
    %c7_319 = arith.constant 7 : index
    %c0_320 = arith.constant 0 : index
    %c0_321 = arith.constant 0 : index
    %401 = vector.load %arg10[%c7_319, %c0_320, %c0_321] : memref<9x7x6xf32, #tpu.memory_space<vmem>>, vector<1x7x6xf32>
    %402 = vector.shape_cast %401 : vector<1x7x6xf32> to vector<7x6xf32>
    %cst_322 = arith.constant dense<0.000000e+00> : vector<7x256xf32>
    %403 = tpu.matmul %402, %400, %cst_322 {dimension_numbers = #tpu.dot_dimension_numbers<[1], [0], [0], [1], [0, 0, 1, 1], [], []>} : vector<7x6xf32>, vector<6x256xf32>, vector<7x256xf32> -> vector<7x256xf32>
    %404 = arith.addf %395, %403 : vector<7x256xf32>
    %c239_i32_323 = arith.constant 239 : i32
    %405 = tpu.dynamic_rotate %336 by %c239_i32_323 dim 1 : vector<6x256xf32>, i32 -> vector<6x256xf32>
    %c8_324 = arith.constant 8 : index
    %c0_325 = arith.constant 0 : index
    %c0_326 = arith.constant 0 : index
    %406 = vector.load %arg2[%c8_324, %c0_325, %c0_326] : memref<9x1x256xf32, #tpu.memory_space<vmem>>, vector<1x1x256xf32>
    %407 = vector.shape_cast %406 : vector<1x1x256xf32> to vector<1x256xf32>
    %408 = vector.broadcast %407 : vector<1x256xf32> to vector<6x256xf32>
    %409 = arith.mulf %405, %408 : vector<6x256xf32>
    %c8_327 = arith.constant 8 : index
    %c0_328 = arith.constant 0 : index
    %c0_329 = arith.constant 0 : index
    %410 = vector.load %arg10[%c8_327, %c0_328, %c0_329] : memref<9x7x6xf32, #tpu.memory_space<vmem>>, vector<1x7x6xf32>
    %411 = vector.shape_cast %410 : vector<1x7x6xf32> to vector<7x6xf32>
    %cst_330 = arith.constant dense<0.000000e+00> : vector<7x256xf32>
    %412 = tpu.matmul %411, %409, %cst_330 {dimension_numbers = #tpu.dot_dimension_numbers<[1], [0], [0], [1], [0, 0, 1, 1], [], []>} : vector<7x6xf32>, vector<6x256xf32>, vector<7x256xf32> -> vector<7x256xf32>
    %413 = arith.addf %404, %412 : vector<7x256xf32>
    %c0_331 = arith.constant 0 : index
    %c0_332 = arith.constant 0 : index
    %414 = vector.load %arg11[%c0_331, %c0_332] : memref<7x1xf32, #tpu.memory_space<vmem>>, vector<7x1xf32>
    %415 = vector.broadcast %414 : vector<7x1xf32> to vector<7x256xf32>
    %416 = arith.addf %413, %415 : vector<7x256xf32>
    %417 = arith.negf %416 : vector<7x256xf32>
    %418 = math.exp %417 : vector<7x256xf32>
    %cst_333 = arith.constant 1.000000e+00 : f32
    %419 = vector.broadcast %cst_333 : f32 to vector<7x256xf32>
    %420 = arith.addf %419, %418 : vector<7x256xf32>
    %421 = arith.divf %419, %420 : vector<7x256xf32>
    %422 = arith.mulf %90, %421 : vector<7x256xf32>
    %423 = arith.addf %422, %90 : vector<7x256xf32>
    %cst_334 = arith.constant 0.000000e+00 : f32
    %424 = vector.broadcast %cst_334 : f32 to vector<14x256xf32>
    %c17_i32_335 = arith.constant 17 : i32
    %425 = tpu.dynamic_rotate %423 by %c17_i32_335 dim 1 : vector<7x256xf32>, i32 -> vector<7x256xf32>
    %c0_336 = arith.constant 0 : index
    %c0_337 = arith.constant 0 : index
    %c0_338 = arith.constant 0 : index
    %426 = vector.load %arg2[%c0_336, %c0_337, %c0_338] : memref<9x1x256xf32, #tpu.memory_space<vmem>>, vector<1x1x256xf32>
    %427 = vector.shape_cast %426 : vector<1x1x256xf32> to vector<1x256xf32>
    %428 = vector.broadcast %427 : vector<1x256xf32> to vector<7x256xf32>
    %429 = arith.mulf %425, %428 : vector<7x256xf32>
    %c0_339 = arith.constant 0 : index
    %c0_340 = arith.constant 0 : index
    %c0_341 = arith.constant 0 : index
    %430 = vector.load %arg12[%c0_339, %c0_340, %c0_341] : memref<9x14x7xf32, #tpu.memory_space<vmem>>, vector<1x14x7xf32>
    %431 = vector.shape_cast %430 : vector<1x14x7xf32> to vector<14x7xf32>
    %cst_342 = arith.constant dense<0.000000e+00> : vector<14x256xf32>
    %432 = tpu.matmul %431, %429, %cst_342 {dimension_numbers = #tpu.dot_dimension_numbers<[1], [0], [0], [1], [0, 0, 1, 1], [], []>} : vector<14x7xf32>, vector<7x256xf32>, vector<14x256xf32> -> vector<14x256xf32>
    %433 = arith.addf %424, %432 : vector<14x256xf32>
    %c16_i32_343 = arith.constant 16 : i32
    %434 = tpu.dynamic_rotate %423 by %c16_i32_343 dim 1 : vector<7x256xf32>, i32 -> vector<7x256xf32>
    %c1_344 = arith.constant 1 : index
    %c0_345 = arith.constant 0 : index
    %c0_346 = arith.constant 0 : index
    %435 = vector.load %arg2[%c1_344, %c0_345, %c0_346] : memref<9x1x256xf32, #tpu.memory_space<vmem>>, vector<1x1x256xf32>
    %436 = vector.shape_cast %435 : vector<1x1x256xf32> to vector<1x256xf32>
    %437 = vector.broadcast %436 : vector<1x256xf32> to vector<7x256xf32>
    %438 = arith.mulf %434, %437 : vector<7x256xf32>
    %c1_347 = arith.constant 1 : index
    %c0_348 = arith.constant 0 : index
    %c0_349 = arith.constant 0 : index
    %439 = vector.load %arg12[%c1_347, %c0_348, %c0_349] : memref<9x14x7xf32, #tpu.memory_space<vmem>>, vector<1x14x7xf32>
    %440 = vector.shape_cast %439 : vector<1x14x7xf32> to vector<14x7xf32>
    %cst_350 = arith.constant dense<0.000000e+00> : vector<14x256xf32>
    %441 = tpu.matmul %440, %438, %cst_350 {dimension_numbers = #tpu.dot_dimension_numbers<[1], [0], [0], [1], [0, 0, 1, 1], [], []>} : vector<14x7xf32>, vector<7x256xf32>, vector<14x256xf32> -> vector<14x256xf32>
    %442 = arith.addf %433, %441 : vector<14x256xf32>
    %c15_i32_351 = arith.constant 15 : i32
    %443 = tpu.dynamic_rotate %423 by %c15_i32_351 dim 1 : vector<7x256xf32>, i32 -> vector<7x256xf32>
    %c2_352 = arith.constant 2 : index
    %c0_353 = arith.constant 0 : index
    %c0_354 = arith.constant 0 : index
    %444 = vector.load %arg2[%c2_352, %c0_353, %c0_354] : memref<9x1x256xf32, #tpu.memory_space<vmem>>, vector<1x1x256xf32>
    %445 = vector.shape_cast %444 : vector<1x1x256xf32> to vector<1x256xf32>
    %446 = vector.broadcast %445 : vector<1x256xf32> to vector<7x256xf32>
    %447 = arith.mulf %443, %446 : vector<7x256xf32>
    %c2_355 = arith.constant 2 : index
    %c0_356 = arith.constant 0 : index
    %c0_357 = arith.constant 0 : index
    %448 = vector.load %arg12[%c2_355, %c0_356, %c0_357] : memref<9x14x7xf32, #tpu.memory_space<vmem>>, vector<1x14x7xf32>
    %449 = vector.shape_cast %448 : vector<1x14x7xf32> to vector<14x7xf32>
    %cst_358 = arith.constant dense<0.000000e+00> : vector<14x256xf32>
    %450 = tpu.matmul %449, %447, %cst_358 {dimension_numbers = #tpu.dot_dimension_numbers<[1], [0], [0], [1], [0, 0, 1, 1], [], []>} : vector<14x7xf32>, vector<7x256xf32>, vector<14x256xf32> -> vector<14x256xf32>
    %451 = arith.addf %442, %450 : vector<14x256xf32>
    %c1_i32_359 = arith.constant 1 : i32
    %452 = tpu.dynamic_rotate %423 by %c1_i32_359 dim 1 : vector<7x256xf32>, i32 -> vector<7x256xf32>
    %c3_360 = arith.constant 3 : index
    %c0_361 = arith.constant 0 : index
    %c0_362 = arith.constant 0 : index
    %453 = vector.load %arg2[%c3_360, %c0_361, %c0_362] : memref<9x1x256xf32, #tpu.memory_space<vmem>>, vector<1x1x256xf32>
    %454 = vector.shape_cast %453 : vector<1x1x256xf32> to vector<1x256xf32>
    %455 = vector.broadcast %454 : vector<1x256xf32> to vector<7x256xf32>
    %456 = arith.mulf %452, %455 : vector<7x256xf32>
    %c3_363 = arith.constant 3 : index
    %c0_364 = arith.constant 0 : index
    %c0_365 = arith.constant 0 : index
    %457 = vector.load %arg12[%c3_363, %c0_364, %c0_365] : memref<9x14x7xf32, #tpu.memory_space<vmem>>, vector<1x14x7xf32>
    %458 = vector.shape_cast %457 : vector<1x14x7xf32> to vector<14x7xf32>
    %cst_366 = arith.constant dense<0.000000e+00> : vector<14x256xf32>
    %459 = tpu.matmul %458, %456, %cst_366 {dimension_numbers = #tpu.dot_dimension_numbers<[1], [0], [0], [1], [0, 0, 1, 1], [], []>} : vector<14x7xf32>, vector<7x256xf32>, vector<14x256xf32> -> vector<14x256xf32>
    %460 = arith.addf %451, %459 : vector<14x256xf32>
    %c4_367 = arith.constant 4 : index
    %c0_368 = arith.constant 0 : index
    %c0_369 = arith.constant 0 : index
    %461 = vector.load %arg12[%c4_367, %c0_368, %c0_369] : memref<9x14x7xf32, #tpu.memory_space<vmem>>, vector<1x14x7xf32>
    %462 = vector.shape_cast %461 : vector<1x14x7xf32> to vector<14x7xf32>
    %cst_370 = arith.constant dense<0.000000e+00> : vector<14x256xf32>
    %463 = tpu.matmul %462, %423, %cst_370 {dimension_numbers = #tpu.dot_dimension_numbers<[1], [0], [0], [1], [0, 0, 1, 1], [], []>} : vector<14x7xf32>, vector<7x256xf32>, vector<14x256xf32> -> vector<14x256xf32>
    %464 = arith.addf %460, %463 : vector<14x256xf32>
    %c255_i32_371 = arith.constant 255 : i32
    %465 = tpu.dynamic_rotate %423 by %c255_i32_371 dim 1 : vector<7x256xf32>, i32 -> vector<7x256xf32>
    %c5_372 = arith.constant 5 : index
    %c0_373 = arith.constant 0 : index
    %c0_374 = arith.constant 0 : index
    %466 = vector.load %arg2[%c5_372, %c0_373, %c0_374] : memref<9x1x256xf32, #tpu.memory_space<vmem>>, vector<1x1x256xf32>
    %467 = vector.shape_cast %466 : vector<1x1x256xf32> to vector<1x256xf32>
    %468 = vector.broadcast %467 : vector<1x256xf32> to vector<7x256xf32>
    %469 = arith.mulf %465, %468 : vector<7x256xf32>
    %c5_375 = arith.constant 5 : index
    %c0_376 = arith.constant 0 : index
    %c0_377 = arith.constant 0 : index
    %470 = vector.load %arg12[%c5_375, %c0_376, %c0_377] : memref<9x14x7xf32, #tpu.memory_space<vmem>>, vector<1x14x7xf32>
    %471 = vector.shape_cast %470 : vector<1x14x7xf32> to vector<14x7xf32>
    %cst_378 = arith.constant dense<0.000000e+00> : vector<14x256xf32>
    %472 = tpu.matmul %471, %469, %cst_378 {dimension_numbers = #tpu.dot_dimension_numbers<[1], [0], [0], [1], [0, 0, 1, 1], [], []>} : vector<14x7xf32>, vector<7x256xf32>, vector<14x256xf32> -> vector<14x256xf32>
    %473 = arith.addf %464, %472 : vector<14x256xf32>
    %c241_i32_379 = arith.constant 241 : i32
    %474 = tpu.dynamic_rotate %423 by %c241_i32_379 dim 1 : vector<7x256xf32>, i32 -> vector<7x256xf32>
    %c6_380 = arith.constant 6 : index
    %c0_381 = arith.constant 0 : index
    %c0_382 = arith.constant 0 : index
    %475 = vector.load %arg2[%c6_380, %c0_381, %c0_382] : memref<9x1x256xf32, #tpu.memory_space<vmem>>, vector<1x1x256xf32>
    %476 = vector.shape_cast %475 : vector<1x1x256xf32> to vector<1x256xf32>
    %477 = vector.broadcast %476 : vector<1x256xf32> to vector<7x256xf32>
    %478 = arith.mulf %474, %477 : vector<7x256xf32>
    %c6_383 = arith.constant 6 : index
    %c0_384 = arith.constant 0 : index
    %c0_385 = arith.constant 0 : index
    %479 = vector.load %arg12[%c6_383, %c0_384, %c0_385] : memref<9x14x7xf32, #tpu.memory_space<vmem>>, vector<1x14x7xf32>
    %480 = vector.shape_cast %479 : vector<1x14x7xf32> to vector<14x7xf32>
    %cst_386 = arith.constant dense<0.000000e+00> : vector<14x256xf32>
    %481 = tpu.matmul %480, %478, %cst_386 {dimension_numbers = #tpu.dot_dimension_numbers<[1], [0], [0], [1], [0, 0, 1, 1], [], []>} : vector<14x7xf32>, vector<7x256xf32>, vector<14x256xf32> -> vector<14x256xf32>
    %482 = arith.addf %473, %481 : vector<14x256xf32>
    %c240_i32_387 = arith.constant 240 : i32
    %483 = tpu.dynamic_rotate %423 by %c240_i32_387 dim 1 : vector<7x256xf32>, i32 -> vector<7x256xf32>
    %c7_388 = arith.constant 7 : index
    %c0_389 = arith.constant 0 : index
    %c0_390 = arith.constant 0 : index
    %484 = vector.load %arg2[%c7_388, %c0_389, %c0_390] : memref<9x1x256xf32, #tpu.memory_space<vmem>>, vector<1x1x256xf32>
    %485 = vector.shape_cast %484 : vector<1x1x256xf32> to vector<1x256xf32>
    %486 = vector.broadcast %485 : vector<1x256xf32> to vector<7x256xf32>
    %487 = arith.mulf %483, %486 : vector<7x256xf32>
    %c7_391 = arith.constant 7 : index
    %c0_392 = arith.constant 0 : index
    %c0_393 = arith.constant 0 : index
    %488 = vector.load %arg12[%c7_391, %c0_392, %c0_393] : memref<9x14x7xf32, #tpu.memory_space<vmem>>, vector<1x14x7xf32>
    %489 = vector.shape_cast %488 : vector<1x14x7xf32> to vector<14x7xf32>
    %cst_394 = arith.constant dense<0.000000e+00> : vector<14x256xf32>
    %490 = tpu.matmul %489, %487, %cst_394 {dimension_numbers = #tpu.dot_dimension_numbers<[1], [0], [0], [1], [0, 0, 1, 1], [], []>} : vector<14x7xf32>, vector<7x256xf32>, vector<14x256xf32> -> vector<14x256xf32>
    %491 = arith.addf %482, %490 : vector<14x256xf32>
    %c239_i32_395 = arith.constant 239 : i32
    %492 = tpu.dynamic_rotate %423 by %c239_i32_395 dim 1 : vector<7x256xf32>, i32 -> vector<7x256xf32>
    %c8_396 = arith.constant 8 : index
    %c0_397 = arith.constant 0 : index
    %c0_398 = arith.constant 0 : index
    %493 = vector.load %arg2[%c8_396, %c0_397, %c0_398] : memref<9x1x256xf32, #tpu.memory_space<vmem>>, vector<1x1x256xf32>
    %494 = vector.shape_cast %493 : vector<1x1x256xf32> to vector<1x256xf32>
    %495 = vector.broadcast %494 : vector<1x256xf32> to vector<7x256xf32>
    %496 = arith.mulf %492, %495 : vector<7x256xf32>
    %c8_399 = arith.constant 8 : index
    %c0_400 = arith.constant 0 : index
    %c0_401 = arith.constant 0 : index
    %497 = vector.load %arg12[%c8_399, %c0_400, %c0_401] : memref<9x14x7xf32, #tpu.memory_space<vmem>>, vector<1x14x7xf32>
    %498 = vector.shape_cast %497 : vector<1x14x7xf32> to vector<14x7xf32>
    %cst_402 = arith.constant dense<0.000000e+00> : vector<14x256xf32>
    %499 = tpu.matmul %498, %496, %cst_402 {dimension_numbers = #tpu.dot_dimension_numbers<[1], [0], [0], [1], [0, 0, 1, 1], [], []>} : vector<14x7xf32>, vector<7x256xf32>, vector<14x256xf32> -> vector<14x256xf32>
    %500 = arith.addf %491, %499 : vector<14x256xf32>
    %c0_403 = arith.constant 0 : index
    %c0_404 = arith.constant 0 : index
    %501 = vector.load %arg13[%c0_403, %c0_404] : memref<14x1xf32, #tpu.memory_space<vmem>>, vector<14x1xf32>
    %502 = vector.broadcast %501 : vector<14x1xf32> to vector<14x256xf32>
    %503 = arith.addf %500, %502 : vector<14x256xf32>
    %cst_405 = arith.constant 0.000000e+00 : f32
    %504 = vector.broadcast %cst_405 : f32 to vector<14x256xf32>
    %505 = arith.maximumf %503, %504 : vector<14x256xf32>
    %cst_406 = arith.constant 0.000000e+00 : f32
    %506 = vector.broadcast %cst_406 : f32 to vector<3x256xf32>
    %c17_i32_407 = arith.constant 17 : i32
    %507 = tpu.dynamic_rotate %505 by %c17_i32_407 dim 1 : vector<14x256xf32>, i32 -> vector<14x256xf32>
    %c0_408 = arith.constant 0 : index
    %c0_409 = arith.constant 0 : index
    %c0_410 = arith.constant 0 : index
    %508 = vector.load %arg14[%c0_408, %c0_409, %c0_410] : memref<9x3x14xf32, #tpu.memory_space<vmem>>, vector<1x3x14xf32>
    %509 = vector.shape_cast %508 : vector<1x3x14xf32> to vector<3x14xf32>
    %cst_411 = arith.constant dense<0.000000e+00> : vector<3x256xf32>
    %510 = tpu.matmul %509, %507, %cst_411 {dimension_numbers = #tpu.dot_dimension_numbers<[1], [0], [0], [1], [0, 0, 1, 1], [], []>} : vector<3x14xf32>, vector<14x256xf32>, vector<3x256xf32> -> vector<3x256xf32>
    %c0_412 = arith.constant 0 : index
    %c0_413 = arith.constant 0 : index
    %c0_414 = arith.constant 0 : index
    %511 = vector.load %arg2[%c0_412, %c0_413, %c0_414] : memref<9x1x256xf32, #tpu.memory_space<vmem>>, vector<1x1x256xf32>
    %512 = vector.shape_cast %511 : vector<1x1x256xf32> to vector<1x256xf32>
    %513 = vector.broadcast %512 : vector<1x256xf32> to vector<3x256xf32>
    %514 = arith.mulf %510, %513 : vector<3x256xf32>
    %515 = arith.addf %506, %514 : vector<3x256xf32>
    %c16_i32_415 = arith.constant 16 : i32
    %516 = tpu.dynamic_rotate %505 by %c16_i32_415 dim 1 : vector<14x256xf32>, i32 -> vector<14x256xf32>
    %c1_416 = arith.constant 1 : index
    %c0_417 = arith.constant 0 : index
    %c0_418 = arith.constant 0 : index
    %517 = vector.load %arg14[%c1_416, %c0_417, %c0_418] : memref<9x3x14xf32, #tpu.memory_space<vmem>>, vector<1x3x14xf32>
    %518 = vector.shape_cast %517 : vector<1x3x14xf32> to vector<3x14xf32>
    %cst_419 = arith.constant dense<0.000000e+00> : vector<3x256xf32>
    %519 = tpu.matmul %518, %516, %cst_419 {dimension_numbers = #tpu.dot_dimension_numbers<[1], [0], [0], [1], [0, 0, 1, 1], [], []>} : vector<3x14xf32>, vector<14x256xf32>, vector<3x256xf32> -> vector<3x256xf32>
    %c1_420 = arith.constant 1 : index
    %c0_421 = arith.constant 0 : index
    %c0_422 = arith.constant 0 : index
    %520 = vector.load %arg2[%c1_420, %c0_421, %c0_422] : memref<9x1x256xf32, #tpu.memory_space<vmem>>, vector<1x1x256xf32>
    %521 = vector.shape_cast %520 : vector<1x1x256xf32> to vector<1x256xf32>
    %522 = vector.broadcast %521 : vector<1x256xf32> to vector<3x256xf32>
    %523 = arith.mulf %519, %522 : vector<3x256xf32>
    %524 = arith.addf %515, %523 : vector<3x256xf32>
    %c15_i32_423 = arith.constant 15 : i32
    %525 = tpu.dynamic_rotate %505 by %c15_i32_423 dim 1 : vector<14x256xf32>, i32 -> vector<14x256xf32>
    %c2_424 = arith.constant 2 : index
    %c0_425 = arith.constant 0 : index
    %c0_426 = arith.constant 0 : index
    %526 = vector.load %arg14[%c2_424, %c0_425, %c0_426] : memref<9x3x14xf32, #tpu.memory_space<vmem>>, vector<1x3x14xf32>
    %527 = vector.shape_cast %526 : vector<1x3x14xf32> to vector<3x14xf32>
    %cst_427 = arith.constant dense<0.000000e+00> : vector<3x256xf32>
    %528 = tpu.matmul %527, %525, %cst_427 {dimension_numbers = #tpu.dot_dimension_numbers<[1], [0], [0], [1], [0, 0, 1, 1], [], []>} : vector<3x14xf32>, vector<14x256xf32>, vector<3x256xf32> -> vector<3x256xf32>
    %c2_428 = arith.constant 2 : index
    %c0_429 = arith.constant 0 : index
    %c0_430 = arith.constant 0 : index
    %529 = vector.load %arg2[%c2_428, %c0_429, %c0_430] : memref<9x1x256xf32, #tpu.memory_space<vmem>>, vector<1x1x256xf32>
    %530 = vector.shape_cast %529 : vector<1x1x256xf32> to vector<1x256xf32>
    %531 = vector.broadcast %530 : vector<1x256xf32> to vector<3x256xf32>
    %532 = arith.mulf %528, %531 : vector<3x256xf32>
    %533 = arith.addf %524, %532 : vector<3x256xf32>
    %c1_i32_431 = arith.constant 1 : i32
    %534 = tpu.dynamic_rotate %505 by %c1_i32_431 dim 1 : vector<14x256xf32>, i32 -> vector<14x256xf32>
    %c3_432 = arith.constant 3 : index
    %c0_433 = arith.constant 0 : index
    %c0_434 = arith.constant 0 : index
    %535 = vector.load %arg14[%c3_432, %c0_433, %c0_434] : memref<9x3x14xf32, #tpu.memory_space<vmem>>, vector<1x3x14xf32>
    %536 = vector.shape_cast %535 : vector<1x3x14xf32> to vector<3x14xf32>
    %cst_435 = arith.constant dense<0.000000e+00> : vector<3x256xf32>
    %537 = tpu.matmul %536, %534, %cst_435 {dimension_numbers = #tpu.dot_dimension_numbers<[1], [0], [0], [1], [0, 0, 1, 1], [], []>} : vector<3x14xf32>, vector<14x256xf32>, vector<3x256xf32> -> vector<3x256xf32>
    %c3_436 = arith.constant 3 : index
    %c0_437 = arith.constant 0 : index
    %c0_438 = arith.constant 0 : index
    %538 = vector.load %arg2[%c3_436, %c0_437, %c0_438] : memref<9x1x256xf32, #tpu.memory_space<vmem>>, vector<1x1x256xf32>
    %539 = vector.shape_cast %538 : vector<1x1x256xf32> to vector<1x256xf32>
    %540 = vector.broadcast %539 : vector<1x256xf32> to vector<3x256xf32>
    %541 = arith.mulf %537, %540 : vector<3x256xf32>
    %542 = arith.addf %533, %541 : vector<3x256xf32>
    %c4_439 = arith.constant 4 : index
    %c0_440 = arith.constant 0 : index
    %c0_441 = arith.constant 0 : index
    %543 = vector.load %arg14[%c4_439, %c0_440, %c0_441] : memref<9x3x14xf32, #tpu.memory_space<vmem>>, vector<1x3x14xf32>
    %544 = vector.shape_cast %543 : vector<1x3x14xf32> to vector<3x14xf32>
    %cst_442 = arith.constant dense<0.000000e+00> : vector<3x256xf32>
    %545 = tpu.matmul %544, %505, %cst_442 {dimension_numbers = #tpu.dot_dimension_numbers<[1], [0], [0], [1], [0, 0, 1, 1], [], []>} : vector<3x14xf32>, vector<14x256xf32>, vector<3x256xf32> -> vector<3x256xf32>
    %546 = arith.addf %542, %545 : vector<3x256xf32>
    %c255_i32_443 = arith.constant 255 : i32
    %547 = tpu.dynamic_rotate %505 by %c255_i32_443 dim 1 : vector<14x256xf32>, i32 -> vector<14x256xf32>
    %c5_444 = arith.constant 5 : index
    %c0_445 = arith.constant 0 : index
    %c0_446 = arith.constant 0 : index
    %548 = vector.load %arg14[%c5_444, %c0_445, %c0_446] : memref<9x3x14xf32, #tpu.memory_space<vmem>>, vector<1x3x14xf32>
    %549 = vector.shape_cast %548 : vector<1x3x14xf32> to vector<3x14xf32>
    %cst_447 = arith.constant dense<0.000000e+00> : vector<3x256xf32>
    %550 = tpu.matmul %549, %547, %cst_447 {dimension_numbers = #tpu.dot_dimension_numbers<[1], [0], [0], [1], [0, 0, 1, 1], [], []>} : vector<3x14xf32>, vector<14x256xf32>, vector<3x256xf32> -> vector<3x256xf32>
    %c5_448 = arith.constant 5 : index
    %c0_449 = arith.constant 0 : index
    %c0_450 = arith.constant 0 : index
    %551 = vector.load %arg2[%c5_448, %c0_449, %c0_450] : memref<9x1x256xf32, #tpu.memory_space<vmem>>, vector<1x1x256xf32>
    %552 = vector.shape_cast %551 : vector<1x1x256xf32> to vector<1x256xf32>
    %553 = vector.broadcast %552 : vector<1x256xf32> to vector<3x256xf32>
    %554 = arith.mulf %550, %553 : vector<3x256xf32>
    %555 = arith.addf %546, %554 : vector<3x256xf32>
    %c241_i32_451 = arith.constant 241 : i32
    %556 = tpu.dynamic_rotate %505 by %c241_i32_451 dim 1 : vector<14x256xf32>, i32 -> vector<14x256xf32>
    %c6_452 = arith.constant 6 : index
    %c0_453 = arith.constant 0 : index
    %c0_454 = arith.constant 0 : index
    %557 = vector.load %arg14[%c6_452, %c0_453, %c0_454] : memref<9x3x14xf32, #tpu.memory_space<vmem>>, vector<1x3x14xf32>
    %558 = vector.shape_cast %557 : vector<1x3x14xf32> to vector<3x14xf32>
    %cst_455 = arith.constant dense<0.000000e+00> : vector<3x256xf32>
    %559 = tpu.matmul %558, %556, %cst_455 {dimension_numbers = #tpu.dot_dimension_numbers<[1], [0], [0], [1], [0, 0, 1, 1], [], []>} : vector<3x14xf32>, vector<14x256xf32>, vector<3x256xf32> -> vector<3x256xf32>
    %c6_456 = arith.constant 6 : index
    %c0_457 = arith.constant 0 : index
    %c0_458 = arith.constant 0 : index
    %560 = vector.load %arg2[%c6_456, %c0_457, %c0_458] : memref<9x1x256xf32, #tpu.memory_space<vmem>>, vector<1x1x256xf32>
    %561 = vector.shape_cast %560 : vector<1x1x256xf32> to vector<1x256xf32>
    %562 = vector.broadcast %561 : vector<1x256xf32> to vector<3x256xf32>
    %563 = arith.mulf %559, %562 : vector<3x256xf32>
    %564 = arith.addf %555, %563 : vector<3x256xf32>
    %c240_i32_459 = arith.constant 240 : i32
    %565 = tpu.dynamic_rotate %505 by %c240_i32_459 dim 1 : vector<14x256xf32>, i32 -> vector<14x256xf32>
    %c7_460 = arith.constant 7 : index
    %c0_461 = arith.constant 0 : index
    %c0_462 = arith.constant 0 : index
    %566 = vector.load %arg14[%c7_460, %c0_461, %c0_462] : memref<9x3x14xf32, #tpu.memory_space<vmem>>, vector<1x3x14xf32>
    %567 = vector.shape_cast %566 : vector<1x3x14xf32> to vector<3x14xf32>
    %cst_463 = arith.constant dense<0.000000e+00> : vector<3x256xf32>
    %568 = tpu.matmul %567, %565, %cst_463 {dimension_numbers = #tpu.dot_dimension_numbers<[1], [0], [0], [1], [0, 0, 1, 1], [], []>} : vector<3x14xf32>, vector<14x256xf32>, vector<3x256xf32> -> vector<3x256xf32>
    %c7_464 = arith.constant 7 : index
    %c0_465 = arith.constant 0 : index
    %c0_466 = arith.constant 0 : index
    %569 = vector.load %arg2[%c7_464, %c0_465, %c0_466] : memref<9x1x256xf32, #tpu.memory_space<vmem>>, vector<1x1x256xf32>
    %570 = vector.shape_cast %569 : vector<1x1x256xf32> to vector<1x256xf32>
    %571 = vector.broadcast %570 : vector<1x256xf32> to vector<3x256xf32>
    %572 = arith.mulf %568, %571 : vector<3x256xf32>
    %573 = arith.addf %564, %572 : vector<3x256xf32>
    %c239_i32_467 = arith.constant 239 : i32
    %574 = tpu.dynamic_rotate %505 by %c239_i32_467 dim 1 : vector<14x256xf32>, i32 -> vector<14x256xf32>
    %c8_468 = arith.constant 8 : index
    %c0_469 = arith.constant 0 : index
    %c0_470 = arith.constant 0 : index
    %575 = vector.load %arg14[%c8_468, %c0_469, %c0_470] : memref<9x3x14xf32, #tpu.memory_space<vmem>>, vector<1x3x14xf32>
    %576 = vector.shape_cast %575 : vector<1x3x14xf32> to vector<3x14xf32>
    %cst_471 = arith.constant dense<0.000000e+00> : vector<3x256xf32>
    %577 = tpu.matmul %576, %574, %cst_471 {dimension_numbers = #tpu.dot_dimension_numbers<[1], [0], [0], [1], [0, 0, 1, 1], [], []>} : vector<3x14xf32>, vector<14x256xf32>, vector<3x256xf32> -> vector<3x256xf32>
    %c8_472 = arith.constant 8 : index
    %c0_473 = arith.constant 0 : index
    %c0_474 = arith.constant 0 : index
    %578 = vector.load %arg2[%c8_472, %c0_473, %c0_474] : memref<9x1x256xf32, #tpu.memory_space<vmem>>, vector<1x1x256xf32>
    %579 = vector.shape_cast %578 : vector<1x1x256xf32> to vector<1x256xf32>
    %580 = vector.broadcast %579 : vector<1x256xf32> to vector<3x256xf32>
    %581 = arith.mulf %577, %580 : vector<3x256xf32>
    %582 = arith.addf %573, %581 : vector<3x256xf32>
    %c0_475 = arith.constant 0 : index
    %c0_476 = arith.constant 0 : index
    %583 = vector.load %arg15[%c0_475, %c0_476] : memref<3x1xf32, #tpu.memory_space<vmem>>, vector<3x1xf32>
    %584 = vector.broadcast %583 : vector<3x1xf32> to vector<3x256xf32>
    %585 = arith.addf %582, %584 : vector<3x256xf32>
    %cst_477 = arith.constant 0.000000e+00 : f32
    %586 = vector.broadcast %cst_477 : f32 to vector<3x256xf32>
    %587 = arith.maximumf %585, %586 : vector<3x256xf32>
    %cst_478 = arith.constant 0.000000e+00 : f32
    %588 = vector.broadcast %cst_478 : f32 to vector<6x256xf32>
    %c17_i32_479 = arith.constant 17 : i32
    %589 = tpu.dynamic_rotate %587 by %c17_i32_479 dim 1 : vector<3x256xf32>, i32 -> vector<3x256xf32>
    %c0_480 = arith.constant 0 : index
    %c0_481 = arith.constant 0 : index
    %c0_482 = arith.constant 0 : index
    %590 = vector.load %arg2[%c0_480, %c0_481, %c0_482] : memref<9x1x256xf32, #tpu.memory_space<vmem>>, vector<1x1x256xf32>
    %591 = vector.shape_cast %590 : vector<1x1x256xf32> to vector<1x256xf32>
    %592 = vector.broadcast %591 : vector<1x256xf32> to vector<3x256xf32>
    %593 = arith.mulf %589, %592 : vector<3x256xf32>
    %c0_483 = arith.constant 0 : index
    %c0_484 = arith.constant 0 : index
    %c0_485 = arith.constant 0 : index
    %594 = vector.load %arg16[%c0_483, %c0_484, %c0_485] : memref<9x6x3xf32, #tpu.memory_space<vmem>>, vector<1x6x3xf32>
    %595 = vector.shape_cast %594 : vector<1x6x3xf32> to vector<6x3xf32>
    %cst_486 = arith.constant dense<0.000000e+00> : vector<6x256xf32>
    %596 = tpu.matmul %595, %593, %cst_486 {dimension_numbers = #tpu.dot_dimension_numbers<[1], [0], [0], [1], [0, 0, 1, 1], [], []>} : vector<6x3xf32>, vector<3x256xf32>, vector<6x256xf32> -> vector<6x256xf32>
    %597 = arith.addf %588, %596 : vector<6x256xf32>
    %c16_i32_487 = arith.constant 16 : i32
    %598 = tpu.dynamic_rotate %587 by %c16_i32_487 dim 1 : vector<3x256xf32>, i32 -> vector<3x256xf32>
    %c1_488 = arith.constant 1 : index
    %c0_489 = arith.constant 0 : index
    %c0_490 = arith.constant 0 : index
    %599 = vector.load %arg2[%c1_488, %c0_489, %c0_490] : memref<9x1x256xf32, #tpu.memory_space<vmem>>, vector<1x1x256xf32>
    %600 = vector.shape_cast %599 : vector<1x1x256xf32> to vector<1x256xf32>
    %601 = vector.broadcast %600 : vector<1x256xf32> to vector<3x256xf32>
    %602 = arith.mulf %598, %601 : vector<3x256xf32>
    %c1_491 = arith.constant 1 : index
    %c0_492 = arith.constant 0 : index
    %c0_493 = arith.constant 0 : index
    %603 = vector.load %arg16[%c1_491, %c0_492, %c0_493] : memref<9x6x3xf32, #tpu.memory_space<vmem>>, vector<1x6x3xf32>
    %604 = vector.shape_cast %603 : vector<1x6x3xf32> to vector<6x3xf32>
    %cst_494 = arith.constant dense<0.000000e+00> : vector<6x256xf32>
    %605 = tpu.matmul %604, %602, %cst_494 {dimension_numbers = #tpu.dot_dimension_numbers<[1], [0], [0], [1], [0, 0, 1, 1], [], []>} : vector<6x3xf32>, vector<3x256xf32>, vector<6x256xf32> -> vector<6x256xf32>
    %606 = arith.addf %597, %605 : vector<6x256xf32>
    %c15_i32_495 = arith.constant 15 : i32
    %607 = tpu.dynamic_rotate %587 by %c15_i32_495 dim 1 : vector<3x256xf32>, i32 -> vector<3x256xf32>
    %c2_496 = arith.constant 2 : index
    %c0_497 = arith.constant 0 : index
    %c0_498 = arith.constant 0 : index
    %608 = vector.load %arg2[%c2_496, %c0_497, %c0_498] : memref<9x1x256xf32, #tpu.memory_space<vmem>>, vector<1x1x256xf32>
    %609 = vector.shape_cast %608 : vector<1x1x256xf32> to vector<1x256xf32>
    %610 = vector.broadcast %609 : vector<1x256xf32> to vector<3x256xf32>
    %611 = arith.mulf %607, %610 : vector<3x256xf32>
    %c2_499 = arith.constant 2 : index
    %c0_500 = arith.constant 0 : index
    %c0_501 = arith.constant 0 : index
    %612 = vector.load %arg16[%c2_499, %c0_500, %c0_501] : memref<9x6x3xf32, #tpu.memory_space<vmem>>, vector<1x6x3xf32>
    %613 = vector.shape_cast %612 : vector<1x6x3xf32> to vector<6x3xf32>
    %cst_502 = arith.constant dense<0.000000e+00> : vector<6x256xf32>
    %614 = tpu.matmul %613, %611, %cst_502 {dimension_numbers = #tpu.dot_dimension_numbers<[1], [0], [0], [1], [0, 0, 1, 1], [], []>} : vector<6x3xf32>, vector<3x256xf32>, vector<6x256xf32> -> vector<6x256xf32>
    %615 = arith.addf %606, %614 : vector<6x256xf32>
    %c1_i32_503 = arith.constant 1 : i32
    %616 = tpu.dynamic_rotate %587 by %c1_i32_503 dim 1 : vector<3x256xf32>, i32 -> vector<3x256xf32>
    %c3_504 = arith.constant 3 : index
    %c0_505 = arith.constant 0 : index
    %c0_506 = arith.constant 0 : index
    %617 = vector.load %arg2[%c3_504, %c0_505, %c0_506] : memref<9x1x256xf32, #tpu.memory_space<vmem>>, vector<1x1x256xf32>
    %618 = vector.shape_cast %617 : vector<1x1x256xf32> to vector<1x256xf32>
    %619 = vector.broadcast %618 : vector<1x256xf32> to vector<3x256xf32>
    %620 = arith.mulf %616, %619 : vector<3x256xf32>
    %c3_507 = arith.constant 3 : index
    %c0_508 = arith.constant 0 : index
    %c0_509 = arith.constant 0 : index
    %621 = vector.load %arg16[%c3_507, %c0_508, %c0_509] : memref<9x6x3xf32, #tpu.memory_space<vmem>>, vector<1x6x3xf32>
    %622 = vector.shape_cast %621 : vector<1x6x3xf32> to vector<6x3xf32>
    %cst_510 = arith.constant dense<0.000000e+00> : vector<6x256xf32>
    %623 = tpu.matmul %622, %620, %cst_510 {dimension_numbers = #tpu.dot_dimension_numbers<[1], [0], [0], [1], [0, 0, 1, 1], [], []>} : vector<6x3xf32>, vector<3x256xf32>, vector<6x256xf32> -> vector<6x256xf32>
    %624 = arith.addf %615, %623 : vector<6x256xf32>
    %c4_511 = arith.constant 4 : index
    %c0_512 = arith.constant 0 : index
    %c0_513 = arith.constant 0 : index
    %625 = vector.load %arg16[%c4_511, %c0_512, %c0_513] : memref<9x6x3xf32, #tpu.memory_space<vmem>>, vector<1x6x3xf32>
    %626 = vector.shape_cast %625 : vector<1x6x3xf32> to vector<6x3xf32>
    %cst_514 = arith.constant dense<0.000000e+00> : vector<6x256xf32>
    %627 = tpu.matmul %626, %587, %cst_514 {dimension_numbers = #tpu.dot_dimension_numbers<[1], [0], [0], [1], [0, 0, 1, 1], [], []>} : vector<6x3xf32>, vector<3x256xf32>, vector<6x256xf32> -> vector<6x256xf32>
    %628 = arith.addf %624, %627 : vector<6x256xf32>
    %c255_i32_515 = arith.constant 255 : i32
    %629 = tpu.dynamic_rotate %587 by %c255_i32_515 dim 1 : vector<3x256xf32>, i32 -> vector<3x256xf32>
    %c5_516 = arith.constant 5 : index
    %c0_517 = arith.constant 0 : index
    %c0_518 = arith.constant 0 : index
    %630 = vector.load %arg2[%c5_516, %c0_517, %c0_518] : memref<9x1x256xf32, #tpu.memory_space<vmem>>, vector<1x1x256xf32>
    %631 = vector.shape_cast %630 : vector<1x1x256xf32> to vector<1x256xf32>
    %632 = vector.broadcast %631 : vector<1x256xf32> to vector<3x256xf32>
    %633 = arith.mulf %629, %632 : vector<3x256xf32>
    %c5_519 = arith.constant 5 : index
    %c0_520 = arith.constant 0 : index
    %c0_521 = arith.constant 0 : index
    %634 = vector.load %arg16[%c5_519, %c0_520, %c0_521] : memref<9x6x3xf32, #tpu.memory_space<vmem>>, vector<1x6x3xf32>
    %635 = vector.shape_cast %634 : vector<1x6x3xf32> to vector<6x3xf32>
    %cst_522 = arith.constant dense<0.000000e+00> : vector<6x256xf32>
    %636 = tpu.matmul %635, %633, %cst_522 {dimension_numbers = #tpu.dot_dimension_numbers<[1], [0], [0], [1], [0, 0, 1, 1], [], []>} : vector<6x3xf32>, vector<3x256xf32>, vector<6x256xf32> -> vector<6x256xf32>
    %637 = arith.addf %628, %636 : vector<6x256xf32>
    %c241_i32_523 = arith.constant 241 : i32
    %638 = tpu.dynamic_rotate %587 by %c241_i32_523 dim 1 : vector<3x256xf32>, i32 -> vector<3x256xf32>
    %c6_524 = arith.constant 6 : index
    %c0_525 = arith.constant 0 : index
    %c0_526 = arith.constant 0 : index
    %639 = vector.load %arg2[%c6_524, %c0_525, %c0_526] : memref<9x1x256xf32, #tpu.memory_space<vmem>>, vector<1x1x256xf32>
    %640 = vector.shape_cast %639 : vector<1x1x256xf32> to vector<1x256xf32>
    %641 = vector.broadcast %640 : vector<1x256xf32> to vector<3x256xf32>
    %642 = arith.mulf %638, %641 : vector<3x256xf32>
    %c6_527 = arith.constant 6 : index
    %c0_528 = arith.constant 0 : index
    %c0_529 = arith.constant 0 : index
    %643 = vector.load %arg16[%c6_527, %c0_528, %c0_529] : memref<9x6x3xf32, #tpu.memory_space<vmem>>, vector<1x6x3xf32>
    %644 = vector.shape_cast %643 : vector<1x6x3xf32> to vector<6x3xf32>
    %cst_530 = arith.constant dense<0.000000e+00> : vector<6x256xf32>
    %645 = tpu.matmul %644, %642, %cst_530 {dimension_numbers = #tpu.dot_dimension_numbers<[1], [0], [0], [1], [0, 0, 1, 1], [], []>} : vector<6x3xf32>, vector<3x256xf32>, vector<6x256xf32> -> vector<6x256xf32>
    %646 = arith.addf %637, %645 : vector<6x256xf32>
    %c240_i32_531 = arith.constant 240 : i32
    %647 = tpu.dynamic_rotate %587 by %c240_i32_531 dim 1 : vector<3x256xf32>, i32 -> vector<3x256xf32>
    %c7_532 = arith.constant 7 : index
    %c0_533 = arith.constant 0 : index
    %c0_534 = arith.constant 0 : index
    %648 = vector.load %arg2[%c7_532, %c0_533, %c0_534] : memref<9x1x256xf32, #tpu.memory_space<vmem>>, vector<1x1x256xf32>
    %649 = vector.shape_cast %648 : vector<1x1x256xf32> to vector<1x256xf32>
    %650 = vector.broadcast %649 : vector<1x256xf32> to vector<3x256xf32>
    %651 = arith.mulf %647, %650 : vector<3x256xf32>
    %c7_535 = arith.constant 7 : index
    %c0_536 = arith.constant 0 : index
    %c0_537 = arith.constant 0 : index
    %652 = vector.load %arg16[%c7_535, %c0_536, %c0_537] : memref<9x6x3xf32, #tpu.memory_space<vmem>>, vector<1x6x3xf32>
    %653 = vector.shape_cast %652 : vector<1x6x3xf32> to vector<6x3xf32>
    %cst_538 = arith.constant dense<0.000000e+00> : vector<6x256xf32>
    %654 = tpu.matmul %653, %651, %cst_538 {dimension_numbers = #tpu.dot_dimension_numbers<[1], [0], [0], [1], [0, 0, 1, 1], [], []>} : vector<6x3xf32>, vector<3x256xf32>, vector<6x256xf32> -> vector<6x256xf32>
    %655 = arith.addf %646, %654 : vector<6x256xf32>
    %c239_i32_539 = arith.constant 239 : i32
    %656 = tpu.dynamic_rotate %587 by %c239_i32_539 dim 1 : vector<3x256xf32>, i32 -> vector<3x256xf32>
    %c8_540 = arith.constant 8 : index
    %c0_541 = arith.constant 0 : index
    %c0_542 = arith.constant 0 : index
    %657 = vector.load %arg2[%c8_540, %c0_541, %c0_542] : memref<9x1x256xf32, #tpu.memory_space<vmem>>, vector<1x1x256xf32>
    %658 = vector.shape_cast %657 : vector<1x1x256xf32> to vector<1x256xf32>
    %659 = vector.broadcast %658 : vector<1x256xf32> to vector<3x256xf32>
    %660 = arith.mulf %656, %659 : vector<3x256xf32>
    %c8_543 = arith.constant 8 : index
    %c0_544 = arith.constant 0 : index
    %c0_545 = arith.constant 0 : index
    %661 = vector.load %arg16[%c8_543, %c0_544, %c0_545] : memref<9x6x3xf32, #tpu.memory_space<vmem>>, vector<1x6x3xf32>
    %662 = vector.shape_cast %661 : vector<1x6x3xf32> to vector<6x3xf32>
    %cst_546 = arith.constant dense<0.000000e+00> : vector<6x256xf32>
    %663 = tpu.matmul %662, %660, %cst_546 {dimension_numbers = #tpu.dot_dimension_numbers<[1], [0], [0], [1], [0, 0, 1, 1], [], []>} : vector<6x3xf32>, vector<3x256xf32>, vector<6x256xf32> -> vector<6x256xf32>
    %664 = arith.addf %655, %663 : vector<6x256xf32>
    %c0_547 = arith.constant 0 : index
    %c0_548 = arith.constant 0 : index
    %665 = vector.load %arg17[%c0_547, %c0_548] : memref<6x1xf32, #tpu.memory_space<vmem>>, vector<6x1xf32>
    %666 = vector.broadcast %665 : vector<6x1xf32> to vector<6x256xf32>
    %667 = arith.addf %664, %666 : vector<6x256xf32>
    %cst_549 = arith.constant 0.000000e+00 : f32
    %668 = vector.broadcast %cst_549 : f32 to vector<6x256xf32>
    %669 = arith.maximumf %667, %668 : vector<6x256xf32>
    %cst_550 = arith.constant 0.000000e+00 : f32
    %670 = vector.broadcast %cst_550 : f32 to vector<7x256xf32>
    %c17_i32_551 = arith.constant 17 : i32
    %671 = tpu.dynamic_rotate %669 by %c17_i32_551 dim 1 : vector<6x256xf32>, i32 -> vector<6x256xf32>
    %c0_552 = arith.constant 0 : index
    %c0_553 = arith.constant 0 : index
    %c0_554 = arith.constant 0 : index
    %672 = vector.load %arg2[%c0_552, %c0_553, %c0_554] : memref<9x1x256xf32, #tpu.memory_space<vmem>>, vector<1x1x256xf32>
    %673 = vector.shape_cast %672 : vector<1x1x256xf32> to vector<1x256xf32>
    %674 = vector.broadcast %673 : vector<1x256xf32> to vector<6x256xf32>
    %675 = arith.mulf %671, %674 : vector<6x256xf32>
    %c0_555 = arith.constant 0 : index
    %c0_556 = arith.constant 0 : index
    %c0_557 = arith.constant 0 : index
    %676 = vector.load %arg18[%c0_555, %c0_556, %c0_557] : memref<9x7x6xf32, #tpu.memory_space<vmem>>, vector<1x7x6xf32>
    %677 = vector.shape_cast %676 : vector<1x7x6xf32> to vector<7x6xf32>
    %cst_558 = arith.constant dense<0.000000e+00> : vector<7x256xf32>
    %678 = tpu.matmul %677, %675, %cst_558 {dimension_numbers = #tpu.dot_dimension_numbers<[1], [0], [0], [1], [0, 0, 1, 1], [], []>} : vector<7x6xf32>, vector<6x256xf32>, vector<7x256xf32> -> vector<7x256xf32>
    %679 = arith.addf %670, %678 : vector<7x256xf32>
    %c16_i32_559 = arith.constant 16 : i32
    %680 = tpu.dynamic_rotate %669 by %c16_i32_559 dim 1 : vector<6x256xf32>, i32 -> vector<6x256xf32>
    %c1_560 = arith.constant 1 : index
    %c0_561 = arith.constant 0 : index
    %c0_562 = arith.constant 0 : index
    %681 = vector.load %arg2[%c1_560, %c0_561, %c0_562] : memref<9x1x256xf32, #tpu.memory_space<vmem>>, vector<1x1x256xf32>
    %682 = vector.shape_cast %681 : vector<1x1x256xf32> to vector<1x256xf32>
    %683 = vector.broadcast %682 : vector<1x256xf32> to vector<6x256xf32>
    %684 = arith.mulf %680, %683 : vector<6x256xf32>
    %c1_563 = arith.constant 1 : index
    %c0_564 = arith.constant 0 : index
    %c0_565 = arith.constant 0 : index
    %685 = vector.load %arg18[%c1_563, %c0_564, %c0_565] : memref<9x7x6xf32, #tpu.memory_space<vmem>>, vector<1x7x6xf32>
    %686 = vector.shape_cast %685 : vector<1x7x6xf32> to vector<7x6xf32>
    %cst_566 = arith.constant dense<0.000000e+00> : vector<7x256xf32>
    %687 = tpu.matmul %686, %684, %cst_566 {dimension_numbers = #tpu.dot_dimension_numbers<[1], [0], [0], [1], [0, 0, 1, 1], [], []>} : vector<7x6xf32>, vector<6x256xf32>, vector<7x256xf32> -> vector<7x256xf32>
    %688 = arith.addf %679, %687 : vector<7x256xf32>
    %c15_i32_567 = arith.constant 15 : i32
    %689 = tpu.dynamic_rotate %669 by %c15_i32_567 dim 1 : vector<6x256xf32>, i32 -> vector<6x256xf32>
    %c2_568 = arith.constant 2 : index
    %c0_569 = arith.constant 0 : index
    %c0_570 = arith.constant 0 : index
    %690 = vector.load %arg2[%c2_568, %c0_569, %c0_570] : memref<9x1x256xf32, #tpu.memory_space<vmem>>, vector<1x1x256xf32>
    %691 = vector.shape_cast %690 : vector<1x1x256xf32> to vector<1x256xf32>
    %692 = vector.broadcast %691 : vector<1x256xf32> to vector<6x256xf32>
    %693 = arith.mulf %689, %692 : vector<6x256xf32>
    %c2_571 = arith.constant 2 : index
    %c0_572 = arith.constant 0 : index
    %c0_573 = arith.constant 0 : index
    %694 = vector.load %arg18[%c2_571, %c0_572, %c0_573] : memref<9x7x6xf32, #tpu.memory_space<vmem>>, vector<1x7x6xf32>
    %695 = vector.shape_cast %694 : vector<1x7x6xf32> to vector<7x6xf32>
    %cst_574 = arith.constant dense<0.000000e+00> : vector<7x256xf32>
    %696 = tpu.matmul %695, %693, %cst_574 {dimension_numbers = #tpu.dot_dimension_numbers<[1], [0], [0], [1], [0, 0, 1, 1], [], []>} : vector<7x6xf32>, vector<6x256xf32>, vector<7x256xf32> -> vector<7x256xf32>
    %697 = arith.addf %688, %696 : vector<7x256xf32>
    %c1_i32_575 = arith.constant 1 : i32
    %698 = tpu.dynamic_rotate %669 by %c1_i32_575 dim 1 : vector<6x256xf32>, i32 -> vector<6x256xf32>
    %c3_576 = arith.constant 3 : index
    %c0_577 = arith.constant 0 : index
    %c0_578 = arith.constant 0 : index
    %699 = vector.load %arg2[%c3_576, %c0_577, %c0_578] : memref<9x1x256xf32, #tpu.memory_space<vmem>>, vector<1x1x256xf32>
    %700 = vector.shape_cast %699 : vector<1x1x256xf32> to vector<1x256xf32>
    %701 = vector.broadcast %700 : vector<1x256xf32> to vector<6x256xf32>
    %702 = arith.mulf %698, %701 : vector<6x256xf32>
    %c3_579 = arith.constant 3 : index
    %c0_580 = arith.constant 0 : index
    %c0_581 = arith.constant 0 : index
    %703 = vector.load %arg18[%c3_579, %c0_580, %c0_581] : memref<9x7x6xf32, #tpu.memory_space<vmem>>, vector<1x7x6xf32>
    %704 = vector.shape_cast %703 : vector<1x7x6xf32> to vector<7x6xf32>
    %cst_582 = arith.constant dense<0.000000e+00> : vector<7x256xf32>
    %705 = tpu.matmul %704, %702, %cst_582 {dimension_numbers = #tpu.dot_dimension_numbers<[1], [0], [0], [1], [0, 0, 1, 1], [], []>} : vector<7x6xf32>, vector<6x256xf32>, vector<7x256xf32> -> vector<7x256xf32>
    %706 = arith.addf %697, %705 : vector<7x256xf32>
    %c4_583 = arith.constant 4 : index
    %c0_584 = arith.constant 0 : index
    %c0_585 = arith.constant 0 : index
    %707 = vector.load %arg18[%c4_583, %c0_584, %c0_585] : memref<9x7x6xf32, #tpu.memory_space<vmem>>, vector<1x7x6xf32>
    %708 = vector.shape_cast %707 : vector<1x7x6xf32> to vector<7x6xf32>
    %cst_586 = arith.constant dense<0.000000e+00> : vector<7x256xf32>
    %709 = tpu.matmul %708, %669, %cst_586 {dimension_numbers = #tpu.dot_dimension_numbers<[1], [0], [0], [1], [0, 0, 1, 1], [], []>} : vector<7x6xf32>, vector<6x256xf32>, vector<7x256xf32> -> vector<7x256xf32>
    %710 = arith.addf %706, %709 : vector<7x256xf32>
    %c255_i32_587 = arith.constant 255 : i32
    %711 = tpu.dynamic_rotate %669 by %c255_i32_587 dim 1 : vector<6x256xf32>, i32 -> vector<6x256xf32>
    %c5_588 = arith.constant 5 : index
    %c0_589 = arith.constant 0 : index
    %c0_590 = arith.constant 0 : index
    %712 = vector.load %arg2[%c5_588, %c0_589, %c0_590] : memref<9x1x256xf32, #tpu.memory_space<vmem>>, vector<1x1x256xf32>
    %713 = vector.shape_cast %712 : vector<1x1x256xf32> to vector<1x256xf32>
    %714 = vector.broadcast %713 : vector<1x256xf32> to vector<6x256xf32>
    %715 = arith.mulf %711, %714 : vector<6x256xf32>
    %c5_591 = arith.constant 5 : index
    %c0_592 = arith.constant 0 : index
    %c0_593 = arith.constant 0 : index
    %716 = vector.load %arg18[%c5_591, %c0_592, %c0_593] : memref<9x7x6xf32, #tpu.memory_space<vmem>>, vector<1x7x6xf32>
    %717 = vector.shape_cast %716 : vector<1x7x6xf32> to vector<7x6xf32>
    %cst_594 = arith.constant dense<0.000000e+00> : vector<7x256xf32>
    %718 = tpu.matmul %717, %715, %cst_594 {dimension_numbers = #tpu.dot_dimension_numbers<[1], [0], [0], [1], [0, 0, 1, 1], [], []>} : vector<7x6xf32>, vector<6x256xf32>, vector<7x256xf32> -> vector<7x256xf32>
    %719 = arith.addf %710, %718 : vector<7x256xf32>
    %c241_i32_595 = arith.constant 241 : i32
    %720 = tpu.dynamic_rotate %669 by %c241_i32_595 dim 1 : vector<6x256xf32>, i32 -> vector<6x256xf32>
    %c6_596 = arith.constant 6 : index
    %c0_597 = arith.constant 0 : index
    %c0_598 = arith.constant 0 : index
    %721 = vector.load %arg2[%c6_596, %c0_597, %c0_598] : memref<9x1x256xf32, #tpu.memory_space<vmem>>, vector<1x1x256xf32>
    %722 = vector.shape_cast %721 : vector<1x1x256xf32> to vector<1x256xf32>
    %723 = vector.broadcast %722 : vector<1x256xf32> to vector<6x256xf32>
    %724 = arith.mulf %720, %723 : vector<6x256xf32>
    %c6_599 = arith.constant 6 : index
    %c0_600 = arith.constant 0 : index
    %c0_601 = arith.constant 0 : index
    %725 = vector.load %arg18[%c6_599, %c0_600, %c0_601] : memref<9x7x6xf32, #tpu.memory_space<vmem>>, vector<1x7x6xf32>
    %726 = vector.shape_cast %725 : vector<1x7x6xf32> to vector<7x6xf32>
    %cst_602 = arith.constant dense<0.000000e+00> : vector<7x256xf32>
    %727 = tpu.matmul %726, %724, %cst_602 {dimension_numbers = #tpu.dot_dimension_numbers<[1], [0], [0], [1], [0, 0, 1, 1], [], []>} : vector<7x6xf32>, vector<6x256xf32>, vector<7x256xf32> -> vector<7x256xf32>
    %728 = arith.addf %719, %727 : vector<7x256xf32>
    %c240_i32_603 = arith.constant 240 : i32
    %729 = tpu.dynamic_rotate %669 by %c240_i32_603 dim 1 : vector<6x256xf32>, i32 -> vector<6x256xf32>
    %c7_604 = arith.constant 7 : index
    %c0_605 = arith.constant 0 : index
    %c0_606 = arith.constant 0 : index
    %730 = vector.load %arg2[%c7_604, %c0_605, %c0_606] : memref<9x1x256xf32, #tpu.memory_space<vmem>>, vector<1x1x256xf32>
    %731 = vector.shape_cast %730 : vector<1x1x256xf32> to vector<1x256xf32>
    %732 = vector.broadcast %731 : vector<1x256xf32> to vector<6x256xf32>
    %733 = arith.mulf %729, %732 : vector<6x256xf32>
    %c7_607 = arith.constant 7 : index
    %c0_608 = arith.constant 0 : index
    %c0_609 = arith.constant 0 : index
    %734 = vector.load %arg18[%c7_607, %c0_608, %c0_609] : memref<9x7x6xf32, #tpu.memory_space<vmem>>, vector<1x7x6xf32>
    %735 = vector.shape_cast %734 : vector<1x7x6xf32> to vector<7x6xf32>
    %cst_610 = arith.constant dense<0.000000e+00> : vector<7x256xf32>
    %736 = tpu.matmul %735, %733, %cst_610 {dimension_numbers = #tpu.dot_dimension_numbers<[1], [0], [0], [1], [0, 0, 1, 1], [], []>} : vector<7x6xf32>, vector<6x256xf32>, vector<7x256xf32> -> vector<7x256xf32>
    %737 = arith.addf %728, %736 : vector<7x256xf32>
    %c239_i32_611 = arith.constant 239 : i32
    %738 = tpu.dynamic_rotate %669 by %c239_i32_611 dim 1 : vector<6x256xf32>, i32 -> vector<6x256xf32>
    %c8_612 = arith.constant 8 : index
    %c0_613 = arith.constant 0 : index
    %c0_614 = arith.constant 0 : index
    %739 = vector.load %arg2[%c8_612, %c0_613, %c0_614] : memref<9x1x256xf32, #tpu.memory_space<vmem>>, vector<1x1x256xf32>
    %740 = vector.shape_cast %739 : vector<1x1x256xf32> to vector<1x256xf32>
    %741 = vector.broadcast %740 : vector<1x256xf32> to vector<6x256xf32>
    %742 = arith.mulf %738, %741 : vector<6x256xf32>
    %c8_615 = arith.constant 8 : index
    %c0_616 = arith.constant 0 : index
    %c0_617 = arith.constant 0 : index
    %743 = vector.load %arg18[%c8_615, %c0_616, %c0_617] : memref<9x7x6xf32, #tpu.memory_space<vmem>>, vector<1x7x6xf32>
    %744 = vector.shape_cast %743 : vector<1x7x6xf32> to vector<7x6xf32>
    %cst_618 = arith.constant dense<0.000000e+00> : vector<7x256xf32>
    %745 = tpu.matmul %744, %742, %cst_618 {dimension_numbers = #tpu.dot_dimension_numbers<[1], [0], [0], [1], [0, 0, 1, 1], [], []>} : vector<7x6xf32>, vector<6x256xf32>, vector<7x256xf32> -> vector<7x256xf32>
    %746 = arith.addf %737, %745 : vector<7x256xf32>
    %c0_619 = arith.constant 0 : index
    %c0_620 = arith.constant 0 : index
    %747 = vector.load %arg19[%c0_619, %c0_620] : memref<7x1xf32, #tpu.memory_space<vmem>>, vector<7x1xf32>
    %748 = vector.broadcast %747 : vector<7x1xf32> to vector<7x256xf32>
    %749 = arith.addf %746, %748 : vector<7x256xf32>
    %750 = arith.negf %749 : vector<7x256xf32>
    %751 = math.exp %750 : vector<7x256xf32>
    %cst_621 = arith.constant 1.000000e+00 : f32
    %752 = vector.broadcast %cst_621 : f32 to vector<7x256xf32>
    %753 = arith.addf %752, %751 : vector<7x256xf32>
    %754 = arith.divf %752, %753 : vector<7x256xf32>
    %755 = arith.mulf %423, %754 : vector<7x256xf32>
    %756 = arith.addf %755, %423 : vector<7x256xf32>
    %cst_622 = arith.constant 0.000000e+00 : f32
    %757 = vector.broadcast %cst_622 : f32 to vector<17x256xf32>
    %c17_i32_623 = arith.constant 17 : i32
    %758 = tpu.dynamic_rotate %756 by %c17_i32_623 dim 1 : vector<7x256xf32>, i32 -> vector<7x256xf32>
    %c0_624 = arith.constant 0 : index
    %c0_625 = arith.constant 0 : index
    %c0_626 = arith.constant 0 : index
    %759 = vector.load %arg2[%c0_624, %c0_625, %c0_626] : memref<9x1x256xf32, #tpu.memory_space<vmem>>, vector<1x1x256xf32>
    %760 = vector.shape_cast %759 : vector<1x1x256xf32> to vector<1x256xf32>
    %761 = vector.broadcast %760 : vector<1x256xf32> to vector<7x256xf32>
    %762 = arith.mulf %758, %761 : vector<7x256xf32>
    %c0_627 = arith.constant 0 : index
    %c0_628 = arith.constant 0 : index
    %c0_629 = arith.constant 0 : index
    %763 = vector.load %arg20[%c0_627, %c0_628, %c0_629] : memref<9x17x7xf32, #tpu.memory_space<vmem>>, vector<1x17x7xf32>
    %764 = vector.shape_cast %763 : vector<1x17x7xf32> to vector<17x7xf32>
    %cst_630 = arith.constant dense<0.000000e+00> : vector<17x256xf32>
    %765 = tpu.matmul %764, %762, %cst_630 {dimension_numbers = #tpu.dot_dimension_numbers<[1], [0], [0], [1], [0, 0, 1, 1], [], []>} : vector<17x7xf32>, vector<7x256xf32>, vector<17x256xf32> -> vector<17x256xf32>
    %766 = arith.addf %757, %765 : vector<17x256xf32>
    %c16_i32_631 = arith.constant 16 : i32
    %767 = tpu.dynamic_rotate %756 by %c16_i32_631 dim 1 : vector<7x256xf32>, i32 -> vector<7x256xf32>
    %c1_632 = arith.constant 1 : index
    %c0_633 = arith.constant 0 : index
    %c0_634 = arith.constant 0 : index
    %768 = vector.load %arg2[%c1_632, %c0_633, %c0_634] : memref<9x1x256xf32, #tpu.memory_space<vmem>>, vector<1x1x256xf32>
    %769 = vector.shape_cast %768 : vector<1x1x256xf32> to vector<1x256xf32>
    %770 = vector.broadcast %769 : vector<1x256xf32> to vector<7x256xf32>
    %771 = arith.mulf %767, %770 : vector<7x256xf32>
    %c1_635 = arith.constant 1 : index
    %c0_636 = arith.constant 0 : index
    %c0_637 = arith.constant 0 : index
    %772 = vector.load %arg20[%c1_635, %c0_636, %c0_637] : memref<9x17x7xf32, #tpu.memory_space<vmem>>, vector<1x17x7xf32>
    %773 = vector.shape_cast %772 : vector<1x17x7xf32> to vector<17x7xf32>
    %cst_638 = arith.constant dense<0.000000e+00> : vector<17x256xf32>
    %774 = tpu.matmul %773, %771, %cst_638 {dimension_numbers = #tpu.dot_dimension_numbers<[1], [0], [0], [1], [0, 0, 1, 1], [], []>} : vector<17x7xf32>, vector<7x256xf32>, vector<17x256xf32> -> vector<17x256xf32>
    %775 = arith.addf %766, %774 : vector<17x256xf32>
    %c15_i32_639 = arith.constant 15 : i32
    %776 = tpu.dynamic_rotate %756 by %c15_i32_639 dim 1 : vector<7x256xf32>, i32 -> vector<7x256xf32>
    %c2_640 = arith.constant 2 : index
    %c0_641 = arith.constant 0 : index
    %c0_642 = arith.constant 0 : index
    %777 = vector.load %arg2[%c2_640, %c0_641, %c0_642] : memref<9x1x256xf32, #tpu.memory_space<vmem>>, vector<1x1x256xf32>
    %778 = vector.shape_cast %777 : vector<1x1x256xf32> to vector<1x256xf32>
    %779 = vector.broadcast %778 : vector<1x256xf32> to vector<7x256xf32>
    %780 = arith.mulf %776, %779 : vector<7x256xf32>
    %c2_643 = arith.constant 2 : index
    %c0_644 = arith.constant 0 : index
    %c0_645 = arith.constant 0 : index
    %781 = vector.load %arg20[%c2_643, %c0_644, %c0_645] : memref<9x17x7xf32, #tpu.memory_space<vmem>>, vector<1x17x7xf32>
    %782 = vector.shape_cast %781 : vector<1x17x7xf32> to vector<17x7xf32>
    %cst_646 = arith.constant dense<0.000000e+00> : vector<17x256xf32>
    %783 = tpu.matmul %782, %780, %cst_646 {dimension_numbers = #tpu.dot_dimension_numbers<[1], [0], [0], [1], [0, 0, 1, 1], [], []>} : vector<17x7xf32>, vector<7x256xf32>, vector<17x256xf32> -> vector<17x256xf32>
    %784 = arith.addf %775, %783 : vector<17x256xf32>
    %c1_i32_647 = arith.constant 1 : i32
    %785 = tpu.dynamic_rotate %756 by %c1_i32_647 dim 1 : vector<7x256xf32>, i32 -> vector<7x256xf32>
    %c3_648 = arith.constant 3 : index
    %c0_649 = arith.constant 0 : index
    %c0_650 = arith.constant 0 : index
    %786 = vector.load %arg2[%c3_648, %c0_649, %c0_650] : memref<9x1x256xf32, #tpu.memory_space<vmem>>, vector<1x1x256xf32>
    %787 = vector.shape_cast %786 : vector<1x1x256xf32> to vector<1x256xf32>
    %788 = vector.broadcast %787 : vector<1x256xf32> to vector<7x256xf32>
    %789 = arith.mulf %785, %788 : vector<7x256xf32>
    %c3_651 = arith.constant 3 : index
    %c0_652 = arith.constant 0 : index
    %c0_653 = arith.constant 0 : index
    %790 = vector.load %arg20[%c3_651, %c0_652, %c0_653] : memref<9x17x7xf32, #tpu.memory_space<vmem>>, vector<1x17x7xf32>
    %791 = vector.shape_cast %790 : vector<1x17x7xf32> to vector<17x7xf32>
    %cst_654 = arith.constant dense<0.000000e+00> : vector<17x256xf32>
    %792 = tpu.matmul %791, %789, %cst_654 {dimension_numbers = #tpu.dot_dimension_numbers<[1], [0], [0], [1], [0, 0, 1, 1], [], []>} : vector<17x7xf32>, vector<7x256xf32>, vector<17x256xf32> -> vector<17x256xf32>
    %793 = arith.addf %784, %792 : vector<17x256xf32>
    %c4_655 = arith.constant 4 : index
    %c0_656 = arith.constant 0 : index
    %c0_657 = arith.constant 0 : index
    %794 = vector.load %arg20[%c4_655, %c0_656, %c0_657] : memref<9x17x7xf32, #tpu.memory_space<vmem>>, vector<1x17x7xf32>
    %795 = vector.shape_cast %794 : vector<1x17x7xf32> to vector<17x7xf32>
    %cst_658 = arith.constant dense<0.000000e+00> : vector<17x256xf32>
    %796 = tpu.matmul %795, %756, %cst_658 {dimension_numbers = #tpu.dot_dimension_numbers<[1], [0], [0], [1], [0, 0, 1, 1], [], []>} : vector<17x7xf32>, vector<7x256xf32>, vector<17x256xf32> -> vector<17x256xf32>
    %797 = arith.addf %793, %796 : vector<17x256xf32>
    %c255_i32_659 = arith.constant 255 : i32
    %798 = tpu.dynamic_rotate %756 by %c255_i32_659 dim 1 : vector<7x256xf32>, i32 -> vector<7x256xf32>
    %c5_660 = arith.constant 5 : index
    %c0_661 = arith.constant 0 : index
    %c0_662 = arith.constant 0 : index
    %799 = vector.load %arg2[%c5_660, %c0_661, %c0_662] : memref<9x1x256xf32, #tpu.memory_space<vmem>>, vector<1x1x256xf32>
    %800 = vector.shape_cast %799 : vector<1x1x256xf32> to vector<1x256xf32>
    %801 = vector.broadcast %800 : vector<1x256xf32> to vector<7x256xf32>
    %802 = arith.mulf %798, %801 : vector<7x256xf32>
    %c5_663 = arith.constant 5 : index
    %c0_664 = arith.constant 0 : index
    %c0_665 = arith.constant 0 : index
    %803 = vector.load %arg20[%c5_663, %c0_664, %c0_665] : memref<9x17x7xf32, #tpu.memory_space<vmem>>, vector<1x17x7xf32>
    %804 = vector.shape_cast %803 : vector<1x17x7xf32> to vector<17x7xf32>
    %cst_666 = arith.constant dense<0.000000e+00> : vector<17x256xf32>
    %805 = tpu.matmul %804, %802, %cst_666 {dimension_numbers = #tpu.dot_dimension_numbers<[1], [0], [0], [1], [0, 0, 1, 1], [], []>} : vector<17x7xf32>, vector<7x256xf32>, vector<17x256xf32> -> vector<17x256xf32>
    %806 = arith.addf %797, %805 : vector<17x256xf32>
    %c241_i32_667 = arith.constant 241 : i32
    %807 = tpu.dynamic_rotate %756 by %c241_i32_667 dim 1 : vector<7x256xf32>, i32 -> vector<7x256xf32>
    %c6_668 = arith.constant 6 : index
    %c0_669 = arith.constant 0 : index
    %c0_670 = arith.constant 0 : index
    %808 = vector.load %arg2[%c6_668, %c0_669, %c0_670] : memref<9x1x256xf32, #tpu.memory_space<vmem>>, vector<1x1x256xf32>
    %809 = vector.shape_cast %808 : vector<1x1x256xf32> to vector<1x256xf32>
    %810 = vector.broadcast %809 : vector<1x256xf32> to vector<7x256xf32>
    %811 = arith.mulf %807, %810 : vector<7x256xf32>
    %c6_671 = arith.constant 6 : index
    %c0_672 = arith.constant 0 : index
    %c0_673 = arith.constant 0 : index
    %812 = vector.load %arg20[%c6_671, %c0_672, %c0_673] : memref<9x17x7xf32, #tpu.memory_space<vmem>>, vector<1x17x7xf32>
    %813 = vector.shape_cast %812 : vector<1x17x7xf32> to vector<17x7xf32>
    %cst_674 = arith.constant dense<0.000000e+00> : vector<17x256xf32>
    %814 = tpu.matmul %813, %811, %cst_674 {dimension_numbers = #tpu.dot_dimension_numbers<[1], [0], [0], [1], [0, 0, 1, 1], [], []>} : vector<17x7xf32>, vector<7x256xf32>, vector<17x256xf32> -> vector<17x256xf32>
    %815 = arith.addf %806, %814 : vector<17x256xf32>
    %c240_i32_675 = arith.constant 240 : i32
    %816 = tpu.dynamic_rotate %756 by %c240_i32_675 dim 1 : vector<7x256xf32>, i32 -> vector<7x256xf32>
    %c7_676 = arith.constant 7 : index
    %c0_677 = arith.constant 0 : index
    %c0_678 = arith.constant 0 : index
    %817 = vector.load %arg2[%c7_676, %c0_677, %c0_678] : memref<9x1x256xf32, #tpu.memory_space<vmem>>, vector<1x1x256xf32>
    %818 = vector.shape_cast %817 : vector<1x1x256xf32> to vector<1x256xf32>
    %819 = vector.broadcast %818 : vector<1x256xf32> to vector<7x256xf32>
    %820 = arith.mulf %816, %819 : vector<7x256xf32>
    %c7_679 = arith.constant 7 : index
    %c0_680 = arith.constant 0 : index
    %c0_681 = arith.constant 0 : index
    %821 = vector.load %arg20[%c7_679, %c0_680, %c0_681] : memref<9x17x7xf32, #tpu.memory_space<vmem>>, vector<1x17x7xf32>
    %822 = vector.shape_cast %821 : vector<1x17x7xf32> to vector<17x7xf32>
    %cst_682 = arith.constant dense<0.000000e+00> : vector<17x256xf32>
    %823 = tpu.matmul %822, %820, %cst_682 {dimension_numbers = #tpu.dot_dimension_numbers<[1], [0], [0], [1], [0, 0, 1, 1], [], []>} : vector<17x7xf32>, vector<7x256xf32>, vector<17x256xf32> -> vector<17x256xf32>
    %824 = arith.addf %815, %823 : vector<17x256xf32>
    %c239_i32_683 = arith.constant 239 : i32
    %825 = tpu.dynamic_rotate %756 by %c239_i32_683 dim 1 : vector<7x256xf32>, i32 -> vector<7x256xf32>
    %c8_684 = arith.constant 8 : index
    %c0_685 = arith.constant 0 : index
    %c0_686 = arith.constant 0 : index
    %826 = vector.load %arg2[%c8_684, %c0_685, %c0_686] : memref<9x1x256xf32, #tpu.memory_space<vmem>>, vector<1x1x256xf32>
    %827 = vector.shape_cast %826 : vector<1x1x256xf32> to vector<1x256xf32>
    %828 = vector.broadcast %827 : vector<1x256xf32> to vector<7x256xf32>
    %829 = arith.mulf %825, %828 : vector<7x256xf32>
    %c8_687 = arith.constant 8 : index
    %c0_688 = arith.constant 0 : index
    %c0_689 = arith.constant 0 : index
    %830 = vector.load %arg20[%c8_687, %c0_688, %c0_689] : memref<9x17x7xf32, #tpu.memory_space<vmem>>, vector<1x17x7xf32>
    %831 = vector.shape_cast %830 : vector<1x17x7xf32> to vector<17x7xf32>
    %cst_690 = arith.constant dense<0.000000e+00> : vector<17x256xf32>
    %832 = tpu.matmul %831, %829, %cst_690 {dimension_numbers = #tpu.dot_dimension_numbers<[1], [0], [0], [1], [0, 0, 1, 1], [], []>} : vector<17x7xf32>, vector<7x256xf32>, vector<17x256xf32> -> vector<17x256xf32>
    %833 = arith.addf %824, %832 : vector<17x256xf32>
    %cst_691 = arith.constant 0.000000e+00 : f32
    %834 = vector.broadcast %cst_691 : f32 to vector<17x256xf32>
    %835 = arith.maximumf %833, %834 : vector<17x256xf32>
    %cst_692 = arith.constant dense<0.000000e+00> : vector<17xf32>
    %836 = vector.multi_reduction <add>, %835, %cst_692 [1] : vector<17x256xf32> to vector<17xf32>
    %837 = vector.shape_cast %836 : vector<17xf32> to vector<17x1xf32>
    %cst_693 = arith.constant 3.906250e-03 : f32
    %838 = vector.broadcast %cst_693 : f32 to vector<17x1xf32>
    %839 = arith.mulf %837, %838 : vector<17x1xf32>
    %840 = arith.mulf %839, %839 : vector<17x1xf32>
    %cst_694 = arith.constant dense<0.000000e+00> : vector<1xf32>
    %841 = vector.multi_reduction <add>, %840, %cst_694 [0] : vector<17x1xf32> to vector<1xf32>
    %842 = vector.shape_cast %841 : vector<1xf32> to vector<1x1xf32>
    %cst_695 = arith.constant 1.700000e+01 : f32
    %843 = vector.broadcast %cst_695 : f32 to vector<1x1xf32>
    %844 = arith.divf %842, %843 : vector<1x1xf32>
    %cst_696 = arith.constant 9.99999997E-7 : f32
    %845 = vector.broadcast %cst_696 : f32 to vector<1x1xf32>
    %846 = arith.addf %844, %845 : vector<1x1xf32>
    %847 = math.rsqrt %846 : vector<1x1xf32>
    %848 = vector.broadcast %847 : vector<1x1xf32> to vector<17x1xf32>
    %849 = arith.mulf %839, %848 : vector<17x1xf32>
    %c0_697 = arith.constant 0 : index
    %c0_698 = arith.constant 0 : index
    %850 = vector.load %arg21[%c0_697, %c0_698] : memref<17x10xf32, #tpu.memory_space<vmem>>, vector<17x10xf32>
    %851 = vector.broadcast %849 : vector<17x1xf32> to vector<17x10xf32>
    %852 = arith.mulf %850, %851 : vector<17x10xf32>
    %cst_699 = arith.constant dense<0.000000e+00> : vector<10xf32>
    %853 = vector.multi_reduction <add>, %852, %cst_699 [0] : vector<17x10xf32> to vector<10xf32>
    %854 = vector.shape_cast %853 : vector<10xf32> to vector<1x10xf32>
    %c0_700 = arith.constant 0 : index
    %c0_701 = arith.constant 0 : index
    %c0_702 = arith.constant 0 : index
    %855 = vector.load %arg22[%c0_700, %c0_701, %c0_702] : memref<1x1x10xf32, #tpu.memory_space<vmem>>, vector<1x1x10xf32>
    %856 = vector.shape_cast %855 : vector<1x1x10xf32> to vector<1x10xf32>
    %857 = vector.shape_cast %854 : vector<1x10xf32> to vector<1x1x10xf32>
    tpu.vector_store %arg22[%c0_700, %c0_701, %c0_702], %857 {strides = array<i32>} : memref<1x1x10xf32, #tpu.memory_space<vmem>>, vector<1x1x10xf32>,
    return
  }
  func.func @transform_0(%arg0: i32) -> (i32, i32, i32) {
    %c0_i32 = arith.constant 0 : i32
    %c0_i32_0 = arith.constant 0 : i32
    %c0_i32_1 = arith.constant 0 : i32
    return %arg0, %c0_i32, %c0_i32_0 : i32, i32, i32
  }
  func.func @transform_1(%arg0: i32) -> (i32, i32, i32) {
    %c0_i32 = arith.constant 0 : i32
    %c0_i32_0 = arith.constant 0 : i32
    %c0_i32_1 = arith.constant 0 : i32
    %c0_i32_2 = arith.constant 0 : i32
    return %c0_i32, %c0_i32_0, %c0_i32_1 : i32, i32, i32
  }
  func.func @transform_2(%arg0: i32) -> (i32, i32, i32) {
    %c0_i32 = arith.constant 0 : i32
    %c0_i32_0 = arith.constant 0 : i32
    %c0_i32_1 = arith.constant 0 : i32
    %c0_i32_2 = arith.constant 0 : i32
    return %c0_i32, %c0_i32_0, %c0_i32_1 : i32, i32, i32
  }
  func.func @transform_3(%arg0: i32) -> (i32, i32, i32) {
    %c0_i32 = arith.constant 0 : i32
    %c0_i32_0 = arith.constant 0 : i32
    %c0_i32_1 = arith.constant 0 : i32
    %c0_i32_2 = arith.constant 0 : i32
    return %c0_i32, %c0_i32_0, %c0_i32_1 : i32, i32, i32
  }
  func.func @transform_4(%arg0: i32) -> (i32, i32) {
    %c0_i32 = arith.constant 0 : i32
    %c0_i32_0 = arith.constant 0 : i32
    %c0_i32_1 = arith.constant 0 : i32
    return %c0_i32, %c0_i32_0 : i32, i32
  }
  func.func @transform_5(%arg0: i32) -> (i32, i32, i32) {
    %c0_i32 = arith.constant 0 : i32
    %c0_i32_0 = arith.constant 0 : i32
    %c0_i32_1 = arith.constant 0 : i32
    %c0_i32_2 = arith.constant 0 : i32
    return %c0_i32, %c0_i32_0, %c0_i32_1 : i32, i32, i32
  }
  func.func @transform_6(%arg0: i32) -> (i32, i32) {
    %c0_i32 = arith.constant 0 : i32
    %c0_i32_0 = arith.constant 0 : i32
    %c0_i32_1 = arith.constant 0 : i32
    return %c0_i32, %c0_i32_0 : i32, i32
  }
  func.func @transform_7(%arg0: i32) -> (i32, i32, i32) {
    %c0_i32 = arith.constant 0 : i32
    %c0_i32_0 = arith.constant 0 : i32
    %c0_i32_1 = arith.constant 0 : i32
    %c0_i32_2 = arith.constant 0 : i32
    return %c0_i32, %c0_i32_0, %c0_i32_1 : i32, i32, i32
  }
  func.func @transform_8(%arg0: i32) -> (i32, i32) {
    %c0_i32 = arith.constant 0 : i32
    %c0_i32_0 = arith.constant 0 : i32
    %c0_i32_1 = arith.constant 0 : i32
    return %c0_i32, %c0_i32_0 : i32, i32
  }
  func.func @transform_9(%arg0: i32) -> (i32, i32, i32) {
    %c0_i32 = arith.constant 0 : i32
    %c0_i32_0 = arith.constant 0 : i32
    %c0_i32_1 = arith.constant 0 : i32
    %c0_i32_2 = arith.constant 0 : i32
    return %c0_i32, %c0_i32_0, %c0_i32_1 : i32, i32, i32
  }
  func.func @transform_10(%arg0: i32) -> (i32, i32) {
    %c0_i32 = arith.constant 0 : i32
    %c0_i32_0 = arith.constant 0 : i32
    %c0_i32_1 = arith.constant 0 : i32
    return %c0_i32, %c0_i32_0 : i32, i32
  }
  func.func @transform_11(%arg0: i32) -> (i32, i32, i32) {
    %c0_i32 = arith.constant 0 : i32
    %c0_i32_0 = arith.constant 0 : i32
    %c0_i32_1 = arith.constant 0 : i32
    %c0_i32_2 = arith.constant 0 : i32
    return %c0_i32, %c0_i32_0, %c0_i32_1 : i32, i32, i32
  }
  func.func @transform_12(%arg0: i32) -> (i32, i32) {
    %c0_i32 = arith.constant 0 : i32
    %c0_i32_0 = arith.constant 0 : i32
    %c0_i32_1 = arith.constant 0 : i32
    return %c0_i32, %c0_i32_0 : i32, i32
  }
  func.func @transform_13(%arg0: i32) -> (i32, i32, i32) {
    %c0_i32 = arith.constant 0 : i32
    %c0_i32_0 = arith.constant 0 : i32
    %c0_i32_1 = arith.constant 0 : i32
    %c0_i32_2 = arith.constant 0 : i32
    return %c0_i32, %c0_i32_0, %c0_i32_1 : i32, i32, i32
  }
  func.func @transform_14(%arg0: i32) -> (i32, i32) {
    %c0_i32 = arith.constant 0 : i32
    %c0_i32_0 = arith.constant 0 : i32
    %c0_i32_1 = arith.constant 0 : i32
    return %c0_i32, %c0_i32_0 : i32, i32
  }
  func.func @transform_15(%arg0: i32) -> (i32, i32, i32) {
    %c0_i32 = arith.constant 0 : i32
    %c0_i32_0 = arith.constant 0 : i32
    %c0_i32_1 = arith.constant 0 : i32
    %c0_i32_2 = arith.constant 0 : i32
    return %c0_i32, %c0_i32_0, %c0_i32_1 : i32, i32, i32
  }
  func.func @transform_16(%arg0: i32) -> (i32, i32) {
    %c0_i32 = arith.constant 0 : i32
    %c0_i32_0 = arith.constant 0 : i32
    %c0_i32_1 = arith.constant 0 : i32
    return %c0_i32, %c0_i32_0 : i32, i32
  }
  func.func @transform_17(%arg0: i32) -> (i32, i32, i32) {
    %c0_i32 = arith.constant 0 : i32
    %c0_i32_0 = arith.constant 0 : i32
    %c0_i32_1 = arith.constant 0 : i32
    %c0_i32_2 = arith.constant 0 : i32
    return %c0_i32, %c0_i32_0, %c0_i32_1 : i32, i32, i32
  }
  func.func @transform_18(%arg0: i32) -> (i32, i32) {
    %c0_i32 = arith.constant 0 : i32
    %c0_i32_0 = arith.constant 0 : i32
    %c0_i32_1 = arith.constant 0 : i32
    return %c0_i32, %c0_i32_0 : i32, i32
  }
  func.func @transform_19(%arg0: i32) -> (i32, i32, i32) {
    %c0_i32 = arith.constant 0 : i32
    %c0_i32_0 = arith.constant 0 : i32
    %c0_i32_1 = arith.constant 0 : i32
    %c0_i32_2 = arith.constant 0 : i32
    return %c0_i32, %c0_i32_0, %c0_i32_1 : i32, i32, i32
  }
  func.func @transform_20(%arg0: i32) -> (i32, i32) {
    %c0_i32 = arith.constant 0 : i32
    %c0_i32_0 = arith.constant 0 : i32
    %c0_i32_1 = arith.constant 0 : i32
    return %c0_i32, %c0_i32_0 : i32, i32
  }
  func.func @transform_21(%arg0: i32) -> (i32, i32, i32) {
    %c0_i32 = arith.constant 0 : i32
    %c0_i32_0 = arith.constant 0 : i32
    %c0_i32_1 = arith.constant 0 : i32
    return %arg0, %c0_i32, %c0_i32_0 : i32, i32, i32
  }
}

</mosaic_0001>

<llo_original>
// kernel: qtinyspeech_forward.1
$region0: #{qtinyspeech_forward.1}
  #allocation0 [shape = 'u32[]', space=smem, size = 0x4, offset = 0x4, fixed_abs, tag = 'smem constant byte address 0x4 - core index']
  #allocation1 [shape = 'u32[144,128]{1,0:T(1,128)}', space=vmem, size = 0x12000, scoped, tag = 'internal scratch']
  %s0 = inlined_call_operand.vmem [shape: f32[2,1,256], index: 0, kind: input, shape index: {}]
  %s1 = inlined_call_operand.vmem [shape: f32[9,1,256], index: 1, kind: input, shape index: {}]
  %s2 = inlined_call_operand.vmem [shape: f32[9,7,1], index: 2, kind: input, shape index: {}]
  %s3 = inlined_call_operand.vmem [shape: f32[9,14,7], index: 3, kind: input, shape index: {}]
  %s4 = inlined_call_operand.vmem [shape: f32[14,1], index: 4, kind: input, shape index: {}]
  %s5 = inlined_call_operand.vmem [shape: f32[9,3,14], index: 5, kind: input, shape index: {}]
  %s6 = inlined_call_operand.vmem [shape: f32[3,1], index: 6, kind: input, shape index: {}]
  %s7 = inlined_call_operand.vmem [shape: f32[9,6,3], index: 7, kind: input, shape index: {}]
  %s8 = inlined_call_operand.vmem [shape: f32[6,1], index: 8, kind: input, shape index: {}]
  %s9 = inlined_call_operand.vmem [shape: f32[9,7,6], index: 9, kind: input, shape index: {}]
  %s10 = inlined_call_operand.vmem [shape: f32[7,1], index: 10, kind: input, shape index: {}]
  %s11 = inlined_call_operand.vmem [shape: f32[9,14,7], index: 11, kind: input, shape index: {}]
  %s12 = inlined_call_operand.vmem [shape: f32[14,1], index: 12, kind: input, shape index: {}]
  %s13 = inlined_call_operand.vmem [shape: f32[9,3,14], index: 13, kind: input, shape index: {}]
  %s14 = inlined_call_operand.vmem [shape: f32[3,1], index: 14, kind: input, shape index: {}]
  %s15 = inlined_call_operand.vmem [shape: f32[9,6,3], index: 15, kind: input, shape index: {}]
  %s16 = inlined_call_operand.vmem [shape: f32[6,1], index: 16, kind: input, shape index: {}]
  %s17 = inlined_call_operand.vmem [shape: f32[9,7,6], index: 17, kind: input, shape index: {}]
  %s18 = inlined_call_operand.vmem [shape: f32[7,1], index: 18, kind: input, shape index: {}]
  %s19 = inlined_call_operand.vmem [shape: f32[9,17,7], index: 19, kind: input, shape index: {}]
  %s20 = inlined_call_operand.vmem [shape: f32[17,10], index: 20, kind: input, shape index: {}]
  %s21 = inlined_call_operand.hbm [shape: f32[2,1,10], index: 21, kind: output, shape index: {}]
  %s22 = sld [smem:[#allocation0]]
  $region117: #{qtinyspeech_forward.1} parent=0
    _
  %s24 = ssub.s32 1, %s22
  %s25 = scalar_select 0, %s24, %s22
  $region1: #{qtinyspeech_forward.1} parent=0
    #allocation2 [shape = 'u8[1024]{0}', space=vmem, size = 0x400, scoped, tag = 'output window, operand 0']
    #allocation3 [shape = 's32[2]{0}', space=sflag, size = 0x8, scoped, tag = 'scoped memory for qtinyspeech_forward.1']
    %26 = vsyncpa [#allocation3], 0
    %s27 = scalar_lea.sflag [#allocation3], 1
    %28 = vsyncpa %s27, 0
    loop: start=0, step=1, limit=4
    $region2: #{qtinyspeech_forward.1} parent=1 // loop_pre_header
      _
    $region3: #{qtinyspeech_forward.1} parent=1 // loop_header
      %s30 = sphi 0, %s34
      %p31 = scmp.ge.s32.totalorder %s30, 4
      %s40 = sphi 0, %s42
      %s43 = sphi 0, %s40
      %s44 = sphi 0, %s43
      %s60 = sphi 0, %s44
      %s64 = sphi 0, %s64
      %s66 = sphi 0, %s64
      %s67 = sphi 0, %s66
      %s81 = sphi 0, %s67
      %s85 = sphi 0, %s85
      %s87 = sphi 0, %s85
      %s88 = sphi 0, %s87
      %s102 = sphi 0, %s88
      %s106 = sphi 0, %s106
      %s108 = sphi 0, %s106
      %s109 = sphi 0, %s108
      %s123 = sphi 0, %s109
      %s127 = sphi 0, %s127
      %s129 = sphi 0, %s127
      %s130 = sphi 0, %s129
      %s144 = sphi 0, %s130
      %s148 = sphi 0, %s148
      %s150 = sphi 0, %s148
      %s151 = sphi 0, %s150
      %s165 = sphi 0, %s151
      %s169 = sphi 0, %s169
      %s171 = sphi 0, %s169
      %s172 = sphi 0, %s171
      %s186 = sphi 0, %s172
      %s190 = sphi 0, %s190
      %s192 = sphi 0, %s190
      %s193 = sphi 0, %s192
      %s207 = sphi 0, %s193
      %s211 = sphi 0, %s211
      %s213 = sphi 0, %s211
      %s214 = sphi 0, %s213
      %s228 = sphi 0, %s214
      %s232 = sphi 0, %s232
      %s234 = sphi 0, %s232
      %s235 = sphi 0, %s234
      %s249 = sphi 0, %s235
      %s253 = sphi 0, %s253
      %s255 = sphi 0, %s253
      %s256 = sphi 0, %s255
      %s270 = sphi 0, %s256
      %s274 = sphi 0, %s274
      %s276 = sphi 0, %s274
      %s277 = sphi 0, %s276
      %s291 = sphi 0, %s277
      %s295 = sphi 0, %s295
      %s297 = sphi 0, %s295
      %s298 = sphi 0, %s297
      %s312 = sphi 0, %s298
      %s316 = sphi 0, %s316
      %s318 = sphi 0, %s316
      %s319 = sphi 0, %s318
      %s333 = sphi 0, %s319
      %s337 = sphi 0, %s337
      %s339 = sphi 0, %s337
      %s340 = sphi 0, %s339
      %s354 = sphi 0, %s340
      %s358 = sphi 0, %s358
      %s360 = sphi 0, %s358
      %s361 = sphi 0, %s360
      %s375 = sphi 0, %s361
      %s379 = sphi 0, %s379
      %s381 = sphi 0, %s379
      %s382 = sphi 0, %s381
      %s396 = sphi 0, %s382
      %s400 = sphi 0, %s400
      %s402 = sphi 0, %s400
      %s403 = sphi 0, %s402
      %s417 = sphi 0, %s403
      %s421 = sphi 0, %s421
      %s423 = sphi 0, %s421
      %s424 = sphi 0, %s423
      %s438 = sphi 0, %s424
      %s442 = sphi 0, %s442
      %s444 = sphi 0, %s442
      %s445 = sphi 0, %s444
      %s459 = sphi 0, %s445
      %s463 = sphi 0, %s463
      %s465 = sphi 0, %s463
      %s466 = sphi 0, %s465
      %s480 = sphi 0, %s466
      %s486 = sphi 0, %s488
      %s489 = sphi 0, %s486
      %s490 = sphi 0, %s489
      %s506 = sphi 0, %s490
    $region4: #{qtinyspeech_forward.1} parent=1 // loop_header_branch
      %33 = sbr.rel (%p31) target = $region8
    $region5: #{qtinyspeech_forward.1} parent=1 // loop_body
      %s35 = ssub.s32 %s30, 1
      %s36 = ssub.s32 %s30, 2
      %s37 = sadd.s32 %s30, 1
      %s38 = ssub.s32 %s30, %s37
      %p39 = scmp.eq.s32.totalorder %s38, 0
      %s41 = sadd.s32 %s40, 1
      %s42 = scalar_select %p39, %s40, %s41
      %p45 = pneg %p39
      %p46 = scmp.eq.s32.totalorder %s30, 1
      %p47 = por %p45, %p46
      %p48 = scmp.ne.s32.totalorder %s40, %s43
      %p49 = scmp.eq.s32.totalorder %s30, 0
      %p50 = por %p48, %p49
      %p51 = scmp.ne.s32.totalorder %s40, %s43
      %p52 = scmp.eq.s32.totalorder %s35, 1
      %p53 = por %p51, %p52
      %p54 = scmp.ne.s32.totalorder %s43, %s44
      %p55 = scmp.eq.s32.totalorder %s35, 0
      %p56 = por %p54, %p55
      %p57 = scmp.ne.s32.totalorder %s43, %s44
      %p58 = scmp.eq.s32.totalorder %s36, 1
      %p59 = por %p57, %p58
      %p61 = scmp.ne.s32.totalorder %s44, %s60
      %p62 = scmp.eq.s32.totalorder %s36, 0
      %p63 = por %p61, %p62
      %s65 = sadd.s32 %s64, 1
      %p68 = scmp.eq.s32.totalorder %s30, 1
      %p69 = scmp.ne.s32.totalorder %s64, %s66
      %p70 = scmp.eq.s32.totalorder %s30, 0
      %p71 = por %p69, %p70
      %p72 = scmp.ne.s32.totalorder %s64, %s66
      %p73 = scmp.eq.s32.totalorder %s35, 1
      %p74 = por %p72, %p73
      %p75 = scmp.ne.s32.totalorder %s66, %s67
      %p76 = scmp.eq.s32.totalorder %s35, 0
      %p77 = por %p75, %p76
      %p78 = scmp.ne.s32.totalorder %s66, %s67
      %p79 = scmp.eq.s32.totalorder %s36, 1
      %p80 = por %p78, %p79
      %p82 = scmp.ne.s32.totalorder %s67, %s81
      %p83 = scmp.eq.s32.totalorder %s36, 0
      %p84 = por %p82, %p83
      %s86 = sadd.s32 %s85, 1
      %p89 = scmp.eq.s32.totalorder %s30, 1
      %p90 = scmp.ne.s32.totalorder %s85, %s87
      %p91 = scmp.eq.s32.totalorder %s30, 0
      %p92 = por %p90, %p91
      %p93 = scmp.ne.s32.totalorder %s85, %s87
      %p94 = scmp.eq.s32.totalorder %s35, 1
      %p95 = por %p93, %p94
      %p96 = scmp.ne.s32.totalorder %s87, %s88
      %p97 = scmp.eq.s32.totalorder %s35, 0
      %p98 = por %p96, %p97
      %p99 = scmp.ne.s32.totalorder %s87, %s88
      %p100 = scmp.eq.s32.totalorder %s36, 1
      %p101 = por %p99, %p100
      %p103 = scmp.ne.s32.totalorder %s88, %s102
      %p104 = scmp.eq.s32.totalorder %s36, 0
      %p105 = por %p103, %p104
      %s107 = sadd.s32 %s106, 1
      %p110 = scmp.eq.s32.totalorder %s30, 1
      %p111 = scmp.ne.s32.totalorder %s106, %s108
      %p112 = scmp.eq.s32.totalorder %s30, 0
      %p113 = por %p111, %p112
      %p114 = scmp.ne.s32.totalorder %s106, %s108
      %p115 = scmp.eq.s32.totalorder %s35, 1
      %p116 = por %p114, %p115
      %p117 = scmp.ne.s32.totalorder %s108, %s109
      %p118 = scmp.eq.s32.totalorder %s35, 0
      %p119 = por %p117, %p118
      %p120 = scmp.ne.s32.totalorder %s108, %s109
      %p121 = scmp.eq.s32.totalorder %s36, 1
      %p122 = por %p120, %p121
      %p124 = scmp.ne.s32.totalorder %s109, %s123
      %p125 = scmp.eq.s32.totalorder %s36, 0
      %p126 = por %p124, %p125
      %s128 = sadd.s32 %s127, 1
      %p131 = scmp.eq.s32.totalorder %s30, 1
      %p132 = scmp.ne.s32.totalorder %s127, %s129
      %p133 = scmp.eq.s32.totalorder %s30, 0
      %p134 = por %p132, %p133
      %p135 = scmp.ne.s32.totalorder %s127, %s129
      %p136 = scmp.eq.s32.totalorder %s35, 1
      %p137 = por %p135, %p136
      %p138 = scmp.ne.s32.totalorder %s129, %s130
      %p139 = scmp.eq.s32.totalorder %s35, 0
      %p140 = por %p138, %p139
      %p141 = scmp.ne.s32.totalorder %s129, %s130
      %p142 = scmp.eq.s32.totalorder %s36, 1
      %p143 = por %p141, %p142
      %p145 = scmp.ne.s32.totalorder %s130, %s144
      %p146 = scmp.eq.s32.totalorder %s36, 0
      %p147 = por %p145, %p146
      %s149 = sadd.s32 %s148, 1
      %p152 = scmp.eq.s32.totalorder %s30, 1
      %p153 = scmp.ne.s32.totalorder %s148, %s150
      %p154 = scmp.eq.s32.totalorder %s30, 0
      %p155 = por %p153, %p154
      %p156 = scmp.ne.s32.totalorder %s148, %s150
      %p157 = scmp.eq.s32.totalorder %s35, 1
      %p158 = por %p156, %p157
      %p159 = scmp.ne.s32.totalorder %s150, %s151
      %p160 = scmp.eq.s32.totalorder %s35, 0
      %p161 = por %p159, %p160
      %p162 = scmp.ne.s32.totalorder %s150, %s151
      %p163 = scmp.eq.s32.totalorder %s36, 1
      %p164 = por %p162, %p163
      %p166 = scmp.ne.s32.totalorder %s151, %s165
      %p167 = scmp.eq.s32.totalorder %s36, 0
      %p168 = por %p166, %p167
      %s170 = sadd.s32 %s169, 1
      %p173 = scmp.eq.s32.totalorder %s30, 1
      %p174 = scmp.ne.s32.totalorder %s169, %s171
      %p175 = scmp.eq.s32.totalorder %s30, 0
      %p176 = por %p174, %p175
      %p177 = scmp.ne.s32.totalorder %s169, %s171
      %p178 = scmp.eq.s32.totalorder %s35, 1
      %p179 = por %p177, %p178
      %p180 = scmp.ne.s32.totalorder %s171, %s172
      %p181 = scmp.eq.s32.totalorder %s35, 0
      %p182 = por %p180, %p181
      %p183 = scmp.ne.s32.totalorder %s171, %s172
      %p184 = scmp.eq.s32.totalorder %s36, 1
      %p185 = por %p183, %p184
      %p187 = scmp.ne.s32.totalorder %s172, %s186
      %p188 = scmp.eq.s32.totalorder %s36, 0
      %p189 = por %p187, %p188
      %s191 = sadd.s32 %s190, 1
      %p194 = scmp.eq.s32.totalorder %s30, 1
      %p195 = scmp.ne.s32.totalorder %s190, %s192
      %p196 = scmp.eq.s32.totalorder %s30, 0
      %p197 = por %p195, %p196
      %p198 = scmp.ne.s32.totalorder %s190, %s192
      %p199 = scmp.eq.s32.totalorder %s35, 1
      %p200 = por %p198, %p199
      %p201 = scmp.ne.s32.totalorder %s192, %s193
      %p202 = scmp.eq.s32.totalorder %s35, 0
      %p203 = por %p201, %p202
      %p204 = scmp.ne.s32.totalorder %s192, %s193
      %p205 = scmp.eq.s32.totalorder %s36, 1
      %p206 = por %p204, %p205
      %p208 = scmp.ne.s32.totalorder %s193, %s207
      %p209 = scmp.eq.s32.totalorder %s36, 0
      %p210 = por %p208, %p209
      %s212 = sadd.s32 %s211, 1
      %p215 = scmp.eq.s32.totalorder %s30, 1
      %p216 = scmp.ne.s32.totalorder %s211, %s213
      %p217 = scmp.eq.s32.totalorder %s30, 0
      %p218 = por %p216, %p217
      %p219 = scmp.ne.s32.totalorder %s211, %s213
      %p220 = scmp.eq.s32.totalorder %s35, 1
      %p221 = por %p219, %p220
      %p222 = scmp.ne.s32.totalorder %s213, %s214
      %p223 = scmp.eq.s32.totalorder %s35, 0
      %p224 = por %p222, %p223
      %p225 = scmp.ne.s32.totalorder %s213, %s214
      %p226 = scmp.eq.s32.totalorder %s36, 1
      %p227 = por %p225, %p226
      %p229 = scmp.ne.s32.totalorder %s214, %s228
      %p230 = scmp.eq.s32.totalorder %s36, 0
      %p231 = por %p229, %p230
      %s233 = sadd.s32 %s232, 1
      %p236 = scmp.eq.s32.totalorder %s30, 1
      %p237 = scmp.ne.s32.totalorder %s232, %s234
      %p238 = scmp.eq.s32.totalorder %s30, 0
      %p239 = por %p237, %p238
      %p240 = scmp.ne.s32.totalorder %s232, %s234
      %p241 = scmp.eq.s32.totalorder %s35, 1
      %p242 = por %p240, %p241
      %p243 = scmp.ne.s32.totalorder %s234, %s235
      %p244 = scmp.eq.s32.totalorder %s35, 0
      %p245 = por %p243, %p244
      %p246 = scmp.ne.s32.totalorder %s234, %s235
      %p247 = scmp.eq.s32.totalorder %s36, 1
      %p248 = por %p246, %p247
      %p250 = scmp.ne.s32.totalorder %s235, %s249
      %p251 = scmp.eq.s32.totalorder %s36, 0
      %p252 = por %p250, %p251
      %s254 = sadd.s32 %s253, 1
      %p257 = scmp.eq.s32.totalorder %s30, 1
      %p258 = scmp.ne.s32.totalorder %s253, %s255
      %p259 = scmp.eq.s32.totalorder %s30, 0
      %p260 = por %p258, %p259
      %p261 = scmp.ne.s32.totalorder %s253, %s255
      %p262 = scmp.eq.s32.totalorder %s35, 1
      %p263 = por %p261, %p262
      %p264 = scmp.ne.s32.totalorder %s255, %s256
      %p265 = scmp.eq.s32.totalorder %s35, 0
      %p266 = por %p264, %p265
      %p267 = scmp.ne.s32.totalorder %s255, %s256
      %p268 = scmp.eq.s32.totalorder %s36, 1
      %p269 = por %p267, %p268
      %p271 = scmp.ne.s32.totalorder %s256, %s270
      %p272 = scmp.eq.s32.totalorder %s36, 0
      %p273 = por %p271, %p272
      %s275 = sadd.s32 %s274, 1
      %p278 = scmp.eq.s32.totalorder %s30, 1
      %p279 = scmp.ne.s32.totalorder %s274, %s276
      %p280 = scmp.eq.s32.totalorder %s30, 0
      %p281 = por %p279, %p280
      %p282 = scmp.ne.s32.totalorder %s274, %s276
      %p283 = scmp.eq.s32.totalorder %s35, 1
      %p284 = por %p282, %p283
      %p285 = scmp.ne.s32.totalorder %s276, %s277
      %p286 = scmp.eq.s32.totalorder %s35, 0
      %p287 = por %p285, %p286
      %p288 = scmp.ne.s32.totalorder %s276, %s277
      %p289 = scmp.eq.s32.totalorder %s36, 1
      %p290 = por %p288, %p289
      %p292 = scmp.ne.s32.totalorder %s277, %s291
      %p293 = scmp.eq.s32.totalorder %s36, 0
      %p294 = por %p292, %p293
      %s296 = sadd.s32 %s295, 1
      %p299 = scmp.eq.s32.totalorder %s30, 1
      %p300 = scmp.ne.s32.totalorder %s295, %s297
      %p301 = scmp.eq.s32.totalorder %s30, 0
      %p302 = por %p300, %p301
      %p303 = scmp.ne.s32.totalorder %s295, %s297
      %p304 = scmp.eq.s32.totalorder %s35, 1
      %p305 = por %p303, %p304
      %p306 = scmp.ne.s32.totalorder %s297, %s298
      %p307 = scmp.eq.s32.totalorder %s35, 0
      %p308 = por %p306, %p307
      %p309 = scmp.ne.s32.totalorder %s297, %s298
      %p310 = scmp.eq.s32.totalorder %s36, 1
      %p311 = por %p309, %p310
      %p313 = scmp.ne.s32.totalorder %s298, %s312
      %p314 = scmp.eq.s32.totalorder %s36, 0
      %p315 = por %p313, %p314
      %s317 = sadd.s32 %s316, 1
      %p320 = scmp.eq.s32.totalorder %s30, 1
      %p321 = scmp.ne.s32.totalorder %s316, %s318
      %p322 = scmp.eq.s32.totalorder %s30, 0
      %p323 = por %p321, %p322
      %p324 = scmp.ne.s32.totalorder %s316, %s318
      %p325 = scmp.eq.s32.totalorder %s35, 1
      %p326 = por %p324, %p325
      %p327 = scmp.ne.s32.totalorder %s318, %s319
      %p328 = scmp.eq.s32.totalorder %s35, 0
      %p329 = por %p327, %p328
      %p330 = scmp.ne.s32.totalorder %s318, %s319
      %p331 = scmp.eq.s32.totalorder %s36, 1
      %p332 = por %p330, %p331
      %p334 = scmp.ne.s32.totalorder %s319, %s333
      %p335 = scmp.eq.s32.totalorder %s36, 0
      %p336 = por %p334, %p335
      %s338 = sadd.s32 %s337, 1
      %p341 = scmp.eq.s32.totalorder %s30, 1
      %p342 = scmp.ne.s32.totalorder %s337, %s339
      %p343 = scmp.eq.s32.totalorder %s30, 0
      %p344 = por %p342, %p343
      %p345 = scmp.ne.s32.totalorder %s337, %s339
      %p346 = scmp.eq.s32.totalorder %s35, 1
      %p347 = por %p345, %p346
      %p348 = scmp.ne.s32.totalorder %s339, %s340
      %p349 = scmp.eq.s32.totalorder %s35, 0
      %p350 = por %p348, %p349
      %p351 = scmp.ne.s32.totalorder %s339, %s340
      %p352 = scmp.eq.s32.totalorder %s36, 1
      %p353 = por %p351, %p352
      %p355 = scmp.ne.s32.totalorder %s340, %s354
      %p356 = scmp.eq.s32.totalorder %s36, 0
      %p357 = por %p355, %p356
      %s359 = sadd.s32 %s358, 1
      %p362 = scmp.eq.s32.totalorder %s30, 1
      %p363 = scmp.ne.s32.totalorder %s358, %s360
      %p364 = scmp.eq.s32.totalorder %s30, 0
      %p365 = por %p363, %p364
      %p366 = scmp.ne.s32.totalorder %s358, %s360
      %p367 = scmp.eq.s32.totalorder %s35, 1
      %p368 = por %p366, %p367
      %p369 = scmp.ne.s32.totalorder %s360, %s361
      %p370 = scmp.eq.s32.totalorder %s35, 0
      %p371 = por %p369, %p370
      %p372 = scmp.ne.s32.totalorder %s360, %s361
      %p373 = scmp.eq.s32.totalorder %s36, 1
      %p374 = por %p372, %p373
      %p376 = scmp.ne.s32.totalorder %s361, %s375
      %p377 = scmp.eq.s32.totalorder %s36, 0
      %p378 = por %p376, %p377
      %s380 = sadd.s32 %s379, 1
      %p383 = scmp.eq.s32.totalorder %s30, 1
      %p384 = scmp.ne.s32.totalorder %s379, %s381
      %p385 = scmp.eq.s32.totalorder %s30, 0
      %p386 = por %p384, %p385
      %p387 = scmp.ne.s32.totalorder %s379, %s381
      %p388 = scmp.eq.s32.totalorder %s35, 1
      %p389 = por %p387, %p388
      %p390 = scmp.ne.s32.totalorder %s381, %s382
      %p391 = scmp.eq.s32.totalorder %s35, 0
      %p392 = por %p390, %p391
      %p393 = scmp.ne.s32.totalorder %s381, %s382
      %p394 = scmp.eq.s32.totalorder %s36, 1
      %p395 = por %p393, %p394
      %p397 = scmp.ne.s32.totalorder %s382, %s396
      %p398 = scmp.eq.s32.totalorder %s36, 0
      %p399 = por %p397, %p398
      %s401 = sadd.s32 %s400, 1
      %p404 = scmp.eq.s32.totalorder %s30, 1
      %p405 = scmp.ne.s32.totalorder %s400, %s402
      %p406 = scmp.eq.s32.totalorder %s30, 0
      %p407 = por %p405, %p406
      %p408 = scmp.ne.s32.totalorder %s400, %s402
      %p409 = scmp.eq.s32.totalorder %s35, 1
      %p410 = por %p408, %p409
      %p411 = scmp.ne.s32.totalorder %s402, %s403
      %p412 = scmp.eq.s32.totalorder %s35, 0
      %p413 = por %p411, %p412
      %p414 = scmp.ne.s32.totalorder %s402, %s403
      %p415 = scmp.eq.s32.totalorder %s36, 1
      %p416 = por %p414, %p415
      %p418 = scmp.ne.s32.totalorder %s403, %s417
      %p419 = scmp.eq.s32.totalorder %s36, 0
      %p420 = por %p418, %p419
      %s422 = sadd.s32 %s421, 1
      %p425 = scmp.eq.s32.totalorder %s30, 1
      %p426 = scmp.ne.s32.totalorder %s421, %s423
      %p427 = scmp.eq.s32.totalorder %s30, 0
      %p428 = por %p426, %p427
      %p429 = scmp.ne.s32.totalorder %s421, %s423
      %p430 = scmp.eq.s32.totalorder %s35, 1
      %p431 = por %p429, %p430
      %p432 = scmp.ne.s32.totalorder %s423, %s424
      %p433 = scmp.eq.s32.totalorder %s35, 0
      %p434 = por %p432, %p433
      %p435 = scmp.ne.s32.totalorder %s423, %s424
      %p436 = scmp.eq.s32.totalorder %s36, 1
      %p437 = por %p435, %p436
      %p439 = scmp.ne.s32.totalorder %s424, %s438
      %p440 = scmp.eq.s32.totalorder %s36, 0
      %p441 = por %p439, %p440
      %s443 = sadd.s32 %s442, 1
      %p446 = scmp.eq.s32.totalorder %s30, 1
      %p447 = scmp.ne.s32.totalorder %s442, %s444
      %p448 = scmp.eq.s32.totalorder %s30, 0
      %p449 = por %p447, %p448
      %p450 = scmp.ne.s32.totalorder %s442, %s444
      %p451 = scmp.eq.s32.totalorder %s35, 1
      %p452 = por %p450, %p451
      %p453 = scmp.ne.s32.totalorder %s444, %s445
      %p454 = scmp.eq.s32.totalorder %s35, 0
      %p455 = por %p453, %p454
      %p456 = scmp.ne.s32.totalorder %s444, %s445
      %p457 = scmp.eq.s32.totalorder %s36, 1
      %p458 = por %p456, %p457
      %p460 = scmp.ne.s32.totalorder %s445, %s459
      %p461 = scmp.eq.s32.totalorder %s36, 0
      %p462 = por %p460, %p461
      %s464 = sadd.s32 %s463, 1
      %p467 = scmp.eq.s32.totalorder %s30, 1
      %p468 = scmp.ne.s32.totalorder %s463, %s465
      %p469 = scmp.eq.s32.totalorder %s30, 0
      %p470 = por %p468, %p469
      %p471 = scmp.ne.s32.totalorder %s463, %s465
      %p472 = scmp.eq.s32.totalorder %s35, 1
      %p473 = por %p471, %p472
      %p474 = scmp.ne.s32.totalorder %s465, %s466
      %p475 = scmp.eq.s32.totalorder %s35, 0
      %p476 = por %p474, %p475
      %p477 = scmp.ne.s32.totalorder %s465, %s466
      %p478 = scmp.eq.s32.totalorder %s36, 1
      %p479 = por %p477, %p478
      %p481 = scmp.ne.s32.totalorder %s466, %s480
      %p482 = scmp.eq.s32.totalorder %s36, 0
      %p483 = por %p481, %p482
      %s484 = ssub.s32 %s30, %s37
      %p485 = scmp.eq.s32.totalorder %s484, 0
      %s487 = sadd.s32 %s486, 1
      %s488 = scalar_select %p485, %s486, %s487
      %p491 = pneg %p485
      %p492 = scmp.eq.s32.totalorder %s30, 1
      %p493 = por %p491, %p492
      %p494 = scmp.ne.s32.totalorder %s486, %s489
      %p495 = scmp.eq.s32.totalorder %s30, 0
      %p496 = por %p494, %p495
      %p497 = scmp.ne.s32.totalorder %s486, %s489
      %p498 = scmp.eq.s32.totalorder %s35, 1
      %p499 = por %p497, %p498
      %p500 = scmp.ne.s32.totalorder %s489, %s490
      %p501 = scmp.eq.s32.totalorder %s35, 0
      %p502 = por %p500, %p501
      %p503 = scmp.ne.s32.totalorder %s489, %s490
      %p504 = scmp.eq.s32.totalorder %s36, 1
      %p505 = por %p503, %p504
      %p507 = scmp.ne.s32.totalorder %s490, %s506
      %p508 = scmp.eq.s32.totalorder %s36, 0
      %p509 = por %p507, %p508
      %p510 = scmp.le.s32.totalorder 1, %s30
      %p511 = scmp.lt.s32.totalorder %s30, 3
      %p512 = pnand %p510, %p511
      %p513 = pneg %p512
      // Predicated region
      $region9: #{qtinyspeech_forward.1} parent=5 // pred_check
        _
      $region10: #{qtinyspeech_forward.1} parent=5 // pred_check_branch
        %515 = sbr.rel (%p512) target = $region12
      $region11: #{qtinyspeech_forward.1} parent=5 // pred_region
        %s516 = ssub.s32 %s30, 1
        // Predicated region
        $region13: #{qtinyspeech_forward.1} parent=11 // pred_check
          %p517 = pneg %p77
        $region14: #{qtinyspeech_forward.1} parent=11 // pred_check_branch
          %519 = sbr.rel (%p517) target = $region16
        $region15: #{qtinyspeech_forward.1} parent=11 // pred_region
          _
        $region16: #{qtinyspeech_forward.1} parent=11 // pred_fallthru
          _
        // Predicated region
        $region17: #{qtinyspeech_forward.1} parent=11 // pred_check
          %p520 = pneg %p98
        $region18: #{qtinyspeech_forward.1} parent=11 // pred_check_branch
          %522 = sbr.rel (%p520) target = $region20
        $region19: #{qtinyspeech_forward.1} parent=11 // pred_region
          _
        $region20: #{qtinyspeech_forward.1} parent=11 // pred_fallthru
          _
        // Predicated region
        $region21: #{qtinyspeech_forward.1} parent=11 // pred_check
          %p523 = pneg %p119
        $region22: #{qtinyspeech_forward.1} parent=11 // pred_check_branch
          %525 = sbr.rel (%p523) target = $region24
        $region23: #{qtinyspeech_forward.1} parent=11 // pred_region
          _
        $region24: #{qtinyspeech_forward.1} parent=11 // pred_fallthru
          _
        // Predicated region
        $region25: #{qtinyspeech_forward.1} parent=11 // pred_check
          %p526 = pneg %p140
        $region26: #{qtinyspeech_forward.1} parent=11 // pred_check_branch
          %528 = sbr.rel (%p526) target = $region28
        $region27: #{qtinyspeech_forward.1} parent=11 // pred_region
          _
        $region28: #{qtinyspeech_forward.1} parent=11 // pred_fallthru
          _
        // Predicated region
        $region29: #{qtinyspeech_forward.1} parent=11 // pred_check
          %p529 = pneg %p161
        $region30: #{qtinyspeech_forward.1} parent=11 // pred_check_branch
          %531 = sbr.rel (%p529) target = $region32
        $region31: #{qtinyspeech_forward.1} parent=11 // pred_region
          _
        $region32: #{qtinyspeech_forward.1} parent=11 // pred_fallthru
          _
        // Predicated region
        $region33: #{qtinyspeech_forward.1} parent=11 // pred_check
          %p532 = pneg %p182
        $region34: #{qtinyspeech_forward.1} parent=11 // pred_check_branch
          %534 = sbr.rel (%p532) target = $region36
        $region35: #{qtinyspeech_forward.1} parent=11 // pred_region
          _
        $region36: #{qtinyspeech_forward.1} parent=11 // pred_fallthru
          _
        // Predicated region
        $region37: #{qtinyspeech_forward.1} parent=11 // pred_check
          %p535 = pneg %p203
        $region38: #{qtinyspeech_forward.1} parent=11 // pred_check_branch
          %537 = sbr.rel (%p535) target = $region40
        $region39: #{qtinyspeech_forward.1} parent=11 // pred_region
          _
        $region40: #{qtinyspeech_forward.1} parent=11 // pred_fallthru
          _
        // Predicated region
        $region41: #{qtinyspeech_forward.1} parent=11 // pred_check
          %p538 = pneg %p224
        $region42: #{qtinyspeech_forward.1} parent=11 // pred_check_branch
          %540 = sbr.rel (%p538) target = $region44
        $region43: #{qtinyspeech_forward.1} parent=11 // pred_region
          _
        $region44: #{qtinyspeech_forward.1} parent=11 // pred_fallthru
          _
        // Predicated region
        $region45: #{qtinyspeech_forward.1} parent=11 // pred_check
          %p541 = pneg %p245
        $region46: #{qtinyspeech_forward.1} parent=11 // pred_check_branch
          %543 = sbr.rel (%p541) target = $region48
        $region47: #{qtinyspeech_forward.1} parent=11 // pred_region
          _
        $region48: #{qtinyspeech_forward.1} parent=11 // pred_fallthru
          _
        // Predicated region
        $region49: #{qtinyspeech_forward.1} parent=11 // pred_check
          %p544 = pneg %p266
        $region50: #{qtinyspeech_forward.1} parent=11 // pred_check_branch
          %546 = sbr.rel (%p544) target = $region52
        $region51: #{qtinyspeech_forward.1} parent=11 // pred_region
          _
        $region52: #{qtinyspeech_forward.1} parent=11 // pred_fallthru
          _
        // Predicated region
        $region53: #{qtinyspeech_forward.1} parent=11 // pred_check
          %p547 = pneg %p287
        $region54: #{qtinyspeech_forward.1} parent=11 // pred_check_branch
          %549 = sbr.rel (%p547) target = $region56
        $region55: #{qtinyspeech_forward.1} parent=11 // pred_region
          _
        $region56: #{qtinyspeech_forward.1} parent=11 // pred_fallthru
          _
        // Predicated region
        $region57: #{qtinyspeech_forward.1} parent=11 // pred_check
          %p550 = pneg %p308
        $region58: #{qtinyspeech_forward.1} parent=11 // pred_check_branch
          %552 = sbr.rel (%p550) target = $region60
        $region59: #{qtinyspeech_forward.1} parent=11 // pred_region
          _
        $region60: #{qtinyspeech_forward.1} parent=11 // pred_fallthru
          _
        // Predicated region
        $region61: #{qtinyspeech_forward.1} parent=11 // pred_check
          %p553 = pneg %p329
        $region62: #{qtinyspeech_forward.1} parent=11 // pred_check_branch
          %555 = sbr.rel (%p553) target = $region64
        $region63: #{qtinyspeech_forward.1} parent=11 // pred_region
          _
        $region64: #{qtinyspeech_forward.1} parent=11 // pred_fallthru
          _
        // Predicated region
        $region65: #{qtinyspeech_forward.1} parent=11 // pred_check
          %p556 = pneg %p350
        $region66: #{qtinyspeech_forward.1} parent=11 // pred_check_branch
          %558 = sbr.rel (%p556) target = $region68
        $region67: #{qtinyspeech_forward.1} parent=11 // pred_region
          _
        $region68: #{qtinyspeech_forward.1} parent=11 // pred_fallthru
          _
        // Predicated region
        $region69: #{qtinyspeech_forward.1} parent=11 // pred_check
          %p559 = pneg %p371
        $region70: #{qtinyspeech_forward.1} parent=11 // pred_check_branch
          %561 = sbr.rel (%p559) target = $region72
        $region71: #{qtinyspeech_forward.1} parent=11 // pred_region
          _
        $region72: #{qtinyspeech_forward.1} parent=11 // pred_fallthru
          _
        // Predicated region
        $region73: #{qtinyspeech_forward.1} parent=11 // pred_check
          %p562 = pneg %p392
        $region74: #{qtinyspeech_forward.1} parent=11 // pred_check_branch
          %564 = sbr.rel (%p562) target = $region76
        $region75: #{qtinyspeech_forward.1} parent=11 // pred_region
          _
        $region76: #{qtinyspeech_forward.1} parent=11 // pred_fallthru
          _
        // Predicated region
        $region77: #{qtinyspeech_forward.1} parent=11 // pred_check
          %p565 = pneg %p413
        $region78: #{qtinyspeech_forward.1} parent=11 // pred_check_branch
          %567 = sbr.rel (%p565) target = $region80
        $region79: #{qtinyspeech_forward.1} parent=11 // pred_region
          _
        $region80: #{qtinyspeech_forward.1} parent=11 // pred_fallthru
          _
        // Predicated region
        $region81: #{qtinyspeech_forward.1} parent=11 // pred_check
          %p568 = pneg %p434
        $region82: #{qtinyspeech_forward.1} parent=11 // pred_check_branch
          %570 = sbr.rel (%p568) target = $region84
        $region83: #{qtinyspeech_forward.1} parent=11 // pred_region
          _
        $region84: #{qtinyspeech_forward.1} parent=11 // pred_fallthru
          _
        // Predicated region
        $region85: #{qtinyspeech_forward.1} parent=11 // pred_check
          %p571 = pneg %p455
        $region86: #{qtinyspeech_forward.1} parent=11 // pred_check_branch
          %573 = sbr.rel (%p571) target = $region88
        $region87: #{qtinyspeech_forward.1} parent=11 // pred_region
          _
        $region88: #{qtinyspeech_forward.1} parent=11 // pred_fallthru
          _
        // Predicated region
        $region89: #{qtinyspeech_forward.1} parent=11 // pred_check
          %p574 = pneg %p476
        $region90: #{qtinyspeech_forward.1} parent=11 // pred_check_branch
          %576 = sbr.rel (%p574) target = $region92
        $region91: #{qtinyspeech_forward.1} parent=11 // pred_region
          _
        $region92: #{qtinyspeech_forward.1} parent=11 // pred_fallthru
          _
      $region12: #{qtinyspeech_forward.1} parent=5 // pred_fallthru
        _
      %p577 = scmp.lt.s32.totalorder %s30, 2
      // Predicated region
      $region93: #{qtinyspeech_forward.1} parent=5 // pred_check
        %p578 = pneg %p577
      $region94: #{qtinyspeech_forward.1} parent=5 // pred_check_branch
        %580 = sbr.rel (%p578) target = $region96
      $region95: #{qtinyspeech_forward.1} parent=5 // pred_region
        // Predicated region
        $region97: #{qtinyspeech_forward.1} parent=95 // pred_check
          %p581 = pneg %p50
        $region98: #{qtinyspeech_forward.1} parent=95 // pred_check_branch
          %583 = sbr.rel (%p581) target = $region100
        $region99: #{qtinyspeech_forward.1} parent=95 // pred_region
          %p584 = scmp.lt.s32.totalorder %s30, 1
          %s585 = scalar_select %p584, %s30, 1
          %s586 = smul.addr %s585, 2
          %s587 = scalar_lea.vmem %s0, %s586
        $region100: #{qtinyspeech_forward.1} parent=95 // pred_fallthru
          _
      $region96: #{qtinyspeech_forward.1} parent=5 // pred_fallthru
        _
      %p588 = scmp.le.s32.totalorder 1, %s30
      %p589 = scmp.lt.s32.totalorder %s30, 3
      %p590 = pnand %p588, %p589
      %p591 = pneg %p590
      // Predicated region
      $region101: #{qtinyspeech_forward.1} parent=5 // pred_check
        _
      $region102: #{qtinyspeech_forward.1} parent=5 // pred_check_branch
        %593 = sbr.rel (%p590) target = $region104
      $region103: #{qtinyspeech_forward.1} parent=5 // pred_region
        %s594 = ssub.s32 %s30, 1
        %p595 = scmp.lt.s32.totalorder %s35, 1
        %s596 = scalar_select %p595, %s35, 1
        %s597 = smul.addr %s596, 2
        %s598 = scalar_lea.vmem %s0, %s597
        %p599 = pneg %p56
        %p600 = pneg %p53
        %p601 = pneg %p77
        %p602 = pneg %p74
        %p603 = pneg %p98
        %p604 = pneg %p95
        %p605 = pneg %p119
        %p606 = pneg %p116
        %p607 = pneg %p140
        %p608 = pneg %p137
        %p609 = pneg %p161
        %p610 = pneg %p158
        %p611 = pneg %p182
        %p612 = pneg %p179
        %p613 = pneg %p203
        %p614 = pneg %p200
        %p615 = pneg %p224
        %p616 = pneg %p221
        %p617 = pneg %p245
        %p618 = pneg %p242
        %p619 = pneg %p266
        %p620 = pneg %p263
        %p621 = pneg %p287
        %p622 = pneg %p284
        %p623 = pneg %p308
        %p624 = pneg %p305
        %p625 = pneg %p329
        %p626 = pneg %p326
        %p627 = pneg %p350
        %p628 = pneg %p347
        %p629 = pneg %p371
        %p630 = pneg %p368
        %p631 = pneg %p392
        %p632 = pneg %p389
        %p633 = pneg %p413
        %p634 = pneg %p410
        %p635 = pneg %p434
        %p636 = pneg %p431
        %p637 = pneg %p455
        %p638 = pneg %p452
        %p639 = pneg %p476
        %p640 = pneg %p473
        %p641 = pneg %p502
        %p642 = pneg %p499
        %s643 = sand.u32 %s489, 1
        %s644 = scalar_lea.sflag [#allocation3], %s643
        %s645 = sand.u32 %s489, 1
        %s646 = scalar_lea.vmem [#allocation2], %s645
        %p647 = scmp.lt.s32.totalorder %s35, 1
        %s648 = scalar_select %p647, %s35, 1
        %s649 = smul.addr %s648, 2
        %s650 = scalar_lea.vmem %s0, %s649
        %v651 = vld [vmem:[%s650] sm:$0x3]
        %v653 = vlaneseq
        %v654 = vshrl.u32 %v653, 7
        %v655 = vsub.s32 0, %v654
        %v656 = vrot.slane %v651, %v655
        %v657 = vlaneseq
        %v658 = vshrl.u32 %v657, 7
        %v659 = vsub.s32 1, %v658
        %v660 = vrot.slane %v651, %v659
        %663 = vrot.lane.b32.xlu0 %v656, 17
        %v664 = vpop.permute.xlu0 %663
        %665 = vrot.lane.b32.xlu0 %v660, 17
        %v666 = vpop.permute.xlu0 %665
        %v667 = vlaneseq
        %v668 = vand.u32 %v667, 127
        %vm669 = vcmp.lt.s32.totalorder %v668, 17
        %v670 = vsel %vm669, %v664, %v666
        %v671 = vsel %vm669, %v666, %v664
        %v672 = vld [vmem:[%s1] sm:$0x3]
        %v674 = vlaneseq
        %v675 = vshrl.u32 %v674, 7
        %v676 = vsub.s32 0, %v675
        %v677 = vrot.slane %v672, %v676
        %v678 = vlaneseq
        %v679 = vshrl.u32 %v678, 7
        %v680 = vsub.s32 1, %v679
        %v681 = vrot.slane %v672, %v680
        %v684 = vmul.f32 %v671, %v677
        %v685 = vmul.f32 %v670, %v681
        %v686 = vld [vmem:[%s2] sm:$0x7f]
        %688 = vset.pattern.permute.xlu0 0
        %689 = vperm.xlu0 %688, %v686
        %v690 = vpop.permute.xlu0 %689
        %v692 = vlaneseq
        %v693 = vshrl.u32 %v692, 7
        %v694 = vsub.s32 0, %v693
        %v695 = vrot.slane %v684, %v694
        %v696 = vlaneseq
        %v697 = vshrl.u32 %v696, 7
        %v698 = vsub.s32 0, %v697
        %v699 = vrot.slane %v685, %v698
        %v700 = vmul.f32 %v690, %v695
        %v701 = vmul.f32 %v690, %v699
        %v702 = vadd.f32 %v700, 0.0
        %v703 = vadd.f32 %v701, 0.0
        %704 = vrot.lane.b32.xlu0 %v656, 16
        %v705 = vpop.permute.xlu0 %704
        %706 = vrot.lane.b32.xlu0 %v660, 16
        %v707 = vpop.permute.xlu0 %706
        %vm708 = vcmp.lt.s32.totalorder %v668, 16
        %v709 = vsel %vm708, %v705, %v707
        %v710 = vsel %vm708, %v707, %v705
        %s711 = scalar_lea.vmem %s1, 2
        %v712 = vld [vmem:[%s711] sm:$0x3]
        %v714 = vlaneseq
        %v715 = vshrl.u32 %v714, 7
        %v716 = vsub.s32 0, %v715
        %v717 = vrot.slane %v712, %v716
        %v718 = vlaneseq
        %v719 = vshrl.u32 %v718, 7
        %v720 = vsub.s32 1, %v719
        %v721 = vrot.slane %v712, %v720
        %v724 = vmul.f32 %v710, %v717
        %v725 = vmul.f32 %v709, %v721
        %s726 = scalar_lea.vmem %s2, 8
        %v727 = vld [vmem:[%s726] sm:$0x7f]
        %729 = vset.pattern.permute.xlu0 0
        %730 = vperm.xlu0 %729, %v727
        %v731 = vpop.permute.xlu0 %730
        %v733 = vlaneseq
        %v734 = vshrl.u32 %v733, 7
        %v735 = vsub.s32 0, %v734
        %v736 = vrot.slane %v724, %v735
        %v737 = vlaneseq
        %v738 = vshrl.u32 %v737, 7
        %v739 = vsub.s32 0, %v738
        %v740 = vrot.slane %v725, %v739
        %v741 = vmul.f32 %v731, %v736
        %v742 = vmul.f32 %v731, %v740
        %v743 = vadd.f32 %v702, %v741
        %v744 = vadd.f32 %v703, %v742
        %745 = vrot.lane.b32.xlu0 %v656, 15
        %v746 = vpop.permute.xlu0 %745
        %747 = vrot.lane.b32.xlu0 %v660, 15
        %v748 = vpop.permute.xlu0 %747
        %vm749 = vcmp.lt.s32.totalorder %v668, 15
        %v750 = vsel %vm749, %v746, %v748
        %v751 = vsel %vm749, %v748, %v746
        %s752 = scalar_lea.vmem %s1, 4
        %v753 = vld [vmem:[%s752] sm:$0x3]
        %v755 = vlaneseq
        %v756 = vshrl.u32 %v755, 7
        %v757 = vsub.s32 0, %v756
        %v758 = vrot.slane %v753, %v757
        %v759 = vlaneseq
        %v760 = vshrl.u32 %v759, 7
        %v761 = vsub.s32 1, %v760
        %v762 = vrot.slane %v753, %v761
        %v765 = vmul.f32 %v751, %v758
        %v766 = vmul.f32 %v750, %v762
        %s767 = scalar_lea.vmem %s2, 16
        %v768 = vld [vmem:[%s767] sm:$0x7f]
        %770 = vset.pattern.permute.xlu0 0
        %771 = vperm.xlu0 %770, %v768
        %v772 = vpop.permute.xlu0 %771
        %v774 = vlaneseq
        %v775 = vshrl.u32 %v774, 7
        %v776 = vsub.s32 0, %v775
        %v777 = vrot.slane %v765, %v776
        %v778 = vlaneseq
        %v779 = vshrl.u32 %v778, 7
        %v780 = vsub.s32 0, %v779
        %v781 = vrot.slane %v766, %v780
        %v782 = vmul.f32 %v772, %v777
        %v783 = vmul.f32 %v772, %v781
        %v784 = vadd.f32 %v743, %v782
        %v785 = vadd.f32 %v744, %v783
        %786 = vrot.lane.b32.xlu0 %v656, 1
        %v787 = vpop.permute.xlu0 %786
        %788 = vrot.lane.b32.xlu0 %v660, 1
        %v789 = vpop.permute.xlu0 %788
        %vm790 = vcmp.lt.s32.totalorder %v668, 1
        %v791 = vsel %vm790, %v787, %v789
        %v792 = vsel %vm790, %v789, %v787
        %s793 = scalar_lea.vmem %s1, 6
        %v794 = vld [vmem:[%s793] sm:$0x3]
        %v796 = vlaneseq
        %v797 = vshrl.u32 %v796, 7
        %v798 = vsub.s32 0, %v797
        %v799 = vrot.slane %v794, %v798
        %v800 = vlaneseq
        %v801 = vshrl.u32 %v800, 7
        %v802 = vsub.s32 1, %v801
        %v803 = vrot.slane %v794, %v802
        %v806 = vmul.f32 %v792, %v799
        %v807 = vmul.f32 %v791, %v803
        %s808 = scalar_lea.vmem %s2, 24
        %v809 = vld [vmem:[%s808] sm:$0x7f]
        %811 = vset.pattern.permute.xlu0 0
        %812 = vperm.xlu0 %811, %v809
        %v813 = vpop.permute.xlu0 %812
        %v815 = vlaneseq
        %v816 = vshrl.u32 %v815, 7
        %v817 = vsub.s32 0, %v816
        %v818 = vrot.slane %v806, %v817
        %v819 = vlaneseq
        %v820 = vshrl.u32 %v819, 7
        %v821 = vsub.s32 0, %v820
        %v822 = vrot.slane %v807, %v821
        %v823 = vmul.f32 %v813, %v818
        %v824 = vmul.f32 %v813, %v822
        %v825 = vadd.f32 %v784, %v823
        %v826 = vadd.f32 %v785, %v824
        %s827 = scalar_lea.vmem %s2, 32
        %v828 = vld [vmem:[%s827] sm:$0x7f]
        %830 = vset.pattern.permute.xlu0 0
        %831 = vperm.xlu0 %830, %v828
        %v832 = vpop.permute.xlu0 %831
        %v834 = vmul.f32 %v832, %v656
        %v835 = vmul.f32 %v832, %v660
        %v836 = vadd.f32 %v825, %v834
        %v837 = vadd.f32 %v826, %v835
        %838 = vrot.lane.b32.xlu0 %v656, 127
        %v839 = vpop.permute.xlu0 %838
        %840 = vrot.lane.b32.xlu0 %v660, 127
        %v841 = vpop.permute.xlu0 %840
        %vm842 = vcmp.lt.s32.totalorder %v668, 127
        %v843 = vsel %vm842, %v839, %v841
        %v844 = vsel %vm842, %v841, %v839
        %s845 = scalar_lea.vmem %s1, 10
        %v846 = vld [vmem:[%s845] sm:$0x3]
        %v848 = vlaneseq
        %v849 = vshrl.u32 %v848, 7
        %v850 = vsub.s32 0, %v849
        %v851 = vrot.slane %v846, %v850
        %v852 = vlaneseq
        %v853 = vshrl.u32 %v852, 7
        %v854 = vsub.s32 1, %v853
        %v855 = vrot.slane %v846, %v854
        %v858 = vmul.f32 %v843, %v851
        %v859 = vmul.f32 %v844, %v855
        %s860 = scalar_lea.vmem %s2, 40
        %v861 = vld [vmem:[%s860] sm:$0x7f]
        %863 = vset.pattern.permute.xlu0 0
        %864 = vperm.xlu0 %863, %v861
        %v865 = vpop.permute.xlu0 %864
        %v867 = vlaneseq
        %v868 = vshrl.u32 %v867, 7
        %v869 = vsub.s32 0, %v868
        %v870 = vrot.slane %v858, %v869
        %v871 = vlaneseq
        %v872 = vshrl.u32 %v871, 7
        %v873 = vsub.s32 0, %v872
        %v874 = vrot.slane %v859, %v873
        %v875 = vmul.f32 %v865, %v870
        %v876 = vmul.f32 %v865, %v874
        %v877 = vadd.f32 %v836, %v875
        %v878 = vadd.f32 %v837, %v876
        %879 = vrot.lane.b32.xlu0 %v656, 113
        %v880 = vpop.permute.xlu0 %879
        %881 = vrot.lane.b32.xlu0 %v660, 113
        %v882 = vpop.permute.xlu0 %881
        %vm883 = vcmp.lt.s32.totalorder %v668, 113
        %v884 = vsel %vm883, %v880, %v882
        %v885 = vsel %vm883, %v882, %v880
        %s886 = scalar_lea.vmem %s1, 12
        %v887 = vld [vmem:[%s886] sm:$0x3]
        %v889 = vlaneseq
        %v890 = vshrl.u32 %v889, 7
        %v891 = vsub.s32 0, %v890
        %v892 = vrot.slane %v887, %v891
        %v893 = vlaneseq
        %v894 = vshrl.u32 %v893, 7
        %v895 = vsub.s32 1, %v894
        %v896 = vrot.slane %v887, %v895
        %v899 = vmul.f32 %v884, %v892
        %v900 = vmul.f32 %v885, %v896
        %s901 = scalar_lea.vmem %s2, 48
        %v902 = vld [vmem:[%s901] sm:$0x7f]
        %904 = vset.pattern.permute.xlu0 0
        %905 = vperm.xlu0 %904, %v902
        %v906 = vpop.permute.xlu0 %905
        %v908 = vlaneseq
        %v909 = vshrl.u32 %v908, 7
        %v910 = vsub.s32 0, %v909
        %v911 = vrot.slane %v899, %v910
        %v912 = vlaneseq
        %v913 = vshrl.u32 %v912, 7
        %v914 = vsub.s32 0, %v913
        %v915 = vrot.slane %v900, %v914
        %v916 = vmul.f32 %v906, %v911
        %v917 = vmul.f32 %v906, %v915
        %v918 = vadd.f32 %v877, %v916
        %v919 = vadd.f32 %v878, %v917
        %920 = vrot.lane.b32.xlu0 %v656, 112
        %v921 = vpop.permute.xlu0 %920
        %922 = vrot.lane.b32.xlu0 %v660, 112
        %v923 = vpop.permute.xlu0 %922
        %vm924 = vcmp.lt.s32.totalorder %v668, 112
        %v925 = vsel %vm924, %v921, %v923
        %v926 = vsel %vm924, %v923, %v921
        %s927 = scalar_lea.vmem %s1, 14
        %v928 = vld [vmem:[%s927] sm:$0x3]
        %v930 = vlaneseq
        %v931 = vshrl.u32 %v930, 7
        %v932 = vsub.s32 0, %v931
        %v933 = vrot.slane %v928, %v932
        %v934 = vlaneseq
        %v935 = vshrl.u32 %v934, 7
        %v936 = vsub.s32 1, %v935
        %v937 = vrot.slane %v928, %v936
        %v940 = vmul.f32 %v925, %v933
        %v941 = vmul.f32 %v926, %v937
        %s942 = scalar_lea.vmem %s2, 56
        %v943 = vld [vmem:[%s942] sm:$0x7f]
        %945 = vset.pattern.permute.xlu0 0
        %946 = vperm.xlu0 %945, %v943
        %v947 = vpop.permute.xlu0 %946
        %v949 = vlaneseq
        %v950 = vshrl.u32 %v949, 7
        %v951 = vsub.s32 0, %v950
        %v952 = vrot.slane %v940, %v951
        %v953 = vlaneseq
        %v954 = vshrl.u32 %v953, 7
        %v955 = vsub.s32 0, %v954
        %v956 = vrot.slane %v941, %v955
        %v957 = vmul.f32 %v947, %v952
        %v958 = vmul.f32 %v947, %v956
        %v959 = vadd.f32 %v918, %v957
        %v960 = vadd.f32 %v919, %v958
        %961 = vrot.lane.b32.xlu0 %v656, 111
        %v962 = vpop.permute.xlu0 %961
        %963 = vrot.lane.b32.xlu0 %v660, 111
        %v964 = vpop.permute.xlu0 %963
        %vm965 = vcmp.lt.s32.totalorder %v668, 111
        %v966 = vsel %vm965, %v962, %v964
        %v967 = vsel %vm965, %v964, %v962
        %s968 = scalar_lea.vmem %s1, 16
        %v969 = vld [vmem:[%s968] sm:$0x3]
        %v971 = vlaneseq
        %v972 = vshrl.u32 %v971, 7
        %v973 = vsub.s32 0, %v972
        %v974 = vrot.slane %v969, %v973
        %v975 = vlaneseq
        %v976 = vshrl.u32 %v975, 7
        %v977 = vsub.s32 1, %v976
        %v978 = vrot.slane %v969, %v977
        %v981 = vmul.f32 %v966, %v974
        %v982 = vmul.f32 %v967, %v978
        %s983 = scalar_lea.vmem %s2, 64
        %v984 = vld [vmem:[%s983] sm:$0x7f]
        %986 = vset.pattern.permute.xlu0 0
        %987 = vperm.xlu0 %986, %v984
        %v988 = vpop.permute.xlu0 %987
        %v990 = vlaneseq
        %v991 = vshrl.u32 %v990, 7
        %v992 = vsub.s32 0, %v991
        %v993 = vrot.slane %v981, %v992
        %v994 = vlaneseq
        %v995 = vshrl.u32 %v994, 7
        %v996 = vsub.s32 0, %v995
        %v997 = vrot.slane %v982, %v996
        %v998 = vmul.f32 %v988, %v993
        %v999 = vmul.f32 %v988, %v997
        %v1000 = vadd.f32 %v959, %v998
        %v1001 = vadd.f32 %v960, %v999
        %v1002 = vmax.f32 %v1000, 0.0
        %v1003 = vmax.f32 %v1001, 0.0
        %1004 = vrot.lane.b32.xlu0 %v1002, 17
        %v1005 = vpop.permute.xlu0 %1004
        %1006 = vrot.lane.b32.xlu0 %v1003, 17
        %v1007 = vpop.permute.xlu0 %1006
        %v1008 = vsel %vm669, %v1005, %v1007
        %v1009 = vsel %vm669, %v1007, %v1005
        %v1010 = vmul.f32 %v1009, %v677
        %v1011 = vmul.f32 %v1008, %v681
        %v1012 = vld [vmem:[%s3] sm:$0xff]
        %v1013 = vld [vmem:[%s3 + $0x8] sm:$0x3f]
        %1014 = vrot.lane.b32.xlu0 %v1002, 16
        %v1015 = vpop.permute.xlu0 %1014
        %1016 = vrot.lane.b32.xlu0 %v1003, 16
        %v1017 = vpop.permute.xlu0 %1016
        %v1018 = vsel %vm708, %v1015, %v1017
        %v1019 = vsel %vm708, %v1017, %v1015
        %v1020 = vmul.f32 %v1019, %v717
        %v1021 = vmul.f32 %v1018, %v721
        %s1022 = scalar_lea.vmem %s3, 16
        %v1023 = vld [vmem:[%s1022] sm:$0xff]
        %v1024 = vld [vmem:[%s1022 + $0x8] sm:$0x3f]
        %vm1025 = vcmask 56320
        %v1027 = vsel %vm1025, %v1023, 0
        %v1030 = vsel %vm1025, %v1024, 0
        %vm1032 = vcmask 1046528
        %v1034 = vsel %vm1032, %v1020, 0
        %v1037 = vsel %vm1032, %v1021, 0
        %1039 = vmatprep.subr.mxu0 %v1037
        %1040 = vmatpush1.msra.mxu0 %v1034
        %1041 = vmatprep.subr.mxu0 0.0
        %1042 = vmatpush1.msra.mxu0 0.0
        %1043 = vmatprep.subr.mxu0 0.0
        %1044 = vmatpush1.msra.mxu0 0.0
        %1045 = vmatprep.subr.mxu0 0.0
        %1046 = vmatpush1.msra.mxu0 0.0
        %1047 = vmatprep.subr.mxu0 0.0
        %1048 = vmatpush1.msra.mxu0 0.0
        %1049 = vmatprep.subr.mxu0 0.0
        %1050 = vmatpush1.msra.mxu0 0.0
        %1051 = vmatprep.subr.mxu0 0.0
        %1052 = vmatpush1.msra.mxu0 0.0
        %1053 = vmatprep.subr.mxu0 0.0
        %1054 = vmatpush1.msra.mxu0 0.0
        %1055 = vmatprep.subr.mxu0 0.0
        %1056 = vmatpush1.msra.mxu0 0.0
        %1057 = vmatprep.subr.mxu0 0.0
        %1058 = vmatpush1.msra.mxu0 0.0
        %1059 = vmatprep.subr.mxu0 0.0
        %1060 = vmatpush1.msra.mxu0 0.0
        %1061 = vmatprep.subr.mxu0 0.0
        %1062 = vmatpush1.msra.mxu0 0.0
        %1063 = vmatprep.subr.mxu0 0.0
        %1064 = vmatpush1.msra.mxu0 0.0
        %1065 = vmatprep.subr.mxu0 0.0
        %1066 = vmatpush1.msra.mxu0 0.0
        %1067 = vmatprep.subr.mxu0 0.0
        %1068 = vmatpush1.msra.mxu0 0.0
        %1069 = vmatprep.subr.mxu0 0.0
        %1070 = vmatpush1.msra.mxu0 0.0
        %1071 = vmatprep.subr.mxu0 0.0
        %1072 = vmatpush1.msra.mxu0 0.0
        %1073 = vmatprep.subr.mxu0 0.0
        %1074 = vmatpush1.msra.mxu0 0.0
        %1075 = vmatprep.subr.mxu0 0.0
        %1076 = vmatpush1.msra.mxu0 0.0
        %1077 = vmatprep.subr.mxu0 0.0
        %1078 = vmatpush1.msra.mxu0 0.0
        %1079 = vmatprep.subr.mxu0 0.0
        %1080 = vmatpush1.msra.mxu0 0.0
        %1081 = vmatprep.subr.mxu0 0.0
        %1082 = vmatpush1.msra.mxu0 0.0
        %1083 = vmatprep.subr.mxu0 0.0
        %1084 = vmatpush1.msra.mxu0 0.0
        %1085 = vmatprep.subr.mxu0 0.0
        %1086 = vmatpush1.msra.mxu0 0.0
        %1087 = vmatprep.subr.mxu0 0.0
        %1088 = vmatpush1.msra.mxu0 0.0
        %1089 = vmatprep.subr.mxu0 0.0
        %1090 = vmatpush1.msra.mxu0 0.0
        %1091 = vmatprep.subr.mxu0 0.0
        %1092 = vmatpush1.msra.mxu0 0.0
        %1093 = vmatprep.subr.mxu0 0.0
        %1094 = vmatpush1.msra.mxu0 0.0
        %1095 = vmatprep.subr.mxu0 0.0
        %1096 = vmatpush1.msra.mxu0 0.0
        %1097 = vmatprep.subr.mxu0 0.0
        %1098 = vmatpush1.msra.mxu0 0.0
        %1099 = vmatprep.subr.mxu0 0.0
        %1100 = vmatpush1.msra.mxu0 0.0
        %1101 = vmatprep.subr.mxu0 0.0
        %1102 = vmatpush1.msra.mxu0 0.0
        %1103 = vmatprep.mubr.f32.mxu0 0.0
        %1104 = vmatmul.mubr.f32.gmra.mrb[0].mxu0 %v1027
        %v1105 = vpop.f32.mrb[0].mxu0
        %v1106 = vadd.f32 0.0, %v1105
        %v1107 = vpop.f32.mrb[0].mxu0
        %v1108 = vadd.f32 0.0, %v1107
        %1109 = vmatprep.mubr.f32.mxu0 0.0
        %1110 = vmatmul.mubr.f32.gmra.mrb[0].mxu0 %v1030
        %v1111 = vpop.f32.mrb[0].mxu0
        %v1112 = vadd.f32 0.0, %v1111
        %v1113 = vpop.f32.mrb[0].mxu0
        %v1114 = vadd.f32 0.0, %v1113
        %1115 = vdwg.mxu0
        %v1117 = vsel %vm1025, %v1012, 0
        %v1120 = vsel %vm1025, %v1013, 0
        %v1123 = vsel %vm1032, %v1010, 0
        %v1126 = vsel %vm1032, %v1011, 0
        %1128 = vmatprep.subr.mxu0 %v1126
        %1129 = vmatpush1.msra.mxu0 %v1123
        %1130 = vmatprep.subr.mxu0 0.0
        %1131 = vmatpush1.msra.mxu0 0.0
        %1132 = vmatprep.subr.mxu0 0.0
        %1133 = vmatpush1.msra.mxu0 0.0
        %1134 = vmatprep.subr.mxu0 0.0
        %1135 = vmatpush1.msra.mxu0 0.0
        %1136 = vmatprep.subr.mxu0 0.0
        %1137 = vmatpush1.msra.mxu0 0.0
        %1138 = vmatprep.subr.mxu0 0.0
        %1139 = vmatpush1.msra.mxu0 0.0
        %1140 = vmatprep.subr.mxu0 0.0
        %1141 = vmatpush1.msra.mxu0 0.0
        %1142 = vmatprep.subr.mxu0 0.0
        %1143 = vmatpush1.msra.mxu0 0.0
        %1144 = vmatprep.subr.mxu0 0.0
        %1145 = vmatpush1.msra.mxu0 0.0
        %1146 = vmatprep.subr.mxu0 0.0
        %1147 = vmatpush1.msra.mxu0 0.0
        %1148 = vmatprep.subr.mxu0 0.0
        %1149 = vmatpush1.msra.mxu0 0.0
        %1150 = vmatprep.subr.mxu0 0.0
        %1151 = vmatpush1.msra.mxu0 0.0
        %1152 = vmatprep.subr.mxu0 0.0
        %1153 = vmatpush1.msra.mxu0 0.0
        %1154 = vmatprep.subr.mxu0 0.0
        %1155 = vmatpush1.msra.mxu0 0.0
        %1156 = vmatprep.subr.mxu0 0.0
        %1157 = vmatpush1.msra.mxu0 0.0
        %1158 = vmatprep.subr.mxu0 0.0
        %1159 = vmatpush1.msra.mxu0 0.0
        %1160 = vmatprep.subr.mxu0 0.0
        %1161 = vmatpush1.msra.mxu0 0.0
        %1162 = vmatprep.subr.mxu0 0.0
        %1163 = vmatpush1.msra.mxu0 0.0
        %1164 = vmatprep.subr.mxu0 0.0
        %1165 = vmatpush1.msra.mxu0 0.0
        %1166 = vmatprep.subr.mxu0 0.0
        %1167 = vmatpush1.msra.mxu0 0.0
        %1168 = vmatprep.subr.mxu0 0.0
        %1169 = vmatpush1.msra.mxu0 0.0
        %1170 = vmatprep.subr.mxu0 0.0
        %1171 = vmatpush1.msra.mxu0 0.0
        %1172 = vmatprep.subr.mxu0 0.0
        %1173 = vmatpush1.msra.mxu0 0.0
        %1174 = vmatprep.subr.mxu0 0.0
        %1175 = vmatpush1.msra.mxu0 0.0
        %1176 = vmatprep.subr.mxu0 0.0
        %1177 = vmatpush1.msra.mxu0 0.0
        %1178 = vmatprep.subr.mxu0 0.0
        %1179 = vmatpush1.msra.mxu0 0.0
        %1180 = vmatprep.subr.mxu0 0.0
        %1181 = vmatpush1.msra.mxu0 0.0
        %1182 = vmatprep.subr.mxu0 0.0
        %1183 = vmatpush1.msra.mxu0 0.0
        %1184 = vmatprep.subr.mxu0 0.0
        %1185 = vmatpush1.msra.mxu0 0.0
        %1186 = vmatprep.subr.mxu0 0.0
        %1187 = vmatpush1.msra.mxu0 0.0
        %1188 = vmatprep.subr.mxu0 0.0
        %1189 = vmatpush1.msra.mxu0 0.0
        %1190 = vmatprep.subr.mxu0 0.0
        %1191 = vmatpush1.msra.mxu0 0.0
        %1192 = vmatprep.mubr.f32.mxu0 0.0
        %1193 = vmatmul.mubr.f32.gmra.mrb[0].mxu0 %v1117
        %v1194 = vpop.f32.mrb[0].mxu0
        %v1195 = vadd.f32 %v1106, %v1194
        %v1196 = vpop.f32.mrb[0].mxu0
        %v1197 = vadd.f32 %v1108, %v1196
        %1198 = vmatprep.mubr.f32.mxu0 0.0
        %1199 = vmatmul.mubr.f32.gmra.mrb[0].mxu0 %v1120
        %v1200 = vpop.f32.mrb[0].mxu0
        %v1201 = vadd.f32 %v1112, %v1200
        %v1202 = vpop.f32.mrb[0].mxu0
        %v1203 = vadd.f32 %v1114, %v1202
        %1204 = vdwg.mxu0
        %1205 = vrot.lane.b32.xlu0 %v1002, 15
        %v1206 = vpop.permute.xlu0 %1205
        %1207 = vrot.lane.b32.xlu0 %v1003, 15
        %v1208 = vpop.permute.xlu0 %1207
        %v1209 = vsel %vm749, %v1206, %v1208
        %v1210 = vsel %vm749, %v1208, %v1206
        %v1211 = vmul.f32 %v1210, %v758
        %v1212 = vmul.f32 %v1209, %v762
        %s1213 = scalar_lea.vmem %s3, 32
        %v1214 = vld [vmem:[%s1213] sm:$0xff]
        %v1215 = vld [vmem:[%s1213 + $0x8] sm:$0x3f]
        %v1217 = vsel %vm1025, %v1214, 0
        %v1220 = vsel %vm1025, %v1215, 0
        %v1223 = vsel %vm1032, %v1211, 0
        %v1226 = vsel %vm1032, %v1212, 0
        %1228 = vmatprep.subr.mxu0 %v1226
        %1229 = vmatpush1.msra.mxu0 %v1223
        %1230 = vmatprep.subr.mxu0 0.0
        %1231 = vmatpush1.msra.mxu0 0.0
        %1232 = vmatprep.subr.mxu0 0.0
        %1233 = vmatpush1.msra.mxu0 0.0
        %1234 = vmatprep.subr.mxu0 0.0
        %1235 = vmatpush1.msra.mxu0 0.0
        %1236 = vmatprep.subr.mxu0 0.0
        %1237 = vmatpush1.msra.mxu0 0.0
        %1238 = vmatprep.subr.mxu0 0.0
        %1239 = vmatpush1.msra.mxu0 0.0
        %1240 = vmatprep.subr.mxu0 0.0
        %1241 = vmatpush1.msra.mxu0 0.0
        %1242 = vmatprep.subr.mxu0 0.0
        %1243 = vmatpush1.msra.mxu0 0.0
        %1244 = vmatprep.subr.mxu0 0.0
        %1245 = vmatpush1.msra.mxu0 0.0
        %1246 = vmatprep.subr.mxu0 0.0
        %1247 = vmatpush1.msra.mxu0 0.0
        %1248 = vmatprep.subr.mxu0 0.0
        %1249 = vmatpush1.msra.mxu0 0.0
        %1250 = vmatprep.subr.mxu0 0.0
        %1251 = vmatpush1.msra.mxu0 0.0
        %1252 = vmatprep.subr.mxu0 0.0
        %1253 = vmatpush1.msra.mxu0 0.0
        %1254 = vmatprep.subr.mxu0 0.0
        %1255 = vmatpush1.msra.mxu0 0.0
        %1256 = vmatprep.subr.mxu0 0.0
        %1257 = vmatpush1.msra.mxu0 0.0
        %1258 = vmatprep.subr.mxu0 0.0
        %1259 = vmatpush1.msra.mxu0 0.0
        %1260 = vmatprep.subr.mxu0 0.0
        %1261 = vmatpush1.msra.mxu0 0.0
        %1262 = vmatprep.subr.mxu0 0.0
        %1263 = vmatpush1.msra.mxu0 0.0
        %1264 = vmatprep.subr.mxu0 0.0
        %1265 = vmatpush1.msra.mxu0 0.0
        %1266 = vmatprep.subr.mxu0 0.0
        %1267 = vmatpush1.msra.mxu0 0.0
        %1268 = vmatprep.subr.mxu0 0.0
        %1269 = vmatpush1.msra.mxu0 0.0
        %1270 = vmatprep.subr.mxu0 0.0
        %1271 = vmatpush1.msra.mxu0 0.0
        %1272 = vmatprep.subr.mxu0 0.0
        %1273 = vmatpush1.msra.mxu0 0.0
        %1274 = vmatprep.subr.mxu0 0.0
        %1275 = vmatpush1.msra.mxu0 0.0
        %1276 = vmatprep.subr.mxu0 0.0
        %1277 = vmatpush1.msra.mxu0 0.0
        %1278 = vmatprep.subr.mxu0 0.0
        %1279 = vmatpush1.msra.mxu0 0.0
        %1280 = vmatprep.subr.mxu0 0.0
        %1281 = vmatpush1.msra.mxu0 0.0
        %1282 = vmatprep.subr.mxu0 0.0
        %1283 = vmatpush1.msra.mxu0 0.0
        %1284 = vmatprep.subr.mxu0 0.0
        %1285 = vmatpush1.msra.mxu0 0.0
        %1286 = vmatprep.subr.mxu0 0.0
        %1287 = vmatpush1.msra.mxu0 0.0
        %1288 = vmatprep.subr.mxu0 0.0
        %1289 = vmatpush1.msra.mxu0 0.0
        %1290 = vmatprep.subr.mxu0 0.0
        %1291 = vmatpush1.msra.mxu0 0.0
        %1292 = vmatprep.mubr.f32.mxu0 0.0
        %1293 = vmatmul.mubr.f32.gmra.mrb[0].mxu0 %v1217
        %v1294 = vpop.f32.mrb[0].mxu0
        %v1295 = vadd.f32 0.0, %v1294
        %v1296 = vpop.f32.mrb[0].mxu0
        %v1297 = vadd.f32 0.0, %v1296
        %1298 = vmatprep.mubr.f32.mxu0 0.0
        %1299 = vmatmul.mubr.f32.gmra.mrb[0].mxu0 %v1220
        %v1300 = vpop.f32.mrb[0].mxu0
        %v1301 = vadd.f32 0.0, %v1300
        %v1302 = vpop.f32.mrb[0].mxu0
        %v1303 = vadd.f32 0.0, %v1302
        %1304 = vdwg.mxu0
        %v1305 = vadd.f32 %v1195, %v1295
        %v1306 = vadd.f32 %v1197, %v1297
        %v1307 = vadd.f32 %v1201, %v1301
        %v1308 = vadd.f32 %v1203, %v1303
        %1309 = vrot.lane.b32.xlu0 %v1002, 1
        %v1310 = vpop.permute.xlu0 %1309
        %1311 = vrot.lane.b32.xlu0 %v1003, 1
        %v1312 = vpop.permute.xlu0 %1311
        %v1313 = vsel %vm790, %v1310, %v1312
        %v1314 = vsel %vm790, %v1312, %v1310
        %v1315 = vmul.f32 %v1314, %v799
        %v1316 = vmul.f32 %v1313, %v803
        %s1317 = scalar_lea.vmem %s3, 48
        %v1318 = vld [vmem:[%s1317] sm:$0xff]
        %v1319 = vld [vmem:[%s1317 + $0x8] sm:$0x3f]
        %v1321 = vsel %vm1025, %v1318, 0
        %v1324 = vsel %vm1025, %v1319, 0
        %v1327 = vsel %vm1032, %v1315, 0
        %v1330 = vsel %vm1032, %v1316, 0
        %1332 = vmatprep.subr.mxu0 %v1330
        %1333 = vmatpush1.msra.mxu0 %v1327
        %1334 = vmatprep.subr.mxu0 0.0
        %1335 = vmatpush1.msra.mxu0 0.0
        %1336 = vmatprep.subr.mxu0 0.0
        %1337 = vmatpush1.msra.mxu0 0.0
        %1338 = vmatprep.subr.mxu0 0.0
        %1339 = vmatpush1.msra.mxu0 0.0
        %1340 = vmatprep.subr.mxu0 0.0
        %1341 = vmatpush1.msra.mxu0 0.0
        %1342 = vmatprep.subr.mxu0 0.0
        %1343 = vmatpush1.msra.mxu0 0.0
        %1344 = vmatprep.subr.mxu0 0.0
        %1345 = vmatpush1.msra.mxu0 0.0
        %1346 = vmatprep.subr.mxu0 0.0
        %1347 = vmatpush1.msra.mxu0 0.0
        %1348 = vmatprep.subr.mxu0 0.0
        %1349 = vmatpush1.msra.mxu0 0.0
        %1350 = vmatprep.subr.mxu0 0.0
        %1351 = vmatpush1.msra.mxu0 0.0
        %1352 = vmatprep.subr.mxu0 0.0
        %1353 = vmatpush1.msra.mxu0 0.0
        %1354 = vmatprep.subr.mxu0 0.0
        %1355 = vmatpush1.msra.mxu0 0.0
        %1356 = vmatprep.subr.mxu0 0.0
        %1357 = vmatpush1.msra.mxu0 0.0
        %1358 = vmatprep.subr.mxu0 0.0
        %1359 = vmatpush1.msra.mxu0 0.0
        %1360 = vmatprep.subr.mxu0 0.0
        %1361 = vmatpush1.msra.mxu0 0.0
        %1362 = vmatprep.subr.mxu0 0.0
        %1363 = vmatpush1.msra.mxu0 0.0
        %1364 = vmatprep.subr.mxu0 0.0
        %1365 = vmatpush1.msra.mxu0 0.0
        %1366 = vmatprep.subr.mxu0 0.0
        %1367 = vmatpush1.msra.mxu0 0.0
        %1368 = vmatprep.subr.mxu0 0.0
        %1369 = vmatpush1.msra.mxu0 0.0
        %1370 = vmatprep.subr.mxu0 0.0
        %1371 = vmatpush1.msra.mxu0 0.0
        %1372 = vmatprep.subr.mxu0 0.0
        %1373 = vmatpush1.msra.mxu0 0.0
        %1374 = vmatprep.subr.mxu0 0.0
        %1375 = vmatpush1.msra.mxu0 0.0
        %1376 = vmatprep.subr.mxu0 0.0
        %1377 = vmatpush1.msra.mxu0 0.0
        %1378 = vmatprep.subr.mxu0 0.0
        %1379 = vmatpush1.msra.mxu0 0.0
        %1380 = vmatprep.subr.mxu0 0.0
        %1381 = vmatpush1.msra.mxu0 0.0
        %1382 = vmatprep.subr.mxu0 0.0
        %1383 = vmatpush1.msra.mxu0 0.0
        %1384 = vmatprep.subr.mxu0 0.0
        %1385 = vmatpush1.msra.mxu0 0.0
        %1386 = vmatprep.subr.mxu0 0.0
        %1387 = vmatpush1.msra.mxu0 0.0
        %1388 = vmatprep.subr.mxu0 0.0
        %1389 = vmatpush1.msra.mxu0 0.0
        %1390 = vmatprep.subr.mxu0 0.0
        %1391 = vmatpush1.msra.mxu0 0.0
        %1392 = vmatprep.subr.mxu0 0.0
        %1393 = vmatpush1.msra.mxu0 0.0
        %1394 = vmatprep.subr.mxu0 0.0
        %1395 = vmatpush1.msra.mxu0 0.0
        %1396 = vmatprep.mubr.f32.mxu0 0.0
        %1397 = vmatmul.mubr.f32.gmra.mrb[0].mxu0 %v1321
        %v1398 = vpop.f32.mrb[0].mxu0
        %v1399 = vadd.f32 0.0, %v1398
        %v1400 = vpop.f32.mrb[0].mxu0
        %v1401 = vadd.f32 0.0, %v1400
        %1402 = vmatprep.mubr.f32.mxu0 0.0
        %1403 = vmatmul.mubr.f32.gmra.mrb[0].mxu0 %v1324
        %v1404 = vpop.f32.mrb[0].mxu0
        %v1405 = vadd.f32 0.0, %v1404
        %v1406 = vpop.f32.mrb[0].mxu0
        %v1407 = vadd.f32 0.0, %v1406
        %1408 = vdwg.mxu0
        %v1409 = vadd.f32 %v1305, %v1399
        %v1410 = vadd.f32 %v1306, %v1401
        %v1411 = vadd.f32 %v1307, %v1405
        %v1412 = vadd.f32 %v1308, %v1407
        %s1413 = scalar_lea.vmem %s3, 64
        %v1414 = vld [vmem:[%s1413] sm:$0xff]
        %v1415 = vld [vmem:[%s1413 + $0x8] sm:$0x3f]
        %v1417 = vsel %vm1025, %v1414, 0
        %v1420 = vsel %vm1025, %v1415, 0
        %v1423 = vsel %vm1032, %v1002, 0
        %v1426 = vsel %vm1032, %v1003, 0
        %1428 = vmatprep.subr.mxu0 %v1426
        %1429 = vmatpush1.msra.mxu0 %v1423
        %1430 = vmatprep.subr.mxu0 0.0
        %1431 = vmatpush1.msra.mxu0 0.0
        %1432 = vmatprep.subr.mxu0 0.0
        %1433 = vmatpush1.msra.mxu0 0.0
        %1434 = vmatprep.subr.mxu0 0.0
        %1435 = vmatpush1.msra.mxu0 0.0
        %1436 = vmatprep.subr.mxu0 0.0
        %1437 = vmatpush1.msra.mxu0 0.0
        %1438 = vmatprep.subr.mxu0 0.0
        %1439 = vmatpush1.msra.mxu0 0.0
        %1440 = vmatprep.subr.mxu0 0.0
        %1441 = vmatpush1.msra.mxu0 0.0
        %1442 = vmatprep.subr.mxu0 0.0
        %1443 = vmatpush1.msra.mxu0 0.0
        %1444 = vmatprep.subr.mxu0 0.0
        %1445 = vmatpush1.msra.mxu0 0.0
        %1446 = vmatprep.subr.mxu0 0.0
        %1447 = vmatpush1.msra.mxu0 0.0
        %1448 = vmatprep.subr.mxu0 0.0
        %1449 = vmatpush1.msra.mxu0 0.0
        %1450 = vmatprep.subr.mxu0 0.0
        %1451 = vmatpush1.msra.mxu0 0.0
        %1452 = vmatprep.subr.mxu0 0.0
        %1453 = vmatpush1.msra.mxu0 0.0
        %1454 = vmatprep.subr.mxu0 0.0
        %1455 = vmatpush1.msra.mxu0 0.0
        %1456 = vmatprep.subr.mxu0 0.0
        %1457 = vmatpush1.msra.mxu0 0.0
        %1458 = vmatprep.subr.mxu0 0.0
        %1459 = vmatpush1.msra.mxu0 0.0
        %1460 = vmatprep.subr.mxu0 0.0
        %1461 = vmatpush1.msra.mxu0 0.0
        %1462 = vmatprep.subr.mxu0 0.0
        %1463 = vmatpush1.msra.mxu0 0.0
        %1464 = vmatprep.subr.mxu0 0.0
        %1465 = vmatpush1.msra.mxu0 0.0
        %1466 = vmatprep.subr.mxu0 0.0
        %1467 = vmatpush1.msra.mxu0 0.0
        %1468 = vmatprep.subr.mxu0 0.0
        %1469 = vmatpush1.msra.mxu0 0.0
        %1470 = vmatprep.subr.mxu0 0.0
        %1471 = vmatpush1.msra.mxu0 0.0
        %1472 = vmatprep.subr.mxu0 0.0
        %1473 = vmatpush1.msra.mxu0 0.0
        %1474 = vmatprep.subr.mxu0 0.0
        %1475 = vmatpush1.msra.mxu0 0.0
        %1476 = vmatprep.subr.mxu0 0.0
        %1477 = vmatpush1.msra.mxu0 0.0
        %1478 = vmatprep.subr.mxu0 0.0
        %1479 = vmatpush1.msra.mxu0 0.0
        %1480 = vmatprep.subr.mxu0 0.0
        %1481 = vmatpush1.msra.mxu0 0.0
        %1482 = vmatprep.subr.mxu0 0.0
        %1483 = vmatpush1.msra.mxu0 0.0
        %1484 = vmatprep.subr.mxu0 0.0
        %1485 = vmatpush1.msra.mxu0 0.0
        %1486 = vmatprep.subr.mxu0 0.0
        %1487 = vmatpush1.msra.mxu0 0.0
        %1488 = vmatprep.subr.mxu0 0.0
        %1489 = vmatpush1.msra.mxu0 0.0
        %1490 = vmatprep.subr.mxu0 0.0
        %1491 = vmatpush1.msra.mxu0 0.0
        %1492 = vmatprep.mubr.f32.mxu0 0.0
        %1493 = vmatmul.mubr.f32.gmra.mrb[0].mxu0 %v1417
        %v1494 = vpop.f32.mrb[0].mxu0
        %v1495 = vadd.f32 0.0, %v1494
        %v1496 = vpop.f32.mrb[0].mxu0
        %v1497 = vadd.f32 0.0, %v1496
        %1498 = vmatprep.mubr.f32.mxu0 0.0
        %1499 = vmatmul.mubr.f32.gmra.mrb[0].mxu0 %v1420
        %v1500 = vpop.f32.mrb[0].mxu0
        %v1501 = vadd.f32 0.0, %v1500
        %v1502 = vpop.f32.mrb[0].mxu0
        %v1503 = vadd.f32 0.0, %v1502
        %1504 = vdwg.mxu0
        %v1505 = vadd.f32 %v1409, %v1495
        %v1506 = vadd.f32 %v1410, %v1497
        %v1507 = vadd.f32 %v1411, %v1501
        %v1508 = vadd.f32 %v1412, %v1503
        %1509 = vrot.lane.b32.xlu0 %v1002, 127
        %v1510 = vpop.permute.xlu0 %1509
        %1511 = vrot.lane.b32.xlu0 %v1003, 127
        %v1512 = vpop.permute.xlu0 %1511
        %v1513 = vsel %vm842, %v1510, %v1512
        %v1514 = vsel %vm842, %v1512, %v1510
        %v1515 = vmul.f32 %v1513, %v851
        %v1516 = vmul.f32 %v1514, %v855
        %s1517 = scalar_lea.vmem %s3, 80
        %v1518 = vld [vmem:[%s1517] sm:$0xff]
        %v1519 = vld [vmem:[%s1517 + $0x8] sm:$0x3f]
        %v1521 = vsel %vm1025, %v1518, 0
        %v1524 = vsel %vm1025, %v1519, 0
        %v1527 = vsel %vm1032, %v1515, 0
        %v1530 = vsel %vm1032, %v1516, 0
        %1532 = vmatprep.subr.mxu0 %v1530
        %1533 = vmatpush1.msra.mxu0 %v1527
        %1534 = vmatprep.subr.mxu0 0.0
        %1535 = vmatpush1.msra.mxu0 0.0
        %1536 = vmatprep.subr.mxu0 0.0
        %1537 = vmatpush1.msra.mxu0 0.0
        %1538 = vmatprep.subr.mxu0 0.0
        %1539 = vmatpush1.msra.mxu0 0.0
        %1540 = vmatprep.subr.mxu0 0.0
        %1541 = vmatpush1.msra.mxu0 0.0
        %1542 = vmatprep.subr.mxu0 0.0
        %1543 = vmatpush1.msra.mxu0 0.0
        %1544 = vmatprep.subr.mxu0 0.0
        %1545 = vmatpush1.msra.mxu0 0.0
        %1546 = vmatprep.subr.mxu0 0.0
        %1547 = vmatpush1.msra.mxu0 0.0
        %1548 = vmatprep.subr.mxu0 0.0
        %1549 = vmatpush1.msra.mxu0 0.0
        %1550 = vmatprep.subr.mxu0 0.0
        %1551 = vmatpush1.msra.mxu0 0.0
        %1552 = vmatprep.subr.mxu0 0.0
        %1553 = vmatpush1.msra.mxu0 0.0
        %1554 = vmatprep.subr.mxu0 0.0
        %1555 = vmatpush1.msra.mxu0 0.0
        %1556 = vmatprep.subr.mxu0 0.0
        %1557 = vmatpush1.msra.mxu0 0.0
        %1558 = vmatprep.subr.mxu0 0.0
        %1559 = vmatpush1.msra.mxu0 0.0
        %1560 = vmatprep.subr.mxu0 0.0
        %1561 = vmatpush1.msra.mxu0 0.0
        %1562 = vmatprep.subr.mxu0 0.0
        %1563 = vmatpush1.msra.mxu0 0.0
        %1564 = vmatprep.subr.mxu0 0.0
        %1565 = vmatpush1.msra.mxu0 0.0
        %1566 = vmatprep.subr.mxu0 0.0
        %1567 = vmatpush1.msra.mxu0 0.0
        %1568 = vmatprep.subr.mxu0 0.0
        %1569 = vmatpush1.msra.mxu0 0.0
        %1570 = vmatprep.subr.mxu0 0.0
        %1571 = vmatpush1.msra.mxu0 0.0
        %1572 = vmatprep.subr.mxu0 0.0
        %1573 = vmatpush1.msra.mxu0 0.0
        %1574 = vmatprep.subr.mxu0 0.0
        %1575 = vmatpush1.msra.mxu0 0.0
        %1576 = vmatprep.subr.mxu0 0.0
        %1577 = vmatpush1.msra.mxu0 0.0
        %1578 = vmatprep.subr.mxu0 0.0
        %1579 = vmatpush1.msra.mxu0 0.0
        %1580 = vmatprep.subr.mxu0 0.0
        %1581 = vmatpush1.msra.mxu0 0.0
        %1582 = vmatprep.subr.mxu0 0.0
        %1583 = vmatpush1.msra.mxu0 0.0
        %1584 = vmatprep.subr.mxu0 0.0
        %1585 = vmatpush1.msra.mxu0 0.0
        %1586 = vmatprep.subr.mxu0 0.0
        %1587 = vmatpush1.msra.mxu0 0.0
        %1588 = vmatprep.subr.mxu0 0.0
        %1589 = vmatpush1.msra.mxu0 0.0
        %1590 = vmatprep.subr.mxu0 0.0
        %1591 = vmatpush1.msra.mxu0 0.0
        %1592 = vmatprep.subr.mxu0 0.0
        %1593 = vmatpush1.msra.mxu0 0.0
        %1594 = vmatprep.subr.mxu0 0.0
        %1595 = vmatpush1.msra.mxu0 0.0
        %1596 = vmatprep.mubr.f32.mxu0 0.0
        %1597 = vmatmul.mubr.f32.gmra.mrb[0].mxu0 %v1521
        %v1598 = vpop.f32.mrb[0].mxu0
        %v1599 = vadd.f32 0.0, %v1598
        %v1600 = vpop.f32.mrb[0].mxu0
        %v1601 = vadd.f32 0.0, %v1600
        %1602 = vmatprep.mubr.f32.mxu0 0.0
        %1603 = vmatmul.mubr.f32.gmra.mrb[0].mxu0 %v1524
        %v1604 = vpop.f32.mrb[0].mxu0
        %v1605 = vadd.f32 0.0, %v1604
        %v1606 = vpop.f32.mrb[0].mxu0
        %v1607 = vadd.f32 0.0, %v1606
        %1608 = vdwg.mxu0
        %v1609 = vadd.f32 %v1505, %v1599
        %v1610 = vadd.f32 %v1506, %v1601
        %v1611 = vadd.f32 %v1507, %v1605
        %v1612 = vadd.f32 %v1508, %v1607
        %1613 = vrot.lane.b32.xlu0 %v1002, 113
        %v1614 = vpop.permute.xlu0 %1613
        %1615 = vrot.lane.b32.xlu0 %v1003, 113
        %v1616 = vpop.permute.xlu0 %1615
        %v1617 = vsel %vm883, %v1614, %v1616
        %v1618 = vsel %vm883, %v1616, %v1614
        %v1619 = vmul.f32 %v1617, %v892
        %v1620 = vmul.f32 %v1618, %v896
        %s1621 = scalar_lea.vmem %s3, 96
        %v1622 = vld [vmem:[%s1621] sm:$0xff]
        %v1623 = vld [vmem:[%s1621 + $0x8] sm:$0x3f]
        %v1625 = vsel %vm1025, %v1622, 0
        %v1628 = vsel %vm1025, %v1623, 0
        %v1631 = vsel %vm1032, %v1619, 0
        %v1634 = vsel %vm1032, %v1620, 0
        %1636 = vmatprep.subr.mxu0 %v1634
        %1637 = vmatpush1.msra.mxu0 %v1631
        %1638 = vmatprep.subr.mxu0 0.0
        %1639 = vmatpush1.msra.mxu0 0.0
        %1640 = vmatprep.subr.mxu0 0.0
        %1641 = vmatpush1.msra.mxu0 0.0
        %1642 = vmatprep.subr.mxu0 0.0
        %1643 = vmatpush1.msra.mxu0 0.0
        %1644 = vmatprep.subr.mxu0 0.0
        %1645 = vmatpush1.msra.mxu0 0.0
        %1646 = vmatprep.subr.mxu0 0.0
        %1647 = vmatpush1.msra.mxu0 0.0
        %1648 = vmatprep.subr.mxu0 0.0
        %1649 = vmatpush1.msra.mxu0 0.0
        %1650 = vmatprep.subr.mxu0 0.0
        %1651 = vmatpush1.msra.mxu0 0.0
        %1652 = vmatprep.subr.mxu0 0.0
        %1653 = vmatpush1.msra.mxu0 0.0
        %1654 = vmatprep.subr.mxu0 0.0
        %1655 = vmatpush1.msra.mxu0 0.0
        %1656 = vmatprep.subr.mxu0 0.0
        %1657 = vmatpush1.msra.mxu0 0.0
        %1658 = vmatprep.subr.mxu0 0.0
        %1659 = vmatpush1.msra.mxu0 0.0
        %1660 = vmatprep.subr.mxu0 0.0
        %1661 = vmatpush1.msra.mxu0 0.0
        %1662 = vmatprep.subr.mxu0 0.0
        %1663 = vmatpush1.msra.mxu0 0.0
        %1664 = vmatprep.subr.mxu0 0.0
        %1665 = vmatpush1.msra.mxu0 0.0
        %1666 = vmatprep.subr.mxu0 0.0
        %1667 = vmatpush1.msra.mxu0 0.0
        %1668 = vmatprep.subr.mxu0 0.0
        %1669 = vmatpush1.msra.mxu0 0.0
        %1670 = vmatprep.subr.mxu0 0.0
        %1671 = vmatpush1.msra.mxu0 0.0
        %1672 = vmatprep.subr.mxu0 0.0
        %1673 = vmatpush1.msra.mxu0 0.0
        %1674 = vmatprep.subr.mxu0 0.0
        %1675 = vmatpush1.msra.mxu0 0.0
        %1676 = vmatprep.subr.mxu0 0.0
        %1677 = vmatpush1.msra.mxu0 0.0
        %1678 = vmatprep.subr.mxu0 0.0
        %1679 = vmatpush1.msra.mxu0 0.0
        %1680 = vmatprep.subr.mxu0 0.0
        %1681 = vmatpush1.msra.mxu0 0.0
        %1682 = vmatprep.subr.mxu0 0.0
        %1683 = vmatpush1.msra.mxu0 0.0
        %1684 = vmatprep.subr.mxu0 0.0
        %1685 = vmatpush1.msra.mxu0 0.0
        %1686 = vmatprep.subr.mxu0 0.0
        %1687 = vmatpush1.msra.mxu0 0.0
        %1688 = vmatprep.subr.mxu0 0.0
        %1689 = vmatpush1.msra.mxu0 0.0
        %1690 = vmatprep.subr.mxu0 0.0
        %1691 = vmatpush1.msra.mxu0 0.0
        %1692 = vmatprep.subr.mxu0 0.0
        %1693 = vmatpush1.msra.mxu0 0.0
        %1694 = vmatprep.subr.mxu0 0.0
        %1695 = vmatpush1.msra.mxu0 0.0
        %1696 = vmatprep.subr.mxu0 0.0
        %1697 = vmatpush1.msra.mxu0 0.0
        %1698 = vmatprep.subr.mxu0 0.0
        %1699 = vmatpush1.msra.mxu0 0.0
        %1700 = vmatprep.mubr.f32.mxu0 0.0
        %1701 = vmatmul.mubr.f32.gmra.mrb[0].mxu0 %v1625
        %v1702 = vpop.f32.mrb[0].mxu0
        %v1703 = vadd.f32 0.0, %v1702
        %v1704 = vpop.f32.mrb[0].mxu0
        %v1705 = vadd.f32 0.0, %v1704
        %1706 = vmatprep.mubr.f32.mxu0 0.0
        %1707 = vmatmul.mubr.f32.gmra.mrb[0].mxu0 %v1628
        %v1708 = vpop.f32.mrb[0].mxu0
        %v1709 = vadd.f32 0.0, %v1708
        %v1710 = vpop.f32.mrb[0].mxu0
        %v1711 = vadd.f32 0.0, %v1710
        %1712 = vdwg.mxu0
        %v1713 = vadd.f32 %v1609, %v1703
        %v1714 = vadd.f32 %v1610, %v1705
        %v1715 = vadd.f32 %v1611, %v1709
        %v1716 = vadd.f32 %v1612, %v1711
        %1717 = vrot.lane.b32.xlu0 %v1002, 112
        %v1718 = vpop.permute.xlu0 %1717
        %1719 = vrot.lane.b32.xlu0 %v1003, 112
        %v1720 = vpop.permute.xlu0 %1719
        %v1721 = vsel %vm924, %v1718, %v1720
        %v1722 = vsel %vm924, %v1720, %v1718
        %v1723 = vmul.f32 %v1721, %v933
        %v1724 = vmul.f32 %v1722, %v937
        %s1725 = scalar_lea.vmem %s3, 112
        %v1726 = vld [vmem:[%s1725] sm:$0xff]
        %v1727 = vld [vmem:[%s1725 + $0x8] sm:$0x3f]
        %v1729 = vsel %vm1025, %v1726, 0
        %v1732 = vsel %vm1025, %v1727, 0
        %v1735 = vsel %vm1032, %v1723, 0
        %v1738 = vsel %vm1032, %v1724, 0
        %1740 = vmatprep.subr.mxu0 %v1738
        %1741 = vmatpush1.msra.mxu0 %v1735
        %1742 = vmatprep.subr.mxu0 0.0
        %1743 = vmatpush1.msra.mxu0 0.0
        %1744 = vmatprep.subr.mxu0 0.0
        %1745 = vmatpush1.msra.mxu0 0.0
        %1746 = vmatprep.subr.mxu0 0.0
        %1747 = vmatpush1.msra.mxu0 0.0
        %1748 = vmatprep.subr.mxu0 0.0
        %1749 = vmatpush1.msra.mxu0 0.0
        %1750 = vmatprep.subr.mxu0 0.0
        %1751 = vmatpush1.msra.mxu0 0.0
        %1752 = vmatprep.subr.mxu0 0.0
        %1753 = vmatpush1.msra.mxu0 0.0
        %1754 = vmatprep.subr.mxu0 0.0
        %1755 = vmatpush1.msra.mxu0 0.0
        %1756 = vmatprep.subr.mxu0 0.0
        %1757 = vmatpush1.msra.mxu0 0.0
        %1758 = vmatprep.subr.mxu0 0.0
        %1759 = vmatpush1.msra.mxu0 0.0
        %1760 = vmatprep.subr.mxu0 0.0
        %1761 = vmatpush1.msra.mxu0 0.0
        %1762 = vmatprep.subr.mxu0 0.0
        %1763 = vmatpush1.msra.mxu0 0.0
        %1764 = vmatprep.subr.mxu0 0.0
        %1765 = vmatpush1.msra.mxu0 0.0
        %1766 = vmatprep.subr.mxu0 0.0
        %1767 = vmatpush1.msra.mxu0 0.0
        %1768 = vmatprep.subr.mxu0 0.0
        %1769 = vmatpush1.msra.mxu0 0.0
        %1770 = vmatprep.subr.mxu0 0.0
        %1771 = vmatpush1.msra.mxu0 0.0
        %1772 = vmatprep.subr.mxu0 0.0
        %1773 = vmatpush1.msra.mxu0 0.0
        %1774 = vmatprep.subr.mxu0 0.0
        %1775 = vmatpush1.msra.mxu0 0.0
        %1776 = vmatprep.subr.mxu0 0.0
        %1777 = vmatpush1.msra.mxu0 0.0
        %1778 = vmatprep.subr.mxu0 0.0
        %1779 = vmatpush1.msra.mxu0 0.0
        %1780 = vmatprep.subr.mxu0 0.0
        %1781 = vmatpush1.msra.mxu0 0.0
        %1782 = vmatprep.subr.mxu0 0.0
        %1783 = vmatpush1.msra.mxu0 0.0
        %1784 = vmatprep.subr.mxu0 0.0
        %1785 = vmatpush1.msra.mxu0 0.0
        %1786 = vmatprep.subr.mxu0 0.0
        %1787 = vmatpush1.msra.mxu0 0.0
        %1788 = vmatprep.subr.mxu0 0.0
        %1789 = vmatpush1.msra.mxu0 0.0
        %1790 = vmatprep.subr.mxu0 0.0
        %1791 = vmatpush1.msra.mxu0 0.0
        %1792 = vmatprep.subr.mxu0 0.0
        %1793 = vmatpush1.msra.mxu0 0.0
        %1794 = vmatprep.subr.mxu0 0.0
        %1795 = vmatpush1.msra.mxu0 0.0
        %1796 = vmatprep.subr.mxu0 0.0
        %1797 = vmatpush1.msra.mxu0 0.0
        %1798 = vmatprep.subr.mxu0 0.0
        %1799 = vmatpush1.msra.mxu0 0.0
        %1800 = vmatprep.subr.mxu0 0.0
        %1801 = vmatpush1.msra.mxu0 0.0
        %1802 = vmatprep.subr.mxu0 0.0
        %1803 = vmatpush1.msra.mxu0 0.0
        %1804 = vmatprep.mubr.f32.mxu0 0.0
        %1805 = vmatmul.mubr.f32.gmra.mrb[0].mxu0 %v1729
        %v1806 = vpop.f32.mrb[0].mxu0
        %v1807 = vadd.f32 0.0, %v1806
        %v1808 = vpop.f32.mrb[0].mxu0
        %v1809 = vadd.f32 0.0, %v1808
        %1810 = vmatprep.mubr.f32.mxu0 0.0
        %1811 = vmatmul.mubr.f32.gmra.mrb[0].mxu0 %v1732
        %v1812 = vpop.f32.mrb[0].mxu0
        %v1813 = vadd.f32 0.0, %v1812
        %v1814 = vpop.f32.mrb[0].mxu0
        %v1815 = vadd.f32 0.0, %v1814
        %1816 = vdwg.mxu0
        %v1817 = vadd.f32 %v1713, %v1807
        %v1818 = vadd.f32 %v1714, %v1809
        %v1819 = vadd.f32 %v1715, %v1813
        %v1820 = vadd.f32 %v1716, %v1815
        %1821 = vrot.lane.b32.xlu0 %v1002, 111
        %v1822 = vpop.permute.xlu0 %1821
        %1823 = vrot.lane.b32.xlu0 %v1003, 111
        %v1824 = vpop.permute.xlu0 %1823
        %v1825 = vsel %vm965, %v1822, %v1824
        %v1826 = vsel %vm965, %v1824, %v1822
        %v1827 = vmul.f32 %v1825, %v974
        %v1828 = vmul.f32 %v1826, %v978
        %s1829 = scalar_lea.vmem %s3, 128
        %v1830 = vld [vmem:[%s1829] sm:$0xff]
        %v1831 = vld [vmem:[%s1829 + $0x8] sm:$0x3f]
        %v1833 = vsel %vm1025, %v1830, 0
        %v1836 = vsel %vm1025, %v1831, 0
        %v1839 = vsel %vm1032, %v1827, 0
        %v1842 = vsel %vm1032, %v1828, 0
        %1844 = vmatprep.subr.mxu0 %v1842
        %1845 = vmatpush1.msra.mxu0 %v1839
        %1846 = vmatprep.subr.mxu0 0.0
        %1847 = vmatpush1.msra.mxu0 0.0
        %1848 = vmatprep.subr.mxu0 0.0
        %1849 = vmatpush1.msra.mxu0 0.0
        %1850 = vmatprep.subr.mxu0 0.0
        %1851 = vmatpush1.msra.mxu0 0.0
        %1852 = vmatprep.subr.mxu0 0.0
        %1853 = vmatpush1.msra.mxu0 0.0
        %1854 = vmatprep.subr.mxu0 0.0
        %1855 = vmatpush1.msra.mxu0 0.0
        %1856 = vmatprep.subr.mxu0 0.0
        %1857 = vmatpush1.msra.mxu0 0.0
        %1858 = vmatprep.subr.mxu0 0.0
        %1859 = vmatpush1.msra.mxu0 0.0
        %1860 = vmatprep.subr.mxu0 0.0
        %1861 = vmatpush1.msra.mxu0 0.0
        %1862 = vmatprep.subr.mxu0 0.0
        %1863 = vmatpush1.msra.mxu0 0.0
        %1864 = vmatprep.subr.mxu0 0.0
        %1865 = vmatpush1.msra.mxu0 0.0
        %1866 = vmatprep.subr.mxu0 0.0
        %1867 = vmatpush1.msra.mxu0 0.0
        %1868 = vmatprep.subr.mxu0 0.0
        %1869 = vmatpush1.msra.mxu0 0.0
        %1870 = vmatprep.subr.mxu0 0.0
        %1871 = vmatpush1.msra.mxu0 0.0
        %1872 = vmatprep.subr.mxu0 0.0
        %1873 = vmatpush1.msra.mxu0 0.0
        %1874 = vmatprep.subr.mxu0 0.0
        %1875 = vmatpush1.msra.mxu0 0.0
        %1876 = vmatprep.subr.mxu0 0.0
        %1877 = vmatpush1.msra.mxu0 0.0
        %1878 = vmatprep.subr.mxu0 0.0
        %1879 = vmatpush1.msra.mxu0 0.0
        %1880 = vmatprep.subr.mxu0 0.0
        %1881 = vmatpush1.msra.mxu0 0.0
        %1882 = vmatprep.subr.mxu0 0.0
        %1883 = vmatpush1.msra.mxu0 0.0
        %1884 = vmatprep.subr.mxu0 0.0
        %1885 = vmatpush1.msra.mxu0 0.0
        %1886 = vmatprep.subr.mxu0 0.0
        %1887 = vmatpush1.msra.mxu0 0.0
        %1888 = vmatprep.subr.mxu0 0.0
        %1889 = vmatpush1.msra.mxu0 0.0
        %1890 = vmatprep.subr.mxu0 0.0
        %1891 = vmatpush1.msra.mxu0 0.0
        %1892 = vmatprep.subr.mxu0 0.0
        %1893 = vmatpush1.msra.mxu0 0.0
        %1894 = vmatprep.subr.mxu0 0.0
        %1895 = vmatpush1.msra.mxu0 0.0
        %1896 = vmatprep.subr.mxu0 0.0
        %1897 = vmatpush1.msra.mxu0 0.0
        %1898 = vmatprep.subr.mxu0 0.0
        %1899 = vmatpush1.msra.mxu0 0.0
        %1900 = vmatprep.subr.mxu0 0.0
        %1901 = vmatpush1.msra.mxu0 0.0
        %1902 = vmatprep.subr.mxu0 0.0
        %1903 = vmatpush1.msra.mxu0 0.0
        %1904 = vmatprep.subr.mxu0 0.0
        %1905 = vmatpush1.msra.mxu0 0.0
        %1906 = vmatprep.subr.mxu0 0.0
        %1907 = vmatpush1.msra.mxu0 0.0
        %1908 = vmatprep.mubr.f32.mxu0 0.0
        %1909 = vmatmul.mubr.f32.gmra.mrb[0].mxu0 %v1833
        %v1910 = vpop.f32.mrb[0].mxu0
        %v1911 = vadd.f32 0.0, %v1910
        %v1912 = vpop.f32.mrb[0].mxu0
        %v1913 = vadd.f32 0.0, %v1912
        %1914 = vmatprep.mubr.f32.mxu0 0.0
        %1915 = vmatmul.mubr.f32.gmra.mrb[0].mxu0 %v1836
        %v1916 = vpop.f32.mrb[0].mxu0
        %v1917 = vadd.f32 0.0, %v1916
        %v1918 = vpop.f32.mrb[0].mxu0
        %v1919 = vadd.f32 0.0, %v1918
        %1920 = vdwg.mxu0
        %v1921 = vadd.f32 %v1817, %v1911
        %v1922 = vadd.f32 %v1818, %v1913
        %v1923 = vadd.f32 %v1819, %v1917
        %v1924 = vadd.f32 %v1820, %v1919
        %v1925 = vld [vmem:[%s4] sm:$0xff]
        %v1926 = vld [vmem:[%s4 + $0x8] sm:$0x3f]
        %1928 = vset.pattern.permute.xlu0 0
        %1929 = vperm.xlu0 %1928, %v1925
        %v1930 = vpop.permute.xlu0 %1929
        %1933 = vset.pattern.permute.xlu0 0
        %1934 = vperm.xlu0 %1933, %v1926
        %v1935 = vpop.permute.xlu0 %1934
        %v1937 = vadd.f32 %v1921, %v1930
        %v1938 = vadd.f32 %v1922, %v1930
        %v1939 = vadd.f32 %v1923, %v1935
        %v1940 = vadd.f32 %v1924, %v1935
        %v1941 = vmax.f32 %v1937, 0.0
        %v1942 = vmax.f32 %v1938, 0.0
        %v1943 = vmax.f32 %v1939, 0.0
        %v1944 = vmax.f32 %v1940, 0.0
        %1945 = vrot.lane.b32.xlu0 %v1941, 17
        %v1946 = vpop.permute.xlu0 %1945
        %1947 = vrot.lane.b32.xlu0 %v1943, 17
        %v1948 = vpop.permute.xlu0 %1947
        %1949 = vrot.lane.b32.xlu0 %v1942, 17
        %v1950 = vpop.permute.xlu0 %1949
        %1951 = vrot.lane.b32.xlu0 %v1944, 17
        %v1952 = vpop.permute.xlu0 %1951
        %v1953 = vsel %vm669, %v1946, %v1950
        %v1954 = vsel %vm669, %v1948, %v1952
        %v1955 = vsel %vm669, %v1950, %v1946
        %v1956 = vsel %vm669, %v1952, %v1948
        %v1957 = vld [vmem:[%s5] sm:$0x7]
        %vm1958 = vcmask 113664
        %v1960 = vsel %vm1958, %v1957, 0
        %vm1962 = vcmask 1045504
        %v1964 = vsel %vm1962, %v1956, 0
        %v1967 = vsel %vm1962, %v1954, 0
        %1969 = vmatprep.subr.mxu0 %v1953
        %1970 = vmatpush1.msra.mxu0 %v1955
        %1971 = vmatprep.subr.mxu0 %v1967
        %1972 = vmatpush1.msra.mxu0 %v1964
        %1973 = vmatprep.subr.mxu0 0.0
        %1974 = vmatpush1.msra.mxu0 0.0
        %1975 = vmatprep.subr.mxu0 0.0
        %1976 = vmatpush1.msra.mxu0 0.0
        %1977 = vmatprep.subr.mxu0 0.0
        %1978 = vmatpush1.msra.mxu0 0.0
        %1979 = vmatprep.subr.mxu0 0.0
        %1980 = vmatpush1.msra.mxu0 0.0
        %1981 = vmatprep.subr.mxu0 0.0
        %1982 = vmatpush1.msra.mxu0 0.0
        %1983 = vmatprep.subr.mxu0 0.0
        %1984 = vmatpush1.msra.mxu0 0.0
        %1985 = vmatprep.subr.mxu0 0.0
        %1986 = vmatpush1.msra.mxu0 0.0
        %1987 = vmatprep.subr.mxu0 0.0
        %1988 = vmatpush1.msra.mxu0 0.0
        %1989 = vmatprep.subr.mxu0 0.0
        %1990 = vmatpush1.msra.mxu0 0.0
        %1991 = vmatprep.subr.mxu0 0.0
        %1992 = vmatpush1.msra.mxu0 0.0
        %1993 = vmatprep.subr.mxu0 0.0
        %1994 = vmatpush1.msra.mxu0 0.0
        %1995 = vmatprep.subr.mxu0 0.0
        %1996 = vmatpush1.msra.mxu0 0.0
        %1997 = vmatprep.subr.mxu0 0.0
        %1998 = vmatpush1.msra.mxu0 0.0
        %1999 = vmatprep.subr.mxu0 0.0
        %2000 = vmatpush1.msra.mxu0 0.0
        %2001 = vmatprep.subr.mxu0 0.0
        %2002 = vmatpush1.msra.mxu0 0.0
        %2003 = vmatprep.subr.mxu0 0.0
        %2004 = vmatpush1.msra.mxu0 0.0
        %2005 = vmatprep.subr.mxu0 0.0
        %2006 = vmatpush1.msra.mxu0 0.0
        %2007 = vmatprep.subr.mxu0 0.0
        %2008 = vmatpush1.msra.mxu0 0.0
        %2009 = vmatprep.subr.mxu0 0.0
        %2010 = vmatpush1.msra.mxu0 0.0
        %2011 = vmatprep.subr.mxu0 0.0
        %2012 = vmatpush1.msra.mxu0 0.0
        %2013 = vmatprep.subr.mxu0 0.0
        %2014 = vmatpush1.msra.mxu0 0.0
        %2015 = vmatprep.subr.mxu0 0.0
        %2016 = vmatpush1.msra.mxu0 0.0
        %2017 = vmatprep.subr.mxu0 0.0
        %2018 = vmatpush1.msra.mxu0 0.0
        %2019 = vmatprep.subr.mxu0 0.0
        %2020 = vmatpush1.msra.mxu0 0.0
        %2021 = vmatprep.subr.mxu0 0.0
        %2022 = vmatpush1.msra.mxu0 0.0
        %2023 = vmatprep.subr.mxu0 0.0
        %2024 = vmatpush1.msra.mxu0 0.0
        %2025 = vmatprep.subr.mxu0 0.0
        %2026 = vmatpush1.msra.mxu0 0.0
        %2027 = vmatprep.subr.mxu0 0.0
        %2028 = vmatpush1.msra.mxu0 0.0
        %2029 = vmatprep.subr.mxu0 0.0
        %2030 = vmatpush1.msra.mxu0 0.0
        %2031 = vmatprep.subr.mxu0 0.0
        %2032 = vmatpush1.msra.mxu0 0.0
        %2033 = vmatprep.mubr.f32.mxu0 0.0
        %2034 = vmatmul.mubr.f32.gmra.mrb[0].mxu0 %v1960
        %v2035 = vpop.f32.mrb[0].mxu0
        %v2036 = vadd.f32 0.0, %v2035
        %v2037 = vpop.f32.mrb[0].mxu0
        %v2038 = vadd.f32 0.0, %v2037
        %2039 = vdwg.mxu0
        %v2040 = vmul.f32 %v2036, %v677
        %v2041 = vmul.f32 %v2038, %v681
        %v2042 = vadd.f32 %v2040, 0.0
        %v2043 = vadd.f32 %v2041, 0.0
        %2044 = vrot.lane.b32.xlu0 %v1941, 16
        %v2045 = vpop.permute.xlu0 %2044
        %2046 = vrot.lane.b32.xlu0 %v1943, 16
        %v2047 = vpop.permute.xlu0 %2046
        %2048 = vrot.lane.b32.xlu0 %v1942, 16
        %v2049 = vpop.permute.xlu0 %2048
        %2050 = vrot.lane.b32.xlu0 %v1944, 16
        %v2051 = vpop.permute.xlu0 %2050
        %v2052 = vsel %vm708, %v2045, %v2049
        %v2053 = vsel %vm708, %v2047, %v2051
        %v2054 = vsel %vm708, %v2049, %v2045
        %v2055 = vsel %vm708, %v2051, %v2047
        %s2056 = scalar_lea.vmem %s5, 4
        %v2057 = vld [vmem:[%s2056] sm:$0x7]
        %v2059 = vsel %vm1958, %v2057, 0
        %v2062 = vsel %vm1962, %v2055, 0
        %v2065 = vsel %vm1962, %v2053, 0
        %2067 = vmatprep.subr.mxu0 %v2052
        %2068 = vmatpush1.msra.mxu0 %v2054
        %2069 = vmatprep.subr.mxu0 %v2065
        %2070 = vmatpush1.msra.mxu0 %v2062
        %2071 = vmatprep.subr.mxu0 0.0
        %2072 = vmatpush1.msra.mxu0 0.0
        %2073 = vmatprep.subr.mxu0 0.0
        %2074 = vmatpush1.msra.mxu0 0.0
        %2075 = vmatprep.subr.mxu0 0.0
        %2076 = vmatpush1.msra.mxu0 0.0
        %2077 = vmatprep.subr.mxu0 0.0
        %2078 = vmatpush1.msra.mxu0 0.0
        %2079 = vmatprep.subr.mxu0 0.0
        %2080 = vmatpush1.msra.mxu0 0.0
        %2081 = vmatprep.subr.mxu0 0.0
        %2082 = vmatpush1.msra.mxu0 0.0
        %2083 = vmatprep.subr.mxu0 0.0
        %2084 = vmatpush1.msra.mxu0 0.0
        %2085 = vmatprep.subr.mxu0 0.0
        %2086 = vmatpush1.msra.mxu0 0.0
        %2087 = vmatprep.subr.mxu0 0.0
        %2088 = vmatpush1.msra.mxu0 0.0
        %2089 = vmatprep.subr.mxu0 0.0
        %2090 = vmatpush1.msra.mxu0 0.0
        %2091 = vmatprep.subr.mxu0 0.0
        %2092 = vmatpush1.msra.mxu0 0.0
        %2093 = vmatprep.subr.mxu0 0.0
        %2094 = vmatpush1.msra.mxu0 0.0
        %2095 = vmatprep.subr.mxu0 0.0
        %2096 = vmatpush1.msra.mxu0 0.0
        %2097 = vmatprep.subr.mxu0 0.0
        %2098 = vmatpush1.msra.mxu0 0.0
        %2099 = vmatprep.subr.mxu0 0.0
        %2100 = vmatpush1.msra.mxu0 0.0
        %2101 = vmatprep.subr.mxu0 0.0
        %2102 = vmatpush1.msra.mxu0 0.0
        %2103 = vmatprep.subr.mxu0 0.0
        %2104 = vmatpush1.msra.mxu0 0.0
        %2105 = vmatprep.subr.mxu0 0.0
        %2106 = vmatpush1.msra.mxu0 0.0
        %2107 = vmatprep.subr.mxu0 0.0
        %2108 = vmatpush1.msra.mxu0 0.0
        %2109 = vmatprep.subr.mxu0 0.0
        %2110 = vmatpush1.msra.mxu0 0.0
        %2111 = vmatprep.subr.mxu0 0.0
        %2112 = vmatpush1.msra.mxu0 0.0
        %2113 = vmatprep.subr.mxu0 0.0
        %2114 = vmatpush1.msra.mxu0 0.0
        %2115 = vmatprep.subr.mxu0 0.0
        %2116 = vmatpush1.msra.mxu0 0.0
        %2117 = vmatprep.subr.mxu0 0.0
        %2118 = vmatpush1.msra.mxu0 0.0
        %2119 = vmatprep.subr.mxu0 0.0
        %2120 = vmatpush1.msra.mxu0 0.0
        %2121 = vmatprep.subr.mxu0 0.0
        %2122 = vmatpush1.msra.mxu0 0.0
        %2123 = vmatprep.subr.mxu0 0.0
        %2124 = vmatpush1.msra.mxu0 0.0
        %2125 = vmatprep.subr.mxu0 0.0
        %2126 = vmatpush1.msra.mxu0 0.0
        %2127 = vmatprep.subr.mxu0 0.0
        %2128 = vmatpush1.msra.mxu0 0.0
        %2129 = vmatprep.subr.mxu0 0.0
        %2130 = vmatpush1.msra.mxu0 0.0
        %2131 = vmatprep.mubr.f32.mxu0 0.0
        %2132 = vmatmul.mubr.f32.gmra.mrb[0].mxu0 %v2059
        %v2133 = vpop.f32.mrb[0].mxu0
        %v2134 = vadd.f32 0.0, %v2133
        %v2135 = vpop.f32.mrb[0].mxu0
        %v2136 = vadd.f32 0.0, %v2135
        %2137 = vdwg.mxu0
        %v2138 = vmul.f32 %v2134, %v717
        %v2139 = vmul.f32 %v2136, %v721
        %v2140 = vadd.f32 %v2042, %v2138
        %v2141 = vadd.f32 %v2043, %v2139
        %2142 = vrot.lane.b32.xlu0 %v1941, 15
        %v2143 = vpop.permute.xlu0 %2142
        %2144 = vrot.lane.b32.xlu0 %v1943, 15
        %v2145 = vpop.permute.xlu0 %2144
        %2146 = vrot.lane.b32.xlu0 %v1942, 15
        %v2147 = vpop.permute.xlu0 %2146
        %2148 = vrot.lane.b32.xlu0 %v1944, 15
        %v2149 = vpop.permute.xlu0 %2148
        %v2150 = vsel %vm749, %v2143, %v2147
        %v2151 = vsel %vm749, %v2145, %v2149
        %v2152 = vsel %vm749, %v2147, %v2143
        %v2153 = vsel %vm749, %v2149, %v2145
        %s2154 = scalar_lea.vmem %s5, 8
        %v2155 = vld [vmem:[%s2154] sm:$0x7]
        %v2157 = vsel %vm1958, %v2155, 0
        %v2160 = vsel %vm1962, %v2153, 0
        %v2163 = vsel %vm1962, %v2151, 0
        %2165 = vmatprep.subr.mxu0 %v2150
        %2166 = vmatpush1.msra.mxu0 %v2152
        %2167 = vmatprep.subr.mxu0 %v2163
        %2168 = vmatpush1.msra.mxu0 %v2160
        %2169 = vmatprep.subr.mxu0 0.0
        %2170 = vmatpush1.msra.mxu0 0.0
        %2171 = vmatprep.subr.mxu0 0.0
        %2172 = vmatpush1.msra.mxu0 0.0
        %2173 = vmatprep.subr.mxu0 0.0
        %2174 = vmatpush1.msra.mxu0 0.0
        %2175 = vmatprep.subr.mxu0 0.0
        %2176 = vmatpush1.msra.mxu0 0.0
        %2177 = vmatprep.subr.mxu0 0.0
        %2178 = vmatpush1.msra.mxu0 0.0
        %2179 = vmatprep.subr.mxu0 0.0
        %2180 = vmatpush1.msra.mxu0 0.0
        %2181 = vmatprep.subr.mxu0 0.0
        %2182 = vmatpush1.msra.mxu0 0.0
        %2183 = vmatprep.subr.mxu0 0.0
        %2184 = vmatpush1.msra.mxu0 0.0
        %2185 = vmatprep.subr.mxu0 0.0
        %2186 = vmatpush1.msra.mxu0 0.0
        %2187 = vmatprep.subr.mxu0 0.0
        %2188 = vmatpush1.msra.mxu0 0.0
        %2189 = vmatprep.subr.mxu0 0.0
        %2190 = vmatpush1.msra.mxu0 0.0
        %2191 = vmatprep.subr.mxu0 0.0
        %2192 = vmatpush1.msra.mxu0 0.0
        %2193 = vmatprep.subr.mxu0 0.0
        %2194 = vmatpush1.msra.mxu0 0.0
        %2195 = vmatprep.subr.mxu0 0.0
        %2196 = vmatpush1.msra.mxu0 0.0
        %2197 = vmatprep.subr.mxu0 0.0
        %2198 = vmatpush1.msra.mxu0 0.0
        %2199 = vmatprep.subr.mxu0 0.0
        %2200 = vmatpush1.msra.mxu0 0.0
        %2201 = vmatprep.subr.mxu0 0.0
        %2202 = vmatpush1.msra.mxu0 0.0
        %2203 = vmatprep.subr.mxu0 0.0
        %2204 = vmatpush1.msra.mxu0 0.0
        %2205 = vmatprep.subr.mxu0 0.0
        %2206 = vmatpush1.msra.mxu0 0.0
        %2207 = vmatprep.subr.mxu0 0.0
        %2208 = vmatpush1.msra.mxu0 0.0
        %2209 = vmatprep.subr.mxu0 0.0
        %2210 = vmatpush1.msra.mxu0 0.0
        %2211 = vmatprep.subr.mxu0 0.0
        %2212 = vmatpush1.msra.mxu0 0.0
        %2213 = vmatprep.subr.mxu0 0.0
        %2214 = vmatpush1.msra.mxu0 0.0
        %2215 = vmatprep.subr.mxu0 0.0
        %2216 = vmatpush1.msra.mxu0 0.0
        %2217 = vmatprep.subr.mxu0 0.0
        %2218 = vmatpush1.msra.mxu0 0.0
        %2219 = vmatprep.subr.mxu0 0.0
        %2220 = vmatpush1.msra.mxu0 0.0
        %2221 = vmatprep.subr.mxu0 0.0
        %2222 = vmatpush1.msra.mxu0 0.0
        %2223 = vmatprep.subr.mxu0 0.0
        %2224 = vmatpush1.msra.mxu0 0.0
        %2225 = vmatprep.subr.mxu0 0.0
        %2226 = vmatpush1.msra.mxu0 0.0
        %2227 = vmatprep.subr.mxu0 0.0
        %2228 = vmatpush1.msra.mxu0 0.0
        %2229 = vmatprep.mubr.f32.mxu0 0.0
        %2230 = vmatmul.mubr.f32.gmra.mrb[0].mxu0 %v2157
        %v2231 = vpop.f32.mrb[0].mxu0
        %v2232 = vadd.f32 0.0, %v2231
        %v2233 = vpop.f32.mrb[0].mxu0
        %v2234 = vadd.f32 0.0, %v2233
        %2235 = vdwg.mxu0
        %v2236 = vmul.f32 %v2232, %v758
        %v2237 = vmul.f32 %v2234, %v762
        %v2238 = vadd.f32 %v2140, %v2236
        %v2239 = vadd.f32 %v2141, %v2237
        %2240 = vrot.lane.b32.xlu0 %v1941, 1
        %v2241 = vpop.permute.xlu0 %2240
        %2242 = vrot.lane.b32.xlu0 %v1943, 1
        %v2243 = vpop.permute.xlu0 %2242
        %2244 = vrot.lane.b32.xlu0 %v1942, 1
        %v2245 = vpop.permute.xlu0 %2244
        %2246 = vrot.lane.b32.xlu0 %v1944, 1
        %v2247 = vpop.permute.xlu0 %2246
        %v2248 = vsel %vm790, %v2241, %v2245
        %v2249 = vsel %vm790, %v2243, %v2247
        %v2250 = vsel %vm790, %v2245, %v2241
        %v2251 = vsel %vm790, %v2247, %v2243
        %s2252 = scalar_lea.vmem %s5, 12
        %v2253 = vld [vmem:[%s2252] sm:$0x7]
        %v2255 = vsel %vm1958, %v2253, 0
        %v2258 = vsel %vm1962, %v2251, 0
        %v2261 = vsel %vm1962, %v2249, 0
        %2263 = vmatprep.subr.mxu0 %v2248
        %2264 = vmatpush1.msra.mxu0 %v2250
        %2265 = vmatprep.subr.mxu0 %v2261
        %2266 = vmatpush1.msra.mxu0 %v2258
        %2267 = vmatprep.subr.mxu0 0.0
        %2268 = vmatpush1.msra.mxu0 0.0
        %2269 = vmatprep.subr.mxu0 0.0
        %2270 = vmatpush1.msra.mxu0 0.0
        %2271 = vmatprep.subr.mxu0 0.0
        %2272 = vmatpush1.msra.mxu0 0.0
        %2273 = vmatprep.subr.mxu0 0.0
        %2274 = vmatpush1.msra.mxu0 0.0
        %2275 = vmatprep.subr.mxu0 0.0
        %2276 = vmatpush1.msra.mxu0 0.0
        %2277 = vmatprep.subr.mxu0 0.0
        %2278 = vmatpush1.msra.mxu0 0.0
        %2279 = vmatprep.subr.mxu0 0.0
        %2280 = vmatpush1.msra.mxu0 0.0
        %2281 = vmatprep.subr.mxu0 0.0
        %2282 = vmatpush1.msra.mxu0 0.0
        %2283 = vmatprep.subr.mxu0 0.0
        %2284 = vmatpush1.msra.mxu0 0.0
        %2285 = vmatprep.subr.mxu0 0.0
        %2286 = vmatpush1.msra.mxu0 0.0
        %2287 = vmatprep.subr.mxu0 0.0
        %2288 = vmatpush1.msra.mxu0 0.0
        %2289 = vmatprep.subr.mxu0 0.0
        %2290 = vmatpush1.msra.mxu0 0.0
        %2291 = vmatprep.subr.mxu0 0.0
        %2292 = vmatpush1.msra.mxu0 0.0
        %2293 = vmatprep.subr.mxu0 0.0
        %2294 = vmatpush1.msra.mxu0 0.0
        %2295 = vmatprep.subr.mxu0 0.0
        %2296 = vmatpush1.msra.mxu0 0.0
        %2297 = vmatprep.subr.mxu0 0.0
        %2298 = vmatpush1.msra.mxu0 0.0
        %2299 = vmatprep.subr.mxu0 0.0
        %2300 = vmatpush1.msra.mxu0 0.0
        %2301 = vmatprep.subr.mxu0 0.0
        %2302 = vmatpush1.msra.mxu0 0.0
        %2303 = vmatprep.subr.mxu0 0.0
        %2304 = vmatpush1.msra.mxu0 0.0
        %2305 = vmatprep.subr.mxu0 0.0
        %2306 = vmatpush1.msra.mxu0 0.0
        %2307 = vmatprep.subr.mxu0 0.0
        %2308 = vmatpush1.msra.mxu0 0.0
        %2309 = vmatprep.subr.mxu0 0.0
        %2310 = vmatpush1.msra.mxu0 0.0
        %2311 = vmatprep.subr.mxu0 0.0
        %2312 = vmatpush1.msra.mxu0 0.0
        %2313 = vmatprep.subr.mxu0 0.0
        %2314 = vmatpush1.msra.mxu0 0.0
        %2315 = vmatprep.subr.mxu0 0.0
        %2316 = vmatpush1.msra.mxu0 0.0
        %2317 = vmatprep.subr.mxu0 0.0
        %2318 = vmatpush1.msra.mxu0 0.0
        %2319 = vmatprep.subr.mxu0 0.0
        %2320 = vmatpush1.msra.mxu0 0.0
        %2321 = vmatprep.subr.mxu0 0.0
        %2322 = vmatpush1.msra.mxu0 0.0
        %2323 = vmatprep.subr.mxu0 0.0
        %2324 = vmatpush1.msra.mxu0 0.0
        %2325 = vmatprep.subr.mxu0 0.0
        %2326 = vmatpush1.msra.mxu0 0.0
        %2327 = vmatprep.mubr.f32.mxu0 0.0
        %2328 = vmatmul.mubr.f32.gmra.mrb[0].mxu0 %v2255
        %v2329 = vpop.f32.mrb[0].mxu0
        %v2330 = vadd.f32 0.0, %v2329
        %v2331 = vpop.f32.mrb[0].mxu0
        %v2332 = vadd.f32 0.0, %v2331
        %2333 = vdwg.mxu0
        %v2334 = vmul.f32 %v2330, %v799
        %v2335 = vmul.f32 %v2332, %v803
        %v2336 = vadd.f32 %v2238, %v2334
        %v2337 = vadd.f32 %v2239, %v2335
        %s2338 = scalar_lea.vmem %s5, 16
        %v2339 = vld [vmem:[%s2338] sm:$0x7]
        %v2341 = vsel %vm1958, %v2339, 0
        %v2344 = vsel %vm1962, %v1943, 0
        %v2347 = vsel %vm1962, %v1944, 0
        %2349 = vmatprep.subr.mxu0 %v1942
        %2350 = vmatpush1.msra.mxu0 %v1941
        %2351 = vmatprep.subr.mxu0 %v2347
        %2352 = vmatpush1.msra.mxu0 %v2344
        %2353 = vmatprep.subr.mxu0 0.0
        %2354 = vmatpush1.msra.mxu0 0.0
        %2355 = vmatprep.subr.mxu0 0.0
        %2356 = vmatpush1.msra.mxu0 0.0
        %2357 = vmatprep.subr.mxu0 0.0
        %2358 = vmatpush1.msra.mxu0 0.0
        %2359 = vmatprep.subr.mxu0 0.0
        %2360 = vmatpush1.msra.mxu0 0.0
        %2361 = vmatprep.subr.mxu0 0.0
        %2362 = vmatpush1.msra.mxu0 0.0
        %2363 = vmatprep.subr.mxu0 0.0
        %2364 = vmatpush1.msra.mxu0 0.0
        %2365 = vmatprep.subr.mxu0 0.0
        %2366 = vmatpush1.msra.mxu0 0.0
        %2367 = vmatprep.subr.mxu0 0.0
        %2368 = vmatpush1.msra.mxu0 0.0
        %2369 = vmatprep.subr.mxu0 0.0
        %2370 = vmatpush1.msra.mxu0 0.0
        %2371 = vmatprep.subr.mxu0 0.0
        %2372 = vmatpush1.msra.mxu0 0.0
        %2373 = vmatprep.subr.mxu0 0.0
        %2374 = vmatpush1.msra.mxu0 0.0
        %2375 = vmatprep.subr.mxu0 0.0
        %2376 = vmatpush1.msra.mxu0 0.0
        %2377 = vmatprep.subr.mxu0 0.0
        %2378 = vmatpush1.msra.mxu0 0.0
        %2379 = vmatprep.subr.mxu0 0.0
        %2380 = vmatpush1.msra.mxu0 0.0
        %2381 = vmatprep.subr.mxu0 0.0
        %2382 = vmatpush1.msra.mxu0 0.0
        %2383 = vmatprep.subr.mxu0 0.0
        %2384 = vmatpush1.msra.mxu0 0.0
        %2385 = vmatprep.subr.mxu0 0.0
        %2386 = vmatpush1.msra.mxu0 0.0
        %2387 = vmatprep.subr.mxu0 0.0
        %2388 = vmatpush1.msra.mxu0 0.0
        %2389 = vmatprep.subr.mxu0 0.0
        %2390 = vmatpush1.msra.mxu0 0.0
        %2391 = vmatprep.subr.mxu0 0.0
        %2392 = vmatpush1.msra.mxu0 0.0
        %2393 = vmatprep.subr.mxu0 0.0
        %2394 = vmatpush1.msra.mxu0 0.0
        %2395 = vmatprep.subr.mxu0 0.0
        %2396 = vmatpush1.msra.mxu0 0.0
        %2397 = vmatprep.subr.mxu0 0.0
        %2398 = vmatpush1.msra.mxu0 0.0
        %2399 = vmatprep.subr.mxu0 0.0
        %2400 = vmatpush1.msra.mxu0 0.0
        %2401 = vmatprep.subr.mxu0 0.0
        %2402 = vmatpush1.msra.mxu0 0.0
        %2403 = vmatprep.subr.mxu0 0.0
        %2404 = vmatpush1.msra.mxu0 0.0
        %2405 = vmatprep.subr.mxu0 0.0
        %2406 = vmatpush1.msra.mxu0 0.0
        %2407 = vmatprep.subr.mxu0 0.0
        %2408 = vmatpush1.msra.mxu0 0.0
        %2409 = vmatprep.subr.mxu0 0.0
        %2410 = vmatpush1.msra.mxu0 0.0
        %2411 = vmatprep.subr.mxu0 0.0
        %2412 = vmatpush1.msra.mxu0 0.0
        %2413 = vmatprep.mubr.f32.mxu0 0.0
        %2414 = vmatmul.mubr.f32.gmra.mrb[0].mxu0 %v2341
        %v2415 = vpop.f32.mrb[0].mxu0
        %v2416 = vadd.f32 0.0, %v2415
        %v2417 = vpop.f32.mrb[0].mxu0
        %v2418 = vadd.f32 0.0, %v2417
        %2419 = vdwg.mxu0
        %v2420 = vadd.f32 %v2336, %v2416
        %v2421 = vadd.f32 %v2337, %v2418
        %2422 = vrot.lane.b32.xlu0 %v1941, 127
        %v2423 = vpop.permute.xlu0 %2422
        %2424 = vrot.lane.b32.xlu0 %v1943, 127
        %v2425 = vpop.permute.xlu0 %2424
        %2426 = vrot.lane.b32.xlu0 %v1942, 127
        %v2427 = vpop.permute.xlu0 %2426
        %2428 = vrot.lane.b32.xlu0 %v1944, 127
        %v2429 = vpop.permute.xlu0 %2428
        %v2430 = vsel %vm842, %v2423, %v2427
        %v2431 = vsel %vm842, %v2425, %v2429
        %v2432 = vsel %vm842, %v2427, %v2423
        %v2433 = vsel %vm842, %v2429, %v2425
        %s2434 = scalar_lea.vmem %s5, 20
        %v2435 = vld [vmem:[%s2434] sm:$0x7]
        %v2437 = vsel %vm1958, %v2435, 0
        %v2440 = vsel %vm1962, %v2431, 0
        %v2443 = vsel %vm1962, %v2433, 0
        %2445 = vmatprep.subr.mxu0 %v2432
        %2446 = vmatpush1.msra.mxu0 %v2430
        %2447 = vmatprep.subr.mxu0 %v2443
        %2448 = vmatpush1.msra.mxu0 %v2440
        %2449 = vmatprep.subr.mxu0 0.0
        %2450 = vmatpush1.msra.mxu0 0.0
        %2451 = vmatprep.subr.mxu0 0.0
        %2452 = vmatpush1.msra.mxu0 0.0
        %2453 = vmatprep.subr.mxu0 0.0
        %2454 = vmatpush1.msra.mxu0 0.0
        %2455 = vmatprep.subr.mxu0 0.0
        %2456 = vmatpush1.msra.mxu0 0.0
        %2457 = vmatprep.subr.mxu0 0.0
        %2458 = vmatpush1.msra.mxu0 0.0
        %2459 = vmatprep.subr.mxu0 0.0
        %2460 = vmatpush1.msra.mxu0 0.0
        %2461 = vmatprep.subr.mxu0 0.0
        %2462 = vmatpush1.msra.mxu0 0.0
        %2463 = vmatprep.subr.mxu0 0.0
        %2464 = vmatpush1.msra.mxu0 0.0
        %2465 = vmatprep.subr.mxu0 0.0
        %2466 = vmatpush1.msra.mxu0 0.0
        %2467 = vmatprep.subr.mxu0 0.0
        %2468 = vmatpush1.msra.mxu0 0.0
        %2469 = vmatprep.subr.mxu0 0.0
        %2470 = vmatpush1.msra.mxu0 0.0
        %2471 = vmatprep.subr.mxu0 0.0
        %2472 = vmatpush1.msra.mxu0 0.0
        %2473 = vmatprep.subr.mxu0 0.0
        %2474 = vmatpush1.msra.mxu0 0.0
        %2475 = vmatprep.subr.mxu0 0.0
        %2476 = vmatpush1.msra.mxu0 0.0
        %2477 = vmatprep.subr.mxu0 0.0
        %2478 = vmatpush1.msra.mxu0 0.0
        %2479 = vmatprep.subr.mxu0 0.0
        %2480 = vmatpush1.msra.mxu0 0.0
        %2481 = vmatprep.subr.mxu0 0.0
        %2482 = vmatpush1.msra.mxu0 0.0
        %2483 = vmatprep.subr.mxu0 0.0
        %2484 = vmatpush1.msra.mxu0 0.0
        %2485 = vmatprep.subr.mxu0 0.0
        %2486 = vmatpush1.msra.mxu0 0.0
        %2487 = vmatprep.subr.mxu0 0.0
        %2488 = vmatpush1.msra.mxu0 0.0
        %2489 = vmatprep.subr.mxu0 0.0
        %2490 = vmatpush1.msra.mxu0 0.0
        %2491 = vmatprep.subr.mxu0 0.0
        %2492 = vmatpush1.msra.mxu0 0.0
        %2493 = vmatprep.subr.mxu0 0.0
        %2494 = vmatpush1.msra.mxu0 0.0
        %2495 = vmatprep.subr.mxu0 0.0
        %2496 = vmatpush1.msra.mxu0 0.0
        %2497 = vmatprep.subr.mxu0 0.0
        %2498 = vmatpush1.msra.mxu0 0.0
        %2499 = vmatprep.subr.mxu0 0.0
        %2500 = vmatpush1.msra.mxu0 0.0
        %2501 = vmatprep.subr.mxu0 0.0
        %2502 = vmatpush1.msra.mxu0 0.0
        %2503 = vmatprep.subr.mxu0 0.0
        %2504 = vmatpush1.msra.mxu0 0.0
        %2505 = vmatprep.subr.mxu0 0.0
        %2506 = vmatpush1.msra.mxu0 0.0
        %2507 = vmatprep.subr.mxu0 0.0
        %2508 = vmatpush1.msra.mxu0 0.0
        %2509 = vmatprep.mubr.f32.mxu0 0.0
        %2510 = vmatmul.mubr.f32.gmra.mrb[0].mxu0 %v2437
        %v2511 = vpop.f32.mrb[0].mxu0
        %v2512 = vadd.f32 0.0, %v2511
        %v2513 = vpop.f32.mrb[0].mxu0
        %v2514 = vadd.f32 0.0, %v2513
        %2515 = vdwg.mxu0
        %v2516 = vmul.f32 %v2512, %v851
        %v2517 = vmul.f32 %v2514, %v855
        %v2518 = vadd.f32 %v2420, %v2516
        %v2519 = vadd.f32 %v2421, %v2517
        %2520 = vrot.lane.b32.xlu0 %v1941, 113
        %v2521 = vpop.permute.xlu0 %2520
        %2522 = vrot.lane.b32.xlu0 %v1943, 113
        %v2523 = vpop.permute.xlu0 %2522
        %2524 = vrot.lane.b32.xlu0 %v1942, 113
        %v2525 = vpop.permute.xlu0 %2524
        %2526 = vrot.lane.b32.xlu0 %v1944, 113
        %v2527 = vpop.permute.xlu0 %2526
        %v2528 = vsel %vm883, %v2521, %v2525
        %v2529 = vsel %vm883, %v2523, %v2527
        %v2530 = vsel %vm883, %v2525, %v2521
        %v2531 = vsel %vm883, %v2527, %v2523
        %s2532 = scalar_lea.vmem %s5, 24
        %v2533 = vld [vmem:[%s2532] sm:$0x7]
        %v2535 = vsel %vm1958, %v2533, 0
        %v2538 = vsel %vm1962, %v2529, 0
        %v2541 = vsel %vm1962, %v2531, 0
        %2543 = vmatprep.subr.mxu0 %v2530
        %2544 = vmatpush1.msra.mxu0 %v2528
        %2545 = vmatprep.subr.mxu0 %v2541
        %2546 = vmatpush1.msra.mxu0 %v2538
        %2547 = vmatprep.subr.mxu0 0.0
        %2548 = vmatpush1.msra.mxu0 0.0
        %2549 = vmatprep.subr.mxu0 0.0
        %2550 = vmatpush1.msra.mxu0 0.0
        %2551 = vmatprep.subr.mxu0 0.0
        %2552 = vmatpush1.msra.mxu0 0.0
        %2553 = vmatprep.subr.mxu0 0.0
        %2554 = vmatpush1.msra.mxu0 0.0
        %2555 = vmatprep.subr.mxu0 0.0
        %2556 = vmatpush1.msra.mxu0 0.0
        %2557 = vmatprep.subr.mxu0 0.0
        %2558 = vmatpush1.msra.mxu0 0.0
        %2559 = vmatprep.subr.mxu0 0.0
        %2560 = vmatpush1.msra.mxu0 0.0
        %2561 = vmatprep.subr.mxu0 0.0
        %2562 = vmatpush1.msra.mxu0 0.0
        %2563 = vmatprep.subr.mxu0 0.0
        %2564 = vmatpush1.msra.mxu0 0.0
        %2565 = vmatprep.subr.mxu0 0.0
        %2566 = vmatpush1.msra.mxu0 0.0
        %2567 = vmatprep.subr.mxu0 0.0
        %2568 = vmatpush1.msra.mxu0 0.0
        %2569 = vmatprep.subr.mxu0 0.0
        %2570 = vmatpush1.msra.mxu0 0.0
        %2571 = vmatprep.subr.mxu0 0.0
        %2572 = vmatpush1.msra.mxu0 0.0
        %2573 = vmatprep.subr.mxu0 0.0
        %2574 = vmatpush1.msra.mxu0 0.0
        %2575 = vmatprep.subr.mxu0 0.0
        %2576 = vmatpush1.msra.mxu0 0.0
        %2577 = vmatprep.subr.mxu0 0.0
        %2578 = vmatpush1.msra.mxu0 0.0
        %2579 = vmatprep.subr.mxu0 0.0
        %2580 = vmatpush1.msra.mxu0 0.0
        %2581 = vmatprep.subr.mxu0 0.0
        %2582 = vmatpush1.msra.mxu0 0.0
        %2583 = vmatprep.subr.mxu0 0.0
        %2584 = vmatpush1.msra.mxu0 0.0
        %2585 = vmatprep.subr.mxu0 0.0
        %2586 = vmatpush1.msra.mxu0 0.0
        %2587 = vmatprep.subr.mxu0 0.0
        %2588 = vmatpush1.msra.mxu0 0.0
        %2589 = vmatprep.subr.mxu0 0.0
        %2590 = vmatpush1.msra.mxu0 0.0
        %2591 = vmatprep.subr.mxu0 0.0
        %2592 = vmatpush1.msra.mxu0 0.0
        %2593 = vmatprep.subr.mxu0 0.0
        %2594 = vmatpush1.msra.mxu0 0.0
        %2595 = vmatprep.subr.mxu0 0.0
        %2596 = vmatpush1.msra.mxu0 0.0
        %2597 = vmatprep.subr.mxu0 0.0
        %2598 = vmatpush1.msra.mxu0 0.0
        %2599 = vmatprep.subr.mxu0 0.0
        %2600 = vmatpush1.msra.mxu0 0.0
        %2601 = vmatprep.subr.mxu0 0.0
        %2602 = vmatpush1.msra.mxu0 0.0
        %2603 = vmatprep.subr.mxu0 0.0
        %2604 = vmatpush1.msra.mxu0 0.0
        %2605 = vmatprep.subr.mxu0 0.0
        %2606 = vmatpush1.msra.mxu0 0.0
        %2607 = vmatprep.mubr.f32.mxu0 0.0
        %2608 = vmatmul.mubr.f32.gmra.mrb[0].mxu0 %v2535
        %v2609 = vpop.f32.mrb[0].mxu0
        %v2610 = vadd.f32 0.0, %v2609
        %v2611 = vpop.f32.mrb[0].mxu0
        %v2612 = vadd.f32 0.0, %v2611
        %2613 = vdwg.mxu0
        %v2614 = vmul.f32 %v2610, %v892
        %v2615 = vmul.f32 %v2612, %v896
        %v2616 = vadd.f32 %v2518, %v2614
        %v2617 = vadd.f32 %v2519, %v2615
        %2618 = vrot.lane.b32.xlu0 %v1941, 112
        %v2619 = vpop.permute.xlu0 %2618
        %2620 = vrot.lane.b32.xlu0 %v1943, 112
        %v2621 = vpop.permute.xlu0 %2620
        %2622 = vrot.lane.b32.xlu0 %v1942, 112
        %v2623 = vpop.permute.xlu0 %2622
        %2624 = vrot.lane.b32.xlu0 %v1944, 112
        %v2625 = vpop.permute.xlu0 %2624
        %v2626 = vsel %vm924, %v2619, %v2623
        %v2627 = vsel %vm924, %v2621, %v2625
        %v2628 = vsel %vm924, %v2623, %v2619
        %v2629 = vsel %vm924, %v2625, %v2621
        %s2630 = scalar_lea.vmem %s5, 28
        %v2631 = vld [vmem:[%s2630] sm:$0x7]
        %v2633 = vsel %vm1958, %v2631, 0
        %v2636 = vsel %vm1962, %v2627, 0
        %v2639 = vsel %vm1962, %v2629, 0
        %2641 = vmatprep.subr.mxu0 %v2628
        %2642 = vmatpush1.msra.mxu0 %v2626
        %2643 = vmatprep.subr.mxu0 %v2639
        %2644 = vmatpush1.msra.mxu0 %v2636
        %2645 = vmatprep.subr.mxu0 0.0
        %2646 = vmatpush1.msra.mxu0 0.0
        %2647 = vmatprep.subr.mxu0 0.0
        %2648 = vmatpush1.msra.mxu0 0.0
        %2649 = vmatprep.subr.mxu0 0.0
        %2650 = vmatpush1.msra.mxu0 0.0
        %2651 = vmatprep.subr.mxu0 0.0
        %2652 = vmatpush1.msra.mxu0 0.0
        %2653 = vmatprep.subr.mxu0 0.0
        %2654 = vmatpush1.msra.mxu0 0.0
        %2655 = vmatprep.subr.mxu0 0.0
        %2656 = vmatpush1.msra.mxu0 0.0
        %2657 = vmatprep.subr.mxu0 0.0
        %2658 = vmatpush1.msra.mxu0 0.0
        %2659 = vmatprep.subr.mxu0 0.0
        %2660 = vmatpush1.msra.mxu0 0.0
        %2661 = vmatprep.subr.mxu0 0.0
        %2662 = vmatpush1.msra.mxu0 0.0
        %2663 = vmatprep.subr.mxu0 0.0
        %2664 = vmatpush1.msra.mxu0 0.0
        %2665 = vmatprep.subr.mxu0 0.0
        %2666 = vmatpush1.msra.mxu0 0.0
        %2667 = vmatprep.subr.mxu0 0.0
        %2668 = vmatpush1.msra.mxu0 0.0
        %2669 = vmatprep.subr.mxu0 0.0
        %2670 = vmatpush1.msra.mxu0 0.0
        %2671 = vmatprep.subr.mxu0 0.0
        %2672 = vmatpush1.msra.mxu0 0.0
        %2673 = vmatprep.subr.mxu0 0.0
        %2674 = vmatpush1.msra.mxu0 0.0
        %2675 = vmatprep.subr.mxu0 0.0
        %2676 = vmatpush1.msra.mxu0 0.0
        %2677 = vmatprep.subr.mxu0 0.0
        %2678 = vmatpush1.msra.mxu0 0.0
        %2679 = vmatprep.subr.mxu0 0.0
        %2680 = vmatpush1.msra.mxu0 0.0
        %2681 = vmatprep.subr.mxu0 0.0
        %2682 = vmatpush1.msra.mxu0 0.0
        %2683 = vmatprep.subr.mxu0 0.0
        %2684 = vmatpush1.msra.mxu0 0.0
        %2685 = vmatprep.subr.mxu0 0.0
        %2686 = vmatpush1.msra.mxu0 0.0
        %2687 = vmatprep.subr.mxu0 0.0
        %2688 = vmatpush1.msra.mxu0 0.0
        %2689 = vmatprep.subr.mxu0 0.0
        %2690 = vmatpush1.msra.mxu0 0.0
        %2691 = vmatprep.subr.mxu0 0.0
        %2692 = vmatpush1.msra.mxu0 0.0
        %2693 = vmatprep.subr.mxu0 0.0
        %2694 = vmatpush1.msra.mxu0 0.0
        %2695 = vmatprep.subr.mxu0 0.0
        %2696 = vmatpush1.msra.mxu0 0.0
        %2697 = vmatprep.subr.mxu0 0.0
        %2698 = vmatpush1.msra.mxu0 0.0
        %2699 = vmatprep.subr.mxu0 0.0
        %2700 = vmatpush1.msra.mxu0 0.0
        %2701 = vmatprep.subr.mxu0 0.0
        %2702 = vmatpush1.msra.mxu0 0.0
        %2703 = vmatprep.subr.mxu0 0.0
        %2704 = vmatpush1.msra.mxu0 0.0
        %2705 = vmatprep.mubr.f32.mxu0 0.0
        %2706 = vmatmul.mubr.f32.gmra.mrb[0].mxu0 %v2633
        %v2707 = vpop.f32.mrb[0].mxu0
        %v2708 = vadd.f32 0.0, %v2707
        %v2709 = vpop.f32.mrb[0].mxu0
        %v2710 = vadd.f32 0.0, %v2709
        %2711 = vdwg.mxu0
        %v2712 = vmul.f32 %v2708, %v933
        %v2713 = vmul.f32 %v2710, %v937
        %v2714 = vadd.f32 %v2616, %v2712
        %v2715 = vadd.f32 %v2617, %v2713
        %2716 = vrot.lane.b32.xlu0 %v1941, 111
        %v2717 = vpop.permute.xlu0 %2716
        %2718 = vrot.lane.b32.xlu0 %v1943, 111
        %v2719 = vpop.permute.xlu0 %2718
        %2720 = vrot.lane.b32.xlu0 %v1942, 111
        %v2721 = vpop.permute.xlu0 %2720
        %2722 = vrot.lane.b32.xlu0 %v1944, 111
        %v2723 = vpop.permute.xlu0 %2722
        %v2724 = vsel %vm965, %v2717, %v2721
        %v2725 = vsel %vm965, %v2719, %v2723
        %v2726 = vsel %vm965, %v2721, %v2717
        %v2727 = vsel %vm965, %v2723, %v2719
        %s2728 = scalar_lea.vmem %s5, 32
        %v2729 = vld [vmem:[%s2728] sm:$0x7]
        %v2731 = vsel %vm1958, %v2729, 0
        %v2734 = vsel %vm1962, %v2725, 0
        %v2737 = vsel %vm1962, %v2727, 0
        %2739 = vmatprep.subr.mxu0 %v2726
        %2740 = vmatpush1.msra.mxu0 %v2724
        %2741 = vmatprep.subr.mxu0 %v2737
        %2742 = vmatpush1.msra.mxu0 %v2734
        %2743 = vmatprep.subr.mxu0 0.0
        %2744 = vmatpush1.msra.mxu0 0.0
        %2745 = vmatprep.subr.mxu0 0.0
        %2746 = vmatpush1.msra.mxu0 0.0
        %2747 = vmatprep.subr.mxu0 0.0
        %2748 = vmatpush1.msra.mxu0 0.0
        %2749 = vmatprep.subr.mxu0 0.0
        %2750 = vmatpush1.msra.mxu0 0.0
        %2751 = vmatprep.subr.mxu0 0.0
        %2752 = vmatpush1.msra.mxu0 0.0
        %2753 = vmatprep.subr.mxu0 0.0
        %2754 = vmatpush1.msra.mxu0 0.0
        %2755 = vmatprep.subr.mxu0 0.0
        %2756 = vmatpush1.msra.mxu0 0.0
        %2757 = vmatprep.subr.mxu0 0.0
        %2758 = vmatpush1.msra.mxu0 0.0
        %2759 = vmatprep.subr.mxu0 0.0
        %2760 = vmatpush1.msra.mxu0 0.0
        %2761 = vmatprep.subr.mxu0 0.0
        %2762 = vmatpush1.msra.mxu0 0.0
        %2763 = vmatprep.subr.mxu0 0.0
        %2764 = vmatpush1.msra.mxu0 0.0
        %2765 = vmatprep.subr.mxu0 0.0
        %2766 = vmatpush1.msra.mxu0 0.0
        %2767 = vmatprep.subr.mxu0 0.0
        %2768 = vmatpush1.msra.mxu0 0.0
        %2769 = vmatprep.subr.mxu0 0.0
        %2770 = vmatpush1.msra.mxu0 0.0
        %2771 = vmatprep.subr.mxu0 0.0
        %2772 = vmatpush1.msra.mxu0 0.0
        %2773 = vmatprep.subr.mxu0 0.0
        %2774 = vmatpush1.msra.mxu0 0.0
        %2775 = vmatprep.subr.mxu0 0.0
        %2776 = vmatpush1.msra.mxu0 0.0
        %2777 = vmatprep.subr.mxu0 0.0
        %2778 = vmatpush1.msra.mxu0 0.0
        %2779 = vmatprep.subr.mxu0 0.0
        %2780 = vmatpush1.msra.mxu0 0.0
        %2781 = vmatprep.subr.mxu0 0.0
        %2782 = vmatpush1.msra.mxu0 0.0
        %2783 = vmatprep.subr.mxu0 0.0
        %2784 = vmatpush1.msra.mxu0 0.0
        %2785 = vmatprep.subr.mxu0 0.0
        %2786 = vmatpush1.msra.mxu0 0.0
        %2787 = vmatprep.subr.mxu0 0.0
        %2788 = vmatpush1.msra.mxu0 0.0
        %2789 = vmatprep.subr.mxu0 0.0
        %2790 = vmatpush1.msra.mxu0 0.0
        %2791 = vmatprep.subr.mxu0 0.0
        %2792 = vmatpush1.msra.mxu0 0.0
        %2793 = vmatprep.subr.mxu0 0.0
        %2794 = vmatpush1.msra.mxu0 0.0
        %2795 = vmatprep.subr.mxu0 0.0
        %2796 = vmatpush1.msra.mxu0 0.0
        %2797 = vmatprep.subr.mxu0 0.0
        %2798 = vmatpush1.msra.mxu0 0.0
        %2799 = vmatprep.subr.mxu0 0.0
        %2800 = vmatpush1.msra.mxu0 0.0
        %2801 = vmatprep.subr.mxu0 0.0
        %2802 = vmatpush1.msra.mxu0 0.0
        %2803 = vmatprep.mubr.f32.mxu0 0.0
        %2804 = vmatmul.mubr.f32.gmra.mrb[0].mxu0 %v2731
        %v2805 = vpop.f32.mrb[0].mxu0
        %v2806 = vadd.f32 0.0, %v2805
        %v2807 = vpop.f32.mrb[0].mxu0
        %v2808 = vadd.f32 0.0, %v2807
        %2809 = vdwg.mxu0
        %v2810 = vmul.f32 %v2806, %v974
        %v2811 = vmul.f32 %v2808, %v978
        %v2812 = vadd.f32 %v2714, %v2810
        %v2813 = vadd.f32 %v2715, %v2811
        %v2814 = vld [vmem:[%s6] sm:$0x7]
        %2816 = vset.pattern.permute.xlu0 0
        %2817 = vperm.xlu0 %2816, %v2814
        %v2818 = vpop.permute.xlu0 %2817
        %v2820 = vadd.f32 %v2812, %v2818
        %v2821 = vadd.f32 %v2813, %v2818
        %v2822 = vmax.f32 %v2820, 0.0
        %v2823 = vmax.f32 %v2821, 0.0
        %2824 = vrot.lane.b32.xlu0 %v2822, 17
        %v2825 = vpop.permute.xlu0 %2824
        %2826 = vrot.lane.b32.xlu0 %v2823, 17
        %v2827 = vpop.permute.xlu0 %2826
        %v2828 = vsel %vm669, %v2825, %v2827
        %v2829 = vsel %vm669, %v2827, %v2825
        %v2830 = vmul.f32 %v2829, %v677
        %v2831 = vmul.f32 %v2828, %v681
        %v2832 = vld [vmem:[%s7] sm:$0x3f]
        %2833 = vrot.lane.b32.xlu0 %v2822, 16
        %v2834 = vpop.permute.xlu0 %2833
        %2835 = vrot.lane.b32.xlu0 %v2823, 16
        %v2836 = vpop.permute.xlu0 %2835
        %v2837 = vsel %vm708, %v2834, %v2836
        %v2838 = vsel %vm708, %v2836, %v2834
        %v2839 = vmul.f32 %v2838, %v717
        %v2840 = vmul.f32 %v2837, %v721
        %s2841 = scalar_lea.vmem %s7, 8
        %v2842 = vld [vmem:[%s2841] sm:$0x3f]
        %vm2843 = vcmask 23552
        %v2845 = vsel %vm2843, %v2842, 0
        %vm2847 = vcmask 1042432
        %v2849 = vsel %vm2847, %v2839, 0
        %v2852 = vsel %vm2847, %v2840, 0
        %2854 = vmatprep.subr.mxu0 %v2852
        %2855 = vmatpush1.msra.mxu0 %v2849
        %2856 = vmatprep.subr.mxu0 0.0
        %2857 = vmatpush1.msra.mxu0 0.0
        %2858 = vmatprep.subr.mxu0 0.0
        %2859 = vmatpush1.msra.mxu0 0.0
        %2860 = vmatprep.subr.mxu0 0.0
        %2861 = vmatpush1.msra.mxu0 0.0
        %2862 = vmatprep.subr.mxu0 0.0
        %2863 = vmatpush1.msra.mxu0 0.0
        %2864 = vmatprep.subr.mxu0 0.0
        %2865 = vmatpush1.msra.mxu0 0.0
        %2866 = vmatprep.subr.mxu0 0.0
        %2867 = vmatpush1.msra.mxu0 0.0
        %2868 = vmatprep.subr.mxu0 0.0
        %2869 = vmatpush1.msra.mxu0 0.0
        %2870 = vmatprep.subr.mxu0 0.0
        %2871 = vmatpush1.msra.mxu0 0.0
        %2872 = vmatprep.subr.mxu0 0.0
        %2873 = vmatpush1.msra.mxu0 0.0
        %2874 = vmatprep.subr.mxu0 0.0
        %2875 = vmatpush1.msra.mxu0 0.0
        %2876 = vmatprep.subr.mxu0 0.0
        %2877 = vmatpush1.msra.mxu0 0.0
        %2878 = vmatprep.subr.mxu0 0.0
        %2879 = vmatpush1.msra.mxu0 0.0
        %2880 = vmatprep.subr.mxu0 0.0
        %2881 = vmatpush1.msra.mxu0 0.0
        %2882 = vmatprep.subr.mxu0 0.0
        %2883 = vmatpush1.msra.mxu0 0.0
        %2884 = vmatprep.subr.mxu0 0.0
        %2885 = vmatpush1.msra.mxu0 0.0
        %2886 = vmatprep.subr.mxu0 0.0
        %2887 = vmatpush1.msra.mxu0 0.0
        %2888 = vmatprep.subr.mxu0 0.0
        %2889 = vmatpush1.msra.mxu0 0.0
        %2890 = vmatprep.subr.mxu0 0.0
        %2891 = vmatpush1.msra.mxu0 0.0
        %2892 = vmatprep.subr.mxu0 0.0
        %2893 = vmatpush1.msra.mxu0 0.0
        %2894 = vmatprep.subr.mxu0 0.0
        %2895 = vmatpush1.msra.mxu0 0.0
        %2896 = vmatprep.subr.mxu0 0.0
        %2897 = vmatpush1.msra.mxu0 0.0
        %2898 = vmatprep.subr.mxu0 0.0
        %2899 = vmatpush1.msra.mxu0 0.0
        %2900 = vmatprep.subr.mxu0 0.0
        %2901 = vmatpush1.msra.mxu0 0.0
        %2902 = vmatprep.subr.mxu0 0.0
        %2903 = vmatpush1.msra.mxu0 0.0
        %2904 = vmatprep.subr.mxu0 0.0
        %2905 = vmatpush1.msra.mxu0 0.0
        %2906 = vmatprep.subr.mxu0 0.0
        %2907 = vmatpush1.msra.mxu0 0.0
        %2908 = vmatprep.subr.mxu0 0.0
        %2909 = vmatpush1.msra.mxu0 0.0
        %2910 = vmatprep.subr.mxu0 0.0
        %2911 = vmatpush1.msra.mxu0 0.0
        %2912 = vmatprep.subr.mxu0 0.0
        %2913 = vmatpush1.msra.mxu0 0.0
        %2914 = vmatprep.subr.mxu0 0.0
        %2915 = vmatpush1.msra.mxu0 0.0
        %2916 = vmatprep.subr.mxu0 0.0
        %2917 = vmatpush1.msra.mxu0 0.0
        %2918 = vmatprep.mubr.f32.mxu0 0.0
        %2919 = vmatmul.mubr.f32.gmra.mrb[0].mxu0 %v2845
        %v2920 = vpop.f32.mrb[0].mxu0
        %v2921 = vadd.f32 0.0, %v2920
        %v2922 = vpop.f32.mrb[0].mxu0
        %v2923 = vadd.f32 0.0, %v2922
        %2924 = vdwg.mxu0
        %v2926 = vsel %vm2843, %v2832, 0
        %v2929 = vsel %vm2847, %v2830, 0
        %v2932 = vsel %vm2847, %v2831, 0
        %2934 = vmatprep.subr.mxu0 %v2932
        %2935 = vmatpush1.msra.mxu0 %v2929
        %2936 = vmatprep.subr.mxu0 0.0
        %2937 = vmatpush1.msra.mxu0 0.0
        %2938 = vmatprep.subr.mxu0 0.0
        %2939 = vmatpush1.msra.mxu0 0.0
        %2940 = vmatprep.subr.mxu0 0.0
        %2941 = vmatpush1.msra.mxu0 0.0
        %2942 = vmatprep.subr.mxu0 0.0
        %2943 = vmatpush1.msra.mxu0 0.0
        %2944 = vmatprep.subr.mxu0 0.0
        %2945 = vmatpush1.msra.mxu0 0.0
        %2946 = vmatprep.subr.mxu0 0.0
        %2947 = vmatpush1.msra.mxu0 0.0
        %2948 = vmatprep.subr.mxu0 0.0
        %2949 = vmatpush1.msra.mxu0 0.0
        %2950 = vmatprep.subr.mxu0 0.0
        %2951 = vmatpush1.msra.mxu0 0.0
        %2952 = vmatprep.subr.mxu0 0.0
        %2953 = vmatpush1.msra.mxu0 0.0
        %2954 = vmatprep.subr.mxu0 0.0
        %2955 = vmatpush1.msra.mxu0 0.0
        %2956 = vmatprep.subr.mxu0 0.0
        %2957 = vmatpush1.msra.mxu0 0.0
        %2958 = vmatprep.subr.mxu0 0.0
        %2959 = vmatpush1.msra.mxu0 0.0
        %2960 = vmatprep.subr.mxu0 0.0
        %2961 = vmatpush1.msra.mxu0 0.0
        %2962 = vmatprep.subr.mxu0 0.0
        %2963 = vmatpush1.msra.mxu0 0.0
        %2964 = vmatprep.subr.mxu0 0.0
        %2965 = vmatpush1.msra.mxu0 0.0
        %2966 = vmatprep.subr.mxu0 0.0
        %2967 = vmatpush1.msra.mxu0 0.0
        %2968 = vmatprep.subr.mxu0 0.0
        %2969 = vmatpush1.msra.mxu0 0.0
        %2970 = vmatprep.subr.mxu0 0.0
        %2971 = vmatpush1.msra.mxu0 0.0
        %2972 = vmatprep.subr.mxu0 0.0
        %2973 = vmatpush1.msra.mxu0 0.0
        %2974 = vmatprep.subr.mxu0 0.0
        %2975 = vmatpush1.msra.mxu0 0.0
        %2976 = vmatprep.subr.mxu0 0.0
        %2977 = vmatpush1.msra.mxu0 0.0
        %2978 = vmatprep.subr.mxu0 0.0
        %2979 = vmatpush1.msra.mxu0 0.0
        %2980 = vmatprep.subr.mxu0 0.0
        %2981 = vmatpush1.msra.mxu0 0.0
        %2982 = vmatprep.subr.mxu0 0.0
        %2983 = vmatpush1.msra.mxu0 0.0
        %2984 = vmatprep.subr.mxu0 0.0
        %2985 = vmatpush1.msra.mxu0 0.0
        %2986 = vmatprep.subr.mxu0 0.0
        %2987 = vmatpush1.msra.mxu0 0.0
        %2988 = vmatprep.subr.mxu0 0.0
        %2989 = vmatpush1.msra.mxu0 0.0
        %2990 = vmatprep.subr.mxu0 0.0
        %2991 = vmatpush1.msra.mxu0 0.0
        %2992 = vmatprep.subr.mxu0 0.0
        %2993 = vmatpush1.msra.mxu0 0.0
        %2994 = vmatprep.subr.mxu0 0.0
        %2995 = vmatpush1.msra.mxu0 0.0
        %2996 = vmatprep.subr.mxu0 0.0
        %2997 = vmatpush1.msra.mxu0 0.0
        %2998 = vmatprep.mubr.f32.mxu0 0.0
        %2999 = vmatmul.mubr.f32.gmra.mrb[0].mxu0 %v2926
        %v3000 = vpop.f32.mrb[0].mxu0
        %v3001 = vadd.f32 %v2921, %v3000
        %v3002 = vpop.f32.mrb[0].mxu0
        %v3003 = vadd.f32 %v2923, %v3002
        %3004 = vdwg.mxu0
        %3005 = vrot.lane.b32.xlu0 %v2822, 15
        %v3006 = vpop.permute.xlu0 %3005
        %3007 = vrot.lane.b32.xlu0 %v2823, 15
        %v3008 = vpop.permute.xlu0 %3007
        %v3009 = vsel %vm749, %v3006, %v3008
        %v3010 = vsel %vm749, %v3008, %v3006
        %v3011 = vmul.f32 %v3010, %v758
        %v3012 = vmul.f32 %v3009, %v762
        %s3013 = scalar_lea.vmem %s7, 16
        %v3014 = vld [vmem:[%s3013] sm:$0x3f]
        %v3016 = vsel %vm2843, %v3014, 0
        %v3019 = vsel %vm2847, %v3011, 0
        %v3022 = vsel %vm2847, %v3012, 0
        %3024 = vmatprep.subr.mxu0 %v3022
        %3025 = vmatpush1.msra.mxu0 %v3019
        %3026 = vmatprep.subr.mxu0 0.0
        %3027 = vmatpush1.msra.mxu0 0.0
        %3028 = vmatprep.subr.mxu0 0.0
        %3029 = vmatpush1.msra.mxu0 0.0
        %3030 = vmatprep.subr.mxu0 0.0
        %3031 = vmatpush1.msra.mxu0 0.0
        %3032 = vmatprep.subr.mxu0 0.0
        %3033 = vmatpush1.msra.mxu0 0.0
        %3034 = vmatprep.subr.mxu0 0.0
        %3035 = vmatpush1.msra.mxu0 0.0
        %3036 = vmatprep.subr.mxu0 0.0
        %3037 = vmatpush1.msra.mxu0 0.0
        %3038 = vmatprep.subr.mxu0 0.0
        %3039 = vmatpush1.msra.mxu0 0.0
        %3040 = vmatprep.subr.mxu0 0.0
        %3041 = vmatpush1.msra.mxu0 0.0
        %3042 = vmatprep.subr.mxu0 0.0
        %3043 = vmatpush1.msra.mxu0 0.0
        %3044 = vmatprep.subr.mxu0 0.0
        %3045 = vmatpush1.msra.mxu0 0.0
        %3046 = vmatprep.subr.mxu0 0.0
        %3047 = vmatpush1.msra.mxu0 0.0
        %3048 = vmatprep.subr.mxu0 0.0
        %3049 = vmatpush1.msra.mxu0 0.0
        %3050 = vmatprep.subr.mxu0 0.0
        %3051 = vmatpush1.msra.mxu0 0.0
        %3052 = vmatprep.subr.mxu0 0.0
        %3053 = vmatpush1.msra.mxu0 0.0
        %3054 = vmatprep.subr.mxu0 0.0
        %3055 = vmatpush1.msra.mxu0 0.0
        %3056 = vmatprep.subr.mxu0 0.0
        %3057 = vmatpush1.msra.mxu0 0.0
        %3058 = vmatprep.subr.mxu0 0.0
        %3059 = vmatpush1.msra.mxu0 0.0
        %3060 = vmatprep.subr.mxu0 0.0
        %3061 = vmatpush1.msra.mxu0 0.0
        %3062 = vmatprep.subr.mxu0 0.0
        %3063 = vmatpush1.msra.mxu0 0.0
        %3064 = vmatprep.subr.mxu0 0.0
        %3065 = vmatpush1.msra.mxu0 0.0
        %3066 = vmatprep.subr.mxu0 0.0
        %3067 = vmatpush1.msra.mxu0 0.0
        %3068 = vmatprep.subr.mxu0 0.0
        %3069 = vmatpush1.msra.mxu0 0.0
        %3070 = vmatprep.subr.mxu0 0.0
        %3071 = vmatpush1.msra.mxu0 0.0
        %3072 = vmatprep.subr.mxu0 0.0
        %3073 = vmatpush1.msra.mxu0 0.0
        %3074 = vmatprep.subr.mxu0 0.0
        %3075 = vmatpush1.msra.mxu0 0.0
        %3076 = vmatprep.subr.mxu0 0.0
        %3077 = vmatpush1.msra.mxu0 0.0
        %3078 = vmatprep.subr.mxu0 0.0
        %3079 = vmatpush1.msra.mxu0 0.0
        %3080 = vmatprep.subr.mxu0 0.0
        %3081 = vmatpush1.msra.mxu0 0.0
        %3082 = vmatprep.subr.mxu0 0.0
        %3083 = vmatpush1.msra.mxu0 0.0
        %3084 = vmatprep.subr.mxu0 0.0
        %3085 = vmatpush1.msra.mxu0 0.0
        %3086 = vmatprep.subr.mxu0 0.0
        %3087 = vmatpush1.msra.mxu0 0.0
        %3088 = vmatprep.mubr.f32.mxu0 0.0
        %3089 = vmatmul.mubr.f32.gmra.mrb[0].mxu0 %v3016
        %v3090 = vpop.f32.mrb[0].mxu0
        %v3091 = vadd.f32 0.0, %v3090
        %v3092 = vpop.f32.mrb[0].mxu0
        %v3093 = vadd.f32 0.0, %v3092
        %3094 = vdwg.mxu0
        %v3095 = vadd.f32 %v3001, %v3091
        %v3096 = vadd.f32 %v3003, %v3093
        %3097 = vrot.lane.b32.xlu0 %v2822, 1
        %v3098 = vpop.permute.xlu0 %3097
        %3099 = vrot.lane.b32.xlu0 %v2823, 1
        %v3100 = vpop.permute.xlu0 %3099
        %v3101 = vsel %vm790, %v3098, %v3100
        %v3102 = vsel %vm790, %v3100, %v3098
        %v3103 = vmul.f32 %v3102, %v799
        %v3104 = vmul.f32 %v3101, %v803
        %s3105 = scalar_lea.vmem %s7, 24
        %v3106 = vld [vmem:[%s3105] sm:$0x3f]
        %v3108 = vsel %vm2843, %v3106, 0
        %v3111 = vsel %vm2847, %v3103, 0
        %v3114 = vsel %vm2847, %v3104, 0
        %3116 = vmatprep.subr.mxu0 %v3114
        %3117 = vmatpush1.msra.mxu0 %v3111
        %3118 = vmatprep.subr.mxu0 0.0
        %3119 = vmatpush1.msra.mxu0 0.0
        %3120 = vmatprep.subr.mxu0 0.0
        %3121 = vmatpush1.msra.mxu0 0.0
        %3122 = vmatprep.subr.mxu0 0.0
        %3123 = vmatpush1.msra.mxu0 0.0
        %3124 = vmatprep.subr.mxu0 0.0
        %3125 = vmatpush1.msra.mxu0 0.0
        %3126 = vmatprep.subr.mxu0 0.0
        %3127 = vmatpush1.msra.mxu0 0.0
        %3128 = vmatprep.subr.mxu0 0.0
        %3129 = vmatpush1.msra.mxu0 0.0
        %3130 = vmatprep.subr.mxu0 0.0
        %3131 = vmatpush1.msra.mxu0 0.0
        %3132 = vmatprep.subr.mxu0 0.0
        %3133 = vmatpush1.msra.mxu0 0.0
        %3134 = vmatprep.subr.mxu0 0.0
        %3135 = vmatpush1.msra.mxu0 0.0
        %3136 = vmatprep.subr.mxu0 0.0
        %3137 = vmatpush1.msra.mxu0 0.0
        %3138 = vmatprep.subr.mxu0 0.0
        %3139 = vmatpush1.msra.mxu0 0.0
        %3140 = vmatprep.subr.mxu0 0.0
        %3141 = vmatpush1.msra.mxu0 0.0
        %3142 = vmatprep.subr.mxu0 0.0
        %3143 = vmatpush1.msra.mxu0 0.0
        %3144 = vmatprep.subr.mxu0 0.0
        %3145 = vmatpush1.msra.mxu0 0.0
        %3146 = vmatprep.subr.mxu0 0.0
        %3147 = vmatpush1.msra.mxu0 0.0
        %3148 = vmatprep.subr.mxu0 0.0
        %3149 = vmatpush1.msra.mxu0 0.0
        %3150 = vmatprep.subr.mxu0 0.0
        %3151 = vmatpush1.msra.mxu0 0.0
        %3152 = vmatprep.subr.mxu0 0.0
        %3153 = vmatpush1.msra.mxu0 0.0
        %3154 = vmatprep.subr.mxu0 0.0
        %3155 = vmatpush1.msra.mxu0 0.0
        %3156 = vmatprep.subr.mxu0 0.0
        %3157 = vmatpush1.msra.mxu0 0.0
        %3158 = vmatprep.subr.mxu0 0.0
        %3159 = vmatpush1.msra.mxu0 0.0
        %3160 = vmatprep.subr.mxu0 0.0
        %3161 = vmatpush1.msra.mxu0 0.0
        %3162 = vmatprep.subr.mxu0 0.0
        %3163 = vmatpush1.msra.mxu0 0.0
        %3164 = vmatprep.subr.mxu0 0.0
        %3165 = vmatpush1.msra.mxu0 0.0
        %3166 = vmatprep.subr.mxu0 0.0
        %3167 = vmatpush1.msra.mxu0 0.0
        %3168 = vmatprep.subr.mxu0 0.0
        %3169 = vmatpush1.msra.mxu0 0.0
        %3170 = vmatprep.subr.mxu0 0.0
        %3171 = vmatpush1.msra.mxu0 0.0
        %3172 = vmatprep.subr.mxu0 0.0
        %3173 = vmatpush1.msra.mxu0 0.0
        %3174 = vmatprep.subr.mxu0 0.0
        %3175 = vmatpush1.msra.mxu0 0.0
        %3176 = vmatprep.subr.mxu0 0.0
        %3177 = vmatpush1.msra.mxu0 0.0
        %3178 = vmatprep.subr.mxu0 0.0
        %3179 = vmatpush1.msra.mxu0 0.0
        %3180 = vmatprep.mubr.f32.mxu0 0.0
        %3181 = vmatmul.mubr.f32.gmra.mrb[0].mxu0 %v3108
        %v3182 = vpop.f32.mrb[0].mxu0
        %v3183 = vadd.f32 0.0, %v3182
        %v3184 = vpop.f32.mrb[0].mxu0
        %v3185 = vadd.f32 0.0, %v3184
        %3186 = vdwg.mxu0
        %v3187 = vadd.f32 %v3095, %v3183
        %v3188 = vadd.f32 %v3096, %v3185
        %s3189 = scalar_lea.vmem %s7, 32
        %v3190 = vld [vmem:[%s3189] sm:$0x3f]
        %v3192 = vsel %vm2843, %v3190, 0
        %v3195 = vsel %vm2847, %v2822, 0
        %v3198 = vsel %vm2847, %v2823, 0
        %3200 = vmatprep.subr.mxu0 %v3198
        %3201 = vmatpush1.msra.mxu0 %v3195
        %3202 = vmatprep.subr.mxu0 0.0
        %3203 = vmatpush1.msra.mxu0 0.0
        %3204 = vmatprep.subr.mxu0 0.0
        %3205 = vmatpush1.msra.mxu0 0.0
        %3206 = vmatprep.subr.mxu0 0.0
        %3207 = vmatpush1.msra.mxu0 0.0
        %3208 = vmatprep.subr.mxu0 0.0
        %3209 = vmatpush1.msra.mxu0 0.0
        %3210 = vmatprep.subr.mxu0 0.0
        %3211 = vmatpush1.msra.mxu0 0.0
        %3212 = vmatprep.subr.mxu0 0.0
        %3213 = vmatpush1.msra.mxu0 0.0
        %3214 = vmatprep.subr.mxu0 0.0
        %3215 = vmatpush1.msra.mxu0 0.0
        %3216 = vmatprep.subr.mxu0 0.0
        %3217 = vmatpush1.msra.mxu0 0.0
        %3218 = vmatprep.subr.mxu0 0.0
        %3219 = vmatpush1.msra.mxu0 0.0
        %3220 = vmatprep.subr.mxu0 0.0
        %3221 = vmatpush1.msra.mxu0 0.0
        %3222 = vmatprep.subr.mxu0 0.0
        %3223 = vmatpush1.msra.mxu0 0.0
        %3224 = vmatprep.subr.mxu0 0.0
        %3225 = vmatpush1.msra.mxu0 0.0
        %3226 = vmatprep.subr.mxu0 0.0
        %3227 = vmatpush1.msra.mxu0 0.0
        %3228 = vmatprep.subr.mxu0 0.0
        %3229 = vmatpush1.msra.mxu0 0.0
        %3230 = vmatprep.subr.mxu0 0.0
        %3231 = vmatpush1.msra.mxu0 0.0
        %3232 = vmatprep.subr.mxu0 0.0
        %3233 = vmatpush1.msra.mxu0 0.0
        %3234 = vmatprep.subr.mxu0 0.0
        %3235 = vmatpush1.msra.mxu0 0.0
        %3236 = vmatprep.subr.mxu0 0.0
        %3237 = vmatpush1.msra.mxu0 0.0
        %3238 = vmatprep.subr.mxu0 0.0
        %3239 = vmatpush1.msra.mxu0 0.0
        %3240 = vmatprep.subr.mxu0 0.0
        %3241 = vmatpush1.msra.mxu0 0.0
        %3242 = vmatprep.subr.mxu0 0.0
        %3243 = vmatpush1.msra.mxu0 0.0
        %3244 = vmatprep.subr.mxu0 0.0
        %3245 = vmatpush1.msra.mxu0 0.0
        %3246 = vmatprep.subr.mxu0 0.0
        %3247 = vmatpush1.msra.mxu0 0.0
        %3248 = vmatprep.subr.mxu0 0.0
        %3249 = vmatpush1.msra.mxu0 0.0
        %3250 = vmatprep.subr.mxu0 0.0
        %3251 = vmatpush1.msra.mxu0 0.0
        %3252 = vmatprep.subr.mxu0 0.0
        %3253 = vmatpush1.msra.mxu0 0.0
        %3254 = vmatprep.subr.mxu0 0.0
        %3255 = vmatpush1.msra.mxu0 0.0
        %3256 = vmatprep.subr.mxu0 0.0
        %3257 = vmatpush1.msra.mxu0 0.0
        %3258 = vmatprep.subr.mxu0 0.0
        %3259 = vmatpush1.msra.mxu0 0.0
        %3260 = vmatprep.subr.mxu0 0.0
        %3261 = vmatpush1.msra.mxu0 0.0
        %3262 = vmatprep.subr.mxu0 0.0
        %3263 = vmatpush1.msra.mxu0 0.0
        %3264 = vmatprep.mubr.f32.mxu0 0.0
        %3265 = vmatmul.mubr.f32.gmra.mrb[0].mxu0 %v3192
        %v3266 = vpop.f32.mrb[0].mxu0
        %v3267 = vadd.f32 0.0, %v3266
        %v3268 = vpop.f32.mrb[0].mxu0
        %v3269 = vadd.f32 0.0, %v3268
        %3270 = vdwg.mxu0
        %v3271 = vadd.f32 %v3187, %v3267
        %v3272 = vadd.f32 %v3188, %v3269
        %3273 = vrot.lane.b32.xlu0 %v2822, 127
        %v3274 = vpop.permute.xlu0 %3273
        %3275 = vrot.lane.b32.xlu0 %v2823, 127
        %v3276 = vpop.permute.xlu0 %3275
        %v3277 = vsel %vm842, %v3274, %v3276
        %v3278 = vsel %vm842, %v3276, %v3274
        %v3279 = vmul.f32 %v3277, %v851
        %v3280 = vmul.f32 %v3278, %v855
        %s3281 = scalar_lea.vmem %s7, 40
        %v3282 = vld [vmem:[%s3281] sm:$0x3f]
        %v3284 = vsel %vm2843, %v3282, 0
        %v3287 = vsel %vm2847, %v3279, 0
        %v3290 = vsel %vm2847, %v3280, 0
        %3292 = vmatprep.subr.mxu0 %v3290
        %3293 = vmatpush1.msra.mxu0 %v3287
        %3294 = vmatprep.subr.mxu0 0.0
        %3295 = vmatpush1.msra.mxu0 0.0
        %3296 = vmatprep.subr.mxu0 0.0
        %3297 = vmatpush1.msra.mxu0 0.0
        %3298 = vmatprep.subr.mxu0 0.0
        %3299 = vmatpush1.msra.mxu0 0.0
        %3300 = vmatprep.subr.mxu0 0.0
        %3301 = vmatpush1.msra.mxu0 0.0
        %3302 = vmatprep.subr.mxu0 0.0
        %3303 = vmatpush1.msra.mxu0 0.0
        %3304 = vmatprep.subr.mxu0 0.0
        %3305 = vmatpush1.msra.mxu0 0.0
        %3306 = vmatprep.subr.mxu0 0.0
        %3307 = vmatpush1.msra.mxu0 0.0
        %3308 = vmatprep.subr.mxu0 0.0
        %3309 = vmatpush1.msra.mxu0 0.0
        %3310 = vmatprep.subr.mxu0 0.0
        %3311 = vmatpush1.msra.mxu0 0.0
        %3312 = vmatprep.subr.mxu0 0.0
        %3313 = vmatpush1.msra.mxu0 0.0
        %3314 = vmatprep.subr.mxu0 0.0
        %3315 = vmatpush1.msra.mxu0 0.0
        %3316 = vmatprep.subr.mxu0 0.0
        %3317 = vmatpush1.msra.mxu0 0.0
        %3318 = vmatprep.subr.mxu0 0.0
        %3319 = vmatpush1.msra.mxu0 0.0
        %3320 = vmatprep.subr.mxu0 0.0
        %3321 = vmatpush1.msra.mxu0 0.0
        %3322 = vmatprep.subr.mxu0 0.0
        %3323 = vmatpush1.msra.mxu0 0.0
        %3324 = vmatprep.subr.mxu0 0.0
        %3325 = vmatpush1.msra.mxu0 0.0
        %3326 = vmatprep.subr.mxu0 0.0
        %3327 = vmatpush1.msra.mxu0 0.0
        %3328 = vmatprep.subr.mxu0 0.0
        %3329 = vmatpush1.msra.mxu0 0.0
        %3330 = vmatprep.subr.mxu0 0.0
        %3331 = vmatpush1.msra.mxu0 0.0
        %3332 = vmatprep.subr.mxu0 0.0
        %3333 = vmatpush1.msra.mxu0 0.0
        %3334 = vmatprep.subr.mxu0 0.0
        %3335 = vmatpush1.msra.mxu0 0.0
        %3336 = vmatprep.subr.mxu0 0.0
        %3337 = vmatpush1.msra.mxu0 0.0
        %3338 = vmatprep.subr.mxu0 0.0
        %3339 = vmatpush1.msra.mxu0 0.0
        %3340 = vmatprep.subr.mxu0 0.0
        %3341 = vmatpush1.msra.mxu0 0.0
        %3342 = vmatprep.subr.mxu0 0.0
        %3343 = vmatpush1.msra.mxu0 0.0
        %3344 = vmatprep.subr.mxu0 0.0
        %3345 = vmatpush1.msra.mxu0 0.0
        %3346 = vmatprep.subr.mxu0 0.0
        %3347 = vmatpush1.msra.mxu0 0.0
        %3348 = vmatprep.subr.mxu0 0.0
        %3349 = vmatpush1.msra.mxu0 0.0
        %3350 = vmatprep.subr.mxu0 0.0
        %3351 = vmatpush1.msra.mxu0 0.0
        %3352 = vmatprep.subr.mxu0 0.0
        %3353 = vmatpush1.msra.mxu0 0.0
        %3354 = vmatprep.subr.mxu0 0.0
        %3355 = vmatpush1.msra.mxu0 0.0
        %3356 = vmatprep.mubr.f32.mxu0 0.0
        %3357 = vmatmul.mubr.f32.gmra.mrb[0].mxu0 %v3284
        %v3358 = vpop.f32.mrb[0].mxu0
        %v3359 = vadd.f32 0.0, %v3358
        %v3360 = vpop.f32.mrb[0].mxu0
        %v3361 = vadd.f32 0.0, %v3360
        %3362 = vdwg.mxu0
        %v3363 = vadd.f32 %v3271, %v3359
        %v3364 = vadd.f32 %v3272, %v3361
        %3365 = vrot.lane.b32.xlu0 %v2822, 113
        %v3366 = vpop.permute.xlu0 %3365
        %3367 = vrot.lane.b32.xlu0 %v2823, 113
        %v3368 = vpop.permute.xlu0 %3367
        %v3369 = vsel %vm883, %v3366, %v3368
        %v3370 = vsel %vm883, %v3368, %v3366
        %v3371 = vmul.f32 %v3369, %v892
        %v3372 = vmul.f32 %v3370, %v896
        %s3373 = scalar_lea.vmem %s7, 48
        %v3374 = vld [vmem:[%s3373] sm:$0x3f]
        %v3376 = vsel %vm2843, %v3374, 0
        %v3379 = vsel %vm2847, %v3371, 0
        %v3382 = vsel %vm2847, %v3372, 0
        %3384 = vmatprep.subr.mxu0 %v3382
        %3385 = vmatpush1.msra.mxu0 %v3379
        %3386 = vmatprep.subr.mxu0 0.0
        %3387 = vmatpush1.msra.mxu0 0.0
        %3388 = vmatprep.subr.mxu0 0.0
        %3389 = vmatpush1.msra.mxu0 0.0
        %3390 = vmatprep.subr.mxu0 0.0
        %3391 = vmatpush1.msra.mxu0 0.0
        %3392 = vmatprep.subr.mxu0 0.0
        %3393 = vmatpush1.msra.mxu0 0.0
        %3394 = vmatprep.subr.mxu0 0.0
        %3395 = vmatpush1.msra.mxu0 0.0
        %3396 = vmatprep.subr.mxu0 0.0
        %3397 = vmatpush1.msra.mxu0 0.0
        %3398 = vmatprep.subr.mxu0 0.0
        %3399 = vmatpush1.msra.mxu0 0.0
        %3400 = vmatprep.subr.mxu0 0.0
        %3401 = vmatpush1.msra.mxu0 0.0
        %3402 = vmatprep.subr.mxu0 0.0
        %3403 = vmatpush1.msra.mxu0 0.0
        %3404 = vmatprep.subr.mxu0 0.0
        %3405 = vmatpush1.msra.mxu0 0.0
        %3406 = vmatprep.subr.mxu0 0.0
        %3407 = vmatpush1.msra.mxu0 0.0
        %3408 = vmatprep.subr.mxu0 0.0
        %3409 = vmatpush1.msra.mxu0 0.0
        %3410 = vmatprep.subr.mxu0 0.0
        %3411 = vmatpush1.msra.mxu0 0.0
        %3412 = vmatprep.subr.mxu0 0.0
        %3413 = vmatpush1.msra.mxu0 0.0
        %3414 = vmatprep.subr.mxu0 0.0
        %3415 = vmatpush1.msra.mxu0 0.0
        %3416 = vmatprep.subr.mxu0 0.0
        %3417 = vmatpush1.msra.mxu0 0.0
        %3418 = vmatprep.subr.mxu0 0.0
        %3419 = vmatpush1.msra.mxu0 0.0
        %3420 = vmatprep.subr.mxu0 0.0
        %3421 = vmatpush1.msra.mxu0 0.0
        %3422 = vmatprep.subr.mxu0 0.0
        %3423 = vmatpush1.msra.mxu0 0.0
        %3424 = vmatprep.subr.mxu0 0.0
        %3425 = vmatpush1.msra.mxu0 0.0
        %3426 = vmatprep.subr.mxu0 0.0
        %3427 = vmatpush1.msra.mxu0 0.0
        %3428 = vmatprep.subr.mxu0 0.0
        %3429 = vmatpush1.msra.mxu0 0.0
        %3430 = vmatprep.subr.mxu0 0.0
        %3431 = vmatpush1.msra.mxu0 0.0
        %3432 = vmatprep.subr.mxu0 0.0
        %3433 = vmatpush1.msra.mxu0 0.0
        %3434 = vmatprep.subr.mxu0 0.0
        %3435 = vmatpush1.msra.mxu0 0.0
        %3436 = vmatprep.subr.mxu0 0.0
        %3437 = vmatpush1.msra.mxu0 0.0
        %3438 = vmatprep.subr.mxu0 0.0
        %3439 = vmatpush1.msra.mxu0 0.0
        %3440 = vmatprep.subr.mxu0 0.0
        %3441 = vmatpush1.msra.mxu0 0.0
        %3442 = vmatprep.subr.mxu0 0.0
        %3443 = vmatpush1.msra.mxu0 0.0
        %3444 = vmatprep.subr.mxu0 0.0
        %3445 = vmatpush1.msra.mxu0 0.0
        %3446 = vmatprep.subr.mxu0 0.0
        %3447 = vmatpush1.msra.mxu0 0.0
        %3448 = vmatprep.mubr.f32.mxu0 0.0
        %3449 = vmatmul.mubr.f32.gmra.mrb[0].mxu0 %v3376
        %v3450 = vpop.f32.mrb[0].mxu0
        %v3451 = vadd.f32 0.0, %v3450
        %v3452 = vpop.f32.mrb[0].mxu0
        %v3453 = vadd.f32 0.0, %v3452
        %3454 = vdwg.mxu0
        %v3455 = vadd.f32 %v3363, %v3451
        %v3456 = vadd.f32 %v3364, %v3453
        %3457 = vrot.lane.b32.xlu0 %v2822, 112
        %v3458 = vpop.permute.xlu0 %3457
        %3459 = vrot.lane.b32.xlu0 %v2823, 112
        %v3460 = vpop.permute.xlu0 %3459
        %v3461 = vsel %vm924, %v3458, %v3460
        %v3462 = vsel %vm924, %v3460, %v3458
        %v3463 = vmul.f32 %v3461, %v933
        %v3464 = vmul.f32 %v3462, %v937
        %s3465 = scalar_lea.vmem %s7, 56
        %v3466 = vld [vmem:[%s3465] sm:$0x3f]
        %v3468 = vsel %vm2843, %v3466, 0
        %v3471 = vsel %vm2847, %v3463, 0
        %v3474 = vsel %vm2847, %v3464, 0
        %3476 = vmatprep.subr.mxu0 %v3474
        %3477 = vmatpush1.msra.mxu0 %v3471
        %3478 = vmatprep.subr.mxu0 0.0
        %3479 = vmatpush1.msra.mxu0 0.0
        %3480 = vmatprep.subr.mxu0 0.0
        %3481 = vmatpush1.msra.mxu0 0.0
        %3482 = vmatprep.subr.mxu0 0.0
        %3483 = vmatpush1.msra.mxu0 0.0
        %3484 = vmatprep.subr.mxu0 0.0
        %3485 = vmatpush1.msra.mxu0 0.0
        %3486 = vmatprep.subr.mxu0 0.0
        %3487 = vmatpush1.msra.mxu0 0.0
        %3488 = vmatprep.subr.mxu0 0.0
        %3489 = vmatpush1.msra.mxu0 0.0
        %3490 = vmatprep.subr.mxu0 0.0
        %3491 = vmatpush1.msra.mxu0 0.0
        %3492 = vmatprep.subr.mxu0 0.0
        %3493 = vmatpush1.msra.mxu0 0.0
        %3494 = vmatprep.subr.mxu0 0.0
        %3495 = vmatpush1.msra.mxu0 0.0
        %3496 = vmatprep.subr.mxu0 0.0
        %3497 = vmatpush1.msra.mxu0 0.0
        %3498 = vmatprep.subr.mxu0 0.0
        %3499 = vmatpush1.msra.mxu0 0.0
        %3500 = vmatprep.subr.mxu0 0.0
        %3501 = vmatpush1.msra.mxu0 0.0
        %3502 = vmatprep.subr.mxu0 0.0
        %3503 = vmatpush1.msra.mxu0 0.0
        %3504 = vmatprep.subr.mxu0 0.0
        %3505 = vmatpush1.msra.mxu0 0.0
        %3506 = vmatprep.subr.mxu0 0.0
        %3507 = vmatpush1.msra.mxu0 0.0
        %3508 = vmatprep.subr.mxu0 0.0
        %3509 = vmatpush1.msra.mxu0 0.0
        %3510 = vmatprep.subr.mxu0 0.0
        %3511 = vmatpush1.msra.mxu0 0.0
        %3512 = vmatprep.subr.mxu0 0.0
        %3513 = vmatpush1.msra.mxu0 0.0
        %3514 = vmatprep.subr.mxu0 0.0
        %3515 = vmatpush1.msra.mxu0 0.0
        %3516 = vmatprep.subr.mxu0 0.0
        %3517 = vmatpush1.msra.mxu0 0.0
        %3518 = vmatprep.subr.mxu0 0.0
        %3519 = vmatpush1.msra.mxu0 0.0
        %3520 = vmatprep.subr.mxu0 0.0
        %3521 = vmatpush1.msra.mxu0 0.0
        %3522 = vmatprep.subr.mxu0 0.0
        %3523 = vmatpush1.msra.mxu0 0.0
        %3524 = vmatprep.subr.mxu0 0.0
        %3525 = vmatpush1.msra.mxu0 0.0
        %3526 = vmatprep.subr.mxu0 0.0
        %3527 = vmatpush1.msra.mxu0 0.0
        %3528 = vmatprep.subr.mxu0 0.0
        %3529 = vmatpush1.msra.mxu0 0.0
        %3530 = vmatprep.subr.mxu0 0.0
        %3531 = vmatpush1.msra.mxu0 0.0
        %3532 = vmatprep.subr.mxu0 0.0
        %3533 = vmatpush1.msra.mxu0 0.0
        %3534 = vmatprep.subr.mxu0 0.0
        %3535 = vmatpush1.msra.mxu0 0.0
        %3536 = vmatprep.subr.mxu0 0.0
        %3537 = vmatpush1.msra.mxu0 0.0
        %3538 = vmatprep.subr.mxu0 0.0
        %3539 = vmatpush1.msra.mxu0 0.0
        %3540 = vmatprep.mubr.f32.mxu0 0.0
        %3541 = vmatmul.mubr.f32.gmra.mrb[0].mxu0 %v3468
        %v3542 = vpop.f32.mrb[0].mxu0
        %v3543 = vadd.f32 0.0, %v3542
        %v3544 = vpop.f32.mrb[0].mxu0
        %v3545 = vadd.f32 0.0, %v3544
        %3546 = vdwg.mxu0
        %v3547 = vadd.f32 %v3455, %v3543
        %v3548 = vadd.f32 %v3456, %v3545
        %3549 = vrot.lane.b32.xlu0 %v2822, 111
        %v3550 = vpop.permute.xlu0 %3549
        %3551 = vrot.lane.b32.xlu0 %v2823, 111
        %v3552 = vpop.permute.xlu0 %3551
        %v3553 = vsel %vm965, %v3550, %v3552
        %v3554 = vsel %vm965, %v3552, %v3550
        %v3555 = vmul.f32 %v3553, %v974
        %v3556 = vmul.f32 %v3554, %v978
        %s3557 = scalar_lea.vmem %s7, 64
        %v3558 = vld [vmem:[%s3557] sm:$0x3f]
        %v3560 = vsel %vm2843, %v3558, 0
        %v3563 = vsel %vm2847, %v3555, 0
        %v3566 = vsel %vm2847, %v3556, 0
        %3568 = vmatprep.subr.mxu0 %v3566
        %3569 = vmatpush1.msra.mxu0 %v3563
        %3570 = vmatprep.subr.mxu0 0.0
        %3571 = vmatpush1.msra.mxu0 0.0
        %3572 = vmatprep.subr.mxu0 0.0
        %3573 = vmatpush1.msra.mxu0 0.0
        %3574 = vmatprep.subr.mxu0 0.0
        %3575 = vmatpush1.msra.mxu0 0.0
        %3576 = vmatprep.subr.mxu0 0.0
        %3577 = vmatpush1.msra.mxu0 0.0
        %3578 = vmatprep.subr.mxu0 0.0
        %3579 = vmatpush1.msra.mxu0 0.0
        %3580 = vmatprep.subr.mxu0 0.0
        %3581 = vmatpush1.msra.mxu0 0.0
        %3582 = vmatprep.subr.mxu0 0.0
        %3583 = vmatpush1.msra.mxu0 0.0
        %3584 = vmatprep.subr.mxu0 0.0
        %3585 = vmatpush1.msra.mxu0 0.0
        %3586 = vmatprep.subr.mxu0 0.0
        %3587 = vmatpush1.msra.mxu0 0.0
        %3588 = vmatprep.subr.mxu0 0.0
        %3589 = vmatpush1.msra.mxu0 0.0
        %3590 = vmatprep.subr.mxu0 0.0
        %3591 = vmatpush1.msra.mxu0 0.0
        %3592 = vmatprep.subr.mxu0 0.0
        %3593 = vmatpush1.msra.mxu0 0.0
        %3594 = vmatprep.subr.mxu0 0.0
        %3595 = vmatpush1.msra.mxu0 0.0
        %3596 = vmatprep.subr.mxu0 0.0
        %3597 = vmatpush1.msra.mxu0 0.0
        %3598 = vmatprep.subr.mxu0 0.0
        %3599 = vmatpush1.msra.mxu0 0.0
        %3600 = vmatprep.subr.mxu0 0.0
        %3601 = vmatpush1.msra.mxu0 0.0
        %3602 = vmatprep.subr.mxu0 0.0
        %3603 = vmatpush1.msra.mxu0 0.0
        %3604 = vmatprep.subr.mxu0 0.0
        %3605 = vmatpush1.msra.mxu0 0.0
        %3606 = vmatprep.subr.mxu0 0.0
        %3607 = vmatpush1.msra.mxu0 0.0
        %3608 = vmatprep.subr.mxu0 0.0
        %3609 = vmatpush1.msra.mxu0 0.0
        %3610 = vmatprep.subr.mxu0 0.0
        %3611 = vmatpush1.msra.mxu0 0.0
        %3612 = vmatprep.subr.mxu0 0.0
        %3613 = vmatpush1.msra.mxu0 0.0
        %3614 = vmatprep.subr.mxu0 0.0
        %3615 = vmatpush1.msra.mxu0 0.0
        %3616 = vmatprep.subr.mxu0 0.0
        %3617 = vmatpush1.msra.mxu0 0.0
        %3618 = vmatprep.subr.mxu0 0.0
        %3619 = vmatpush1.msra.mxu0 0.0
        %3620 = vmatprep.subr.mxu0 0.0
        %3621 = vmatpush1.msra.mxu0 0.0
        %3622 = vmatprep.subr.mxu0 0.0
        %3623 = vmatpush1.msra.mxu0 0.0
        %3624 = vmatprep.subr.mxu0 0.0
        %3625 = vmatpush1.msra.mxu0 0.0
        %3626 = vmatprep.subr.mxu0 0.0
        %3627 = vmatpush1.msra.mxu0 0.0
        %3628 = vmatprep.subr.mxu0 0.0
        %3629 = vmatpush1.msra.mxu0 0.0
        %3630 = vmatprep.subr.mxu0 0.0
        %3631 = vmatpush1.msra.mxu0 0.0
        %3632 = vmatprep.mubr.f32.mxu0 0.0
        %3633 = vmatmul.mubr.f32.gmra.mrb[0].mxu0 %v3560
        %v3634 = vpop.f32.mrb[0].mxu0
        %v3635 = vadd.f32 0.0, %v3634
        %v3636 = vpop.f32.mrb[0].mxu0
        %v3637 = vadd.f32 0.0, %v3636
        %3638 = vdwg.mxu0
        %v3639 = vadd.f32 %v3547, %v3635
        %v3640 = vadd.f32 %v3548, %v3637
        %v3641 = vld [vmem:[%s8] sm:$0x3f]
        %3643 = vset.pattern.permute.xlu0 0
        %3644 = vperm.xlu0 %3643, %v3641
        %v3645 = vpop.permute.xlu0 %3644
        %v3647 = vadd.f32 %v3639, %v3645
        %v3648 = vadd.f32 %v3640, %v3645
        %v3649 = vmax.f32 %v3647, 0.0
        %v3650 = vmax.f32 %v3648, 0.0
        %3651 = vrot.lane.b32.xlu0 %v3649, 17
        %v3652 = vpop.permute.xlu0 %3651
        %3653 = vrot.lane.b32.xlu0 %v3650, 17
        %v3654 = vpop.permute.xlu0 %3653
        %v3655 = vsel %vm669, %v3652, %v3654
        %v3656 = vsel %vm669, %v3654, %v3652
        %v3657 = vmul.f32 %v3656, %v677
        %v3658 = vmul.f32 %v3655, %v681
        %v3659 = vld [vmem:[%s9] sm:$0x7f]
        %3660 = vrot.lane.b32.xlu0 %v3649, 16
        %v3661 = vpop.permute.xlu0 %3660
        %3662 = vrot.lane.b32.xlu0 %v3650, 16
        %v3663 = vpop.permute.xlu0 %3662
        %v3664 = vsel %vm708, %v3661, %v3663
        %v3665 = vsel %vm708, %v3663, %v3661
        %v3666 = vmul.f32 %v3665, %v717
        %v3667 = vmul.f32 %v3664, %v721
        %s3668 = scalar_lea.vmem %s9, 8
        %v3669 = vld [vmem:[%s3668] sm:$0x7f]
        %vm3670 = vcmask 48128
        %v3672 = vsel %vm3670, %v3669, 0
        %v3675 = vsel %vm1962, %v3666, 0
        %v3678 = vsel %vm1962, %v3667, 0
        %3680 = vmatprep.subr.mxu0 %v3678
        %3681 = vmatpush1.msra.mxu0 %v3675
        %3682 = vmatprep.subr.mxu0 0.0
        %3683 = vmatpush1.msra.mxu0 0.0
        %3684 = vmatprep.subr.mxu0 0.0
        %3685 = vmatpush1.msra.mxu0 0.0
        %3686 = vmatprep.subr.mxu0 0.0
        %3687 = vmatpush1.msra.mxu0 0.0
        %3688 = vmatprep.subr.mxu0 0.0
        %3689 = vmatpush1.msra.mxu0 0.0
        %3690 = vmatprep.subr.mxu0 0.0
        %3691 = vmatpush1.msra.mxu0 0.0
        %3692 = vmatprep.subr.mxu0 0.0
        %3693 = vmatpush1.msra.mxu0 0.0
        %3694 = vmatprep.subr.mxu0 0.0
        %3695 = vmatpush1.msra.mxu0 0.0
        %3696 = vmatprep.subr.mxu0 0.0
        %3697 = vmatpush1.msra.mxu0 0.0
        %3698 = vmatprep.subr.mxu0 0.0
        %3699 = vmatpush1.msra.mxu0 0.0
        %3700 = vmatprep.subr.mxu0 0.0
        %3701 = vmatpush1.msra.mxu0 0.0
        %3702 = vmatprep.subr.mxu0 0.0
        %3703 = vmatpush1.msra.mxu0 0.0
        %3704 = vmatprep.subr.mxu0 0.0
        %3705 = vmatpush1.msra.mxu0 0.0
        %3706 = vmatprep.subr.mxu0 0.0
        %3707 = vmatpush1.msra.mxu0 0.0
        %3708 = vmatprep.subr.mxu0 0.0
        %3709 = vmatpush1.msra.mxu0 0.0
        %3710 = vmatprep.subr.mxu0 0.0
        %3711 = vmatpush1.msra.mxu0 0.0
        %3712 = vmatprep.subr.mxu0 0.0
        %3713 = vmatpush1.msra.mxu0 0.0
        %3714 = vmatprep.subr.mxu0 0.0
        %3715 = vmatpush1.msra.mxu0 0.0
        %3716 = vmatprep.subr.mxu0 0.0
        %3717 = vmatpush1.msra.mxu0 0.0
        %3718 = vmatprep.subr.mxu0 0.0
        %3719 = vmatpush1.msra.mxu0 0.0
        %3720 = vmatprep.subr.mxu0 0.0
        %3721 = vmatpush1.msra.mxu0 0.0
        %3722 = vmatprep.subr.mxu0 0.0
        %3723 = vmatpush1.msra.mxu0 0.0
        %3724 = vmatprep.subr.mxu0 0.0
        %3725 = vmatpush1.msra.mxu0 0.0
        %3726 = vmatprep.subr.mxu0 0.0
        %3727 = vmatpush1.msra.mxu0 0.0
        %3728 = vmatprep.subr.mxu0 0.0
        %3729 = vmatpush1.msra.mxu0 0.0
        %3730 = vmatprep.subr.mxu0 0.0
        %3731 = vmatpush1.msra.mxu0 0.0
        %3732 = vmatprep.subr.mxu0 0.0
        %3733 = vmatpush1.msra.mxu0 0.0
        %3734 = vmatprep.subr.mxu0 0.0
        %3735 = vmatpush1.msra.mxu0 0.0
        %3736 = vmatprep.subr.mxu0 0.0
        %3737 = vmatpush1.msra.mxu0 0.0
        %3738 = vmatprep.subr.mxu0 0.0
        %3739 = vmatpush1.msra.mxu0 0.0
        %3740 = vmatprep.subr.mxu0 0.0
        %3741 = vmatpush1.msra.mxu0 0.0
        %3742 = vmatprep.subr.mxu0 0.0
        %3743 = vmatpush1.msra.mxu0 0.0
        %3744 = vmatprep.mubr.f32.mxu0 0.0
        %3745 = vmatmul.mubr.f32.gmra.mrb[0].mxu0 %v3672
        %v3746 = vpop.f32.mrb[0].mxu0
        %v3747 = vadd.f32 0.0, %v3746
        %v3748 = vpop.f32.mrb[0].mxu0
        %v3749 = vadd.f32 0.0, %v3748
        %3750 = vdwg.mxu0
        %v3752 = vsel %vm3670, %v3659, 0
        %v3755 = vsel %vm1962, %v3657, 0
        %v3758 = vsel %vm1962, %v3658, 0
        %3760 = vmatprep.subr.mxu0 %v3758
        %3761 = vmatpush1.msra.mxu0 %v3755
        %3762 = vmatprep.subr.mxu0 0.0
        %3763 = vmatpush1.msra.mxu0 0.0
        %3764 = vmatprep.subr.mxu0 0.0
        %3765 = vmatpush1.msra.mxu0 0.0
        %3766 = vmatprep.subr.mxu0 0.0
        %3767 = vmatpush1.msra.mxu0 0.0
        %3768 = vmatprep.subr.mxu0 0.0
        %3769 = vmatpush1.msra.mxu0 0.0
        %3770 = vmatprep.subr.mxu0 0.0
        %3771 = vmatpush1.msra.mxu0 0.0
        %3772 = vmatprep.subr.mxu0 0.0
        %3773 = vmatpush1.msra.mxu0 0.0
        %3774 = vmatprep.subr.mxu0 0.0
        %3775 = vmatpush1.msra.mxu0 0.0
        %3776 = vmatprep.subr.mxu0 0.0
        %3777 = vmatpush1.msra.mxu0 0.0
        %3778 = vmatprep.subr.mxu0 0.0
        %3779 = vmatpush1.msra.mxu0 0.0
        %3780 = vmatprep.subr.mxu0 0.0
        %3781 = vmatpush1.msra.mxu0 0.0
        %3782 = vmatprep.subr.mxu0 0.0
        %3783 = vmatpush1.msra.mxu0 0.0
        %3784 = vmatprep.subr.mxu0 0.0
        %3785 = vmatpush1.msra.mxu0 0.0
        %3786 = vmatprep.subr.mxu0 0.0
        %3787 = vmatpush1.msra.mxu0 0.0
        %3788 = vmatprep.subr.mxu0 0.0
        %3789 = vmatpush1.msra.mxu0 0.0
        %3790 = vmatprep.subr.mxu0 0.0
        %3791 = vmatpush1.msra.mxu0 0.0
        %3792 = vmatprep.subr.mxu0 0.0
        %3793 = vmatpush1.msra.mxu0 0.0
        %3794 = vmatprep.subr.mxu0 0.0
        %3795 = vmatpush1.msra.mxu0 0.0
        %3796 = vmatprep.subr.mxu0 0.0
        %3797 = vmatpush1.msra.mxu0 0.0
        %3798 = vmatprep.subr.mxu0 0.0
        %3799 = vmatpush1.msra.mxu0 0.0
        %3800 = vmatprep.subr.mxu0 0.0
        %3801 = vmatpush1.msra.mxu0 0.0
        %3802 = vmatprep.subr.mxu0 0.0
        %3803 = vmatpush1.msra.mxu0 0.0
        %3804 = vmatprep.subr.mxu0 0.0
        %3805 = vmatpush1.msra.mxu0 0.0
        %3806 = vmatprep.subr.mxu0 0.0
        %3807 = vmatpush1.msra.mxu0 0.0
        %3808 = vmatprep.subr.mxu0 0.0
        %3809 = vmatpush1.msra.mxu0 0.0
        %3810 = vmatprep.subr.mxu0 0.0
        %3811 = vmatpush1.msra.mxu0 0.0
        %3812 = vmatprep.subr.mxu0 0.0
        %3813 = vmatpush1.msra.mxu0 0.0
        %3814 = vmatprep.subr.mxu0 0.0
        %3815 = vmatpush1.msra.mxu0 0.0
        %3816 = vmatprep.subr.mxu0 0.0
        %3817 = vmatpush1.msra.mxu0 0.0
        %3818 = vmatprep.subr.mxu0 0.0
        %3819 = vmatpush1.msra.mxu0 0.0
        %3820 = vmatprep.subr.mxu0 0.0
        %3821 = vmatpush1.msra.mxu0 0.0
        %3822 = vmatprep.subr.mxu0 0.0
        %3823 = vmatpush1.msra.mxu0 0.0
        %3824 = vmatprep.mubr.f32.mxu0 0.0
        %3825 = vmatmul.mubr.f32.gmra.mrb[0].mxu0 %v3752
        %v3826 = vpop.f32.mrb[0].mxu0
        %v3827 = vadd.f32 %v3747, %v3826
        %v3828 = vpop.f32.mrb[0].mxu0
        %v3829 = vadd.f32 %v3749, %v3828
        %3830 = vdwg.mxu0
        %3831 = vrot.lane.b32.xlu0 %v3649, 15
        %v3832 = vpop.permute.xlu0 %3831
        %3833 = vrot.lane.b32.xlu0 %v3650, 15
        %v3834 = vpop.permute.xlu0 %3833
        %v3835 = vsel %vm749, %v3832, %v3834
        %v3836 = vsel %vm749, %v3834, %v3832
        %v3837 = vmul.f32 %v3836, %v758
        %v3838 = vmul.f32 %v3835, %v762
        %s3839 = scalar_lea.vmem %s9, 16
        %v3840 = vld [vmem:[%s3839] sm:$0x7f]
        %v3842 = vsel %vm3670, %v3840, 0
        %v3845 = vsel %vm1962, %v3837, 0
        %v3848 = vsel %vm1962, %v3838, 0
        %3850 = vmatprep.subr.mxu0 %v3848
        %3851 = vmatpush1.msra.mxu0 %v3845
        %3852 = vmatprep.subr.mxu0 0.0
        %3853 = vmatpush1.msra.mxu0 0.0
        %3854 = vmatprep.subr.mxu0 0.0
        %3855 = vmatpush1.msra.mxu0 0.0
        %3856 = vmatprep.subr.mxu0 0.0
        %3857 = vmatpush1.msra.mxu0 0.0
        %3858 = vmatprep.subr.mxu0 0.0
        %3859 = vmatpush1.msra.mxu0 0.0
        %3860 = vmatprep.subr.mxu0 0.0
        %3861 = vmatpush1.msra.mxu0 0.0
        %3862 = vmatprep.subr.mxu0 0.0
        %3863 = vmatpush1.msra.mxu0 0.0
        %3864 = vmatprep.subr.mxu0 0.0
        %3865 = vmatpush1.msra.mxu0 0.0
        %3866 = vmatprep.subr.mxu0 0.0
        %3867 = vmatpush1.msra.mxu0 0.0
        %3868 = vmatprep.subr.mxu0 0.0
        %3869 = vmatpush1.msra.mxu0 0.0
        %3870 = vmatprep.subr.mxu0 0.0
        %3871 = vmatpush1.msra.mxu0 0.0
        %3872 = vmatprep.subr.mxu0 0.0
        %3873 = vmatpush1.msra.mxu0 0.0
        %3874 = vmatprep.subr.mxu0 0.0
        %3875 = vmatpush1.msra.mxu0 0.0
        %3876 = vmatprep.subr.mxu0 0.0
        %3877 = vmatpush1.msra.mxu0 0.0
        %3878 = vmatprep.subr.mxu0 0.0
        %3879 = vmatpush1.msra.mxu0 0.0
        %3880 = vmatprep.subr.mxu0 0.0
        %3881 = vmatpush1.msra.mxu0 0.0
        %3882 = vmatprep.subr.mxu0 0.0
        %3883 = vmatpush1.msra.mxu0 0.0
        %3884 = vmatprep.subr.mxu0 0.0
        %3885 = vmatpush1.msra.mxu0 0.0
        %3886 = vmatprep.subr.mxu0 0.0
        %3887 = vmatpush1.msra.mxu0 0.0
        %3888 = vmatprep.subr.mxu0 0.0
        %3889 = vmatpush1.msra.mxu0 0.0
        %3890 = vmatprep.subr.mxu0 0.0
        %3891 = vmatpush1.msra.mxu0 0.0
        %3892 = vmatprep.subr.mxu0 0.0
        %3893 = vmatpush1.msra.mxu0 0.0
        %3894 = vmatprep.subr.mxu0 0.0
        %3895 = vmatpush1.msra.mxu0 0.0
        %3896 = vmatprep.subr.mxu0 0.0
        %3897 = vmatpush1.msra.mxu0 0.0
        %3898 = vmatprep.subr.mxu0 0.0
        %3899 = vmatpush1.msra.mxu0 0.0
        %3900 = vmatprep.subr.mxu0 0.0
        %3901 = vmatpush1.msra.mxu0 0.0
        %3902 = vmatprep.subr.mxu0 0.0
        %3903 = vmatpush1.msra.mxu0 0.0
        %3904 = vmatprep.subr.mxu0 0.0
        %3905 = vmatpush1.msra.mxu0 0.0
        %3906 = vmatprep.subr.mxu0 0.0
        %3907 = vmatpush1.msra.mxu0 0.0
        %3908 = vmatprep.subr.mxu0 0.0
        %3909 = vmatpush1.msra.mxu0 0.0
        %3910 = vmatprep.subr.mxu0 0.0
        %3911 = vmatpush1.msra.mxu0 0.0
        %3912 = vmatprep.subr.mxu0 0.0
        %3913 = vmatpush1.msra.mxu0 0.0
        %3914 = vmatprep.mubr.f32.mxu0 0.0
        %3915 = vmatmul.mubr.f32.gmra.mrb[0].mxu0 %v3842
        %v3916 = vpop.f32.mrb[0].mxu0
        %v3917 = vadd.f32 0.0, %v3916
        %v3918 = vpop.f32.mrb[0].mxu0
        %v3919 = vadd.f32 0.0, %v3918
        %3920 = vdwg.mxu0
        %v3921 = vadd.f32 %v3827, %v3917
        %v3922 = vadd.f32 %v3829, %v3919
        %3923 = vrot.lane.b32.xlu0 %v3649, 1
        %v3924 = vpop.permute.xlu0 %3923
        %3925 = vrot.lane.b32.xlu0 %v3650, 1
        %v3926 = vpop.permute.xlu0 %3925
        %v3927 = vsel %vm790, %v3924, %v3926
        %v3928 = vsel %vm790, %v3926, %v3924
        %v3929 = vmul.f32 %v3928, %v799
        %v3930 = vmul.f32 %v3927, %v803
        %s3931 = scalar_lea.vmem %s9, 24
        %v3932 = vld [vmem:[%s3931] sm:$0x7f]
        %v3934 = vsel %vm3670, %v3932, 0
        %v3937 = vsel %vm1962, %v3929, 0
        %v3940 = vsel %vm1962, %v3930, 0
        %3942 = vmatprep.subr.mxu0 %v3940
        %3943 = vmatpush1.msra.mxu0 %v3937
        %3944 = vmatprep.subr.mxu0 0.0
        %3945 = vmatpush1.msra.mxu0 0.0
        %3946 = vmatprep.subr.mxu0 0.0
        %3947 = vmatpush1.msra.mxu0 0.0
        %3948 = vmatprep.subr.mxu0 0.0
        %3949 = vmatpush1.msra.mxu0 0.0
        %3950 = vmatprep.subr.mxu0 0.0
        %3951 = vmatpush1.msra.mxu0 0.0
        %3952 = vmatprep.subr.mxu0 0.0
        %3953 = vmatpush1.msra.mxu0 0.0
        %3954 = vmatprep.subr.mxu0 0.0
        %3955 = vmatpush1.msra.mxu0 0.0
        %3956 = vmatprep.subr.mxu0 0.0
        %3957 = vmatpush1.msra.mxu0 0.0
        %3958 = vmatprep.subr.mxu0 0.0
        %3959 = vmatpush1.msra.mxu0 0.0
        %3960 = vmatprep.subr.mxu0 0.0
        %3961 = vmatpush1.msra.mxu0 0.0
        %3962 = vmatprep.subr.mxu0 0.0
        %3963 = vmatpush1.msra.mxu0 0.0
        %3964 = vmatprep.subr.mxu0 0.0
        %3965 = vmatpush1.msra.mxu0 0.0
        %3966 = vmatprep.subr.mxu0 0.0
        %3967 = vmatpush1.msra.mxu0 0.0
        %3968 = vmatprep.subr.mxu0 0.0
        %3969 = vmatpush1.msra.mxu0 0.0
        %3970 = vmatprep.subr.mxu0 0.0
        %3971 = vmatpush1.msra.mxu0 0.0
        %3972 = vmatprep.subr.mxu0 0.0
        %3973 = vmatpush1.msra.mxu0 0.0
        %3974 = vmatprep.subr.mxu0 0.0
        %3975 = vmatpush1.msra.mxu0 0.0
        %3976 = vmatprep.subr.mxu0 0.0
        %3977 = vmatpush1.msra.mxu0 0.0
        %3978 = vmatprep.subr.mxu0 0.0
        %3979 = vmatpush1.msra.mxu0 0.0
        %3980 = vmatprep.subr.mxu0 0.0
        %3981 = vmatpush1.msra.mxu0 0.0
        %3982 = vmatprep.subr.mxu0 0.0
        %3983 = vmatpush1.msra.mxu0 0.0
        %3984 = vmatprep.subr.mxu0 0.0
        %3985 = vmatpush1.msra.mxu0 0.0
        %3986 = vmatprep.subr.mxu0 0.0
        %3987 = vmatpush1.msra.mxu0 0.0
        %3988 = vmatprep.subr.mxu0 0.0
        %3989 = vmatpush1.msra.mxu0 0.0
        %3990 = vmatprep.subr.mxu0 0.0
        %3991 = vmatpush1.msra.mxu0 0.0
        %3992 = vmatprep.subr.mxu0 0.0
        %3993 = vmatpush1.msra.mxu0 0.0
        %3994 = vmatprep.subr.mxu0 0.0
        %3995 = vmatpush1.msra.mxu0 0.0
        %3996 = vmatprep.subr.mxu0 0.0
        %3997 = vmatpush1.msra.mxu0 0.0
        %3998 = vmatprep.subr.mxu0 0.0
        %3999 = vmatpush1.msra.mxu0 0.0
        %4000 = vmatprep.subr.mxu0 0.0
        %4001 = vmatpush1.msra.mxu0 0.0
        %4002 = vmatprep.subr.mxu0 0.0
        %4003 = vmatpush1.msra.mxu0 0.0
        %4004 = vmatprep.subr.mxu0 0.0
        %4005 = vmatpush1.msra.mxu0 0.0
        %4006 = vmatprep.mubr.f32.mxu0 0.0
        %4007 = vmatmul.mubr.f32.gmra.mrb[0].mxu0 %v3934
        %v4008 = vpop.f32.mrb[0].mxu0
        %v4009 = vadd.f32 0.0, %v4008
        %v4010 = vpop.f32.mrb[0].mxu0
        %v4011 = vadd.f32 0.0, %v4010
        %4012 = vdwg.mxu0
        %v4013 = vadd.f32 %v3921, %v4009
        %v4014 = vadd.f32 %v3922, %v4011
        %s4015 = scalar_lea.vmem %s9, 32
        %v4016 = vld [vmem:[%s4015] sm:$0x7f]
        %v4018 = vsel %vm3670, %v4016, 0
        %v4021 = vsel %vm1962, %v3649, 0
        %v4024 = vsel %vm1962, %v3650, 0
        %4026 = vmatprep.subr.mxu0 %v4024
        %4027 = vmatpush1.msra.mxu0 %v4021
        %4028 = vmatprep.subr.mxu0 0.0
        %4029 = vmatpush1.msra.mxu0 0.0
        %4030 = vmatprep.subr.mxu0 0.0
        %4031 = vmatpush1.msra.mxu0 0.0
        %4032 = vmatprep.subr.mxu0 0.0
        %4033 = vmatpush1.msra.mxu0 0.0
        %4034 = vmatprep.subr.mxu0 0.0
        %4035 = vmatpush1.msra.mxu0 0.0
        %4036 = vmatprep.subr.mxu0 0.0
        %4037 = vmatpush1.msra.mxu0 0.0
        %4038 = vmatprep.subr.mxu0 0.0
        %4039 = vmatpush1.msra.mxu0 0.0
        %4040 = vmatprep.subr.mxu0 0.0
        %4041 = vmatpush1.msra.mxu0 0.0
        %4042 = vmatprep.subr.mxu0 0.0
        %4043 = vmatpush1.msra.mxu0 0.0
        %4044 = vmatprep.subr.mxu0 0.0
        %4045 = vmatpush1.msra.mxu0 0.0
        %4046 = vmatprep.subr.mxu0 0.0
        %4047 = vmatpush1.msra.mxu0 0.0
        %4048 = vmatprep.subr.mxu0 0.0
        %4049 = vmatpush1.msra.mxu0 0.0
        %4050 = vmatprep.subr.mxu0 0.0
        %4051 = vmatpush1.msra.mxu0 0.0
        %4052 = vmatprep.subr.mxu0 0.0
        %4053 = vmatpush1.msra.mxu0 0.0
        %4054 = vmatprep.subr.mxu0 0.0
        %4055 = vmatpush1.msra.mxu0 0.0
        %4056 = vmatprep.subr.mxu0 0.0
        %4057 = vmatpush1.msra.mxu0 0.0
        %4058 = vmatprep.subr.mxu0 0.0
        %4059 = vmatpush1.msra.mxu0 0.0
        %4060 = vmatprep.subr.mxu0 0.0
        %4061 = vmatpush1.msra.mxu0 0.0
        %4062 = vmatprep.subr.mxu0 0.0
        %4063 = vmatpush1.msra.mxu0 0.0
        %4064 = vmatprep.subr.mxu0 0.0
        %4065 = vmatpush1.msra.mxu0 0.0
        %4066 = vmatprep.subr.mxu0 0.0
        %4067 = vmatpush1.msra.mxu0 0.0
        %4068 = vmatprep.subr.mxu0 0.0
        %4069 = vmatpush1.msra.mxu0 0.0
        %4070 = vmatprep.subr.mxu0 0.0
        %4071 = vmatpush1.msra.mxu0 0.0
        %4072 = vmatprep.subr.mxu0 0.0
        %4073 = vmatpush1.msra.mxu0 0.0
        %4074 = vmatprep.subr.mxu0 0.0
        %4075 = vmatpush1.msra.mxu0 0.0
        %4076 = vmatprep.subr.mxu0 0.0
        %4077 = vmatpush1.msra.mxu0 0.0
        %4078 = vmatprep.subr.mxu0 0.0
        %4079 = vmatpush1.msra.mxu0 0.0
        %4080 = vmatprep.subr.mxu0 0.0
        %4081 = vmatpush1.msra.mxu0 0.0
        %4082 = vmatprep.subr.mxu0 0.0
        %4083 = vmatpush1.msra.mxu0 0.0
        %4084 = vmatprep.subr.mxu0 0.0
        %4085 = vmatpush1.msra.mxu0 0.0
        %4086 = vmatprep.subr.mxu0 0.0
        %4087 = vmatpush1.msra.mxu0 0.0
        %4088 = vmatprep.subr.mxu0 0.0
        %4089 = vmatpush1.msra.mxu0 0.0
        %4090 = vmatprep.mubr.f32.mxu0 0.0
        %4091 = vmatmul.mubr.f32.gmra.mrb[0].mxu0 %v4018
        %v4092 = vpop.f32.mrb[0].mxu0
        %v4093 = vadd.f32 0.0, %v4092
        %v4094 = vpop.f32.mrb[0].mxu0
        %v4095 = vadd.f32 0.0, %v4094
        %4096 = vdwg.mxu0
        %v4097 = vadd.f32 %v4013, %v4093
        %v4098 = vadd.f32 %v4014, %v4095
        %4099 = vrot.lane.b32.xlu0 %v3649, 127
        %v4100 = vpop.permute.xlu0 %4099
        %4101 = vrot.lane.b32.xlu0 %v3650, 127
        %v4102 = vpop.permute.xlu0 %4101
        %v4103 = vsel %vm842, %v4100, %v4102
        %v4104 = vsel %vm842, %v4102, %v4100
        %v4105 = vmul.f32 %v4103, %v851
        %v4106 = vmul.f32 %v4104, %v855
        %s4107 = scalar_lea.vmem %s9, 40
        %v4108 = vld [vmem:[%s4107] sm:$0x7f]
        %v4110 = vsel %vm3670, %v4108, 0
        %v4113 = vsel %vm1962, %v4105, 0
        %v4116 = vsel %vm1962, %v4106, 0
        %4118 = vmatprep.subr.mxu0 %v4116
        %4119 = vmatpush1.msra.mxu0 %v4113
        %4120 = vmatprep.subr.mxu0 0.0
        %4121 = vmatpush1.msra.mxu0 0.0
        %4122 = vmatprep.subr.mxu0 0.0
        %4123 = vmatpush1.msra.mxu0 0.0
        %4124 = vmatprep.subr.mxu0 0.0
        %4125 = vmatpush1.msra.mxu0 0.0
        %4126 = vmatprep.subr.mxu0 0.0
        %4127 = vmatpush1.msra.mxu0 0.0
        %4128 = vmatprep.subr.mxu0 0.0
        %4129 = vmatpush1.msra.mxu0 0.0
        %4130 = vmatprep.subr.mxu0 0.0
        %4131 = vmatpush1.msra.mxu0 0.0
        %4132 = vmatprep.subr.mxu0 0.0
        %4133 = vmatpush1.msra.mxu0 0.0
        %4134 = vmatprep.subr.mxu0 0.0
        %4135 = vmatpush1.msra.mxu0 0.0
        %4136 = vmatprep.subr.mxu0 0.0
        %4137 = vmatpush1.msra.mxu0 0.0
        %4138 = vmatprep.subr.mxu0 0.0
        %4139 = vmatpush1.msra.mxu0 0.0
        %4140 = vmatprep.subr.mxu0 0.0
        %4141 = vmatpush1.msra.mxu0 0.0
        %4142 = vmatprep.subr.mxu0 0.0
        %4143 = vmatpush1.msra.mxu0 0.0
        %4144 = vmatprep.subr.mxu0 0.0
        %4145 = vmatpush1.msra.mxu0 0.0
        %4146 = vmatprep.subr.mxu0 0.0
        %4147 = vmatpush1.msra.mxu0 0.0
        %4148 = vmatprep.subr.mxu0 0.0
        %4149 = vmatpush1.msra.mxu0 0.0
        %4150 = vmatprep.subr.mxu0 0.0
        %4151 = vmatpush1.msra.mxu0 0.0
        %4152 = vmatprep.subr.mxu0 0.0
        %4153 = vmatpush1.msra.mxu0 0.0
        %4154 = vmatprep.subr.mxu0 0.0
        %4155 = vmatpush1.msra.mxu0 0.0
        %4156 = vmatprep.subr.mxu0 0.0
        %4157 = vmatpush1.msra.mxu0 0.0
        %4158 = vmatprep.subr.mxu0 0.0
        %4159 = vmatpush1.msra.mxu0 0.0
        %4160 = vmatprep.subr.mxu0 0.0
        %4161 = vmatpush1.msra.mxu0 0.0
        %4162 = vmatprep.subr.mxu0 0.0
        %4163 = vmatpush1.msra.mxu0 0.0
        %4164 = vmatprep.subr.mxu0 0.0
        %4165 = vmatpush1.msra.mxu0 0.0
        %4166 = vmatprep.subr.mxu0 0.0
        %4167 = vmatpush1.msra.mxu0 0.0
        %4168 = vmatprep.subr.mxu0 0.0
        %4169 = vmatpush1.msra.mxu0 0.0
        %4170 = vmatprep.subr.mxu0 0.0
        %4171 = vmatpush1.msra.mxu0 0.0
        %4172 = vmatprep.subr.mxu0 0.0
        %4173 = vmatpush1.msra.mxu0 0.0
        %4174 = vmatprep.subr.mxu0 0.0
        %4175 = vmatpush1.msra.mxu0 0.0
        %4176 = vmatprep.subr.mxu0 0.0
        %4177 = vmatpush1.msra.mxu0 0.0
        %4178 = vmatprep.subr.mxu0 0.0
        %4179 = vmatpush1.msra.mxu0 0.0
        %4180 = vmatprep.subr.mxu0 0.0
        %4181 = vmatpush1.msra.mxu0 0.0
        %4182 = vmatprep.mubr.f32.mxu0 0.0
        %4183 = vmatmul.mubr.f32.gmra.mrb[0].mxu0 %v4110
        %v4184 = vpop.f32.mrb[0].mxu0
        %v4185 = vadd.f32 0.0, %v4184
        %v4186 = vpop.f32.mrb[0].mxu0
        %v4187 = vadd.f32 0.0, %v4186
        %4188 = vdwg.mxu0
        %v4189 = vadd.f32 %v4097, %v4185
        %v4190 = vadd.f32 %v4098, %v4187
        %4191 = vrot.lane.b32.xlu0 %v3649, 113
        %v4192 = vpop.permute.xlu0 %4191
        %4193 = vrot.lane.b32.xlu0 %v3650, 113
        %v4194 = vpop.permute.xlu0 %4193
        %v4195 = vsel %vm883, %v4192, %v4194
        %v4196 = vsel %vm883, %v4194, %v4192
        %v4197 = vmul.f32 %v4195, %v892
        %v4198 = vmul.f32 %v4196, %v896
        %s4199 = scalar_lea.vmem %s9, 48
        %v4200 = vld [vmem:[%s4199] sm:$0x7f]
        %v4202 = vsel %vm3670, %v4200, 0
        %v4205 = vsel %vm1962, %v4197, 0
        %v4208 = vsel %vm1962, %v4198, 0
        %4210 = vmatprep.subr.mxu0 %v4208
        %4211 = vmatpush1.msra.mxu0 %v4205
        %4212 = vmatprep.subr.mxu0 0.0
        %4213 = vmatpush1.msra.mxu0 0.0
        %4214 = vmatprep.subr.mxu0 0.0
        %4215 = vmatpush1.msra.mxu0 0.0
        %4216 = vmatprep.subr.mxu0 0.0
        %4217 = vmatpush1.msra.mxu0 0.0
        %4218 = vmatprep.subr.mxu0 0.0
        %4219 = vmatpush1.msra.mxu0 0.0
        %4220 = vmatprep.subr.mxu0 0.0
        %4221 = vmatpush1.msra.mxu0 0.0
        %4222 = vmatprep.subr.mxu0 0.0
        %4223 = vmatpush1.msra.mxu0 0.0
        %4224 = vmatprep.subr.mxu0 0.0
        %4225 = vmatpush1.msra.mxu0 0.0
        %4226 = vmatprep.subr.mxu0 0.0
        %4227 = vmatpush1.msra.mxu0 0.0
        %4228 = vmatprep.subr.mxu0 0.0
        %4229 = vmatpush1.msra.mxu0 0.0
        %4230 = vmatprep.subr.mxu0 0.0
        %4231 = vmatpush1.msra.mxu0 0.0
        %4232 = vmatprep.subr.mxu0 0.0
        %4233 = vmatpush1.msra.mxu0 0.0
        %4234 = vmatprep.subr.mxu0 0.0
        %4235 = vmatpush1.msra.mxu0 0.0
        %4236 = vmatprep.subr.mxu0 0.0
        %4237 = vmatpush1.msra.mxu0 0.0
        %4238 = vmatprep.subr.mxu0 0.0
        %4239 = vmatpush1.msra.mxu0 0.0
        %4240 = vmatprep.subr.mxu0 0.0
        %4241 = vmatpush1.msra.mxu0 0.0
        %4242 = vmatprep.subr.mxu0 0.0
        %4243 = vmatpush1.msra.mxu0 0.0
        %4244 = vmatprep.subr.mxu0 0.0
        %4245 = vmatpush1.msra.mxu0 0.0
        %4246 = vmatprep.subr.mxu0 0.0
        %4247 = vmatpush1.msra.mxu0 0.0
        %4248 = vmatprep.subr.mxu0 0.0
        %4249 = vmatpush1.msra.mxu0 0.0
        %4250 = vmatprep.subr.mxu0 0.0
        %4251 = vmatpush1.msra.mxu0 0.0
        %4252 = vmatprep.subr.mxu0 0.0
        %4253 = vmatpush1.msra.mxu0 0.0
        %4254 = vmatprep.subr.mxu0 0.0
        %4255 = vmatpush1.msra.mxu0 0.0
        %4256 = vmatprep.subr.mxu0 0.0
        %4257 = vmatpush1.msra.mxu0 0.0
        %4258 = vmatprep.subr.mxu0 0.0
        %4259 = vmatpush1.msra.mxu0 0.0
        %4260 = vmatprep.subr.mxu0 0.0
        %4261 = vmatpush1.msra.mxu0 0.0
        %4262 = vmatprep.subr.mxu0 0.0
        %4263 = vmatpush1.msra.mxu0 0.0
        %4264 = vmatprep.subr.mxu0 0.0
        %4265 = vmatpush1.msra.mxu0 0.0
        %4266 = vmatprep.subr.mxu0 0.0
        %4267 = vmatpush1.msra.mxu0 0.0
        %4268 = vmatprep.subr.mxu0 0.0
        %4269 = vmatpush1.msra.mxu0 0.0
        %4270 = vmatprep.subr.mxu0 0.0
        %4271 = vmatpush1.msra.mxu0 0.0
        %4272 = vmatprep.subr.mxu0 0.0
        %4273 = vmatpush1.msra.mxu0 0.0
        %4274 = vmatprep.mubr.f32.mxu0 0.0
        %4275 = vmatmul.mubr.f32.gmra.mrb[0].mxu0 %v4202
        %v4276 = vpop.f32.mrb[0].mxu0
        %v4277 = vadd.f32 0.0, %v4276
        %v4278 = vpop.f32.mrb[0].mxu0
        %v4279 = vadd.f32 0.0, %v4278
        %4280 = vdwg.mxu0
        %v4281 = vadd.f32 %v4189, %v4277
        %v4282 = vadd.f32 %v4190, %v4279
        %4283 = vrot.lane.b32.xlu0 %v3649, 112
        %v4284 = vpop.permute.xlu0 %4283
        %4285 = vrot.lane.b32.xlu0 %v3650, 112
        %v4286 = vpop.permute.xlu0 %4285
        %v4287 = vsel %vm924, %v4284, %v4286
        %v4288 = vsel %vm924, %v4286, %v4284
        %v4289 = vmul.f32 %v4287, %v933
        %v4290 = vmul.f32 %v4288, %v937
        %s4291 = scalar_lea.vmem %s9, 56
        %v4292 = vld [vmem:[%s4291] sm:$0x7f]
        %v4294 = vsel %vm3670, %v4292, 0
        %v4297 = vsel %vm1962, %v4289, 0
        %v4300 = vsel %vm1962, %v4290, 0
        %4302 = vmatprep.subr.mxu0 %v4300
        %4303 = vmatpush1.msra.mxu0 %v4297
        %4304 = vmatprep.subr.mxu0 0.0
        %4305 = vmatpush1.msra.mxu0 0.0
        %4306 = vmatprep.subr.mxu0 0.0
        %4307 = vmatpush1.msra.mxu0 0.0
        %4308 = vmatprep.subr.mxu0 0.0
        %4309 = vmatpush1.msra.mxu0 0.0
        %4310 = vmatprep.subr.mxu0 0.0
        %4311 = vmatpush1.msra.mxu0 0.0
        %4312 = vmatprep.subr.mxu0 0.0
        %4313 = vmatpush1.msra.mxu0 0.0
        %4314 = vmatprep.subr.mxu0 0.0
        %4315 = vmatpush1.msra.mxu0 0.0
        %4316 = vmatprep.subr.mxu0 0.0
        %4317 = vmatpush1.msra.mxu0 0.0
        %4318 = vmatprep.subr.mxu0 0.0
        %4319 = vmatpush1.msra.mxu0 0.0
        %4320 = vmatprep.subr.mxu0 0.0
        %4321 = vmatpush1.msra.mxu0 0.0
        %4322 = vmatprep.subr.mxu0 0.0
        %4323 = vmatpush1.msra.mxu0 0.0
        %4324 = vmatprep.subr.mxu0 0.0
        %4325 = vmatpush1.msra.mxu0 0.0
        %4326 = vmatprep.subr.mxu0 0.0
        %4327 = vmatpush1.msra.mxu0 0.0
        %4328 = vmatprep.subr.mxu0 0.0
        %4329 = vmatpush1.msra.mxu0 0.0
        %4330 = vmatprep.subr.mxu0 0.0
        %4331 = vmatpush1.msra.mxu0 0.0
        %4332 = vmatprep.subr.mxu0 0.0
        %4333 = vmatpush1.msra.mxu0 0.0
        %4334 = vmatprep.subr.mxu0 0.0
        %4335 = vmatpush1.msra.mxu0 0.0
        %4336 = vmatprep.subr.mxu0 0.0
        %4337 = vmatpush1.msra.mxu0 0.0
        %4338 = vmatprep.subr.mxu0 0.0
        %4339 = vmatpush1.msra.mxu0 0.0
        %4340 = vmatprep.subr.mxu0 0.0
        %4341 = vmatpush1.msra.mxu0 0.0
        %4342 = vmatprep.subr.mxu0 0.0
        %4343 = vmatpush1.msra.mxu0 0.0
        %4344 = vmatprep.subr.mxu0 0.0
        %4345 = vmatpush1.msra.mxu0 0.0
        %4346 = vmatprep.subr.mxu0 0.0
        %4347 = vmatpush1.msra.mxu0 0.0
        %4348 = vmatprep.subr.mxu0 0.0
        %4349 = vmatpush1.msra.mxu0 0.0
        %4350 = vmatprep.subr.mxu0 0.0
        %4351 = vmatpush1.msra.mxu0 0.0
        %4352 = vmatprep.subr.mxu0 0.0
        %4353 = vmatpush1.msra.mxu0 0.0
        %4354 = vmatprep.subr.mxu0 0.0
        %4355 = vmatpush1.msra.mxu0 0.0
        %4356 = vmatprep.subr.mxu0 0.0
        %4357 = vmatpush1.msra.mxu0 0.0
        %4358 = vmatprep.subr.mxu0 0.0
        %4359 = vmatpush1.msra.mxu0 0.0
        %4360 = vmatprep.subr.mxu0 0.0
        %4361 = vmatpush1.msra.mxu0 0.0
        %4362 = vmatprep.subr.mxu0 0.0
        %4363 = vmatpush1.msra.mxu0 0.0
        %4364 = vmatprep.subr.mxu0 0.0
        %4365 = vmatpush1.msra.mxu0 0.0
        %4366 = vmatprep.mubr.f32.mxu0 0.0
        %4367 = vmatmul.mubr.f32.gmra.mrb[0].mxu0 %v4294
        %v4368 = vpop.f32.mrb[0].mxu0
        %v4369 = vadd.f32 0.0, %v4368
        %v4370 = vpop.f32.mrb[0].mxu0
        %v4371 = vadd.f32 0.0, %v4370
        %4372 = vdwg.mxu0
        %v4373 = vadd.f32 %v4281, %v4369
        %v4374 = vadd.f32 %v4282, %v4371
        %4375 = vrot.lane.b32.xlu0 %v3649, 111
        %v4376 = vpop.permute.xlu0 %4375
        %4377 = vrot.lane.b32.xlu0 %v3650, 111
        %v4378 = vpop.permute.xlu0 %4377
        %v4379 = vsel %vm965, %v4376, %v4378
        %v4380 = vsel %vm965, %v4378, %v4376
        %v4381 = vmul.f32 %v4379, %v974
        %v4382 = vmul.f32 %v4380, %v978
        %s4383 = scalar_lea.vmem %s9, 64
        %v4384 = vld [vmem:[%s4383] sm:$0x7f]
        %v4386 = vsel %vm3670, %v4384, 0
        %v4389 = vsel %vm1962, %v4381, 0
        %v4392 = vsel %vm1962, %v4382, 0
        %4394 = vmatprep.subr.mxu0 %v4392
        %4395 = vmatpush1.msra.mxu0 %v4389
        %4396 = vmatprep.subr.mxu0 0.0
        %4397 = vmatpush1.msra.mxu0 0.0
        %4398 = vmatprep.subr.mxu0 0.0
        %4399 = vmatpush1.msra.mxu0 0.0
        %4400 = vmatprep.subr.mxu0 0.0
        %4401 = vmatpush1.msra.mxu0 0.0
        %4402 = vmatprep.subr.mxu0 0.0
        %4403 = vmatpush1.msra.mxu0 0.0
        %4404 = vmatprep.subr.mxu0 0.0
        %4405 = vmatpush1.msra.mxu0 0.0
        %4406 = vmatprep.subr.mxu0 0.0
        %4407 = vmatpush1.msra.mxu0 0.0
        %4408 = vmatprep.subr.mxu0 0.0
        %4409 = vmatpush1.msra.mxu0 0.0
        %4410 = vmatprep.subr.mxu0 0.0
        %4411 = vmatpush1.msra.mxu0 0.0
        %4412 = vmatprep.subr.mxu0 0.0
        %4413 = vmatpush1.msra.mxu0 0.0
        %4414 = vmatprep.subr.mxu0 0.0
        %4415 = vmatpush1.msra.mxu0 0.0
        %4416 = vmatprep.subr.mxu0 0.0
        %4417 = vmatpush1.msra.mxu0 0.0
        %4418 = vmatprep.subr.mxu0 0.0
        %4419 = vmatpush1.msra.mxu0 0.0
        %4420 = vmatprep.subr.mxu0 0.0
        %4421 = vmatpush1.msra.mxu0 0.0
        %4422 = vmatprep.subr.mxu0 0.0
        %4423 = vmatpush1.msra.mxu0 0.0
        %4424 = vmatprep.subr.mxu0 0.0
        %4425 = vmatpush1.msra.mxu0 0.0
        %4426 = vmatprep.subr.mxu0 0.0
        %4427 = vmatpush1.msra.mxu0 0.0
        %4428 = vmatprep.subr.mxu0 0.0
        %4429 = vmatpush1.msra.mxu0 0.0
        %4430 = vmatprep.subr.mxu0 0.0
        %4431 = vmatpush1.msra.mxu0 0.0
        %4432 = vmatprep.subr.mxu0 0.0
        %4433 = vmatpush1.msra.mxu0 0.0
        %4434 = vmatprep.subr.mxu0 0.0
        %4435 = vmatpush1.msra.mxu0 0.0
        %4436 = vmatprep.subr.mxu0 0.0
        %4437 = vmatpush1.msra.mxu0 0.0
        %4438 = vmatprep.subr.mxu0 0.0
        %4439 = vmatpush1.msra.mxu0 0.0
        %4440 = vmatprep.subr.mxu0 0.0
        %4441 = vmatpush1.msra.mxu0 0.0
        %4442 = vmatprep.subr.mxu0 0.0
        %4443 = vmatpush1.msra.mxu0 0.0
        %4444 = vmatprep.subr.mxu0 0.0
        %4445 = vmatpush1.msra.mxu0 0.0
        %4446 = vmatprep.subr.mxu0 0.0
        %4447 = vmatpush1.msra.mxu0 0.0
        %4448 = vmatprep.subr.mxu0 0.0
        %4449 = vmatpush1.msra.mxu0 0.0
        %4450 = vmatprep.subr.mxu0 0.0
        %4451 = vmatpush1.msra.mxu0 0.0
        %4452 = vmatprep.subr.mxu0 0.0
        %4453 = vmatpush1.msra.mxu0 0.0
        %4454 = vmatprep.subr.mxu0 0.0
        %4455 = vmatpush1.msra.mxu0 0.0
        %4456 = vmatprep.subr.mxu0 0.0
        %4457 = vmatpush1.msra.mxu0 0.0
        %4458 = vmatprep.mubr.f32.mxu0 0.0
        %4459 = vmatmul.mubr.f32.gmra.mrb[0].mxu0 %v4386
        %v4460 = vpop.f32.mrb[0].mxu0
        %v4461 = vadd.f32 0.0, %v4460
        %v4462 = vpop.f32.mrb[0].mxu0
        %v4463 = vadd.f32 0.0, %v4462
        %4464 = vdwg.mxu0
        %v4465 = vadd.f32 %v4373, %v4461
        %v4466 = vadd.f32 %v4374, %v4463
        %v4467 = vld [vmem:[%s10] sm:$0x7f]
        %4469 = vset.pattern.permute.xlu0 0
        %4470 = vperm.xlu0 %4469, %v4467
        %v4471 = vpop.permute.xlu0 %4470
        %v4473 = vadd.f32 %v4465, %v4471
        %v4474 = vadd.f32 %v4466, %v4471
        %v4475 = vxor.u32 %v4473, 2147483648
        %v4476 = vxor.u32 %v4474, 2147483648
        %v4477 = vmul.f32 %v4475, 1.442695
        %v4478 = vpow.pop %v4477
        %v4479 = vmul.f32 %v4476, 1.442695
        %v4480 = vpow.pop %v4479
        %v4481 = vadd.f32 %v4478, 1.0
        %v4482 = vadd.f32 %v4480, 1.0
        %v4483 = vrcp.pop %v4481
        %v4484 = vmul.f32 1.0, %v4483
        %v4485 = vrcp.pop %v4482
        %v4486 = vmul.f32 1.0, %v4485
        %v4487 = vmul.f32 %v1002, %v4484
        %v4488 = vmul.f32 %v1003, %v4486
        %v4489 = vadd.f32 %v4487, %v1002
        %v4490 = vadd.f32 %v4488, %v1003
        %4491 = vrot.lane.b32.xlu0 %v4489, 17
        %v4492 = vpop.permute.xlu0 %4491
        %4493 = vrot.lane.b32.xlu0 %v4490, 17
        %v4494 = vpop.permute.xlu0 %4493
        %v4495 = vsel %vm669, %v4492, %v4494
        %v4496 = vsel %vm669, %v4494, %v4492
        %v4497 = vmul.f32 %v4496, %v677
        %v4498 = vmul.f32 %v4495, %v681
        %v4499 = vld [vmem:[%s11] sm:$0xff]
        %v4500 = vld [vmem:[%s11 + $0x8] sm:$0x3f]
        %4501 = vrot.lane.b32.xlu0 %v4489, 16
        %v4502 = vpop.permute.xlu0 %4501
        %4503 = vrot.lane.b32.xlu0 %v4490, 16
        %v4504 = vpop.permute.xlu0 %4503
        %v4505 = vsel %vm708, %v4502, %v4504
        %v4506 = vsel %vm708, %v4504, %v4502
        %v4507 = vmul.f32 %v4506, %v717
        %v4508 = vmul.f32 %v4505, %v721
        %s4509 = scalar_lea.vmem %s11, 16
        %v4510 = vld [vmem:[%s4509] sm:$0xff]
        %v4511 = vld [vmem:[%s4509 + $0x8] sm:$0x3f]
        %v4513 = vsel %vm1025, %v4510, 0
        %v4516 = vsel %vm1025, %v4511, 0
        %v4519 = vsel %vm1032, %v4507, 0
        %v4522 = vsel %vm1032, %v4508, 0
        %4524 = vmatprep.subr.mxu0 %v4522
        %4525 = vmatpush1.msra.mxu0 %v4519
        %4526 = vmatprep.subr.mxu0 0.0
        %4527 = vmatpush1.msra.mxu0 0.0
        %4528 = vmatprep.subr.mxu0 0.0
        %4529 = vmatpush1.msra.mxu0 0.0
        %4530 = vmatprep.subr.mxu0 0.0
        %4531 = vmatpush1.msra.mxu0 0.0
        %4532 = vmatprep.subr.mxu0 0.0
        %4533 = vmatpush1.msra.mxu0 0.0
        %4534 = vmatprep.subr.mxu0 0.0
        %4535 = vmatpush1.msra.mxu0 0.0
        %4536 = vmatprep.subr.mxu0 0.0
        %4537 = vmatpush1.msra.mxu0 0.0
        %4538 = vmatprep.subr.mxu0 0.0
        %4539 = vmatpush1.msra.mxu0 0.0
        %4540 = vmatprep.subr.mxu0 0.0
        %4541 = vmatpush1.msra.mxu0 0.0
        %4542 = vmatprep.subr.mxu0 0.0
        %4543 = vmatpush1.msra.mxu0 0.0
        %4544 = vmatprep.subr.mxu0 0.0
        %4545 = vmatpush1.msra.mxu0 0.0
        %4546 = vmatprep.subr.mxu0 0.0
        %4547 = vmatpush1.msra.mxu0 0.0
        %4548 = vmatprep.subr.mxu0 0.0
        %4549 = vmatpush1.msra.mxu0 0.0
        %4550 = vmatprep.subr.mxu0 0.0
        %4551 = vmatpush1.msra.mxu0 0.0
        %4552 = vmatprep.subr.mxu0 0.0
        %4553 = vmatpush1.msra.mxu0 0.0
        %4554 = vmatprep.subr.mxu0 0.0
        %4555 = vmatpush1.msra.mxu0 0.0
        %4556 = vmatprep.subr.mxu0 0.0
        %4557 = vmatpush1.msra.mxu0 0.0
        %4558 = vmatprep.subr.mxu0 0.0
        %4559 = vmatpush1.msra.mxu0 0.0
        %4560 = vmatprep.subr.mxu0 0.0
        %4561 = vmatpush1.msra.mxu0 0.0
        %4562 = vmatprep.subr.mxu0 0.0
        %4563 = vmatpush1.msra.mxu0 0.0
        %4564 = vmatprep.subr.mxu0 0.0
        %4565 = vmatpush1.msra.mxu0 0.0
        %4566 = vmatprep.subr.mxu0 0.0
        %4567 = vmatpush1.msra.mxu0 0.0
        %4568 = vmatprep.subr.mxu0 0.0
        %4569 = vmatpush1.msra.mxu0 0.0
        %4570 = vmatprep.subr.mxu0 0.0
        %4571 = vmatpush1.msra.mxu0 0.0
        %4572 = vmatprep.subr.mxu0 0.0
        %4573 = vmatpush1.msra.mxu0 0.0
        %4574 = vmatprep.subr.mxu0 0.0
        %4575 = vmatpush1.msra.mxu0 0.0
        %4576 = vmatprep.subr.mxu0 0.0
        %4577 = vmatpush1.msra.mxu0 0.0
        %4578 = vmatprep.subr.mxu0 0.0
        %4579 = vmatpush1.msra.mxu0 0.0
        %4580 = vmatprep.subr.mxu0 0.0
        %4581 = vmatpush1.msra.mxu0 0.0
        %4582 = vmatprep.subr.mxu0 0.0
        %4583 = vmatpush1.msra.mxu0 0.0
        %4584 = vmatprep.subr.mxu0 0.0
        %4585 = vmatpush1.msra.mxu0 0.0
        %4586 = vmatprep.subr.mxu0 0.0
        %4587 = vmatpush1.msra.mxu0 0.0
        %4588 = vmatprep.mubr.f32.mxu0 0.0
        %4589 = vmatmul.mubr.f32.gmra.mrb[0].mxu0 %v4513
        %v4590 = vpop.f32.mrb[0].mxu0
        %v4591 = vadd.f32 0.0, %v4590
        %v4592 = vpop.f32.mrb[0].mxu0
        %v4593 = vadd.f32 0.0, %v4592
        %4594 = vmatprep.mubr.f32.mxu0 0.0
        %4595 = vmatmul.mubr.f32.gmra.mrb[0].mxu0 %v4516
        %v4596 = vpop.f32.mrb[0].mxu0
        %v4597 = vadd.f32 0.0, %v4596
        %v4598 = vpop.f32.mrb[0].mxu0
        %v4599 = vadd.f32 0.0, %v4598
        %4600 = vdwg.mxu0
        %v4602 = vsel %vm1025, %v4499, 0
        %v4605 = vsel %vm1025, %v4500, 0
        %v4608 = vsel %vm1032, %v4497, 0
        %v4611 = vsel %vm1032, %v4498, 0
        %4613 = vmatprep.subr.mxu0 %v4611
        %4614 = vmatpush1.msra.mxu0 %v4608
        %4615 = vmatprep.subr.mxu0 0.0
        %4616 = vmatpush1.msra.mxu0 0.0
        %4617 = vmatprep.subr.mxu0 0.0
        %4618 = vmatpush1.msra.mxu0 0.0
        %4619 = vmatprep.subr.mxu0 0.0
        %4620 = vmatpush1.msra.mxu0 0.0
        %4621 = vmatprep.subr.mxu0 0.0
        %4622 = vmatpush1.msra.mxu0 0.0
        %4623 = vmatprep.subr.mxu0 0.0
        %4624 = vmatpush1.msra.mxu0 0.0
        %4625 = vmatprep.subr.mxu0 0.0
        %4626 = vmatpush1.msra.mxu0 0.0
        %4627 = vmatprep.subr.mxu0 0.0
        %4628 = vmatpush1.msra.mxu0 0.0
        %4629 = vmatprep.subr.mxu0 0.0
        %4630 = vmatpush1.msra.mxu0 0.0
        %4631 = vmatprep.subr.mxu0 0.0
        %4632 = vmatpush1.msra.mxu0 0.0
        %4633 = vmatprep.subr.mxu0 0.0
        %4634 = vmatpush1.msra.mxu0 0.0
        %4635 = vmatprep.subr.mxu0 0.0
        %4636 = vmatpush1.msra.mxu0 0.0
        %4637 = vmatprep.subr.mxu0 0.0
        %4638 = vmatpush1.msra.mxu0 0.0
        %4639 = vmatprep.subr.mxu0 0.0
        %4640 = vmatpush1.msra.mxu0 0.0
        %4641 = vmatprep.subr.mxu0 0.0
        %4642 = vmatpush1.msra.mxu0 0.0
        %4643 = vmatprep.subr.mxu0 0.0
        %4644 = vmatpush1.msra.mxu0 0.0
        %4645 = vmatprep.subr.mxu0 0.0
        %4646 = vmatpush1.msra.mxu0 0.0
        %4647 = vmatprep.subr.mxu0 0.0
        %4648 = vmatpush1.msra.mxu0 0.0
        %4649 = vmatprep.subr.mxu0 0.0
        %4650 = vmatpush1.msra.mxu0 0.0
        %4651 = vmatprep.subr.mxu0 0.0
        %4652 = vmatpush1.msra.mxu0 0.0
        %4653 = vmatprep.subr.mxu0 0.0
        %4654 = vmatpush1.msra.mxu0 0.0
        %4655 = vmatprep.subr.mxu0 0.0
        %4656 = vmatpush1.msra.mxu0 0.0
        %4657 = vmatprep.subr.mxu0 0.0
        %4658 = vmatpush1.msra.mxu0 0.0
        %4659 = vmatprep.subr.mxu0 0.0
        %4660 = vmatpush1.msra.mxu0 0.0
        %4661 = vmatprep.subr.mxu0 0.0
        %4662 = vmatpush1.msra.mxu0 0.0
        %4663 = vmatprep.subr.mxu0 0.0
        %4664 = vmatpush1.msra.mxu0 0.0
        %4665 = vmatprep.subr.mxu0 0.0
        %4666 = vmatpush1.msra.mxu0 0.0
        %4667 = vmatprep.subr.mxu0 0.0
        %4668 = vmatpush1.msra.mxu0 0.0
        %4669 = vmatprep.subr.mxu0 0.0
        %4670 = vmatpush1.msra.mxu0 0.0
        %4671 = vmatprep.subr.mxu0 0.0
        %4672 = vmatpush1.msra.mxu0 0.0
        %4673 = vmatprep.subr.mxu0 0.0
        %4674 = vmatpush1.msra.mxu0 0.0
        %4675 = vmatprep.subr.mxu0 0.0
        %4676 = vmatpush1.msra.mxu0 0.0
        %4677 = vmatprep.mubr.f32.mxu0 0.0
        %4678 = vmatmul.mubr.f32.gmra.mrb[0].mxu0 %v4602
        %v4679 = vpop.f32.mrb[0].mxu0
        %v4680 = vadd.f32 %v4591, %v4679
        %v4681 = vpop.f32.mrb[0].mxu0
        %v4682 = vadd.f32 %v4593, %v4681
        %4683 = vmatprep.mubr.f32.mxu0 0.0
        %4684 = vmatmul.mubr.f32.gmra.mrb[0].mxu0 %v4605
        %v4685 = vpop.f32.mrb[0].mxu0
        %v4686 = vadd.f32 %v4597, %v4685
        %v4687 = vpop.f32.mrb[0].mxu0
        %v4688 = vadd.f32 %v4599, %v4687
        %4689 = vdwg.mxu0
        %4690 = vrot.lane.b32.xlu0 %v4489, 15
        %v4691 = vpop.permute.xlu0 %4690
        %4692 = vrot.lane.b32.xlu0 %v4490, 15
        %v4693 = vpop.permute.xlu0 %4692
        %v4694 = vsel %vm749, %v4691, %v4693
        %v4695 = vsel %vm749, %v4693, %v4691
        %v4696 = vmul.f32 %v4695, %v758
        %v4697 = vmul.f32 %v4694, %v762
        %s4698 = scalar_lea.vmem %s11, 32
        %v4699 = vld [vmem:[%s4698] sm:$0xff]
        %v4700 = vld [vmem:[%s4698 + $0x8] sm:$0x3f]
        %v4702 = vsel %vm1025, %v4699, 0
        %v4705 = vsel %vm1025, %v4700, 0
        %v4708 = vsel %vm1032, %v4696, 0
        %v4711 = vsel %vm1032, %v4697, 0
        %4713 = vmatprep.subr.mxu0 %v4711
        %4714 = vmatpush1.msra.mxu0 %v4708
        %4715 = vmatprep.subr.mxu0 0.0
        %4716 = vmatpush1.msra.mxu0 0.0
        %4717 = vmatprep.subr.mxu0 0.0
        %4718 = vmatpush1.msra.mxu0 0.0
        %4719 = vmatprep.subr.mxu0 0.0
        %4720 = vmatpush1.msra.mxu0 0.0
        %4721 = vmatprep.subr.mxu0 0.0
        %4722 = vmatpush1.msra.mxu0 0.0
        %4723 = vmatprep.subr.mxu0 0.0
        %4724 = vmatpush1.msra.mxu0 0.0
        %4725 = vmatprep.subr.mxu0 0.0
        %4726 = vmatpush1.msra.mxu0 0.0
        %4727 = vmatprep.subr.mxu0 0.0
        %4728 = vmatpush1.msra.mxu0 0.0
        %4729 = vmatprep.subr.mxu0 0.0
        %4730 = vmatpush1.msra.mxu0 0.0
        %4731 = vmatprep.subr.mxu0 0.0
        %4732 = vmatpush1.msra.mxu0 0.0
        %4733 = vmatprep.subr.mxu0 0.0
        %4734 = vmatpush1.msra.mxu0 0.0
        %4735 = vmatprep.subr.mxu0 0.0
        %4736 = vmatpush1.msra.mxu0 0.0
        %4737 = vmatprep.subr.mxu0 0.0
        %4738 = vmatpush1.msra.mxu0 0.0
        %4739 = vmatprep.subr.mxu0 0.0
        %4740 = vmatpush1.msra.mxu0 0.0
        %4741 = vmatprep.subr.mxu0 0.0
        %4742 = vmatpush1.msra.mxu0 0.0
        %4743 = vmatprep.subr.mxu0 0.0
        %4744 = vmatpush1.msra.mxu0 0.0
        %4745 = vmatprep.subr.mxu0 0.0
        %4746 = vmatpush1.msra.mxu0 0.0
        %4747 = vmatprep.subr.mxu0 0.0
        %4748 = vmatpush1.msra.mxu0 0.0
        %4749 = vmatprep.subr.mxu0 0.0
        %4750 = vmatpush1.msra.mxu0 0.0
        %4751 = vmatprep.subr.mxu0 0.0
        %4752 = vmatpush1.msra.mxu0 0.0
        %4753 = vmatprep.subr.mxu0 0.0
        %4754 = vmatpush1.msra.mxu0 0.0
        %4755 = vmatprep.subr.mxu0 0.0
        %4756 = vmatpush1.msra.mxu0 0.0
        %4757 = vmatprep.subr.mxu0 0.0
        %4758 = vmatpush1.msra.mxu0 0.0
        %4759 = vmatprep.subr.mxu0 0.0
        %4760 = vmatpush1.msra.mxu0 0.0
        %4761 = vmatprep.subr.mxu0 0.0
        %4762 = vmatpush1.msra.mxu0 0.0
        %4763 = vmatprep.subr.mxu0 0.0
        %4764 = vmatpush1.msra.mxu0 0.0
        %4765 = vmatprep.subr.mxu0 0.0
        %4766 = vmatpush1.msra.mxu0 0.0
        %4767 = vmatprep.subr.mxu0 0.0
        %4768 = vmatpush1.msra.mxu0 0.0
        %4769 = vmatprep.subr.mxu0 0.0
        %4770 = vmatpush1.msra.mxu0 0.0
        %4771 = vmatprep.subr.mxu0 0.0
        %4772 = vmatpush1.msra.mxu0 0.0
        %4773 = vmatprep.subr.mxu0 0.0
        %4774 = vmatpush1.msra.mxu0 0.0
        %4775 = vmatprep.subr.mxu0 0.0
        %4776 = vmatpush1.msra.mxu0 0.0
        %4777 = vmatprep.mubr.f32.mxu0 0.0
        %4778 = vmatmul.mubr.f32.gmra.mrb[0].mxu0 %v4702
        %v4779 = vpop.f32.mrb[0].mxu0
        %v4780 = vadd.f32 0.0, %v4779
        %v4781 = vpop.f32.mrb[0].mxu0
        %v4782 = vadd.f32 0.0, %v4781
        %4783 = vmatprep.mubr.f32.mxu0 0.0
        %4784 = vmatmul.mubr.f32.gmra.mrb[0].mxu0 %v4705
        %v4785 = vpop.f32.mrb[0].mxu0
        %v4786 = vadd.f32 0.0, %v4785
        %v4787 = vpop.f32.mrb[0].mxu0
        %v4788 = vadd.f32 0.0, %v4787
        %4789 = vdwg.mxu0
        %v4790 = vadd.f32 %v4680, %v4780
        %v4791 = vadd.f32 %v4682, %v4782
        %v4792 = vadd.f32 %v4686, %v4786
        %v4793 = vadd.f32 %v4688, %v4788
        %4794 = vrot.lane.b32.xlu0 %v4489, 1
        %v4795 = vpop.permute.xlu0 %4794
        %4796 = vrot.lane.b32.xlu0 %v4490, 1
        %v4797 = vpop.permute.xlu0 %4796
        %v4798 = vsel %vm790, %v4795, %v4797
        %v4799 = vsel %vm790, %v4797, %v4795
        %v4800 = vmul.f32 %v4799, %v799
        %v4801 = vmul.f32 %v4798, %v803
        %s4802 = scalar_lea.vmem %s11, 48
        %v4803 = vld [vmem:[%s4802] sm:$0xff]
        %v4804 = vld [vmem:[%s4802 + $0x8] sm:$0x3f]
        %v4806 = vsel %vm1025, %v4803, 0
        %v4809 = vsel %vm1025, %v4804, 0
        %v4812 = vsel %vm1032, %v4800, 0
        %v4815 = vsel %vm1032, %v4801, 0
        %4817 = vmatprep.subr.mxu0 %v4815
        %4818 = vmatpush1.msra.mxu0 %v4812
        %4819 = vmatprep.subr.mxu0 0.0
        %4820 = vmatpush1.msra.mxu0 0.0
        %4821 = vmatprep.subr.mxu0 0.0
        %4822 = vmatpush1.msra.mxu0 0.0
        %4823 = vmatprep.subr.mxu0 0.0
        %4824 = vmatpush1.msra.mxu0 0.0
        %4825 = vmatprep.subr.mxu0 0.0
        %4826 = vmatpush1.msra.mxu0 0.0
        %4827 = vmatprep.subr.mxu0 0.0
        %4828 = vmatpush1.msra.mxu0 0.0
        %4829 = vmatprep.subr.mxu0 0.0
        %4830 = vmatpush1.msra.mxu0 0.0
        %4831 = vmatprep.subr.mxu0 0.0
        %4832 = vmatpush1.msra.mxu0 0.0
        %4833 = vmatprep.subr.mxu0 0.0
        %4834 = vmatpush1.msra.mxu0 0.0
        %4835 = vmatprep.subr.mxu0 0.0
        %4836 = vmatpush1.msra.mxu0 0.0
        %4837 = vmatprep.subr.mxu0 0.0
        %4838 = vmatpush1.msra.mxu0 0.0
        %4839 = vmatprep.subr.mxu0 0.0
        %4840 = vmatpush1.msra.mxu0 0.0
        %4841 = vmatprep.subr.mxu0 0.0
        %4842 = vmatpush1.msra.mxu0 0.0
        %4843 = vmatprep.subr.mxu0 0.0
        %4844 = vmatpush1.msra.mxu0 0.0
        %4845 = vmatprep.subr.mxu0 0.0
        %4846 = vmatpush1.msra.mxu0 0.0
        %4847 = vmatprep.subr.mxu0 0.0
        %4848 = vmatpush1.msra.mxu0 0.0
        %4849 = vmatprep.subr.mxu0 0.0
        %4850 = vmatpush1.msra.mxu0 0.0
        %4851 = vmatprep.subr.mxu0 0.0
        %4852 = vmatpush1.msra.mxu0 0.0
        %4853 = vmatprep.subr.mxu0 0.0
        %4854 = vmatpush1.msra.mxu0 0.0
        %4855 = vmatprep.subr.mxu0 0.0
        %4856 = vmatpush1.msra.mxu0 0.0
        %4857 = vmatprep.subr.mxu0 0.0
        %4858 = vmatpush1.msra.mxu0 0.0
        %4859 = vmatprep.subr.mxu0 0.0
        %4860 = vmatpush1.msra.mxu0 0.0
        %4861 = vmatprep.subr.mxu0 0.0
        %4862 = vmatpush1.msra.mxu0 0.0
        %4863 = vmatprep.subr.mxu0 0.0
        %4864 = vmatpush1.msra.mxu0 0.0
        %4865 = vmatprep.subr.mxu0 0.0
        %4866 = vmatpush1.msra.mxu0 0.0
        %4867 = vmatprep.subr.mxu0 0.0
        %4868 = vmatpush1.msra.mxu0 0.0
        %4869 = vmatprep.subr.mxu0 0.0
        %4870 = vmatpush1.msra.mxu0 0.0
        %4871 = vmatprep.subr.mxu0 0.0
        %4872 = vmatpush1.msra.mxu0 0.0
        %4873 = vmatprep.subr.mxu0 0.0
        %4874 = vmatpush1.msra.mxu0 0.0
        %4875 = vmatprep.subr.mxu0 0.0
        %4876 = vmatpush1.msra.mxu0 0.0
        %4877 = vmatprep.subr.mxu0 0.0
        %4878 = vmatpush1.msra.mxu0 0.0
        %4879 = vmatprep.subr.mxu0 0.0
        %4880 = vmatpush1.msra.mxu0 0.0
        %4881 = vmatprep.mubr.f32.mxu0 0.0
        %4882 = vmatmul.mubr.f32.gmra.mrb[0].mxu0 %v4806
        %v4883 = vpop.f32.mrb[0].mxu0
        %v4884 = vadd.f32 0.0, %v4883
        %v4885 = vpop.f32.mrb[0].mxu0
        %v4886 = vadd.f32 0.0, %v4885
        %4887 = vmatprep.mubr.f32.mxu0 0.0
        %4888 = vmatmul.mubr.f32.gmra.mrb[0].mxu0 %v4809
        %v4889 = vpop.f32.mrb[0].mxu0
        %v4890 = vadd.f32 0.0, %v4889
        %v4891 = vpop.f32.mrb[0].mxu0
        %v4892 = vadd.f32 0.0, %v4891
        %4893 = vdwg.mxu0
        %v4894 = vadd.f32 %v4790, %v4884
        %v4895 = vadd.f32 %v4791, %v4886
        %v4896 = vadd.f32 %v4792, %v4890
        %v4897 = vadd.f32 %v4793, %v4892
        %s4898 = scalar_lea.vmem %s11, 64
        %v4899 = vld [vmem:[%s4898] sm:$0xff]
        %v4900 = vld [vmem:[%s4898 + $0x8] sm:$0x3f]
        %v4902 = vsel %vm1025, %v4899, 0
        %v4905 = vsel %vm1025, %v4900, 0
        %v4908 = vsel %vm1032, %v4489, 0
        %v4911 = vsel %vm1032, %v4490, 0
        %4913 = vmatprep.subr.mxu0 %v4911
        %4914 = vmatpush1.msra.mxu0 %v4908
        %4915 = vmatprep.subr.mxu0 0.0
        %4916 = vmatpush1.msra.mxu0 0.0
        %4917 = vmatprep.subr.mxu0 0.0
        %4918 = vmatpush1.msra.mxu0 0.0
        %4919 = vmatprep.subr.mxu0 0.0
        %4920 = vmatpush1.msra.mxu0 0.0
        %4921 = vmatprep.subr.mxu0 0.0
        %4922 = vmatpush1.msra.mxu0 0.0
        %4923 = vmatprep.subr.mxu0 0.0
        %4924 = vmatpush1.msra.mxu0 0.0
        %4925 = vmatprep.subr.mxu0 0.0
        %4926 = vmatpush1.msra.mxu0 0.0
        %4927 = vmatprep.subr.mxu0 0.0
        %4928 = vmatpush1.msra.mxu0 0.0
        %4929 = vmatprep.subr.mxu0 0.0
        %4930 = vmatpush1.msra.mxu0 0.0
        %4931 = vmatprep.subr.mxu0 0.0
        %4932 = vmatpush1.msra.mxu0 0.0
        %4933 = vmatprep.subr.mxu0 0.0
        %4934 = vmatpush1.msra.mxu0 0.0
        %4935 = vmatprep.subr.mxu0 0.0
        %4936 = vmatpush1.msra.mxu0 0.0
        %4937 = vmatprep.subr.mxu0 0.0
        %4938 = vmatpush1.msra.mxu0 0.0
        %4939 = vmatprep.subr.mxu0 0.0
        %4940 = vmatpush1.msra.mxu0 0.0
        %4941 = vmatprep.subr.mxu0 0.0
        %4942 = vmatpush1.msra.mxu0 0.0
        %4943 = vmatprep.subr.mxu0 0.0
        %4944 = vmatpush1.msra.mxu0 0.0
        %4945 = vmatprep.subr.mxu0 0.0
        %4946 = vmatpush1.msra.mxu0 0.0
        %4947 = vmatprep.subr.mxu0 0.0
        %4948 = vmatpush1.msra.mxu0 0.0
        %4949 = vmatprep.subr.mxu0 0.0
        %4950 = vmatpush1.msra.mxu0 0.0
        %4951 = vmatprep.subr.mxu0 0.0
        %4952 = vmatpush1.msra.mxu0 0.0
        %4953 = vmatprep.subr.mxu0 0.0
        %4954 = vmatpush1.msra.mxu0 0.0
        %4955 = vmatprep.subr.mxu0 0.0
        %4956 = vmatpush1.msra.mxu0 0.0
        %4957 = vmatprep.subr.mxu0 0.0
        %4958 = vmatpush1.msra.mxu0 0.0
        %4959 = vmatprep.subr.mxu0 0.0
        %4960 = vmatpush1.msra.mxu0 0.0
        %4961 = vmatprep.subr.mxu0 0.0
        %4962 = vmatpush1.msra.mxu0 0.0
        %4963 = vmatprep.subr.mxu0 0.0
        %4964 = vmatpush1.msra.mxu0 0.0
        %4965 = vmatprep.subr.mxu0 0.0
        %4966 = vmatpush1.msra.mxu0 0.0
        %4967 = vmatprep.subr.mxu0 0.0
        %4968 = vmatpush1.msra.mxu0 0.0
        %4969 = vmatprep.subr.mxu0 0.0
        %4970 = vmatpush1.msra.mxu0 0.0
        %4971 = vmatprep.subr.mxu0 0.0
        %4972 = vmatpush1.msra.mxu0 0.0
        %4973 = vmatprep.subr.mxu0 0.0
        %4974 = vmatpush1.msra.mxu0 0.0
        %4975 = vmatprep.subr.mxu0 0.0
        %4976 = vmatpush1.msra.mxu0 0.0
        %4977 = vmatprep.mubr.f32.mxu0 0.0
        %4978 = vmatmul.mubr.f32.gmra.mrb[0].mxu0 %v4902
        %v4979 = vpop.f32.mrb[0].mxu0
        %v4980 = vadd.f32 0.0, %v4979
        %v4981 = vpop.f32.mrb[0].mxu0
        %v4982 = vadd.f32 0.0, %v4981
        %4983 = vmatprep.mubr.f32.mxu0 0.0
        %4984 = vmatmul.mubr.f32.gmra.mrb[0].mxu0 %v4905
        %v4985 = vpop.f32.mrb[0].mxu0
        %v4986 = vadd.f32 0.0, %v4985
        %v4987 = vpop.f32.mrb[0].mxu0
        %v4988 = vadd.f32 0.0, %v4987
        %4989 = vdwg.mxu0
        %v4990 = vadd.f32 %v4894, %v4980
        %v4991 = vadd.f32 %v4895, %v4982
        %v4992 = vadd.f32 %v4896, %v4986
        %v4993 = vadd.f32 %v4897, %v4988
        %4994 = vrot.lane.b32.xlu0 %v4489, 127
        %v4995 = vpop.permute.xlu0 %4994
        %4996 = vrot.lane.b32.xlu0 %v4490, 127
        %v4997 = vpop.permute.xlu0 %4996
        %v4998 = vsel %vm842, %v4995, %v4997
        %v4999 = vsel %vm842, %v4997, %v4995
        %v5000 = vmul.f32 %v4998, %v851
        %v5001 = vmul.f32 %v4999, %v855
        %s5002 = scalar_lea.vmem %s11, 80
        %v5003 = vld [vmem:[%s5002] sm:$0xff]
        %v5004 = vld [vmem:[%s5002 + $0x8] sm:$0x3f]
        %v5006 = vsel %vm1025, %v5003, 0
        %v5009 = vsel %vm1025, %v5004, 0
        %v5012 = vsel %vm1032, %v5000, 0
        %v5015 = vsel %vm1032, %v5001, 0
        %5017 = vmatprep.subr.mxu0 %v5015
        %5018 = vmatpush1.msra.mxu0 %v5012
        %5019 = vmatprep.subr.mxu0 0.0
        %5020 = vmatpush1.msra.mxu0 0.0
        %5021 = vmatprep.subr.mxu0 0.0
        %5022 = vmatpush1.msra.mxu0 0.0
        %5023 = vmatprep.subr.mxu0 0.0
        %5024 = vmatpush1.msra.mxu0 0.0
        %5025 = vmatprep.subr.mxu0 0.0
        %5026 = vmatpush1.msra.mxu0 0.0
        %5027 = vmatprep.subr.mxu0 0.0
        %5028 = vmatpush1.msra.mxu0 0.0
        %5029 = vmatprep.subr.mxu0 0.0
        %5030 = vmatpush1.msra.mxu0 0.0
        %5031 = vmatprep.subr.mxu0 0.0
        %5032 = vmatpush1.msra.mxu0 0.0
        %5033 = vmatprep.subr.mxu0 0.0
        %5034 = vmatpush1.msra.mxu0 0.0
        %5035 = vmatprep.subr.mxu0 0.0
        %5036 = vmatpush1.msra.mxu0 0.0
        %5037 = vmatprep.subr.mxu0 0.0
        %5038 = vmatpush1.msra.mxu0 0.0
        %5039 = vmatprep.subr.mxu0 0.0
        %5040 = vmatpush1.msra.mxu0 0.0
        %5041 = vmatprep.subr.mxu0 0.0
        %5042 = vmatpush1.msra.mxu0 0.0
        %5043 = vmatprep.subr.mxu0 0.0
        %5044 = vmatpush1.msra.mxu0 0.0
        %5045 = vmatprep.subr.mxu0 0.0
        %5046 = vmatpush1.msra.mxu0 0.0
        %5047 = vmatprep.subr.mxu0 0.0
        %5048 = vmatpush1.msra.mxu0 0.0
        %5049 = vmatprep.subr.mxu0 0.0
        %5050 = vmatpush1.msra.mxu0 0.0
        %5051 = vmatprep.subr.mxu0 0.0
        %5052 = vmatpush1.msra.mxu0 0.0
        %5053 = vmatprep.subr.mxu0 0.0
        %5054 = vmatpush1.msra.mxu0 0.0
        %5055 = vmatprep.subr.mxu0 0.0
        %5056 = vmatpush1.msra.mxu0 0.0
        %5057 = vmatprep.subr.mxu0 0.0
        %5058 = vmatpush1.msra.mxu0 0.0
        %5059 = vmatprep.subr.mxu0 0.0
        %5060 = vmatpush1.msra.mxu0 0.0
        %5061 = vmatprep.subr.mxu0 0.0
        %5062 = vmatpush1.msra.mxu0 0.0
        %5063 = vmatprep.subr.mxu0 0.0
        %5064 = vmatpush1.msra.mxu0 0.0
        %5065 = vmatprep.subr.mxu0 0.0
        %5066 = vmatpush1.msra.mxu0 0.0
        %5067 = vmatprep.subr.mxu0 0.0
        %5068 = vmatpush1.msra.mxu0 0.0
        %5069 = vmatprep.subr.mxu0 0.0
        %5070 = vmatpush1.msra.mxu0 0.0
        %5071 = vmatprep.subr.mxu0 0.0
        %5072 = vmatpush1.msra.mxu0 0.0
        %5073 = vmatprep.subr.mxu0 0.0
        %5074 = vmatpush1.msra.mxu0 0.0
        %5075 = vmatprep.subr.mxu0 0.0
        %5076 = vmatpush1.msra.mxu0 0.0
        %5077 = vmatprep.subr.mxu0 0.0
        %5078 = vmatpush1.msra.mxu0 0.0
        %5079 = vmatprep.subr.mxu0 0.0
        %5080 = vmatpush1.msra.mxu0 0.0
        %5081 = vmatprep.mubr.f32.mxu0 0.0
        %5082 = vmatmul.mubr.f32.gmra.mrb[0].mxu0 %v5006
        %v5083 = vpop.f32.mrb[0].mxu0
        %v5084 = vadd.f32 0.0, %v5083
        %v5085 = vpop.f32.mrb[0].mxu0
        %v5086 = vadd.f32 0.0, %v5085
        %5087 = vmatprep.mubr.f32.mxu0 0.0
        %5088 = vmatmul.mubr.f32.gmra.mrb[0].mxu0 %v5009
        %v5089 = vpop.f32.mrb[0].mxu0
        %v5090 = vadd.f32 0.0, %v5089
        %v5091 = vpop.f32.mrb[0].mxu0
        %v5092 = vadd.f32 0.0, %v5091
        %5093 = vdwg.mxu0
        %v5094 = vadd.f32 %v4990, %v5084
        %v5095 = vadd.f32 %v4991, %v5086
        %v5096 = vadd.f32 %v4992, %v5090
        %v5097 = vadd.f32 %v4993, %v5092
        %5098 = vrot.lane.b32.xlu0 %v4489, 113
        %v5099 = vpop.permute.xlu0 %5098
        %5100 = vrot.lane.b32.xlu0 %v4490, 113
        %v5101 = vpop.permute.xlu0 %5100
        %v5102 = vsel %vm883, %v5099, %v5101
        %v5103 = vsel %vm883, %v5101, %v5099
        %v5104 = vmul.f32 %v5102, %v892
        %v5105 = vmul.f32 %v5103, %v896
        %s5106 = scalar_lea.vmem %s11, 96
        %v5107 = vld [vmem:[%s5106] sm:$0xff]
        %v5108 = vld [vmem:[%s5106 + $0x8] sm:$0x3f]
        %v5110 = vsel %vm1025, %v5107, 0
        %v5113 = vsel %vm1025, %v5108, 0
        %v5116 = vsel %vm1032, %v5104, 0
        %v5119 = vsel %vm1032, %v5105, 0
        %5121 = vmatprep.subr.mxu0 %v5119
        %5122 = vmatpush1.msra.mxu0 %v5116
        %5123 = vmatprep.subr.mxu0 0.0
        %5124 = vmatpush1.msra.mxu0 0.0
        %5125 = vmatprep.subr.mxu0 0.0
        %5126 = vmatpush1.msra.mxu0 0.0
        %5127 = vmatprep.subr.mxu0 0.0
        %5128 = vmatpush1.msra.mxu0 0.0
        %5129 = vmatprep.subr.mxu0 0.0
        %5130 = vmatpush1.msra.mxu0 0.0
        %5131 = vmatprep.subr.mxu0 0.0
        %5132 = vmatpush1.msra.mxu0 0.0
        %5133 = vmatprep.subr.mxu0 0.0
        %5134 = vmatpush1.msra.mxu0 0.0
        %5135 = vmatprep.subr.mxu0 0.0
        %5136 = vmatpush1.msra.mxu0 0.0
        %5137 = vmatprep.subr.mxu0 0.0
        %5138 = vmatpush1.msra.mxu0 0.0
        %5139 = vmatprep.subr.mxu0 0.0
        %5140 = vmatpush1.msra.mxu0 0.0
        %5141 = vmatprep.subr.mxu0 0.0
        %5142 = vmatpush1.msra.mxu0 0.0
        %5143 = vmatprep.subr.mxu0 0.0
        %5144 = vmatpush1.msra.mxu0 0.0
        %5145 = vmatprep.subr.mxu0 0.0
        %5146 = vmatpush1.msra.mxu0 0.0
        %5147 = vmatprep.subr.mxu0 0.0
        %5148 = vmatpush1.msra.mxu0 0.0
        %5149 = vmatprep.subr.mxu0 0.0
        %5150 = vmatpush1.msra.mxu0 0.0
        %5151 = vmatprep.subr.mxu0 0.0
        %5152 = vmatpush1.msra.mxu0 0.0
        %5153 = vmatprep.subr.mxu0 0.0
        %5154 = vmatpush1.msra.mxu0 0.0
        %5155 = vmatprep.subr.mxu0 0.0
        %5156 = vmatpush1.msra.mxu0 0.0
        %5157 = vmatprep.subr.mxu0 0.0
        %5158 = vmatpush1.msra.mxu0 0.0
        %5159 = vmatprep.subr.mxu0 0.0
        %5160 = vmatpush1.msra.mxu0 0.0
        %5161 = vmatprep.subr.mxu0 0.0
        %5162 = vmatpush1.msra.mxu0 0.0
        %5163 = vmatprep.subr.mxu0 0.0
        %5164 = vmatpush1.msra.mxu0 0.0
        %5165 = vmatprep.subr.mxu0 0.0
        %5166 = vmatpush1.msra.mxu0 0.0
        %5167 = vmatprep.subr.mxu0 0.0
        %5168 = vmatpush1.msra.mxu0 0.0
        %5169 = vmatprep.subr.mxu0 0.0
        %5170 = vmatpush1.msra.mxu0 0.0
        %5171 = vmatprep.subr.mxu0 0.0
        %5172 = vmatpush1.msra.mxu0 0.0
        %5173 = vmatprep.subr.mxu0 0.0
        %5174 = vmatpush1.msra.mxu0 0.0
        %5175 = vmatprep.subr.mxu0 0.0
        %5176 = vmatpush1.msra.mxu0 0.0
        %5177 = vmatprep.subr.mxu0 0.0
        %5178 = vmatpush1.msra.mxu0 0.0
        %5179 = vmatprep.subr.mxu0 0.0
        %5180 = vmatpush1.msra.mxu0 0.0
        %5181 = vmatprep.subr.mxu0 0.0
        %5182 = vmatpush1.msra.mxu0 0.0
        %5183 = vmatprep.subr.mxu0 0.0
        %5184 = vmatpush1.msra.mxu0 0.0
        %5185 = vmatprep.mubr.f32.mxu0 0.0
        %5186 = vmatmul.mubr.f32.gmra.mrb[0].mxu0 %v5110
        %v5187 = vpop.f32.mrb[0].mxu0
        %v5188 = vadd.f32 0.0, %v5187
        %v5189 = vpop.f32.mrb[0].mxu0
        %v5190 = vadd.f32 0.0, %v5189
        %5191 = vmatprep.mubr.f32.mxu0 0.0
        %5192 = vmatmul.mubr.f32.gmra.mrb[0].mxu0 %v5113
        %v5193 = vpop.f32.mrb[0].mxu0
        %v5194 = vadd.f32 0.0, %v5193
        %v5195 = vpop.f32.mrb[0].mxu0
        %v5196 = vadd.f32 0.0, %v5195
        %5197 = vdwg.mxu0
        %v5198 = vadd.f32 %v5094, %v5188
        %v5199 = vadd.f32 %v5095, %v5190
        %v5200 = vadd.f32 %v5096, %v5194
        %v5201 = vadd.f32 %v5097, %v5196
        %5202 = vrot.lane.b32.xlu0 %v4489, 112
        %v5203 = vpop.permute.xlu0 %5202
        %5204 = vrot.lane.b32.xlu0 %v4490, 112
        %v5205 = vpop.permute.xlu0 %5204
        %v5206 = vsel %vm924, %v5203, %v5205
        %v5207 = vsel %vm924, %v5205, %v5203
        %v5208 = vmul.f32 %v5206, %v933
        %v5209 = vmul.f32 %v5207, %v937
        %s5210 = scalar_lea.vmem %s11, 112
        %v5211 = vld [vmem:[%s5210] sm:$0xff]
        %v5212 = vld [vmem:[%s5210 + $0x8] sm:$0x3f]
        %v5214 = vsel %vm1025, %v5211, 0
        %v5217 = vsel %vm1025, %v5212, 0
        %v5220 = vsel %vm1032, %v5208, 0
        %v5223 = vsel %vm1032, %v5209, 0
        %5225 = vmatprep.subr.mxu0 %v5223
        %5226 = vmatpush1.msra.mxu0 %v5220
        %5227 = vmatprep.subr.mxu0 0.0
        %5228 = vmatpush1.msra.mxu0 0.0
        %5229 = vmatprep.subr.mxu0 0.0
        %5230 = vmatpush1.msra.mxu0 0.0
        %5231 = vmatprep.subr.mxu0 0.0
        %5232 = vmatpush1.msra.mxu0 0.0
        %5233 = vmatprep.subr.mxu0 0.0
        %5234 = vmatpush1.msra.mxu0 0.0
        %5235 = vmatprep.subr.mxu0 0.0
        %5236 = vmatpush1.msra.mxu0 0.0
        %5237 = vmatprep.subr.mxu0 0.0
        %5238 = vmatpush1.msra.mxu0 0.0
        %5239 = vmatprep.subr.mxu0 0.0
        %5240 = vmatpush1.msra.mxu0 0.0
        %5241 = vmatprep.subr.mxu0 0.0
        %5242 = vmatpush1.msra.mxu0 0.0
        %5243 = vmatprep.subr.mxu0 0.0
        %5244 = vmatpush1.msra.mxu0 0.0
        %5245 = vmatprep.subr.mxu0 0.0
        %5246 = vmatpush1.msra.mxu0 0.0
        %5247 = vmatprep.subr.mxu0 0.0
        %5248 = vmatpush1.msra.mxu0 0.0
        %5249 = vmatprep.subr.mxu0 0.0
        %5250 = vmatpush1.msra.mxu0 0.0
        %5251 = vmatprep.subr.mxu0 0.0
        %5252 = vmatpush1.msra.mxu0 0.0
        %5253 = vmatprep.subr.mxu0 0.0
        %5254 = vmatpush1.msra.mxu0 0.0
        %5255 = vmatprep.subr.mxu0 0.0
        %5256 = vmatpush1.msra.mxu0 0.0
        %5257 = vmatprep.subr.mxu0 0.0
        %5258 = vmatpush1.msra.mxu0 0.0
        %5259 = vmatprep.subr.mxu0 0.0
        %5260 = vmatpush1.msra.mxu0 0.0
        %5261 = vmatprep.subr.mxu0 0.0
        %5262 = vmatpush1.msra.mxu0 0.0
        %5263 = vmatprep.subr.mxu0 0.0
        %5264 = vmatpush1.msra.mxu0 0.0
        %5265 = vmatprep.subr.mxu0 0.0
        %5266 = vmatpush1.msra.mxu0 0.0
        %5267 = vmatprep.subr.mxu0 0.0
        %5268 = vmatpush1.msra.mxu0 0.0
        %5269 = vmatprep.subr.mxu0 0.0
        %5270 = vmatpush1.msra.mxu0 0.0
        %5271 = vmatprep.subr.mxu0 0.0
        %5272 = vmatpush1.msra.mxu0 0.0
        %5273 = vmatprep.subr.mxu0 0.0
        %5274 = vmatpush1.msra.mxu0 0.0
        %5275 = vmatprep.subr.mxu0 0.0
        %5276 = vmatpush1.msra.mxu0 0.0
        %5277 = vmatprep.subr.mxu0 0.0
        %5278 = vmatpush1.msra.mxu0 0.0
        %5279 = vmatprep.subr.mxu0 0.0
        %5280 = vmatpush1.msra.mxu0 0.0
        %5281 = vmatprep.subr.mxu0 0.0
        %5282 = vmatpush1.msra.mxu0 0.0
        %5283 = vmatprep.subr.mxu0 0.0
        %5284 = vmatpush1.msra.mxu0 0.0
        %5285 = vmatprep.subr.mxu0 0.0
        %5286 = vmatpush1.msra.mxu0 0.0
        %5287 = vmatprep.subr.mxu0 0.0
        %5288 = vmatpush1.msra.mxu0 0.0
        %5289 = vmatprep.mubr.f32.mxu0 0.0
        %5290 = vmatmul.mubr.f32.gmra.mrb[0].mxu0 %v5214
        %v5291 = vpop.f32.mrb[0].mxu0
        %v5292 = vadd.f32 0.0, %v5291
        %v5293 = vpop.f32.mrb[0].mxu0
        %v5294 = vadd.f32 0.0, %v5293
        %5295 = vmatprep.mubr.f32.mxu0 0.0
        %5296 = vmatmul.mubr.f32.gmra.mrb[0].mxu0 %v5217
        %v5297 = vpop.f32.mrb[0].mxu0
        %v5298 = vadd.f32 0.0, %v5297
        %v5299 = vpop.f32.mrb[0].mxu0
        %v5300 = vadd.f32 0.0, %v5299
        %5301 = vdwg.mxu0
        %v5302 = vadd.f32 %v5198, %v5292
        %v5303 = vadd.f32 %v5199, %v5294
        %v5304 = vadd.f32 %v5200, %v5298
        %v5305 = vadd.f32 %v5201, %v5300
        %5306 = vrot.lane.b32.xlu0 %v4489, 111
        %v5307 = vpop.permute.xlu0 %5306
        %5308 = vrot.lane.b32.xlu0 %v4490, 111
        %v5309 = vpop.permute.xlu0 %5308
        %v5310 = vsel %vm965, %v5307, %v5309
        %v5311 = vsel %vm965, %v5309, %v5307
        %v5312 = vmul.f32 %v5310, %v974
        %v5313 = vmul.f32 %v5311, %v978
        %s5314 = scalar_lea.vmem %s11, 128
        %v5315 = vld [vmem:[%s5314] sm:$0xff]
        %v5316 = vld [vmem:[%s5314 + $0x8] sm:$0x3f]
        %v5318 = vsel %vm1025, %v5315, 0
        %v5321 = vsel %vm1025, %v5316, 0
        %v5324 = vsel %vm1032, %v5312, 0
        %v5327 = vsel %vm1032, %v5313, 0
        %5329 = vmatprep.subr.mxu0 %v5327
        %5330 = vmatpush1.msra.mxu0 %v5324
        %5331 = vmatprep.subr.mxu0 0.0
        %5332 = vmatpush1.msra.mxu0 0.0
        %5333 = vmatprep.subr.mxu0 0.0
        %5334 = vmatpush1.msra.mxu0 0.0
        %5335 = vmatprep.subr.mxu0 0.0
        %5336 = vmatpush1.msra.mxu0 0.0
        %5337 = vmatprep.subr.mxu0 0.0
        %5338 = vmatpush1.msra.mxu0 0.0
        %5339 = vmatprep.subr.mxu0 0.0
        %5340 = vmatpush1.msra.mxu0 0.0
        %5341 = vmatprep.subr.mxu0 0.0
        %5342 = vmatpush1.msra.mxu0 0.0
        %5343 = vmatprep.subr.mxu0 0.0
        %5344 = vmatpush1.msra.mxu0 0.0
        %5345 = vmatprep.subr.mxu0 0.0
        %5346 = vmatpush1.msra.mxu0 0.0
        %5347 = vmatprep.subr.mxu0 0.0
        %5348 = vmatpush1.msra.mxu0 0.0
        %5349 = vmatprep.subr.mxu0 0.0
        %5350 = vmatpush1.msra.mxu0 0.0
        %5351 = vmatprep.subr.mxu0 0.0
        %5352 = vmatpush1.msra.mxu0 0.0
        %5353 = vmatprep.subr.mxu0 0.0
        %5354 = vmatpush1.msra.mxu0 0.0
        %5355 = vmatprep.subr.mxu0 0.0
        %5356 = vmatpush1.msra.mxu0 0.0
        %5357 = vmatprep.subr.mxu0 0.0
        %5358 = vmatpush1.msra.mxu0 0.0
        %5359 = vmatprep.subr.mxu0 0.0
        %5360 = vmatpush1.msra.mxu0 0.0
        %5361 = vmatprep.subr.mxu0 0.0
        %5362 = vmatpush1.msra.mxu0 0.0
        %5363 = vmatprep.subr.mxu0 0.0
        %5364 = vmatpush1.msra.mxu0 0.0
        %5365 = vmatprep.subr.mxu0 0.0
        %5366 = vmatpush1.msra.mxu0 0.0
        %5367 = vmatprep.subr.mxu0 0.0
        %5368 = vmatpush1.msra.mxu0 0.0
        %5369 = vmatprep.subr.mxu0 0.0
        %5370 = vmatpush1.msra.mxu0 0.0
        %5371 = vmatprep.subr.mxu0 0.0
        %5372 = vmatpush1.msra.mxu0 0.0
        %5373 = vmatprep.subr.mxu0 0.0
        %5374 = vmatpush1.msra.mxu0 0.0
        %5375 = vmatprep.subr.mxu0 0.0
        %5376 = vmatpush1.msra.mxu0 0.0
        %5377 = vmatprep.subr.mxu0 0.0
        %5378 = vmatpush1.msra.mxu0 0.0
        %5379 = vmatprep.subr.mxu0 0.0
        %5380 = vmatpush1.msra.mxu0 0.0
        %5381 = vmatprep.subr.mxu0 0.0
        %5382 = vmatpush1.msra.mxu0 0.0
        %5383 = vmatprep.subr.mxu0 0.0
        %5384 = vmatpush1.msra.mxu0 0.0
        %5385 = vmatprep.subr.mxu0 0.0
        %5386 = vmatpush1.msra.mxu0 0.0
        %5387 = vmatprep.subr.mxu0 0.0
        %5388 = vmatpush1.msra.mxu0 0.0
        %5389 = vmatprep.subr.mxu0 0.0
        %5390 = vmatpush1.msra.mxu0 0.0
        %5391 = vmatprep.subr.mxu0 0.0
        %5392 = vmatpush1.msra.mxu0 0.0
        %5393 = vmatprep.mubr.f32.mxu0 0.0
        %5394 = vmatmul.mubr.f32.gmra.mrb[0].mxu0 %v5318
        %v5395 = vpop.f32.mrb[0].mxu0
        %v5396 = vadd.f32 0.0, %v5395
        %v5397 = vpop.f32.mrb[0].mxu0
        %v5398 = vadd.f32 0.0, %v5397
        %5399 = vmatprep.mubr.f32.mxu0 0.0
        %5400 = vmatmul.mubr.f32.gmra.mrb[0].mxu0 %v5321
        %v5401 = vpop.f32.mrb[0].mxu0
        %v5402 = vadd.f32 0.0, %v5401
        %v5403 = vpop.f32.mrb[0].mxu0
        %v5404 = vadd.f32 0.0, %v5403
        %5405 = vdwg.mxu0
        %v5406 = vadd.f32 %v5302, %v5396
        %v5407 = vadd.f32 %v5303, %v5398
        %v5408 = vadd.f32 %v5304, %v5402
        %v5409 = vadd.f32 %v5305, %v5404
        %v5410 = vld [vmem:[%s12] sm:$0xff]
        %v5411 = vld [vmem:[%s12 + $0x8] sm:$0x3f]
        %5413 = vset.pattern.permute.xlu0 0
        %5414 = vperm.xlu0 %5413, %v5410
        %v5415 = vpop.permute.xlu0 %5414
        %5418 = vset.pattern.permute.xlu0 0
        %5419 = vperm.xlu0 %5418, %v5411
        %v5420 = vpop.permute.xlu0 %5419
        %v5422 = vadd.f32 %v5406, %v5415
        %v5423 = vadd.f32 %v5407, %v5415
        %v5424 = vadd.f32 %v5408, %v5420
        %v5425 = vadd.f32 %v5409, %v5420
        %v5426 = vmax.f32 %v5422, 0.0
        %v5427 = vmax.f32 %v5423, 0.0
        %v5428 = vmax.f32 %v5424, 0.0
        %v5429 = vmax.f32 %v5425, 0.0
        %5430 = vrot.lane.b32.xlu0 %v5426, 17
        %v5431 = vpop.permute.xlu0 %5430
        %5432 = vrot.lane.b32.xlu0 %v5428, 17
        %v5433 = vpop.permute.xlu0 %5432
        %5434 = vrot.lane.b32.xlu0 %v5427, 17
        %v5435 = vpop.permute.xlu0 %5434
        %5436 = vrot.lane.b32.xlu0 %v5429, 17
        %v5437 = vpop.permute.xlu0 %5436
        %v5438 = vsel %vm669, %v5431, %v5435
        %v5439 = vsel %vm669, %v5433, %v5437
        %v5440 = vsel %vm669, %v5435, %v5431
        %v5441 = vsel %vm669, %v5437, %v5433
        %v5442 = vld [vmem:[%s13] sm:$0x7]
        %v5444 = vsel %vm1958, %v5442, 0
        %v5447 = vsel %vm1962, %v5441, 0
        %v5450 = vsel %vm1962, %v5439, 0
        %5452 = vmatprep.subr.mxu0 %v5438
        %5453 = vmatpush1.msra.mxu0 %v5440
        %5454 = vmatprep.subr.mxu0 %v5450
        %5455 = vmatpush1.msra.mxu0 %v5447
        %5456 = vmatprep.subr.mxu0 0.0
        %5457 = vmatpush1.msra.mxu0 0.0
        %5458 = vmatprep.subr.mxu0 0.0
        %5459 = vmatpush1.msra.mxu0 0.0
        %5460 = vmatprep.subr.mxu0 0.0
        %5461 = vmatpush1.msra.mxu0 0.0
        %5462 = vmatprep.subr.mxu0 0.0
        %5463 = vmatpush1.msra.mxu0 0.0
        %5464 = vmatprep.subr.mxu0 0.0
        %5465 = vmatpush1.msra.mxu0 0.0
        %5466 = vmatprep.subr.mxu0 0.0
        %5467 = vmatpush1.msra.mxu0 0.0
        %5468 = vmatprep.subr.mxu0 0.0
        %5469 = vmatpush1.msra.mxu0 0.0
        %5470 = vmatprep.subr.mxu0 0.0
        %5471 = vmatpush1.msra.mxu0 0.0
        %5472 = vmatprep.subr.mxu0 0.0
        %5473 = vmatpush1.msra.mxu0 0.0
        %5474 = vmatprep.subr.mxu0 0.0
        %5475 = vmatpush1.msra.mxu0 0.0
        %5476 = vmatprep.subr.mxu0 0.0
        %5477 = vmatpush1.msra.mxu0 0.0
        %5478 = vmatprep.subr.mxu0 0.0
        %5479 = vmatpush1.msra.mxu0 0.0
        %5480 = vmatprep.subr.mxu0 0.0
        %5481 = vmatpush1.msra.mxu0 0.0
        %5482 = vmatprep.subr.mxu0 0.0
        %5483 = vmatpush1.msra.mxu0 0.0
        %5484 = vmatprep.subr.mxu0 0.0
        %5485 = vmatpush1.msra.mxu0 0.0
        %5486 = vmatprep.subr.mxu0 0.0
        %5487 = vmatpush1.msra.mxu0 0.0
        %5488 = vmatprep.subr.mxu0 0.0
        %5489 = vmatpush1.msra.mxu0 0.0
        %5490 = vmatprep.subr.mxu0 0.0
        %5491 = vmatpush1.msra.mxu0 0.0
        %5492 = vmatprep.subr.mxu0 0.0
        %5493 = vmatpush1.msra.mxu0 0.0
        %5494 = vmatprep.subr.mxu0 0.0
        %5495 = vmatpush1.msra.mxu0 0.0
        %5496 = vmatprep.subr.mxu0 0.0
        %5497 = vmatpush1.msra.mxu0 0.0
        %5498 = vmatprep.subr.mxu0 0.0
        %5499 = vmatpush1.msra.mxu0 0.0
        %5500 = vmatprep.subr.mxu0 0.0
        %5501 = vmatpush1.msra.mxu0 0.0
        %5502 = vmatprep.subr.mxu0 0.0
        %5503 = vmatpush1.msra.mxu0 0.0
        %5504 = vmatprep.subr.mxu0 0.0
        %5505 = vmatpush1.msra.mxu0 0.0
        %5506 = vmatprep.subr.mxu0 0.0
        %5507 = vmatpush1.msra.mxu0 0.0
        %5508 = vmatprep.subr.mxu0 0.0
        %5509 = vmatpush1.msra.mxu0 0.0
        %5510 = vmatprep.subr.mxu0 0.0
        %5511 = vmatpush1.msra.mxu0 0.0
        %5512 = vmatprep.subr.mxu0 0.0
        %5513 = vmatpush1.msra.mxu0 0.0
        %5514 = vmatprep.subr.mxu0 0.0
        %5515 = vmatpush1.msra.mxu0 0.0
        %5516 = vmatprep.mubr.f32.mxu0 0.0
        %5517 = vmatmul.mubr.f32.gmra.mrb[0].mxu0 %v5444
        %v5518 = vpop.f32.mrb[0].mxu0
        %v5519 = vadd.f32 0.0, %v5518
        %v5520 = vpop.f32.mrb[0].mxu0
        %v5521 = vadd.f32 0.0, %v5520
        %5522 = vdwg.mxu0
        %v5523 = vmul.f32 %v5519, %v677
        %v5524 = vmul.f32 %v5521, %v681
        %v5525 = vadd.f32 %v5523, 0.0
        %v5526 = vadd.f32 %v5524, 0.0
        %5527 = vrot.lane.b32.xlu0 %v5426, 16
        %v5528 = vpop.permute.xlu0 %5527
        %5529 = vrot.lane.b32.xlu0 %v5428, 16
        %v5530 = vpop.permute.xlu0 %5529
        %5531 = vrot.lane.b32.xlu0 %v5427, 16
        %v5532 = vpop.permute.xlu0 %5531
        %5533 = vrot.lane.b32.xlu0 %v5429, 16
        %v5534 = vpop.permute.xlu0 %5533
        %v5535 = vsel %vm708, %v5528, %v5532
        %v5536 = vsel %vm708, %v5530, %v5534
        %v5537 = vsel %vm708, %v5532, %v5528
        %v5538 = vsel %vm708, %v5534, %v5530
        %s5539 = scalar_lea.vmem %s13, 4
        %v5540 = vld [vmem:[%s5539] sm:$0x7]
        %v5542 = vsel %vm1958, %v5540, 0
        %v5545 = vsel %vm1962, %v5538, 0
        %v5548 = vsel %vm1962, %v5536, 0
        %5550 = vmatprep.subr.mxu0 %v5535
        %5551 = vmatpush1.msra.mxu0 %v5537
        %5552 = vmatprep.subr.mxu0 %v5548
        %5553 = vmatpush1.msra.mxu0 %v5545
        %5554 = vmatprep.subr.mxu0 0.0
        %5555 = vmatpush1.msra.mxu0 0.0
        %5556 = vmatprep.subr.mxu0 0.0
        %5557 = vmatpush1.msra.mxu0 0.0
        %5558 = vmatprep.subr.mxu0 0.0
        %5559 = vmatpush1.msra.mxu0 0.0
        %5560 = vmatprep.subr.mxu0 0.0
        %5561 = vmatpush1.msra.mxu0 0.0
        %5562 = vmatprep.subr.mxu0 0.0
        %5563 = vmatpush1.msra.mxu0 0.0
        %5564 = vmatprep.subr.mxu0 0.0
        %5565 = vmatpush1.msra.mxu0 0.0
        %5566 = vmatprep.subr.mxu0 0.0
        %5567 = vmatpush1.msra.mxu0 0.0
        %5568 = vmatprep.subr.mxu0 0.0
        %5569 = vmatpush1.msra.mxu0 0.0
        %5570 = vmatprep.subr.mxu0 0.0
        %5571 = vmatpush1.msra.mxu0 0.0
        %5572 = vmatprep.subr.mxu0 0.0
        %5573 = vmatpush1.msra.mxu0 0.0
        %5574 = vmatprep.subr.mxu0 0.0
        %5575 = vmatpush1.msra.mxu0 0.0
        %5576 = vmatprep.subr.mxu0 0.0
        %5577 = vmatpush1.msra.mxu0 0.0
        %5578 = vmatprep.subr.mxu0 0.0
        %5579 = vmatpush1.msra.mxu0 0.0
        %5580 = vmatprep.subr.mxu0 0.0
        %5581 = vmatpush1.msra.mxu0 0.0
        %5582 = vmatprep.subr.mxu0 0.0
        %5583 = vmatpush1.msra.mxu0 0.0
        %5584 = vmatprep.subr.mxu0 0.0
        %5585 = vmatpush1.msra.mxu0 0.0
        %5586 = vmatprep.subr.mxu0 0.0
        %5587 = vmatpush1.msra.mxu0 0.0
        %5588 = vmatprep.subr.mxu0 0.0
        %5589 = vmatpush1.msra.mxu0 0.0
        %5590 = vmatprep.subr.mxu0 0.0
        %5591 = vmatpush1.msra.mxu0 0.0
        %5592 = vmatprep.subr.mxu0 0.0
        %5593 = vmatpush1.msra.mxu0 0.0
        %5594 = vmatprep.subr.mxu0 0.0
        %5595 = vmatpush1.msra.mxu0 0.0
        %5596 = vmatprep.subr.mxu0 0.0
        %5597 = vmatpush1.msra.mxu0 0.0
        %5598 = vmatprep.subr.mxu0 0.0
        %5599 = vmatpush1.msra.mxu0 0.0
        %5600 = vmatprep.subr.mxu0 0.0
        %5601 = vmatpush1.msra.mxu0 0.0
        %5602 = vmatprep.subr.mxu0 0.0
        %5603 = vmatpush1.msra.mxu0 0.0
        %5604 = vmatprep.subr.mxu0 0.0
        %5605 = vmatpush1.msra.mxu0 0.0
        %5606 = vmatprep.subr.mxu0 0.0
        %5607 = vmatpush1.msra.mxu0 0.0
        %5608 = vmatprep.subr.mxu0 0.0
        %5609 = vmatpush1.msra.mxu0 0.0
        %5610 = vmatprep.subr.mxu0 0.0
        %5611 = vmatpush1.msra.mxu0 0.0
        %5612 = vmatprep.subr.mxu0 0.0
        %5613 = vmatpush1.msra.mxu0 0.0
        %5614 = vmatprep.mubr.f32.mxu0 0.0
        %5615 = vmatmul.mubr.f32.gmra.mrb[0].mxu0 %v5542
        %v5616 = vpop.f32.mrb[0].mxu0
        %v5617 = vadd.f32 0.0, %v5616
        %v5618 = vpop.f32.mrb[0].mxu0
        %v5619 = vadd.f32 0.0, %v5618
        %5620 = vdwg.mxu0
        %v5621 = vmul.f32 %v5617, %v717
        %v5622 = vmul.f32 %v5619, %v721
        %v5623 = vadd.f32 %v5525, %v5621
        %v5624 = vadd.f32 %v5526, %v5622
        %5625 = vrot.lane.b32.xlu0 %v5426, 15
        %v5626 = vpop.permute.xlu0 %5625
        %5627 = vrot.lane.b32.xlu0 %v5428, 15
        %v5628 = vpop.permute.xlu0 %5627
        %5629 = vrot.lane.b32.xlu0 %v5427, 15
        %v5630 = vpop.permute.xlu0 %5629
        %5631 = vrot.lane.b32.xlu0 %v5429, 15
        %v5632 = vpop.permute.xlu0 %5631
        %v5633 = vsel %vm749, %v5626, %v5630
        %v5634 = vsel %vm749, %v5628, %v5632
        %v5635 = vsel %vm749, %v5630, %v5626
        %v5636 = vsel %vm749, %v5632, %v5628
        %s5637 = scalar_lea.vmem %s13, 8
        %v5638 = vld [vmem:[%s5637] sm:$0x7]
        %v5640 = vsel %vm1958, %v5638, 0
        %v5643 = vsel %vm1962, %v5636, 0
        %v5646 = vsel %vm1962, %v5634, 0
        %5648 = vmatprep.subr.mxu0 %v5633
        %5649 = vmatpush1.msra.mxu0 %v5635
        %5650 = vmatprep.subr.mxu0 %v5646
        %5651 = vmatpush1.msra.mxu0 %v5643
        %5652 = vmatprep.subr.mxu0 0.0
        %5653 = vmatpush1.msra.mxu0 0.0
        %5654 = vmatprep.subr.mxu0 0.0
        %5655 = vmatpush1.msra.mxu0 0.0
        %5656 = vmatprep.subr.mxu0 0.0
        %5657 = vmatpush1.msra.mxu0 0.0
        %5658 = vmatprep.subr.mxu0 0.0
        %5659 = vmatpush1.msra.mxu0 0.0
        %5660 = vmatprep.subr.mxu0 0.0
        %5661 = vmatpush1.msra.mxu0 0.0
        %5662 = vmatprep.subr.mxu0 0.0
        %5663 = vmatpush1.msra.mxu0 0.0
        %5664 = vmatprep.subr.mxu0 0.0
        %5665 = vmatpush1.msra.mxu0 0.0
        %5666 = vmatprep.subr.mxu0 0.0
        %5667 = vmatpush1.msra.mxu0 0.0
        %5668 = vmatprep.subr.mxu0 0.0
        %5669 = vmatpush1.msra.mxu0 0.0
        %5670 = vmatprep.subr.mxu0 0.0
        %5671 = vmatpush1.msra.mxu0 0.0
        %5672 = vmatprep.subr.mxu0 0.0
        %5673 = vmatpush1.msra.mxu0 0.0
        %5674 = vmatprep.subr.mxu0 0.0
        %5675 = vmatpush1.msra.mxu0 0.0
        %5676 = vmatprep.subr.mxu0 0.0
        %5677 = vmatpush1.msra.mxu0 0.0
        %5678 = vmatprep.subr.mxu0 0.0
        %5679 = vmatpush1.msra.mxu0 0.0
        %5680 = vmatprep.subr.mxu0 0.0
        %5681 = vmatpush1.msra.mxu0 0.0
        %5682 = vmatprep.subr.mxu0 0.0
        %5683 = vmatpush1.msra.mxu0 0.0
        %5684 = vmatprep.subr.mxu0 0.0
        %5685 = vmatpush1.msra.mxu0 0.0
        %5686 = vmatprep.subr.mxu0 0.0
        %5687 = vmatpush1.msra.mxu0 0.0
        %5688 = vmatprep.subr.mxu0 0.0
        %5689 = vmatpush1.msra.mxu0 0.0
        %5690 = vmatprep.subr.mxu0 0.0
        %5691 = vmatpush1.msra.mxu0 0.0
        %5692 = vmatprep.subr.mxu0 0.0
        %5693 = vmatpush1.msra.mxu0 0.0
        %5694 = vmatprep.subr.mxu0 0.0
        %5695 = vmatpush1.msra.mxu0 0.0
        %5696 = vmatprep.subr.mxu0 0.0
        %5697 = vmatpush1.msra.mxu0 0.0
        %5698 = vmatprep.subr.mxu0 0.0
        %5699 = vmatpush1.msra.mxu0 0.0
        %5700 = vmatprep.subr.mxu0 0.0
        %5701 = vmatpush1.msra.mxu0 0.0
        %5702 = vmatprep.subr.mxu0 0.0
        %5703 = vmatpush1.msra.mxu0 0.0
        %5704 = vmatprep.subr.mxu0 0.0
        %5705 = vmatpush1.msra.mxu0 0.0
        %5706 = vmatprep.subr.mxu0 0.0
        %5707 = vmatpush1.msra.mxu0 0.0
        %5708 = vmatprep.subr.mxu0 0.0
        %5709 = vmatpush1.msra.mxu0 0.0
        %5710 = vmatprep.subr.mxu0 0.0
        %5711 = vmatpush1.msra.mxu0 0.0
        %5712 = vmatprep.mubr.f32.mxu0 0.0
        %5713 = vmatmul.mubr.f32.gmra.mrb[0].mxu0 %v5640
        %v5714 = vpop.f32.mrb[0].mxu0
        %v5715 = vadd.f32 0.0, %v5714
        %v5716 = vpop.f32.mrb[0].mxu0
        %v5717 = vadd.f32 0.0, %v5716
        %5718 = vdwg.mxu0
        %v5719 = vmul.f32 %v5715, %v758
        %v5720 = vmul.f32 %v5717, %v762
        %v5721 = vadd.f32 %v5623, %v5719
        %v5722 = vadd.f32 %v5624, %v5720
        %5723 = vrot.lane.b32.xlu0 %v5426, 1
        %v5724 = vpop.permute.xlu0 %5723
        %5725 = vrot.lane.b32.xlu0 %v5428, 1
        %v5726 = vpop.permute.xlu0 %5725
        %5727 = vrot.lane.b32.xlu0 %v5427, 1
        %v5728 = vpop.permute.xlu0 %5727
        %5729 = vrot.lane.b32.xlu0 %v5429, 1
        %v5730 = vpop.permute.xlu0 %5729
        %v5731 = vsel %vm790, %v5724, %v5728
        %v5732 = vsel %vm790, %v5726, %v5730
        %v5733 = vsel %vm790, %v5728, %v5724
        %v5734 = vsel %vm790, %v5730, %v5726
        %s5735 = scalar_lea.vmem %s13, 12
        %v5736 = vld [vmem:[%s5735] sm:$0x7]
        %v5738 = vsel %vm1958, %v5736, 0
        %v5741 = vsel %vm1962, %v5734, 0
        %v5744 = vsel %vm1962, %v5732, 0
        %5746 = vmatprep.subr.mxu0 %v5731
        %5747 = vmatpush1.msra.mxu0 %v5733
        %5748 = vmatprep.subr.mxu0 %v5744
        %5749 = vmatpush1.msra.mxu0 %v5741
        %5750 = vmatprep.subr.mxu0 0.0
        %5751 = vmatpush1.msra.mxu0 0.0
        %5752 = vmatprep.subr.mxu0 0.0
        %5753 = vmatpush1.msra.mxu0 0.0
        %5754 = vmatprep.subr.mxu0 0.0
        %5755 = vmatpush1.msra.mxu0 0.0
        %5756 = vmatprep.subr.mxu0 0.0
        %5757 = vmatpush1.msra.mxu0 0.0
        %5758 = vmatprep.subr.mxu0 0.0
        %5759 = vmatpush1.msra.mxu0 0.0
        %5760 = vmatprep.subr.mxu0 0.0
        %5761 = vmatpush1.msra.mxu0 0.0
        %5762 = vmatprep.subr.mxu0 0.0
        %5763 = vmatpush1.msra.mxu0 0.0
        %5764 = vmatprep.subr.mxu0 0.0
        %5765 = vmatpush1.msra.mxu0 0.0
        %5766 = vmatprep.subr.mxu0 0.0
        %5767 = vmatpush1.msra.mxu0 0.0
        %5768 = vmatprep.subr.mxu0 0.0
        %5769 = vmatpush1.msra.mxu0 0.0
        %5770 = vmatprep.subr.mxu0 0.0
        %5771 = vmatpush1.msra.mxu0 0.0
        %5772 = vmatprep.subr.mxu0 0.0
        %5773 = vmatpush1.msra.mxu0 0.0
        %5774 = vmatprep.subr.mxu0 0.0
        %5775 = vmatpush1.msra.mxu0 0.0
        %5776 = vmatprep.subr.mxu0 0.0
        %5777 = vmatpush1.msra.mxu0 0.0
        %5778 = vmatprep.subr.mxu0 0.0
        %5779 = vmatpush1.msra.mxu0 0.0
        %5780 = vmatprep.subr.mxu0 0.0
        %5781 = vmatpush1.msra.mxu0 0.0
        %5782 = vmatprep.subr.mxu0 0.0
        %5783 = vmatpush1.msra.mxu0 0.0
        %5784 = vmatprep.subr.mxu0 0.0
        %5785 = vmatpush1.msra.mxu0 0.0
        %5786 = vmatprep.subr.mxu0 0.0
        %5787 = vmatpush1.msra.mxu0 0.0
        %5788 = vmatprep.subr.mxu0 0.0
        %5789 = vmatpush1.msra.mxu0 0.0
        %5790 = vmatprep.subr.mxu0 0.0
        %5791 = vmatpush1.msra.mxu0 0.0
        %5792 = vmatprep.subr.mxu0 0.0
        %5793 = vmatpush1.msra.mxu0 0.0
        %5794 = vmatprep.subr.mxu0 0.0
        %5795 = vmatpush1.msra.mxu0 0.0
        %5796 = vmatprep.subr.mxu0 0.0
        %5797 = vmatpush1.msra.mxu0 0.0
        %5798 = vmatprep.subr.mxu0 0.0
        %5799 = vmatpush1.msra.mxu0 0.0
        %5800 = vmatprep.subr.mxu0 0.0
        %5801 = vmatpush1.msra.mxu0 0.0
        %5802 = vmatprep.subr.mxu0 0.0
        %5803 = vmatpush1.msra.mxu0 0.0
        %5804 = vmatprep.subr.mxu0 0.0
        %5805 = vmatpush1.msra.mxu0 0.0
        %5806 = vmatprep.subr.mxu0 0.0
        %5807 = vmatpush1.msra.mxu0 0.0
        %5808 = vmatprep.subr.mxu0 0.0
        %5809 = vmatpush1.msra.mxu0 0.0
        %5810 = vmatprep.mubr.f32.mxu0 0.0
        %5811 = vmatmul.mubr.f32.gmra.mrb[0].mxu0 %v5738
        %v5812 = vpop.f32.mrb[0].mxu0
        %v5813 = vadd.f32 0.0, %v5812
        %v5814 = vpop.f32.mrb[0].mxu0
        %v5815 = vadd.f32 0.0, %v5814
        %5816 = vdwg.mxu0
        %v5817 = vmul.f32 %v5813, %v799
        %v5818 = vmul.f32 %v5815, %v803
        %v5819 = vadd.f32 %v5721, %v5817
        %v5820 = vadd.f32 %v5722, %v5818
        %s5821 = scalar_lea.vmem %s13, 16
        %v5822 = vld [vmem:[%s5821] sm:$0x7]
        %v5824 = vsel %vm1958, %v5822, 0
        %v5827 = vsel %vm1962, %v5428, 0
        %v5830 = vsel %vm1962, %v5429, 0
        %5832 = vmatprep.subr.mxu0 %v5427
        %5833 = vmatpush1.msra.mxu0 %v5426
        %5834 = vmatprep.subr.mxu0 %v5830
        %5835 = vmatpush1.msra.mxu0 %v5827
        %5836 = vmatprep.subr.mxu0 0.0
        %5837 = vmatpush1.msra.mxu0 0.0
        %5838 = vmatprep.subr.mxu0 0.0
        %5839 = vmatpush1.msra.mxu0 0.0
        %5840 = vmatprep.subr.mxu0 0.0
        %5841 = vmatpush1.msra.mxu0 0.0
        %5842 = vmatprep.subr.mxu0 0.0
        %5843 = vmatpush1.msra.mxu0 0.0
        %5844 = vmatprep.subr.mxu0 0.0
        %5845 = vmatpush1.msra.mxu0 0.0
        %5846 = vmatprep.subr.mxu0 0.0
        %5847 = vmatpush1.msra.mxu0 0.0
        %5848 = vmatprep.subr.mxu0 0.0
        %5849 = vmatpush1.msra.mxu0 0.0
        %5850 = vmatprep.subr.mxu0 0.0
        %5851 = vmatpush1.msra.mxu0 0.0
        %5852 = vmatprep.subr.mxu0 0.0
        %5853 = vmatpush1.msra.mxu0 0.0
        %5854 = vmatprep.subr.mxu0 0.0
        %5855 = vmatpush1.msra.mxu0 0.0
        %5856 = vmatprep.subr.mxu0 0.0
        %5857 = vmatpush1.msra.mxu0 0.0
        %5858 = vmatprep.subr.mxu0 0.0
        %5859 = vmatpush1.msra.mxu0 0.0
        %5860 = vmatprep.subr.mxu0 0.0
        %5861 = vmatpush1.msra.mxu0 0.0
        %5862 = vmatprep.subr.mxu0 0.0
        %5863 = vmatpush1.msra.mxu0 0.0
        %5864 = vmatprep.subr.mxu0 0.0
        %5865 = vmatpush1.msra.mxu0 0.0
        %5866 = vmatprep.subr.mxu0 0.0
        %5867 = vmatpush1.msra.mxu0 0.0
        %5868 = vmatprep.subr.mxu0 0.0
        %5869 = vmatpush1.msra.mxu0 0.0
        %5870 = vmatprep.subr.mxu0 0.0
        %5871 = vmatpush1.msra.mxu0 0.0
        %5872 = vmatprep.subr.mxu0 0.0
        %5873 = vmatpush1.msra.mxu0 0.0
        %5874 = vmatprep.subr.mxu0 0.0
        %5875 = vmatpush1.msra.mxu0 0.0
        %5876 = vmatprep.subr.mxu0 0.0
        %5877 = vmatpush1.msra.mxu0 0.0
        %5878 = vmatprep.subr.mxu0 0.0
        %5879 = vmatpush1.msra.mxu0 0.0
        %5880 = vmatprep.subr.mxu0 0.0
        %5881 = vmatpush1.msra.mxu0 0.0
        %5882 = vmatprep.subr.mxu0 0.0
        %5883 = vmatpush1.msra.mxu0 0.0
        %5884 = vmatprep.subr.mxu0 0.0
        %5885 = vmatpush1.msra.mxu0 0.0
        %5886 = vmatprep.subr.mxu0 0.0
        %5887 = vmatpush1.msra.mxu0 0.0
        %5888 = vmatprep.subr.mxu0 0.0
        %5889 = vmatpush1.msra.mxu0 0.0
        %5890 = vmatprep.subr.mxu0 0.0
        %5891 = vmatpush1.msra.mxu0 0.0
        %5892 = vmatprep.subr.mxu0 0.0
        %5893 = vmatpush1.msra.mxu0 0.0
        %5894 = vmatprep.subr.mxu0 0.0
        %5895 = vmatpush1.msra.mxu0 0.0
        %5896 = vmatprep.mubr.f32.mxu0 0.0
        %5897 = vmatmul.mubr.f32.gmra.mrb[0].mxu0 %v5824
        %v5898 = vpop.f32.mrb[0].mxu0
        %v5899 = vadd.f32 0.0, %v5898
        %v5900 = vpop.f32.mrb[0].mxu0
        %v5901 = vadd.f32 0.0, %v5900
        %5902 = vdwg.mxu0
        %v5903 = vadd.f32 %v5819, %v5899
        %v5904 = vadd.f32 %v5820, %v5901
        %5905 = vrot.lane.b32.xlu0 %v5426, 127
        %v5906 = vpop.permute.xlu0 %5905
        %5907 = vrot.lane.b32.xlu0 %v5428, 127
        %v5908 = vpop.permute.xlu0 %5907
        %5909 = vrot.lane.b32.xlu0 %v5427, 127
        %v5910 = vpop.permute.xlu0 %5909
        %5911 = vrot.lane.b32.xlu0 %v5429, 127
        %v5912 = vpop.permute.xlu0 %5911
        %v5913 = vsel %vm842, %v5906, %v5910
        %v5914 = vsel %vm842, %v5908, %v5912
        %v5915 = vsel %vm842, %v5910, %v5906
        %v5916 = vsel %vm842, %v5912, %v5908
        %s5917 = scalar_lea.vmem %s13, 20
        %v5918 = vld [vmem:[%s5917] sm:$0x7]
        %v5920 = vsel %vm1958, %v5918, 0
        %v5923 = vsel %vm1962, %v5914, 0
        %v5926 = vsel %vm1962, %v5916, 0
        %5928 = vmatprep.subr.mxu0 %v5915
        %5929 = vmatpush1.msra.mxu0 %v5913
        %5930 = vmatprep.subr.mxu0 %v5926
        %5931 = vmatpush1.msra.mxu0 %v5923
        %5932 = vmatprep.subr.mxu0 0.0
        %5933 = vmatpush1.msra.mxu0 0.0
        %5934 = vmatprep.subr.mxu0 0.0
        %5935 = vmatpush1.msra.mxu0 0.0
        %5936 = vmatprep.subr.mxu0 0.0
        %5937 = vmatpush1.msra.mxu0 0.0
        %5938 = vmatprep.subr.mxu0 0.0
        %5939 = vmatpush1.msra.mxu0 0.0
        %5940 = vmatprep.subr.mxu0 0.0
        %5941 = vmatpush1.msra.mxu0 0.0
        %5942 = vmatprep.subr.mxu0 0.0
        %5943 = vmatpush1.msra.mxu0 0.0
        %5944 = vmatprep.subr.mxu0 0.0
        %5945 = vmatpush1.msra.mxu0 0.0
        %5946 = vmatprep.subr.mxu0 0.0
        %5947 = vmatpush1.msra.mxu0 0.0
        %5948 = vmatprep.subr.mxu0 0.0
        %5949 = vmatpush1.msra.mxu0 0.0
        %5950 = vmatprep.subr.mxu0 0.0
        %5951 = vmatpush1.msra.mxu0 0.0
        %5952 = vmatprep.subr.mxu0 0.0
        %5953 = vmatpush1.msra.mxu0 0.0
        %5954 = vmatprep.subr.mxu0 0.0
        %5955 = vmatpush1.msra.mxu0 0.0
        %5956 = vmatprep.subr.mxu0 0.0
        %5957 = vmatpush1.msra.mxu0 0.0
        %5958 = vmatprep.subr.mxu0 0.0
        %5959 = vmatpush1.msra.mxu0 0.0
        %5960 = vmatprep.subr.mxu0 0.0
        %5961 = vmatpush1.msra.mxu0 0.0
        %5962 = vmatprep.subr.mxu0 0.0
        %5963 = vmatpush1.msra.mxu0 0.0
        %5964 = vmatprep.subr.mxu0 0.0
        %5965 = vmatpush1.msra.mxu0 0.0
        %5966 = vmatprep.subr.mxu0 0.0
        %5967 = vmatpush1.msra.mxu0 0.0
        %5968 = vmatprep.subr.mxu0 0.0
        %5969 = vmatpush1.msra.mxu0 0.0
        %5970 = vmatprep.subr.mxu0 0.0
        %5971 = vmatpush1.msra.mxu0 0.0
        %5972 = vmatprep.subr.mxu0 0.0
        %5973 = vmatpush1.msra.mxu0 0.0
        %5974 = vmatprep.subr.mxu0 0.0
        %5975 = vmatpush1.msra.mxu0 0.0
        %5976 = vmatprep.subr.mxu0 0.0
        %5977 = vmatpush1.msra.mxu0 0.0
        %5978 = vmatprep.subr.mxu0 0.0
        %5979 = vmatpush1.msra.mxu0 0.0
        %5980 = vmatprep.subr.mxu0 0.0
        %5981 = vmatpush1.msra.mxu0 0.0
        %5982 = vmatprep.subr.mxu0 0.0
        %5983 = vmatpush1.msra.mxu0 0.0
        %5984 = vmatprep.subr.mxu0 0.0
        %5985 = vmatpush1.msra.mxu0 0.0
        %5986 = vmatprep.subr.mxu0 0.0
        %5987 = vmatpush1.msra.mxu0 0.0
        %5988 = vmatprep.subr.mxu0 0.0
        %5989 = vmatpush1.msra.mxu0 0.0
        %5990 = vmatprep.subr.mxu0 0.0
        %5991 = vmatpush1.msra.mxu0 0.0
        %5992 = vmatprep.mubr.f32.mxu0 0.0
        %5993 = vmatmul.mubr.f32.gmra.mrb[0].mxu0 %v5920
        %v5994 = vpop.f32.mrb[0].mxu0
        %v5995 = vadd.f32 0.0, %v5994
        %v5996 = vpop.f32.mrb[0].mxu0
        %v5997 = vadd.f32 0.0, %v5996
        %5998 = vdwg.mxu0
        %v5999 = vmul.f32 %v5995, %v851
        %v6000 = vmul.f32 %v5997, %v855
        %v6001 = vadd.f32 %v5903, %v5999
        %v6002 = vadd.f32 %v5904, %v6000
        %6003 = vrot.lane.b32.xlu0 %v5426, 113
        %v6004 = vpop.permute.xlu0 %6003
        %6005 = vrot.lane.b32.xlu0 %v5428, 113
        %v6006 = vpop.permute.xlu0 %6005
        %6007 = vrot.lane.b32.xlu0 %v5427, 113
        %v6008 = vpop.permute.xlu0 %6007
        %6009 = vrot.lane.b32.xlu0 %v5429, 113
        %v6010 = vpop.permute.xlu0 %6009
        %v6011 = vsel %vm883, %v6004, %v6008
        %v6012 = vsel %vm883, %v6006, %v6010
        %v6013 = vsel %vm883, %v6008, %v6004
        %v6014 = vsel %vm883, %v6010, %v6006
        %s6015 = scalar_lea.vmem %s13, 24
        %v6016 = vld [vmem:[%s6015] sm:$0x7]
        %v6018 = vsel %vm1958, %v6016, 0
        %v6021 = vsel %vm1962, %v6012, 0
        %v6024 = vsel %vm1962, %v6014, 0
        %6026 = vmatprep.subr.mxu0 %v6013
        %6027 = vmatpush1.msra.mxu0 %v6011
        %6028 = vmatprep.subr.mxu0 %v6024
        %6029 = vmatpush1.msra.mxu0 %v6021
        %6030 = vmatprep.subr.mxu0 0.0
        %6031 = vmatpush1.msra.mxu0 0.0
        %6032 = vmatprep.subr.mxu0 0.0
        %6033 = vmatpush1.msra.mxu0 0.0
        %6034 = vmatprep.subr.mxu0 0.0
        %6035 = vmatpush1.msra.mxu0 0.0
        %6036 = vmatprep.subr.mxu0 0.0
        %6037 = vmatpush1.msra.mxu0 0.0
        %6038 = vmatprep.subr.mxu0 0.0
        %6039 = vmatpush1.msra.mxu0 0.0
        %6040 = vmatprep.subr.mxu0 0.0
        %6041 = vmatpush1.msra.mxu0 0.0
        %6042 = vmatprep.subr.mxu0 0.0
        %6043 = vmatpush1.msra.mxu0 0.0
        %6044 = vmatprep.subr.mxu0 0.0
        %6045 = vmatpush1.msra.mxu0 0.0
        %6046 = vmatprep.subr.mxu0 0.0
        %6047 = vmatpush1.msra.mxu0 0.0
        %6048 = vmatprep.subr.mxu0 0.0
        %6049 = vmatpush1.msra.mxu0 0.0
        %6050 = vmatprep.subr.mxu0 0.0
        %6051 = vmatpush1.msra.mxu0 0.0
        %6052 = vmatprep.subr.mxu0 0.0
        %6053 = vmatpush1.msra.mxu0 0.0
        %6054 = vmatprep.subr.mxu0 0.0
        %6055 = vmatpush1.msra.mxu0 0.0
        %6056 = vmatprep.subr.mxu0 0.0
        %6057 = vmatpush1.msra.mxu0 0.0
        %6058 = vmatprep.subr.mxu0 0.0
        %6059 = vmatpush1.msra.mxu0 0.0
        %6060 = vmatprep.subr.mxu0 0.0
        %6061 = vmatpush1.msra.mxu0 0.0
        %6062 = vmatprep.subr.mxu0 0.0
        %6063 = vmatpush1.msra.mxu0 0.0
        %6064 = vmatprep.subr.mxu0 0.0
        %6065 = vmatpush1.msra.mxu0 0.0
        %6066 = vmatprep.subr.mxu0 0.0
        %6067 = vmatpush1.msra.mxu0 0.0
        %6068 = vmatprep.subr.mxu0 0.0
        %6069 = vmatpush1.msra.mxu0 0.0
        %6070 = vmatprep.subr.mxu0 0.0
        %6071 = vmatpush1.msra.mxu0 0.0
        %6072 = vmatprep.subr.mxu0 0.0
        %6073 = vmatpush1.msra.mxu0 0.0
        %6074 = vmatprep.subr.mxu0 0.0
        %6075 = vmatpush1.msra.mxu0 0.0
        %6076 = vmatprep.subr.mxu0 0.0
        %6077 = vmatpush1.msra.mxu0 0.0
        %6078 = vmatprep.subr.mxu0 0.0
        %6079 = vmatpush1.msra.mxu0 0.0
        %6080 = vmatprep.subr.mxu0 0.0
        %6081 = vmatpush1.msra.mxu0 0.0
        %6082 = vmatprep.subr.mxu0 0.0
        %6083 = vmatpush1.msra.mxu0 0.0
        %6084 = vmatprep.subr.mxu0 0.0
        %6085 = vmatpush1.msra.mxu0 0.0
        %6086 = vmatprep.subr.mxu0 0.0
        %6087 = vmatpush1.msra.mxu0 0.0
        %6088 = vmatprep.subr.mxu0 0.0
        %6089 = vmatpush1.msra.mxu0 0.0
        %6090 = vmatprep.mubr.f32.mxu0 0.0
        %6091 = vmatmul.mubr.f32.gmra.mrb[0].mxu0 %v6018
        %v6092 = vpop.f32.mrb[0].mxu0
        %v6093 = vadd.f32 0.0, %v6092
        %v6094 = vpop.f32.mrb[0].mxu0
        %v6095 = vadd.f32 0.0, %v6094
        %6096 = vdwg.mxu0
        %v6097 = vmul.f32 %v6093, %v892
        %v6098 = vmul.f32 %v6095, %v896
        %v6099 = vadd.f32 %v6001, %v6097
        %v6100 = vadd.f32 %v6002, %v6098
        %6101 = vrot.lane.b32.xlu0 %v5426, 112
        %v6102 = vpop.permute.xlu0 %6101
        %6103 = vrot.lane.b32.xlu0 %v5428, 112
        %v6104 = vpop.permute.xlu0 %6103
        %6105 = vrot.lane.b32.xlu0 %v5427, 112
        %v6106 = vpop.permute.xlu0 %6105
        %6107 = vrot.lane.b32.xlu0 %v5429, 112
        %v6108 = vpop.permute.xlu0 %6107
        %v6109 = vsel %vm924, %v6102, %v6106
        %v6110 = vsel %vm924, %v6104, %v6108
        %v6111 = vsel %vm924, %v6106, %v6102
        %v6112 = vsel %vm924, %v6108, %v6104
        %s6113 = scalar_lea.vmem %s13, 28
        %v6114 = vld [vmem:[%s6113] sm:$0x7]
        %v6116 = vsel %vm1958, %v6114, 0
        %v6119 = vsel %vm1962, %v6110, 0
        %v6122 = vsel %vm1962, %v6112, 0
        %6124 = vmatprep.subr.mxu0 %v6111
        %6125 = vmatpush1.msra.mxu0 %v6109
        %6126 = vmatprep.subr.mxu0 %v6122
        %6127 = vmatpush1.msra.mxu0 %v6119
        %6128 = vmatprep.subr.mxu0 0.0
        %6129 = vmatpush1.msra.mxu0 0.0
        %6130 = vmatprep.subr.mxu0 0.0
        %6131 = vmatpush1.msra.mxu0 0.0
        %6132 = vmatprep.subr.mxu0 0.0
        %6133 = vmatpush1.msra.mxu0 0.0
        %6134 = vmatprep.subr.mxu0 0.0
        %6135 = vmatpush1.msra.mxu0 0.0
        %6136 = vmatprep.subr.mxu0 0.0
        %6137 = vmatpush1.msra.mxu0 0.0
        %6138 = vmatprep.subr.mxu0 0.0
        %6139 = vmatpush1.msra.mxu0 0.0
        %6140 = vmatprep.subr.mxu0 0.0
        %6141 = vmatpush1.msra.mxu0 0.0
        %6142 = vmatprep.subr.mxu0 0.0
        %6143 = vmatpush1.msra.mxu0 0.0
        %6144 = vmatprep.subr.mxu0 0.0
        %6145 = vmatpush1.msra.mxu0 0.0
        %6146 = vmatprep.subr.mxu0 0.0
        %6147 = vmatpush1.msra.mxu0 0.0
        %6148 = vmatprep.subr.mxu0 0.0
        %6149 = vmatpush1.msra.mxu0 0.0
        %6150 = vmatprep.subr.mxu0 0.0
        %6151 = vmatpush1.msra.mxu0 0.0
        %6152 = vmatprep.subr.mxu0 0.0
        %6153 = vmatpush1.msra.mxu0 0.0
        %6154 = vmatprep.subr.mxu0 0.0
        %6155 = vmatpush1.msra.mxu0 0.0
        %6156 = vmatprep.subr.mxu0 0.0
        %6157 = vmatpush1.msra.mxu0 0.0
        %6158 = vmatprep.subr.mxu0 0.0
        %6159 = vmatpush1.msra.mxu0 0.0
        %6160 = vmatprep.subr.mxu0 0.0
        %6161 = vmatpush1.msra.mxu0 0.0
        %6162 = vmatprep.subr.mxu0 0.0
        %6163 = vmatpush1.msra.mxu0 0.0
        %6164 = vmatprep.subr.mxu0 0.0
        %6165 = vmatpush1.msra.mxu0 0.0
        %6166 = vmatprep.subr.mxu0 0.0
        %6167 = vmatpush1.msra.mxu0 0.0
        %6168 = vmatprep.subr.mxu0 0.0
        %6169 = vmatpush1.msra.mxu0 0.0
        %6170 = vmatprep.subr.mxu0 0.0
        %6171 = vmatpush1.msra.mxu0 0.0
        %6172 = vmatprep.subr.mxu0 0.0
        %6173 = vmatpush1.msra.mxu0 0.0
        %6174 = vmatprep.subr.mxu0 0.0
        %6175 = vmatpush1.msra.mxu0 0.0
        %6176 = vmatprep.subr.mxu0 0.0
        %6177 = vmatpush1.msra.mxu0 0.0
        %6178 = vmatprep.subr.mxu0 0.0
        %6179 = vmatpush1.msra.mxu0 0.0
        %6180 = vmatprep.subr.mxu0 0.0
        %6181 = vmatpush1.msra.mxu0 0.0
        %6182 = vmatprep.subr.mxu0 0.0
        %6183 = vmatpush1.msra.mxu0 0.0
        %6184 = vmatprep.subr.mxu0 0.0
        %6185 = vmatpush1.msra.mxu0 0.0
        %6186 = vmatprep.subr.mxu0 0.0
        %6187 = vmatpush1.msra.mxu0 0.0
        %6188 = vmatprep.mubr.f32.mxu0 0.0
        %6189 = vmatmul.mubr.f32.gmra.mrb[0].mxu0 %v6116
        %v6190 = vpop.f32.mrb[0].mxu0
        %v6191 = vadd.f32 0.0, %v6190
        %v6192 = vpop.f32.mrb[0].mxu0
        %v6193 = vadd.f32 0.0, %v6192
        %6194 = vdwg.mxu0
        %v6195 = vmul.f32 %v6191, %v933
        %v6196 = vmul.f32 %v6193, %v937
        %v6197 = vadd.f32 %v6099, %v6195
        %v6198 = vadd.f32 %v6100, %v6196
        %6199 = vrot.lane.b32.xlu0 %v5426, 111
        %v6200 = vpop.permute.xlu0 %6199
        %6201 = vrot.lane.b32.xlu0 %v5428, 111
        %v6202 = vpop.permute.xlu0 %6201
        %6203 = vrot.lane.b32.xlu0 %v5427, 111
        %v6204 = vpop.permute.xlu0 %6203
        %6205 = vrot.lane.b32.xlu0 %v5429, 111
        %v6206 = vpop.permute.xlu0 %6205
        %v6207 = vsel %vm965, %v6200, %v6204
        %v6208 = vsel %vm965, %v6202, %v6206
        %v6209 = vsel %vm965, %v6204, %v6200
        %v6210 = vsel %vm965, %v6206, %v6202
        %s6211 = scalar_lea.vmem %s13, 32
        %v6212 = vld [vmem:[%s6211] sm:$0x7]
        %v6214 = vsel %vm1958, %v6212, 0
        %v6217 = vsel %vm1962, %v6208, 0
        %v6220 = vsel %vm1962, %v6210, 0
        %6222 = vmatprep.subr.mxu0 %v6209
        %6223 = vmatpush1.msra.mxu0 %v6207
        %6224 = vmatprep.subr.mxu0 %v6220
        %6225 = vmatpush1.msra.mxu0 %v6217
        %6226 = vmatprep.subr.mxu0 0.0
        %6227 = vmatpush1.msra.mxu0 0.0
        %6228 = vmatprep.subr.mxu0 0.0
        %6229 = vmatpush1.msra.mxu0 0.0
        %6230 = vmatprep.subr.mxu0 0.0
        %6231 = vmatpush1.msra.mxu0 0.0
        %6232 = vmatprep.subr.mxu0 0.0
        %6233 = vmatpush1.msra.mxu0 0.0
        %6234 = vmatprep.subr.mxu0 0.0
        %6235 = vmatpush1.msra.mxu0 0.0
        %6236 = vmatprep.subr.mxu0 0.0
        %6237 = vmatpush1.msra.mxu0 0.0
        %6238 = vmatprep.subr.mxu0 0.0
        %6239 = vmatpush1.msra.mxu0 0.0
        %6240 = vmatprep.subr.mxu0 0.0
        %6241 = vmatpush1.msra.mxu0 0.0
        %6242 = vmatprep.subr.mxu0 0.0
        %6243 = vmatpush1.msra.mxu0 0.0
        %6244 = vmatprep.subr.mxu0 0.0
        %6245 = vmatpush1.msra.mxu0 0.0
        %6246 = vmatprep.subr.mxu0 0.0
        %6247 = vmatpush1.msra.mxu0 0.0
        %6248 = vmatprep.subr.mxu0 0.0
        %6249 = vmatpush1.msra.mxu0 0.0
        %6250 = vmatprep.subr.mxu0 0.0
        %6251 = vmatpush1.msra.mxu0 0.0
        %6252 = vmatprep.subr.mxu0 0.0
        %6253 = vmatpush1.msra.mxu0 0.0
        %6254 = vmatprep.subr.mxu0 0.0
        %6255 = vmatpush1.msra.mxu0 0.0
        %6256 = vmatprep.subr.mxu0 0.0
        %6257 = vmatpush1.msra.mxu0 0.0
        %6258 = vmatprep.subr.mxu0 0.0
        %6259 = vmatpush1.msra.mxu0 0.0
        %6260 = vmatprep.subr.mxu0 0.0
        %6261 = vmatpush1.msra.mxu0 0.0
        %6262 = vmatprep.subr.mxu0 0.0
        %6263 = vmatpush1.msra.mxu0 0.0
        %6264 = vmatprep.subr.mxu0 0.0
        %6265 = vmatpush1.msra.mxu0 0.0
        %6266 = vmatprep.subr.mxu0 0.0
        %6267 = vmatpush1.msra.mxu0 0.0
        %6268 = vmatprep.subr.mxu0 0.0
        %6269 = vmatpush1.msra.mxu0 0.0
        %6270 = vmatprep.subr.mxu0 0.0
        %6271 = vmatpush1.msra.mxu0 0.0
        %6272 = vmatprep.subr.mxu0 0.0
        %6273 = vmatpush1.msra.mxu0 0.0
        %6274 = vmatprep.subr.mxu0 0.0
        %6275 = vmatpush1.msra.mxu0 0.0
        %6276 = vmatprep.subr.mxu0 0.0
        %6277 = vmatpush1.msra.mxu0 0.0
        %6278 = vmatprep.subr.mxu0 0.0
        %6279 = vmatpush1.msra.mxu0 0.0
        %6280 = vmatprep.subr.mxu0 0.0
        %6281 = vmatpush1.msra.mxu0 0.0
        %6282 = vmatprep.subr.mxu0 0.0
        %6283 = vmatpush1.msra.mxu0 0.0
        %6284 = vmatprep.subr.mxu0 0.0
        %6285 = vmatpush1.msra.mxu0 0.0
        %6286 = vmatprep.mubr.f32.mxu0 0.0
        %6287 = vmatmul.mubr.f32.gmra.mrb[0].mxu0 %v6214
        %v6288 = vpop.f32.mrb[0].mxu0
        %v6289 = vadd.f32 0.0, %v6288
        %v6290 = vpop.f32.mrb[0].mxu0
        %v6291 = vadd.f32 0.0, %v6290
        %6292 = vdwg.mxu0
        %v6293 = vmul.f32 %v6289, %v974
        %v6294 = vmul.f32 %v6291, %v978
        %v6295 = vadd.f32 %v6197, %v6293
        %v6296 = vadd.f32 %v6198, %v6294
        %v6297 = vld [vmem:[%s14] sm:$0x7]
        %6299 = vset.pattern.permute.xlu0 0
        %6300 = vperm.xlu0 %6299, %v6297
        %v6301 = vpop.permute.xlu0 %6300
        %v6303 = vadd.f32 %v6295, %v6301
        %v6304 = vadd.f32 %v6296, %v6301
        %v6305 = vmax.f32 %v6303, 0.0
        %v6306 = vmax.f32 %v6304, 0.0
        %6307 = vrot.lane.b32.xlu0 %v6305, 17
        %v6308 = vpop.permute.xlu0 %6307
        %6309 = vrot.lane.b32.xlu0 %v6306, 17
        %v6310 = vpop.permute.xlu0 %6309
        %v6311 = vsel %vm669, %v6308, %v6310
        %v6312 = vsel %vm669, %v6310, %v6308
        %v6313 = vmul.f32 %v6312, %v677
        %v6314 = vmul.f32 %v6311, %v681
        %v6315 = vld [vmem:[%s15] sm:$0x3f]
        %6316 = vrot.lane.b32.xlu0 %v6305, 16
        %v6317 = vpop.permute.xlu0 %6316
        %6318 = vrot.lane.b32.xlu0 %v6306, 16
        %v6319 = vpop.permute.xlu0 %6318
        %v6320 = vsel %vm708, %v6317, %v6319
        %v6321 = vsel %vm708, %v6319, %v6317
        %v6322 = vmul.f32 %v6321, %v717
        %v6323 = vmul.f32 %v6320, %v721
        %s6324 = scalar_lea.vmem %s15, 8
        %v6325 = vld [vmem:[%s6324] sm:$0x3f]
        %v6327 = vsel %vm2843, %v6325, 0
        %v6330 = vsel %vm2847, %v6322, 0
        %v6333 = vsel %vm2847, %v6323, 0
        %6335 = vmatprep.subr.mxu0 %v6333
        %6336 = vmatpush1.msra.mxu0 %v6330
        %6337 = vmatprep.subr.mxu0 0.0
        %6338 = vmatpush1.msra.mxu0 0.0
        %6339 = vmatprep.subr.mxu0 0.0
        %6340 = vmatpush1.msra.mxu0 0.0
        %6341 = vmatprep.subr.mxu0 0.0
        %6342 = vmatpush1.msra.mxu0 0.0
        %6343 = vmatprep.subr.mxu0 0.0
        %6344 = vmatpush1.msra.mxu0 0.0
        %6345 = vmatprep.subr.mxu0 0.0
        %6346 = vmatpush1.msra.mxu0 0.0
        %6347 = vmatprep.subr.mxu0 0.0
        %6348 = vmatpush1.msra.mxu0 0.0
        %6349 = vmatprep.subr.mxu0 0.0
        %6350 = vmatpush1.msra.mxu0 0.0
        %6351 = vmatprep.subr.mxu0 0.0
        %6352 = vmatpush1.msra.mxu0 0.0
        %6353 = vmatprep.subr.mxu0 0.0
        %6354 = vmatpush1.msra.mxu0 0.0
        %6355 = vmatprep.subr.mxu0 0.0
        %6356 = vmatpush1.msra.mxu0 0.0
        %6357 = vmatprep.subr.mxu0 0.0
        %6358 = vmatpush1.msra.mxu0 0.0
        %6359 = vmatprep.subr.mxu0 0.0
        %6360 = vmatpush1.msra.mxu0 0.0
        %6361 = vmatprep.subr.mxu0 0.0
        %6362 = vmatpush1.msra.mxu0 0.0
        %6363 = vmatprep.subr.mxu0 0.0
        %6364 = vmatpush1.msra.mxu0 0.0
        %6365 = vmatprep.subr.mxu0 0.0
        %6366 = vmatpush1.msra.mxu0 0.0
        %6367 = vmatprep.subr.mxu0 0.0
        %6368 = vmatpush1.msra.mxu0 0.0
        %6369 = vmatprep.subr.mxu0 0.0
        %6370 = vmatpush1.msra.mxu0 0.0
        %6371 = vmatprep.subr.mxu0 0.0
        %6372 = vmatpush1.msra.mxu0 0.0
        %6373 = vmatprep.subr.mxu0 0.0
        %6374 = vmatpush1.msra.mxu0 0.0
        %6375 = vmatprep.subr.mxu0 0.0
        %6376 = vmatpush1.msra.mxu0 0.0
        %6377 = vmatprep.subr.mxu0 0.0
        %6378 = vmatpush1.msra.mxu0 0.0
        %6379 = vmatprep.subr.mxu0 0.0
        %6380 = vmatpush1.msra.mxu0 0.0
        %6381 = vmatprep.subr.mxu0 0.0
        %6382 = vmatpush1.msra.mxu0 0.0
        %6383 = vmatprep.subr.mxu0 0.0
        %6384 = vmatpush1.msra.mxu0 0.0
        %6385 = vmatprep.subr.mxu0 0.0
        %6386 = vmatpush1.msra.mxu0 0.0
        %6387 = vmatprep.subr.mxu0 0.0
        %6388 = vmatpush1.msra.mxu0 0.0
        %6389 = vmatprep.subr.mxu0 0.0
        %6390 = vmatpush1.msra.mxu0 0.0
        %6391 = vmatprep.subr.mxu0 0.0
        %6392 = vmatpush1.msra.mxu0 0.0
        %6393 = vmatprep.subr.mxu0 0.0
        %6394 = vmatpush1.msra.mxu0 0.0
        %6395 = vmatprep.subr.mxu0 0.0
        %6396 = vmatpush1.msra.mxu0 0.0
        %6397 = vmatprep.subr.mxu0 0.0
        %6398 = vmatpush1.msra.mxu0 0.0
        %6399 = vmatprep.mubr.f32.mxu0 0.0
        %6400 = vmatmul.mubr.f32.gmra.mrb[0].mxu0 %v6327
        %v6401 = vpop.f32.mrb[0].mxu0
        %v6402 = vadd.f32 0.0, %v6401
        %v6403 = vpop.f32.mrb[0].mxu0
        %v6404 = vadd.f32 0.0, %v6403
        %6405 = vdwg.mxu0
        %v6407 = vsel %vm2843, %v6315, 0
        %v6410 = vsel %vm2847, %v6313, 0
        %v6413 = vsel %vm2847, %v6314, 0
        %6415 = vmatprep.subr.mxu0 %v6413
        %6416 = vmatpush1.msra.mxu0 %v6410
        %6417 = vmatprep.subr.mxu0 0.0
        %6418 = vmatpush1.msra.mxu0 0.0
        %6419 = vmatprep.subr.mxu0 0.0
        %6420 = vmatpush1.msra.mxu0 0.0
        %6421 = vmatprep.subr.mxu0 0.0
        %6422 = vmatpush1.msra.mxu0 0.0
        %6423 = vmatprep.subr.mxu0 0.0
        %6424 = vmatpush1.msra.mxu0 0.0
        %6425 = vmatprep.subr.mxu0 0.0
        %6426 = vmatpush1.msra.mxu0 0.0
        %6427 = vmatprep.subr.mxu0 0.0
        %6428 = vmatpush1.msra.mxu0 0.0
        %6429 = vmatprep.subr.mxu0 0.0
        %6430 = vmatpush1.msra.mxu0 0.0
        %6431 = vmatprep.subr.mxu0 0.0
        %6432 = vmatpush1.msra.mxu0 0.0
        %6433 = vmatprep.subr.mxu0 0.0
        %6434 = vmatpush1.msra.mxu0 0.0
        %6435 = vmatprep.subr.mxu0 0.0
        %6436 = vmatpush1.msra.mxu0 0.0
        %6437 = vmatprep.subr.mxu0 0.0
        %6438 = vmatpush1.msra.mxu0 0.0
        %6439 = vmatprep.subr.mxu0 0.0
        %6440 = vmatpush1.msra.mxu0 0.0
        %6441 = vmatprep.subr.mxu0 0.0
        %6442 = vmatpush1.msra.mxu0 0.0
        %6443 = vmatprep.subr.mxu0 0.0
        %6444 = vmatpush1.msra.mxu0 0.0
        %6445 = vmatprep.subr.mxu0 0.0
        %6446 = vmatpush1.msra.mxu0 0.0
        %6447 = vmatprep.subr.mxu0 0.0
        %6448 = vmatpush1.msra.mxu0 0.0
        %6449 = vmatprep.subr.mxu0 0.0
        %6450 = vmatpush1.msra.mxu0 0.0
        %6451 = vmatprep.subr.mxu0 0.0
        %6452 = vmatpush1.msra.mxu0 0.0
        %6453 = vmatprep.subr.mxu0 0.0
        %6454 = vmatpush1.msra.mxu0 0.0
        %6455 = vmatprep.subr.mxu0 0.0
        %6456 = vmatpush1.msra.mxu0 0.0
        %6457 = vmatprep.subr.mxu0 0.0
        %6458 = vmatpush1.msra.mxu0 0.0
        %6459 = vmatprep.subr.mxu0 0.0
        %6460 = vmatpush1.msra.mxu0 0.0
        %6461 = vmatprep.subr.mxu0 0.0
        %6462 = vmatpush1.msra.mxu0 0.0
        %6463 = vmatprep.subr.mxu0 0.0
        %6464 = vmatpush1.msra.mxu0 0.0
        %6465 = vmatprep.subr.mxu0 0.0
        %6466 = vmatpush1.msra.mxu0 0.0
        %6467 = vmatprep.subr.mxu0 0.0
        %6468 = vmatpush1.msra.mxu0 0.0
        %6469 = vmatprep.subr.mxu0 0.0
        %6470 = vmatpush1.msra.mxu0 0.0
        %6471 = vmatprep.subr.mxu0 0.0
        %6472 = vmatpush1.msra.mxu0 0.0
        %6473 = vmatprep.subr.mxu0 0.0
        %6474 = vmatpush1.msra.mxu0 0.0
        %6475 = vmatprep.subr.mxu0 0.0
        %6476 = vmatpush1.msra.mxu0 0.0
        %6477 = vmatprep.subr.mxu0 0.0
        %6478 = vmatpush1.msra.mxu0 0.0
        %6479 = vmatprep.mubr.f32.mxu0 0.0
        %6480 = vmatmul.mubr.f32.gmra.mrb[0].mxu0 %v6407
        %v6481 = vpop.f32.mrb[0].mxu0
        %v6482 = vadd.f32 %v6402, %v6481
        %v6483 = vpop.f32.mrb[0].mxu0
        %v6484 = vadd.f32 %v6404, %v6483
        %6485 = vdwg.mxu0
        %6486 = vrot.lane.b32.xlu0 %v6305, 15
        %v6487 = vpop.permute.xlu0 %6486
        %6488 = vrot.lane.b32.xlu0 %v6306, 15
        %v6489 = vpop.permute.xlu0 %6488
        %v6490 = vsel %vm749, %v6487, %v6489
        %v6491 = vsel %vm749, %v6489, %v6487
        %v6492 = vmul.f32 %v6491, %v758
        %v6493 = vmul.f32 %v6490, %v762
        %s6494 = scalar_lea.vmem %s15, 16
        %v6495 = vld [vmem:[%s6494] sm:$0x3f]
        %v6497 = vsel %vm2843, %v6495, 0
        %v6500 = vsel %vm2847, %v6492, 0
        %v6503 = vsel %vm2847, %v6493, 0
        %6505 = vmatprep.subr.mxu0 %v6503
        %6506 = vmatpush1.msra.mxu0 %v6500
        %6507 = vmatprep.subr.mxu0 0.0
        %6508 = vmatpush1.msra.mxu0 0.0
        %6509 = vmatprep.subr.mxu0 0.0
        %6510 = vmatpush1.msra.mxu0 0.0
        %6511 = vmatprep.subr.mxu0 0.0
        %6512 = vmatpush1.msra.mxu0 0.0
        %6513 = vmatprep.subr.mxu0 0.0
        %6514 = vmatpush1.msra.mxu0 0.0
        %6515 = vmatprep.subr.mxu0 0.0
        %6516 = vmatpush1.msra.mxu0 0.0
        %6517 = vmatprep.subr.mxu0 0.0
        %6518 = vmatpush1.msra.mxu0 0.0
        %6519 = vmatprep.subr.mxu0 0.0
        %6520 = vmatpush1.msra.mxu0 0.0
        %6521 = vmatprep.subr.mxu0 0.0
        %6522 = vmatpush1.msra.mxu0 0.0
        %6523 = vmatprep.subr.mxu0 0.0
        %6524 = vmatpush1.msra.mxu0 0.0
        %6525 = vmatprep.subr.mxu0 0.0
        %6526 = vmatpush1.msra.mxu0 0.0
        %6527 = vmatprep.subr.mxu0 0.0
        %6528 = vmatpush1.msra.mxu0 0.0
        %6529 = vmatprep.subr.mxu0 0.0
        %6530 = vmatpush1.msra.mxu0 0.0
        %6531 = vmatprep.subr.mxu0 0.0
        %6532 = vmatpush1.msra.mxu0 0.0
        %6533 = vmatprep.subr.mxu0 0.0
        %6534 = vmatpush1.msra.mxu0 0.0
        %6535 = vmatprep.subr.mxu0 0.0
        %6536 = vmatpush1.msra.mxu0 0.0
        %6537 = vmatprep.subr.mxu0 0.0
        %6538 = vmatpush1.msra.mxu0 0.0
        %6539 = vmatprep.subr.mxu0 0.0
        %6540 = vmatpush1.msra.mxu0 0.0
        %6541 = vmatprep.subr.mxu0 0.0
        %6542 = vmatpush1.msra.mxu0 0.0
        %6543 = vmatprep.subr.mxu0 0.0
        %6544 = vmatpush1.msra.mxu0 0.0
        %6545 = vmatprep.subr.mxu0 0.0
        %6546 = vmatpush1.msra.mxu0 0.0
        %6547 = vmatprep.subr.mxu0 0.0
        %6548 = vmatpush1.msra.mxu0 0.0
        %6549 = vmatprep.subr.mxu0 0.0
        %6550 = vmatpush1.msra.mxu0 0.0
        %6551 = vmatprep.subr.mxu0 0.0
        %6552 = vmatpush1.msra.mxu0 0.0
        %6553 = vmatprep.subr.mxu0 0.0
        %6554 = vmatpush1.msra.mxu0 0.0
        %6555 = vmatprep.subr.mxu0 0.0
        %6556 = vmatpush1.msra.mxu0 0.0
        %6557 = vmatprep.subr.mxu0 0.0
        %6558 = vmatpush1.msra.mxu0 0.0
        %6559 = vmatprep.subr.mxu0 0.0
        %6560 = vmatpush1.msra.mxu0 0.0
        %6561 = vmatprep.subr.mxu0 0.0
        %6562 = vmatpush1.msra.mxu0 0.0
        %6563 = vmatprep.subr.mxu0 0.0
        %6564 = vmatpush1.msra.mxu0 0.0
        %6565 = vmatprep.subr.mxu0 0.0
        %6566 = vmatpush1.msra.mxu0 0.0
        %6567 = vmatprep.subr.mxu0 0.0
        %6568 = vmatpush1.msra.mxu0 0.0
        %6569 = vmatprep.mubr.f32.mxu0 0.0
        %6570 = vmatmul.mubr.f32.gmra.mrb[0].mxu0 %v6497
        %v6571 = vpop.f32.mrb[0].mxu0
        %v6572 = vadd.f32 0.0, %v6571
        %v6573 = vpop.f32.mrb[0].mxu0
        %v6574 = vadd.f32 0.0, %v6573
        %6575 = vdwg.mxu0
        %v6576 = vadd.f32 %v6482, %v6572
        %v6577 = vadd.f32 %v6484, %v6574
        %6578 = vrot.lane.b32.xlu0 %v6305, 1
        %v6579 = vpop.permute.xlu0 %6578
        %6580 = vrot.lane.b32.xlu0 %v6306, 1
        %v6581 = vpop.permute.xlu0 %6580
        %v6582 = vsel %vm790, %v6579, %v6581
        %v6583 = vsel %vm790, %v6581, %v6579
        %v6584 = vmul.f32 %v6583, %v799
        %v6585 = vmul.f32 %v6582, %v803
        %s6586 = scalar_lea.vmem %s15, 24
        %v6587 = vld [vmem:[%s6586] sm:$0x3f]
        %v6589 = vsel %vm2843, %v6587, 0
        %v6592 = vsel %vm2847, %v6584, 0
        %v6595 = vsel %vm2847, %v6585, 0
        %6597 = vmatprep.subr.mxu0 %v6595
        %6598 = vmatpush1.msra.mxu0 %v6592
        %6599 = vmatprep.subr.mxu0 0.0
        %6600 = vmatpush1.msra.mxu0 0.0
        %6601 = vmatprep.subr.mxu0 0.0
        %6602 = vmatpush1.msra.mxu0 0.0
        %6603 = vmatprep.subr.mxu0 0.0
        %6604 = vmatpush1.msra.mxu0 0.0
        %6605 = vmatprep.subr.mxu0 0.0
        %6606 = vmatpush1.msra.mxu0 0.0
        %6607 = vmatprep.subr.mxu0 0.0
        %6608 = vmatpush1.msra.mxu0 0.0
        %6609 = vmatprep.subr.mxu0 0.0
        %6610 = vmatpush1.msra.mxu0 0.0
        %6611 = vmatprep.subr.mxu0 0.0
        %6612 = vmatpush1.msra.mxu0 0.0
        %6613 = vmatprep.subr.mxu0 0.0
        %6614 = vmatpush1.msra.mxu0 0.0
        %6615 = vmatprep.subr.mxu0 0.0
        %6616 = vmatpush1.msra.mxu0 0.0
        %6617 = vmatprep.subr.mxu0 0.0
        %6618 = vmatpush1.msra.mxu0 0.0
        %6619 = vmatprep.subr.mxu0 0.0
        %6620 = vmatpush1.msra.mxu0 0.0
        %6621 = vmatprep.subr.mxu0 0.0
        %6622 = vmatpush1.msra.mxu0 0.0
        %6623 = vmatprep.subr.mxu0 0.0
        %6624 = vmatpush1.msra.mxu0 0.0
        %6625 = vmatprep.subr.mxu0 0.0
        %6626 = vmatpush1.msra.mxu0 0.0
        %6627 = vmatprep.subr.mxu0 0.0
        %6628 = vmatpush1.msra.mxu0 0.0
        %6629 = vmatprep.subr.mxu0 0.0
        %6630 = vmatpush1.msra.mxu0 0.0
        %6631 = vmatprep.subr.mxu0 0.0
        %6632 = vmatpush1.msra.mxu0 0.0
        %6633 = vmatprep.subr.mxu0 0.0
        %6634 = vmatpush1.msra.mxu0 0.0
        %6635 = vmatprep.subr.mxu0 0.0
        %6636 = vmatpush1.msra.mxu0 0.0
        %6637 = vmatprep.subr.mxu0 0.0
        %6638 = vmatpush1.msra.mxu0 0.0
        %6639 = vmatprep.subr.mxu0 0.0
        %6640 = vmatpush1.msra.mxu0 0.0
        %6641 = vmatprep.subr.mxu0 0.0
        %6642 = vmatpush1.msra.mxu0 0.0
        %6643 = vmatprep.subr.mxu0 0.0
        %6644 = vmatpush1.msra.mxu0 0.0
        %6645 = vmatprep.subr.mxu0 0.0
        %6646 = vmatpush1.msra.mxu0 0.0
        %6647 = vmatprep.subr.mxu0 0.0
        %6648 = vmatpush1.msra.mxu0 0.0
        %6649 = vmatprep.subr.mxu0 0.0
        %6650 = vmatpush1.msra.mxu0 0.0
        %6651 = vmatprep.subr.mxu0 0.0
        %6652 = vmatpush1.msra.mxu0 0.0
        %6653 = vmatprep.subr.mxu0 0.0
        %6654 = vmatpush1.msra.mxu0 0.0
        %6655 = vmatprep.subr.mxu0 0.0
        %6656 = vmatpush1.msra.mxu0 0.0
        %6657 = vmatprep.subr.mxu0 0.0
        %6658 = vmatpush1.msra.mxu0 0.0
        %6659 = vmatprep.subr.mxu0 0.0
        %6660 = vmatpush1.msra.mxu0 0.0
        %6661 = vmatprep.mubr.f32.mxu0 0.0
        %6662 = vmatmul.mubr.f32.gmra.mrb[0].mxu0 %v6589
        %v6663 = vpop.f32.mrb[0].mxu0
        %v6664 = vadd.f32 0.0, %v6663
        %v6665 = vpop.f32.mrb[0].mxu0
        %v6666 = vadd.f32 0.0, %v6665
        %6667 = vdwg.mxu0
        %v6668 = vadd.f32 %v6576, %v6664
        %v6669 = vadd.f32 %v6577, %v6666
        %s6670 = scalar_lea.vmem %s15, 32
        %v6671 = vld [vmem:[%s6670] sm:$0x3f]
        %v6673 = vsel %vm2843, %v6671, 0
        %v6676 = vsel %vm2847, %v6305, 0
        %v6679 = vsel %vm2847, %v6306, 0
        %6681 = vmatprep.subr.mxu0 %v6679
        %6682 = vmatpush1.msra.mxu0 %v6676
        %6683 = vmatprep.subr.mxu0 0.0
        %6684 = vmatpush1.msra.mxu0 0.0
        %6685 = vmatprep.subr.mxu0 0.0
        %6686 = vmatpush1.msra.mxu0 0.0
        %6687 = vmatprep.subr.mxu0 0.0
        %6688 = vmatpush1.msra.mxu0 0.0
        %6689 = vmatprep.subr.mxu0 0.0
        %6690 = vmatpush1.msra.mxu0 0.0
        %6691 = vmatprep.subr.mxu0 0.0
        %6692 = vmatpush1.msra.mxu0 0.0
        %6693 = vmatprep.subr.mxu0 0.0
        %6694 = vmatpush1.msra.mxu0 0.0
        %6695 = vmatprep.subr.mxu0 0.0
        %6696 = vmatpush1.msra.mxu0 0.0
        %6697 = vmatprep.subr.mxu0 0.0
        %6698 = vmatpush1.msra.mxu0 0.0
        %6699 = vmatprep.subr.mxu0 0.0
        %6700 = vmatpush1.msra.mxu0 0.0
        %6701 = vmatprep.subr.mxu0 0.0
        %6702 = vmatpush1.msra.mxu0 0.0
        %6703 = vmatprep.subr.mxu0 0.0
        %6704 = vmatpush1.msra.mxu0 0.0
        %6705 = vmatprep.subr.mxu0 0.0
        %6706 = vmatpush1.msra.mxu0 0.0
        %6707 = vmatprep.subr.mxu0 0.0
        %6708 = vmatpush1.msra.mxu0 0.0
        %6709 = vmatprep.subr.mxu0 0.0
        %6710 = vmatpush1.msra.mxu0 0.0
        %6711 = vmatprep.subr.mxu0 0.0
        %6712 = vmatpush1.msra.mxu0 0.0
        %6713 = vmatprep.subr.mxu0 0.0
        %6714 = vmatpush1.msra.mxu0 0.0
        %6715 = vmatprep.subr.mxu0 0.0
        %6716 = vmatpush1.msra.mxu0 0.0
        %6717 = vmatprep.subr.mxu0 0.0
        %6718 = vmatpush1.msra.mxu0 0.0
        %6719 = vmatprep.subr.mxu0 0.0
        %6720 = vmatpush1.msra.mxu0 0.0
        %6721 = vmatprep.subr.mxu0 0.0
        %6722 = vmatpush1.msra.mxu0 0.0
        %6723 = vmatprep.subr.mxu0 0.0
        %6724 = vmatpush1.msra.mxu0 0.0
        %6725 = vmatprep.subr.mxu0 0.0
        %6726 = vmatpush1.msra.mxu0 0.0
        %6727 = vmatprep.subr.mxu0 0.0
        %6728 = vmatpush1.msra.mxu0 0.0
        %6729 = vmatprep.subr.mxu0 0.0
        %6730 = vmatpush1.msra.mxu0 0.0
        %6731 = vmatprep.subr.mxu0 0.0
        %6732 = vmatpush1.msra.mxu0 0.0
        %6733 = vmatprep.subr.mxu0 0.0
        %6734 = vmatpush1.msra.mxu0 0.0
        %6735 = vmatprep.subr.mxu0 0.0
        %6736 = vmatpush1.msra.mxu0 0.0
        %6737 = vmatprep.subr.mxu0 0.0
        %6738 = vmatpush1.msra.mxu0 0.0
        %6739 = vmatprep.subr.mxu0 0.0
        %6740 = vmatpush1.msra.mxu0 0.0
        %6741 = vmatprep.subr.mxu0 0.0
        %6742 = vmatpush1.msra.mxu0 0.0
        %6743 = vmatprep.subr.mxu0 0.0
        %6744 = vmatpush1.msra.mxu0 0.0
        %6745 = vmatprep.mubr.f32.mxu0 0.0
        %6746 = vmatmul.mubr.f32.gmra.mrb[0].mxu0 %v6673
        %v6747 = vpop.f32.mrb[0].mxu0
        %v6748 = vadd.f32 0.0, %v6747
        %v6749 = vpop.f32.mrb[0].mxu0
        %v6750 = vadd.f32 0.0, %v6749
        %6751 = vdwg.mxu0
        %v6752 = vadd.f32 %v6668, %v6748
        %v6753 = vadd.f32 %v6669, %v6750
        %6754 = vrot.lane.b32.xlu0 %v6305, 127
        %v6755 = vpop.permute.xlu0 %6754
        %6756 = vrot.lane.b32.xlu0 %v6306, 127
        %v6757 = vpop.permute.xlu0 %6756
        %v6758 = vsel %vm842, %v6755, %v6757
        %v6759 = vsel %vm842, %v6757, %v6755
        %v6760 = vmul.f32 %v6758, %v851
        %v6761 = vmul.f32 %v6759, %v855
        %s6762 = scalar_lea.vmem %s15, 40
        %v6763 = vld [vmem:[%s6762] sm:$0x3f]
        %v6765 = vsel %vm2843, %v6763, 0
        %v6768 = vsel %vm2847, %v6760, 0
        %v6771 = vsel %vm2847, %v6761, 0
        %6773 = vmatprep.subr.mxu0 %v6771
        %6774 = vmatpush1.msra.mxu0 %v6768
        %6775 = vmatprep.subr.mxu0 0.0
        %6776 = vmatpush1.msra.mxu0 0.0
        %6777 = vmatprep.subr.mxu0 0.0
        %6778 = vmatpush1.msra.mxu0 0.0
        %6779 = vmatprep.subr.mxu0 0.0
        %6780 = vmatpush1.msra.mxu0 0.0
        %6781 = vmatprep.subr.mxu0 0.0
        %6782 = vmatpush1.msra.mxu0 0.0
        %6783 = vmatprep.subr.mxu0 0.0
        %6784 = vmatpush1.msra.mxu0 0.0
        %6785 = vmatprep.subr.mxu0 0.0
        %6786 = vmatpush1.msra.mxu0 0.0
        %6787 = vmatprep.subr.mxu0 0.0
        %6788 = vmatpush1.msra.mxu0 0.0
        %6789 = vmatprep.subr.mxu0 0.0
        %6790 = vmatpush1.msra.mxu0 0.0
        %6791 = vmatprep.subr.mxu0 0.0
        %6792 = vmatpush1.msra.mxu0 0.0
        %6793 = vmatprep.subr.mxu0 0.0
        %6794 = vmatpush1.msra.mxu0 0.0
        %6795 = vmatprep.subr.mxu0 0.0
        %6796 = vmatpush1.msra.mxu0 0.0
        %6797 = vmatprep.subr.mxu0 0.0
        %6798 = vmatpush1.msra.mxu0 0.0
        %6799 = vmatprep.subr.mxu0 0.0
        %6800 = vmatpush1.msra.mxu0 0.0
        %6801 = vmatprep.subr.mxu0 0.0
        %6802 = vmatpush1.msra.mxu0 0.0
        %6803 = vmatprep.subr.mxu0 0.0
        %6804 = vmatpush1.msra.mxu0 0.0
        %6805 = vmatprep.subr.mxu0 0.0
        %6806 = vmatpush1.msra.mxu0 0.0
        %6807 = vmatprep.subr.mxu0 0.0
        %6808 = vmatpush1.msra.mxu0 0.0
        %6809 = vmatprep.subr.mxu0 0.0
        %6810 = vmatpush1.msra.mxu0 0.0
        %6811 = vmatprep.subr.mxu0 0.0
        %6812 = vmatpush1.msra.mxu0 0.0
        %6813 = vmatprep.subr.mxu0 0.0
        %6814 = vmatpush1.msra.mxu0 0.0
        %6815 = vmatprep.subr.mxu0 0.0
        %6816 = vmatpush1.msra.mxu0 0.0
        %6817 = vmatprep.subr.mxu0 0.0
        %6818 = vmatpush1.msra.mxu0 0.0
        %6819 = vmatprep.subr.mxu0 0.0
        %6820 = vmatpush1.msra.mxu0 0.0
        %6821 = vmatprep.subr.mxu0 0.0
        %6822 = vmatpush1.msra.mxu0 0.0
        %6823 = vmatprep.subr.mxu0 0.0
        %6824 = vmatpush1.msra.mxu0 0.0
        %6825 = vmatprep.subr.mxu0 0.0
        %6826 = vmatpush1.msra.mxu0 0.0
        %6827 = vmatprep.subr.mxu0 0.0
        %6828 = vmatpush1.msra.mxu0 0.0
        %6829 = vmatprep.subr.mxu0 0.0
        %6830 = vmatpush1.msra.mxu0 0.0
        %6831 = vmatprep.subr.mxu0 0.0
        %6832 = vmatpush1.msra.mxu0 0.0
        %6833 = vmatprep.subr.mxu0 0.0
        %6834 = vmatpush1.msra.mxu0 0.0
        %6835 = vmatprep.subr.mxu0 0.0
        %6836 = vmatpush1.msra.mxu0 0.0
        %6837 = vmatprep.mubr.f32.mxu0 0.0
        %6838 = vmatmul.mubr.f32.gmra.mrb[0].mxu0 %v6765
        %v6839 = vpop.f32.mrb[0].mxu0
        %v6840 = vadd.f32 0.0, %v6839
        %v6841 = vpop.f32.mrb[0].mxu0
        %v6842 = vadd.f32 0.0, %v6841
        %6843 = vdwg.mxu0
        %v6844 = vadd.f32 %v6752, %v6840
        %v6845 = vadd.f32 %v6753, %v6842
        %6846 = vrot.lane.b32.xlu0 %v6305, 113
        %v6847 = vpop.permute.xlu0 %6846
        %6848 = vrot.lane.b32.xlu0 %v6306, 113
        %v6849 = vpop.permute.xlu0 %6848
        %v6850 = vsel %vm883, %v6847, %v6849
        %v6851 = vsel %vm883, %v6849, %v6847
        %v6852 = vmul.f32 %v6850, %v892
        %v6853 = vmul.f32 %v6851, %v896
        %s6854 = scalar_lea.vmem %s15, 48
        %v6855 = vld [vmem:[%s6854] sm:$0x3f]
        %v6857 = vsel %vm2843, %v6855, 0
        %v6860 = vsel %vm2847, %v6852, 0
        %v6863 = vsel %vm2847, %v6853, 0
        %6865 = vmatprep.subr.mxu0 %v6863
        %6866 = vmatpush1.msra.mxu0 %v6860
        %6867 = vmatprep.subr.mxu0 0.0
        %6868 = vmatpush1.msra.mxu0 0.0
        %6869 = vmatprep.subr.mxu0 0.0
        %6870 = vmatpush1.msra.mxu0 0.0
        %6871 = vmatprep.subr.mxu0 0.0
        %6872 = vmatpush1.msra.mxu0 0.0
        %6873 = vmatprep.subr.mxu0 0.0
        %6874 = vmatpush1.msra.mxu0 0.0
        %6875 = vmatprep.subr.mxu0 0.0
        %6876 = vmatpush1.msra.mxu0 0.0
        %6877 = vmatprep.subr.mxu0 0.0
        %6878 = vmatpush1.msra.mxu0 0.0
        %6879 = vmatprep.subr.mxu0 0.0
        %6880 = vmatpush1.msra.mxu0 0.0
        %6881 = vmatprep.subr.mxu0 0.0
        %6882 = vmatpush1.msra.mxu0 0.0
        %6883 = vmatprep.subr.mxu0 0.0
        %6884 = vmatpush1.msra.mxu0 0.0
        %6885 = vmatprep.subr.mxu0 0.0
        %6886 = vmatpush1.msra.mxu0 0.0
        %6887 = vmatprep.subr.mxu0 0.0
        %6888 = vmatpush1.msra.mxu0 0.0
        %6889 = vmatprep.subr.mxu0 0.0
        %6890 = vmatpush1.msra.mxu0 0.0
        %6891 = vmatprep.subr.mxu0 0.0
        %6892 = vmatpush1.msra.mxu0 0.0
        %6893 = vmatprep.subr.mxu0 0.0
        %6894 = vmatpush1.msra.mxu0 0.0
        %6895 = vmatprep.subr.mxu0 0.0
        %6896 = vmatpush1.msra.mxu0 0.0
        %6897 = vmatprep.subr.mxu0 0.0
        %6898 = vmatpush1.msra.mxu0 0.0
        %6899 = vmatprep.subr.mxu0 0.0
        %6900 = vmatpush1.msra.mxu0 0.0
        %6901 = vmatprep.subr.mxu0 0.0
        %6902 = vmatpush1.msra.mxu0 0.0
        %6903 = vmatprep.subr.mxu0 0.0
        %6904 = vmatpush1.msra.mxu0 0.0
        %6905 = vmatprep.subr.mxu0 0.0
        %6906 = vmatpush1.msra.mxu0 0.0
        %6907 = vmatprep.subr.mxu0 0.0
        %6908 = vmatpush1.msra.mxu0 0.0
        %6909 = vmatprep.subr.mxu0 0.0
        %6910 = vmatpush1.msra.mxu0 0.0
        %6911 = vmatprep.subr.mxu0 0.0
        %6912 = vmatpush1.msra.mxu0 0.0
        %6913 = vmatprep.subr.mxu0 0.0
        %6914 = vmatpush1.msra.mxu0 0.0
        %6915 = vmatprep.subr.mxu0 0.0
        %6916 = vmatpush1.msra.mxu0 0.0
        %6917 = vmatprep.subr.mxu0 0.0
        %6918 = vmatpush1.msra.mxu0 0.0
        %6919 = vmatprep.subr.mxu0 0.0
        %6920 = vmatpush1.msra.mxu0 0.0
        %6921 = vmatprep.subr.mxu0 0.0
        %6922 = vmatpush1.msra.mxu0 0.0
        %6923 = vmatprep.subr.mxu0 0.0
        %6924 = vmatpush1.msra.mxu0 0.0
        %6925 = vmatprep.subr.mxu0 0.0
        %6926 = vmatpush1.msra.mxu0 0.0
        %6927 = vmatprep.subr.mxu0 0.0
        %6928 = vmatpush1.msra.mxu0 0.0
        %6929 = vmatprep.mubr.f32.mxu0 0.0
        %6930 = vmatmul.mubr.f32.gmra.mrb[0].mxu0 %v6857
        %v6931 = vpop.f32.mrb[0].mxu0
        %v6932 = vadd.f32 0.0, %v6931
        %v6933 = vpop.f32.mrb[0].mxu0
        %v6934 = vadd.f32 0.0, %v6933
        %6935 = vdwg.mxu0
        %v6936 = vadd.f32 %v6844, %v6932
        %v6937 = vadd.f32 %v6845, %v6934
        %6938 = vrot.lane.b32.xlu0 %v6305, 112
        %v6939 = vpop.permute.xlu0 %6938
        %6940 = vrot.lane.b32.xlu0 %v6306, 112
        %v6941 = vpop.permute.xlu0 %6940
        %v6942 = vsel %vm924, %v6939, %v6941
        %v6943 = vsel %vm924, %v6941, %v6939
        %v6944 = vmul.f32 %v6942, %v933
        %v6945 = vmul.f32 %v6943, %v937
        %s6946 = scalar_lea.vmem %s15, 56
        %v6947 = vld [vmem:[%s6946] sm:$0x3f]
        %v6949 = vsel %vm2843, %v6947, 0
        %v6952 = vsel %vm2847, %v6944, 0
        %v6955 = vsel %vm2847, %v6945, 0
        %6957 = vmatprep.subr.mxu0 %v6955
        %6958 = vmatpush1.msra.mxu0 %v6952
        %6959 = vmatprep.subr.mxu0 0.0
        %6960 = vmatpush1.msra.mxu0 0.0
        %6961 = vmatprep.subr.mxu0 0.0
        %6962 = vmatpush1.msra.mxu0 0.0
        %6963 = vmatprep.subr.mxu0 0.0
        %6964 = vmatpush1.msra.mxu0 0.0
        %6965 = vmatprep.subr.mxu0 0.0
        %6966 = vmatpush1.msra.mxu0 0.0
        %6967 = vmatprep.subr.mxu0 0.0
        %6968 = vmatpush1.msra.mxu0 0.0
        %6969 = vmatprep.subr.mxu0 0.0
        %6970 = vmatpush1.msra.mxu0 0.0
        %6971 = vmatprep.subr.mxu0 0.0
        %6972 = vmatpush1.msra.mxu0 0.0
        %6973 = vmatprep.subr.mxu0 0.0
        %6974 = vmatpush1.msra.mxu0 0.0
        %6975 = vmatprep.subr.mxu0 0.0
        %6976 = vmatpush1.msra.mxu0 0.0
        %6977 = vmatprep.subr.mxu0 0.0
        %6978 = vmatpush1.msra.mxu0 0.0
        %6979 = vmatprep.subr.mxu0 0.0
        %6980 = vmatpush1.msra.mxu0 0.0
        %6981 = vmatprep.subr.mxu0 0.0
        %6982 = vmatpush1.msra.mxu0 0.0
        %6983 = vmatprep.subr.mxu0 0.0
        %6984 = vmatpush1.msra.mxu0 0.0
        %6985 = vmatprep.subr.mxu0 0.0
        %6986 = vmatpush1.msra.mxu0 0.0
        %6987 = vmatprep.subr.mxu0 0.0
        %6988 = vmatpush1.msra.mxu0 0.0
        %6989 = vmatprep.subr.mxu0 0.0
        %6990 = vmatpush1.msra.mxu0 0.0
        %6991 = vmatprep.subr.mxu0 0.0
        %6992 = vmatpush1.msra.mxu0 0.0
        %6993 = vmatprep.subr.mxu0 0.0
        %6994 = vmatpush1.msra.mxu0 0.0
        %6995 = vmatprep.subr.mxu0 0.0
        %6996 = vmatpush1.msra.mxu0 0.0
        %6997 = vmatprep.subr.mxu0 0.0
        %6998 = vmatpush1.msra.mxu0 0.0
        %6999 = vmatprep.subr.mxu0 0.0
        %7000 = vmatpush1.msra.mxu0 0.0
        %7001 = vmatprep.subr.mxu0 0.0
        %7002 = vmatpush1.msra.mxu0 0.0
        %7003 = vmatprep.subr.mxu0 0.0
        %7004 = vmatpush1.msra.mxu0 0.0
        %7005 = vmatprep.subr.mxu0 0.0
        %7006 = vmatpush1.msra.mxu0 0.0
        %7007 = vmatprep.subr.mxu0 0.0
        %7008 = vmatpush1.msra.mxu0 0.0
        %7009 = vmatprep.subr.mxu0 0.0
        %7010 = vmatpush1.msra.mxu0 0.0
        %7011 = vmatprep.subr.mxu0 0.0
        %7012 = vmatpush1.msra.mxu0 0.0
        %7013 = vmatprep.subr.mxu0 0.0
        %7014 = vmatpush1.msra.mxu0 0.0
        %7015 = vmatprep.subr.mxu0 0.0
        %7016 = vmatpush1.msra.mxu0 0.0
        %7017 = vmatprep.subr.mxu0 0.0
        %7018 = vmatpush1.msra.mxu0 0.0
        %7019 = vmatprep.subr.mxu0 0.0
        %7020 = vmatpush1.msra.mxu0 0.0
        %7021 = vmatprep.mubr.f32.mxu0 0.0
        %7022 = vmatmul.mubr.f32.gmra.mrb[0].mxu0 %v6949
        %v7023 = vpop.f32.mrb[0].mxu0
        %v7024 = vadd.f32 0.0, %v7023
        %v7025 = vpop.f32.mrb[0].mxu0
        %v7026 = vadd.f32 0.0, %v7025
        %7027 = vdwg.mxu0
        %v7028 = vadd.f32 %v6936, %v7024
        %v7029 = vadd.f32 %v6937, %v7026
        %7030 = vrot.lane.b32.xlu0 %v6305, 111
        %v7031 = vpop.permute.xlu0 %7030
        %7032 = vrot.lane.b32.xlu0 %v6306, 111
        %v7033 = vpop.permute.xlu0 %7032
        %v7034 = vsel %vm965, %v7031, %v7033
        %v7035 = vsel %vm965, %v7033, %v7031
        %v7036 = vmul.f32 %v7034, %v974
        %v7037 = vmul.f32 %v7035, %v978
        %s7038 = scalar_lea.vmem %s15, 64
        %v7039 = vld [vmem:[%s7038] sm:$0x3f]
        %v7041 = vsel %vm2843, %v7039, 0
        %v7044 = vsel %vm2847, %v7036, 0
        %v7047 = vsel %vm2847, %v7037, 0
        %7049 = vmatprep.subr.mxu0 %v7047
        %7050 = vmatpush1.msra.mxu0 %v7044
        %7051 = vmatprep.subr.mxu0 0.0
        %7052 = vmatpush1.msra.mxu0 0.0
        %7053 = vmatprep.subr.mxu0 0.0
        %7054 = vmatpush1.msra.mxu0 0.0
        %7055 = vmatprep.subr.mxu0 0.0
        %7056 = vmatpush1.msra.mxu0 0.0
        %7057 = vmatprep.subr.mxu0 0.0
        %7058 = vmatpush1.msra.mxu0 0.0
        %7059 = vmatprep.subr.mxu0 0.0
        %7060 = vmatpush1.msra.mxu0 0.0
        %7061 = vmatprep.subr.mxu0 0.0
        %7062 = vmatpush1.msra.mxu0 0.0
        %7063 = vmatprep.subr.mxu0 0.0
        %7064 = vmatpush1.msra.mxu0 0.0
        %7065 = vmatprep.subr.mxu0 0.0
        %7066 = vmatpush1.msra.mxu0 0.0
        %7067 = vmatprep.subr.mxu0 0.0
        %7068 = vmatpush1.msra.mxu0 0.0
        %7069 = vmatprep.subr.mxu0 0.0
        %7070 = vmatpush1.msra.mxu0 0.0
        %7071 = vmatprep.subr.mxu0 0.0
        %7072 = vmatpush1.msra.mxu0 0.0
        %7073 = vmatprep.subr.mxu0 0.0
        %7074 = vmatpush1.msra.mxu0 0.0
        %7075 = vmatprep.subr.mxu0 0.0
        %7076 = vmatpush1.msra.mxu0 0.0
        %7077 = vmatprep.subr.mxu0 0.0
        %7078 = vmatpush1.msra.mxu0 0.0
        %7079 = vmatprep.subr.mxu0 0.0
        %7080 = vmatpush1.msra.mxu0 0.0
        %7081 = vmatprep.subr.mxu0 0.0
        %7082 = vmatpush1.msra.mxu0 0.0
        %7083 = vmatprep.subr.mxu0 0.0
        %7084 = vmatpush1.msra.mxu0 0.0
        %7085 = vmatprep.subr.mxu0 0.0
        %7086 = vmatpush1.msra.mxu0 0.0
        %7087 = vmatprep.subr.mxu0 0.0
        %7088 = vmatpush1.msra.mxu0 0.0
        %7089 = vmatprep.subr.mxu0 0.0
        %7090 = vmatpush1.msra.mxu0 0.0
        %7091 = vmatprep.subr.mxu0 0.0
        %7092 = vmatpush1.msra.mxu0 0.0
        %7093 = vmatprep.subr.mxu0 0.0
        %7094 = vmatpush1.msra.mxu0 0.0
        %7095 = vmatprep.subr.mxu0 0.0
        %7096 = vmatpush1.msra.mxu0 0.0
        %7097 = vmatprep.subr.mxu0 0.0
        %7098 = vmatpush1.msra.mxu0 0.0
        %7099 = vmatprep.subr.mxu0 0.0
        %7100 = vmatpush1.msra.mxu0 0.0
        %7101 = vmatprep.subr.mxu0 0.0
        %7102 = vmatpush1.msra.mxu0 0.0
        %7103 = vmatprep.subr.mxu0 0.0
        %7104 = vmatpush1.msra.mxu0 0.0
        %7105 = vmatprep.subr.mxu0 0.0
        %7106 = vmatpush1.msra.mxu0 0.0
        %7107 = vmatprep.subr.mxu0 0.0
        %7108 = vmatpush1.msra.mxu0 0.0
        %7109 = vmatprep.subr.mxu0 0.0
        %7110 = vmatpush1.msra.mxu0 0.0
        %7111 = vmatprep.subr.mxu0 0.0
        %7112 = vmatpush1.msra.mxu0 0.0
        %7113 = vmatprep.mubr.f32.mxu0 0.0
        %7114 = vmatmul.mubr.f32.gmra.mrb[0].mxu0 %v7041
        %v7115 = vpop.f32.mrb[0].mxu0
        %v7116 = vadd.f32 0.0, %v7115
        %v7117 = vpop.f32.mrb[0].mxu0
        %v7118 = vadd.f32 0.0, %v7117
        %7119 = vdwg.mxu0
        %v7120 = vadd.f32 %v7028, %v7116
        %v7121 = vadd.f32 %v7029, %v7118
        %v7122 = vld [vmem:[%s16] sm:$0x3f]
        %7124 = vset.pattern.permute.xlu0 0
        %7125 = vperm.xlu0 %7124, %v7122
        %v7126 = vpop.permute.xlu0 %7125
        %v7128 = vadd.f32 %v7120, %v7126
        %v7129 = vadd.f32 %v7121, %v7126
        %v7130 = vmax.f32 %v7128, 0.0
        %v7131 = vmax.f32 %v7129, 0.0
        %7132 = vrot.lane.b32.xlu0 %v7130, 17
        %v7133 = vpop.permute.xlu0 %7132
        %7134 = vrot.lane.b32.xlu0 %v7131, 17
        %v7135 = vpop.permute.xlu0 %7134
        %v7136 = vsel %vm669, %v7133, %v7135
        %v7137 = vsel %vm669, %v7135, %v7133
        %v7138 = vmul.f32 %v7137, %v677
        %v7139 = vmul.f32 %v7136, %v681
        %v7140 = vld [vmem:[%s17] sm:$0x7f]
        %7141 = vrot.lane.b32.xlu0 %v7130, 16
        %v7142 = vpop.permute.xlu0 %7141
        %7143 = vrot.lane.b32.xlu0 %v7131, 16
        %v7144 = vpop.permute.xlu0 %7143
        %v7145 = vsel %vm708, %v7142, %v7144
        %v7146 = vsel %vm708, %v7144, %v7142
        %v7147 = vmul.f32 %v7146, %v717
        %v7148 = vmul.f32 %v7145, %v721
        %s7149 = scalar_lea.vmem %s17, 8
        %v7150 = vld [vmem:[%s7149] sm:$0x7f]
        %v7152 = vsel %vm3670, %v7150, 0
        %v7155 = vsel %vm1962, %v7147, 0
        %v7158 = vsel %vm1962, %v7148, 0
        %7160 = vmatprep.subr.mxu0 %v7158
        %7161 = vmatpush1.msra.mxu0 %v7155
        %7162 = vmatprep.subr.mxu0 0.0
        %7163 = vmatpush1.msra.mxu0 0.0
        %7164 = vmatprep.subr.mxu0 0.0
        %7165 = vmatpush1.msra.mxu0 0.0
        %7166 = vmatprep.subr.mxu0 0.0
        %7167 = vmatpush1.msra.mxu0 0.0
        %7168 = vmatprep.subr.mxu0 0.0
        %7169 = vmatpush1.msra.mxu0 0.0
        %7170 = vmatprep.subr.mxu0 0.0
        %7171 = vmatpush1.msra.mxu0 0.0
        %7172 = vmatprep.subr.mxu0 0.0
        %7173 = vmatpush1.msra.mxu0 0.0
        %7174 = vmatprep.subr.mxu0 0.0
        %7175 = vmatpush1.msra.mxu0 0.0
        %7176 = vmatprep.subr.mxu0 0.0
        %7177 = vmatpush1.msra.mxu0 0.0
        %7178 = vmatprep.subr.mxu0 0.0
        %7179 = vmatpush1.msra.mxu0 0.0
        %7180 = vmatprep.subr.mxu0 0.0
        %7181 = vmatpush1.msra.mxu0 0.0
        %7182 = vmatprep.subr.mxu0 0.0
        %7183 = vmatpush1.msra.mxu0 0.0
        %7184 = vmatprep.subr.mxu0 0.0
        %7185 = vmatpush1.msra.mxu0 0.0
        %7186 = vmatprep.subr.mxu0 0.0
        %7187 = vmatpush1.msra.mxu0 0.0
        %7188 = vmatprep.subr.mxu0 0.0
        %7189 = vmatpush1.msra.mxu0 0.0
        %7190 = vmatprep.subr.mxu0 0.0
        %7191 = vmatpush1.msra.mxu0 0.0
        %7192 = vmatprep.subr.mxu0 0.0
        %7193 = vmatpush1.msra.mxu0 0.0
        %7194 = vmatprep.subr.mxu0 0.0
        %7195 = vmatpush1.msra.mxu0 0.0
        %7196 = vmatprep.subr.mxu0 0.0
        %7197 = vmatpush1.msra.mxu0 0.0
        %7198 = vmatprep.subr.mxu0 0.0
        %7199 = vmatpush1.msra.mxu0 0.0
        %7200 = vmatprep.subr.mxu0 0.0
        %7201 = vmatpush1.msra.mxu0 0.0
        %7202 = vmatprep.subr.mxu0 0.0
        %7203 = vmatpush1.msra.mxu0 0.0
        %7204 = vmatprep.subr.mxu0 0.0
        %7205 = vmatpush1.msra.mxu0 0.0
        %7206 = vmatprep.subr.mxu0 0.0
        %7207 = vmatpush1.msra.mxu0 0.0
        %7208 = vmatprep.subr.mxu0 0.0
        %7209 = vmatpush1.msra.mxu0 0.0
        %7210 = vmatprep.subr.mxu0 0.0
        %7211 = vmatpush1.msra.mxu0 0.0
        %7212 = vmatprep.subr.mxu0 0.0
        %7213 = vmatpush1.msra.mxu0 0.0
        %7214 = vmatprep.subr.mxu0 0.0
        %7215 = vmatpush1.msra.mxu0 0.0
        %7216 = vmatprep.subr.mxu0 0.0
        %7217 = vmatpush1.msra.mxu0 0.0
        %7218 = vmatprep.subr.mxu0 0.0
        %7219 = vmatpush1.msra.mxu0 0.0
        %7220 = vmatprep.subr.mxu0 0.0
        %7221 = vmatpush1.msra.mxu0 0.0
        %7222 = vmatprep.subr.mxu0 0.0
        %7223 = vmatpush1.msra.mxu0 0.0
        %7224 = vmatprep.mubr.f32.mxu0 0.0
        %7225 = vmatmul.mubr.f32.gmra.mrb[0].mxu0 %v7152
        %v7226 = vpop.f32.mrb[0].mxu0
        %v7227 = vadd.f32 0.0, %v7226
        %v7228 = vpop.f32.mrb[0].mxu0
        %v7229 = vadd.f32 0.0, %v7228
        %7230 = vdwg.mxu0
        %v7232 = vsel %vm3670, %v7140, 0
        %v7235 = vsel %vm1962, %v7138, 0
        %v7238 = vsel %vm1962, %v7139, 0
        %7240 = vmatprep.subr.mxu0 %v7238
        %7241 = vmatpush1.msra.mxu0 %v7235
        %7242 = vmatprep.subr.mxu0 0.0
        %7243 = vmatpush1.msra.mxu0 0.0
        %7244 = vmatprep.subr.mxu0 0.0
        %7245 = vmatpush1.msra.mxu0 0.0
        %7246 = vmatprep.subr.mxu0 0.0
        %7247 = vmatpush1.msra.mxu0 0.0
        %7248 = vmatprep.subr.mxu0 0.0
        %7249 = vmatpush1.msra.mxu0 0.0
        %7250 = vmatprep.subr.mxu0 0.0
        %7251 = vmatpush1.msra.mxu0 0.0
        %7252 = vmatprep.subr.mxu0 0.0
        %7253 = vmatpush1.msra.mxu0 0.0
        %7254 = vmatprep.subr.mxu0 0.0
        %7255 = vmatpush1.msra.mxu0 0.0
        %7256 = vmatprep.subr.mxu0 0.0
        %7257 = vmatpush1.msra.mxu0 0.0
        %7258 = vmatprep.subr.mxu0 0.0
        %7259 = vmatpush1.msra.mxu0 0.0
        %7260 = vmatprep.subr.mxu0 0.0
        %7261 = vmatpush1.msra.mxu0 0.0
        %7262 = vmatprep.subr.mxu0 0.0
        %7263 = vmatpush1.msra.mxu0 0.0
        %7264 = vmatprep.subr.mxu0 0.0
        %7265 = vmatpush1.msra.mxu0 0.0
        %7266 = vmatprep.subr.mxu0 0.0
        %7267 = vmatpush1.msra.mxu0 0.0
        %7268 = vmatprep.subr.mxu0 0.0
        %7269 = vmatpush1.msra.mxu0 0.0
        %7270 = vmatprep.subr.mxu0 0.0
        %7271 = vmatpush1.msra.mxu0 0.0
        %7272 = vmatprep.subr.mxu0 0.0
        %7273 = vmatpush1.msra.mxu0 0.0
        %7274 = vmatprep.subr.mxu0 0.0
        %7275 = vmatpush1.msra.mxu0 0.0
        %7276 = vmatprep.subr.mxu0 0.0
        %7277 = vmatpush1.msra.mxu0 0.0
        %7278 = vmatprep.subr.mxu0 0.0
        %7279 = vmatpush1.msra.mxu0 0.0
        %7280 = vmatprep.subr.mxu0 0.0
        %7281 = vmatpush1.msra.mxu0 0.0
        %7282 = vmatprep.subr.mxu0 0.0
        %7283 = vmatpush1.msra.mxu0 0.0
        %7284 = vmatprep.subr.mxu0 0.0
        %7285 = vmatpush1.msra.mxu0 0.0
        %7286 = vmatprep.subr.mxu0 0.0
        %7287 = vmatpush1.msra.mxu0 0.0
        %7288 = vmatprep.subr.mxu0 0.0
        %7289 = vmatpush1.msra.mxu0 0.0
        %7290 = vmatprep.subr.mxu0 0.0
        %7291 = vmatpush1.msra.mxu0 0.0
        %7292 = vmatprep.subr.mxu0 0.0
        %7293 = vmatpush1.msra.mxu0 0.0
        %7294 = vmatprep.subr.mxu0 0.0
        %7295 = vmatpush1.msra.mxu0 0.0
        %7296 = vmatprep.subr.mxu0 0.0
        %7297 = vmatpush1.msra.mxu0 0.0
        %7298 = vmatprep.subr.mxu0 0.0
        %7299 = vmatpush1.msra.mxu0 0.0
        %7300 = vmatprep.subr.mxu0 0.0
        %7301 = vmatpush1.msra.mxu0 0.0
        %7302 = vmatprep.subr.mxu0 0.0
        %7303 = vmatpush1.msra.mxu0 0.0
        %7304 = vmatprep.mubr.f32.mxu0 0.0
        %7305 = vmatmul.mubr.f32.gmra.mrb[0].mxu0 %v7232
        %v7306 = vpop.f32.mrb[0].mxu0
        %v7307 = vadd.f32 %v7227, %v7306
        %v7308 = vpop.f32.mrb[0].mxu0
        %v7309 = vadd.f32 %v7229, %v7308
        %7310 = vdwg.mxu0
        %7311 = vrot.lane.b32.xlu0 %v7130, 15
        %v7312 = vpop.permute.xlu0 %7311
        %7313 = vrot.lane.b32.xlu0 %v7131, 15
        %v7314 = vpop.permute.xlu0 %7313
        %v7315 = vsel %vm749, %v7312, %v7314
        %v7316 = vsel %vm749, %v7314, %v7312
        %v7317 = vmul.f32 %v7316, %v758
        %v7318 = vmul.f32 %v7315, %v762
        %s7319 = scalar_lea.vmem %s17, 16
        %v7320 = vld [vmem:[%s7319] sm:$0x7f]
        %v7322 = vsel %vm3670, %v7320, 0
        %v7325 = vsel %vm1962, %v7317, 0
        %v7328 = vsel %vm1962, %v7318, 0
        %7330 = vmatprep.subr.mxu0 %v7328
        %7331 = vmatpush1.msra.mxu0 %v7325
        %7332 = vmatprep.subr.mxu0 0.0
        %7333 = vmatpush1.msra.mxu0 0.0
        %7334 = vmatprep.subr.mxu0 0.0
        %7335 = vmatpush1.msra.mxu0 0.0
        %7336 = vmatprep.subr.mxu0 0.0
        %7337 = vmatpush1.msra.mxu0 0.0
        %7338 = vmatprep.subr.mxu0 0.0
        %7339 = vmatpush1.msra.mxu0 0.0
        %7340 = vmatprep.subr.mxu0 0.0
        %7341 = vmatpush1.msra.mxu0 0.0
        %7342 = vmatprep.subr.mxu0 0.0
        %7343 = vmatpush1.msra.mxu0 0.0
        %7344 = vmatprep.subr.mxu0 0.0
        %7345 = vmatpush1.msra.mxu0 0.0
        %7346 = vmatprep.subr.mxu0 0.0
        %7347 = vmatpush1.msra.mxu0 0.0
        %7348 = vmatprep.subr.mxu0 0.0
        %7349 = vmatpush1.msra.mxu0 0.0
        %7350 = vmatprep.subr.mxu0 0.0
        %7351 = vmatpush1.msra.mxu0 0.0
        %7352 = vmatprep.subr.mxu0 0.0
        %7353 = vmatpush1.msra.mxu0 0.0
        %7354 = vmatprep.subr.mxu0 0.0
        %7355 = vmatpush1.msra.mxu0 0.0
        %7356 = vmatprep.subr.mxu0 0.0
        %7357 = vmatpush1.msra.mxu0 0.0
        %7358 = vmatprep.subr.mxu0 0.0
        %7359 = vmatpush1.msra.mxu0 0.0
        %7360 = vmatprep.subr.mxu0 0.0
        %7361 = vmatpush1.msra.mxu0 0.0
        %7362 = vmatprep.subr.mxu0 0.0
        %7363 = vmatpush1.msra.mxu0 0.0
        %7364 = vmatprep.subr.mxu0 0.0
        %7365 = vmatpush1.msra.mxu0 0.0
        %7366 = vmatprep.subr.mxu0 0.0
        %7367 = vmatpush1.msra.mxu0 0.0
        %7368 = vmatprep.subr.mxu0 0.0
        %7369 = vmatpush1.msra.mxu0 0.0
        %7370 = vmatprep.subr.mxu0 0.0
        %7371 = vmatpush1.msra.mxu0 0.0
        %7372 = vmatprep.subr.mxu0 0.0
        %7373 = vmatpush1.msra.mxu0 0.0
        %7374 = vmatprep.subr.mxu0 0.0
        %7375 = vmatpush1.msra.mxu0 0.0
        %7376 = vmatprep.subr.mxu0 0.0
        %7377 = vmatpush1.msra.mxu0 0.0
        %7378 = vmatprep.subr.mxu0 0.0
        %7379 = vmatpush1.msra.mxu0 0.0
        %7380 = vmatprep.subr.mxu0 0.0
        %7381 = vmatpush1.msra.mxu0 0.0
        %7382 = vmatprep.subr.mxu0 0.0
        %7383 = vmatpush1.msra.mxu0 0.0
        %7384 = vmatprep.subr.mxu0 0.0
        %7385 = vmatpush1.msra.mxu0 0.0
        %7386 = vmatprep.subr.mxu0 0.0
        %7387 = vmatpush1.msra.mxu0 0.0
        %7388 = vmatprep.subr.mxu0 0.0
        %7389 = vmatpush1.msra.mxu0 0.0
        %7390 = vmatprep.subr.mxu0 0.0
        %7391 = vmatpush1.msra.mxu0 0.0
        %7392 = vmatprep.subr.mxu0 0.0
        %7393 = vmatpush1.msra.mxu0 0.0
        %7394 = vmatprep.mubr.f32.mxu0 0.0
        %7395 = vmatmul.mubr.f32.gmra.mrb[0].mxu0 %v7322
        %v7396 = vpop.f32.mrb[0].mxu0
        %v7397 = vadd.f32 0.0, %v7396
        %v7398 = vpop.f32.mrb[0].mxu0
        %v7399 = vadd.f32 0.0, %v7398
        %7400 = vdwg.mxu0
        %v7401 = vadd.f32 %v7307, %v7397
        %v7402 = vadd.f32 %v7309, %v7399
        %7403 = vrot.lane.b32.xlu0 %v7130, 1
        %v7404 = vpop.permute.xlu0 %7403
        %7405 = vrot.lane.b32.xlu0 %v7131, 1
        %v7406 = vpop.permute.xlu0 %7405
        %v7407 = vsel %vm790, %v7404, %v7406
        %v7408 = vsel %vm790, %v7406, %v7404
        %v7409 = vmul.f32 %v7408, %v799
        %v7410 = vmul.f32 %v7407, %v803
        %s7411 = scalar_lea.vmem %s17, 24
        %v7412 = vld [vmem:[%s7411] sm:$0x7f]
        %v7414 = vsel %vm3670, %v7412, 0
        %v7417 = vsel %vm1962, %v7409, 0
        %v7420 = vsel %vm1962, %v7410, 0
        %7422 = vmatprep.subr.mxu0 %v7420
        %7423 = vmatpush1.msra.mxu0 %v7417
        %7424 = vmatprep.subr.mxu0 0.0
        %7425 = vmatpush1.msra.mxu0 0.0
        %7426 = vmatprep.subr.mxu0 0.0
        %7427 = vmatpush1.msra.mxu0 0.0
        %7428 = vmatprep.subr.mxu0 0.0
        %7429 = vmatpush1.msra.mxu0 0.0
        %7430 = vmatprep.subr.mxu0 0.0
        %7431 = vmatpush1.msra.mxu0 0.0
        %7432 = vmatprep.subr.mxu0 0.0
        %7433 = vmatpush1.msra.mxu0 0.0
        %7434 = vmatprep.subr.mxu0 0.0
        %7435 = vmatpush1.msra.mxu0 0.0
        %7436 = vmatprep.subr.mxu0 0.0
        %7437 = vmatpush1.msra.mxu0 0.0
        %7438 = vmatprep.subr.mxu0 0.0
        %7439 = vmatpush1.msra.mxu0 0.0
        %7440 = vmatprep.subr.mxu0 0.0
        %7441 = vmatpush1.msra.mxu0 0.0
        %7442 = vmatprep.subr.mxu0 0.0
        %7443 = vmatpush1.msra.mxu0 0.0
        %7444 = vmatprep.subr.mxu0 0.0
        %7445 = vmatpush1.msra.mxu0 0.0
        %7446 = vmatprep.subr.mxu0 0.0
        %7447 = vmatpush1.msra.mxu0 0.0
        %7448 = vmatprep.subr.mxu0 0.0
        %7449 = vmatpush1.msra.mxu0 0.0
        %7450 = vmatprep.subr.mxu0 0.0
        %7451 = vmatpush1.msra.mxu0 0.0
        %7452 = vmatprep.subr.mxu0 0.0
        %7453 = vmatpush1.msra.mxu0 0.0
        %7454 = vmatprep.subr.mxu0 0.0
        %7455 = vmatpush1.msra.mxu0 0.0
        %7456 = vmatprep.subr.mxu0 0.0
        %7457 = vmatpush1.msra.mxu0 0.0
        %7458 = vmatprep.subr.mxu0 0.0
        %7459 = vmatpush1.msra.mxu0 0.0
        %7460 = vmatprep.subr.mxu0 0.0
        %7461 = vmatpush1.msra.mxu0 0.0
        %7462 = vmatprep.subr.mxu0 0.0
        %7463 = vmatpush1.msra.mxu0 0.0
        %7464 = vmatprep.subr.mxu0 0.0
        %7465 = vmatpush1.msra.mxu0 0.0
        %7466 = vmatprep.subr.mxu0 0.0
        %7467 = vmatpush1.msra.mxu0 0.0
        %7468 = vmatprep.subr.mxu0 0.0
        %7469 = vmatpush1.msra.mxu0 0.0
        %7470 = vmatprep.subr.mxu0 0.0
        %7471 = vmatpush1.msra.mxu0 0.0
        %7472 = vmatprep.subr.mxu0 0.0
        %7473 = vmatpush1.msra.mxu0 0.0
        %7474 = vmatprep.subr.mxu0 0.0
        %7475 = vmatpush1.msra.mxu0 0.0
        %7476 = vmatprep.subr.mxu0 0.0
        %7477 = vmatpush1.msra.mxu0 0.0
        %7478 = vmatprep.subr.mxu0 0.0
        %7479 = vmatpush1.msra.mxu0 0.0
        %7480 = vmatprep.subr.mxu0 0.0
        %7481 = vmatpush1.msra.mxu0 0.0
        %7482 = vmatprep.subr.mxu0 0.0
        %7483 = vmatpush1.msra.mxu0 0.0
        %7484 = vmatprep.subr.mxu0 0.0
        %7485 = vmatpush1.msra.mxu0 0.0
        %7486 = vmatprep.mubr.f32.mxu0 0.0
        %7487 = vmatmul.mubr.f32.gmra.mrb[0].mxu0 %v7414
        %v7488 = vpop.f32.mrb[0].mxu0
        %v7489 = vadd.f32 0.0, %v7488
        %v7490 = vpop.f32.mrb[0].mxu0
        %v7491 = vadd.f32 0.0, %v7490
        %7492 = vdwg.mxu0
        %v7493 = vadd.f32 %v7401, %v7489
        %v7494 = vadd.f32 %v7402, %v7491
        %s7495 = scalar_lea.vmem %s17, 32
        %v7496 = vld [vmem:[%s7495] sm:$0x7f]
        %v7498 = vsel %vm3670, %v7496, 0
        %v7501 = vsel %vm1962, %v7130, 0
        %v7504 = vsel %vm1962, %v7131, 0
        %7506 = vmatprep.subr.mxu0 %v7504
        %7507 = vmatpush1.msra.mxu0 %v7501
        %7508 = vmatprep.subr.mxu0 0.0
        %7509 = vmatpush1.msra.mxu0 0.0
        %7510 = vmatprep.subr.mxu0 0.0
        %7511 = vmatpush1.msra.mxu0 0.0
        %7512 = vmatprep.subr.mxu0 0.0
        %7513 = vmatpush1.msra.mxu0 0.0
        %7514 = vmatprep.subr.mxu0 0.0
        %7515 = vmatpush1.msra.mxu0 0.0
        %7516 = vmatprep.subr.mxu0 0.0
        %7517 = vmatpush1.msra.mxu0 0.0
        %7518 = vmatprep.subr.mxu0 0.0
        %7519 = vmatpush1.msra.mxu0 0.0
        %7520 = vmatprep.subr.mxu0 0.0
        %7521 = vmatpush1.msra.mxu0 0.0
        %7522 = vmatprep.subr.mxu0 0.0
        %7523 = vmatpush1.msra.mxu0 0.0
        %7524 = vmatprep.subr.mxu0 0.0
        %7525 = vmatpush1.msra.mxu0 0.0
        %7526 = vmatprep.subr.mxu0 0.0
        %7527 = vmatpush1.msra.mxu0 0.0
        %7528 = vmatprep.subr.mxu0 0.0
        %7529 = vmatpush1.msra.mxu0 0.0
        %7530 = vmatprep.subr.mxu0 0.0
        %7531 = vmatpush1.msra.mxu0 0.0
        %7532 = vmatprep.subr.mxu0 0.0
        %7533 = vmatpush1.msra.mxu0 0.0
        %7534 = vmatprep.subr.mxu0 0.0
        %7535 = vmatpush1.msra.mxu0 0.0
        %7536 = vmatprep.subr.mxu0 0.0
        %7537 = vmatpush1.msra.mxu0 0.0
        %7538 = vmatprep.subr.mxu0 0.0
        %7539 = vmatpush1.msra.mxu0 0.0
        %7540 = vmatprep.subr.mxu0 0.0
        %7541 = vmatpush1.msra.mxu0 0.0
        %7542 = vmatprep.subr.mxu0 0.0
        %7543 = vmatpush1.msra.mxu0 0.0
        %7544 = vmatprep.subr.mxu0 0.0
        %7545 = vmatpush1.msra.mxu0 0.0
        %7546 = vmatprep.subr.mxu0 0.0
        %7547 = vmatpush1.msra.mxu0 0.0
        %7548 = vmatprep.subr.mxu0 0.0
        %7549 = vmatpush1.msra.mxu0 0.0
        %7550 = vmatprep.subr.mxu0 0.0
        %7551 = vmatpush1.msra.mxu0 0.0
        %7552 = vmatprep.subr.mxu0 0.0
        %7553 = vmatpush1.msra.mxu0 0.0
        %7554 = vmatprep.subr.mxu0 0.0
        %7555 = vmatpush1.msra.mxu0 0.0
        %7556 = vmatprep.subr.mxu0 0.0
        %7557 = vmatpush1.msra.mxu0 0.0
        %7558 = vmatprep.subr.mxu0 0.0
        %7559 = vmatpush1.msra.mxu0 0.0
        %7560 = vmatprep.subr.mxu0 0.0
        %7561 = vmatpush1.msra.mxu0 0.0
        %7562 = vmatprep.subr.mxu0 0.0
        %7563 = vmatpush1.msra.mxu0 0.0
        %7564 = vmatprep.subr.mxu0 0.0
        %7565 = vmatpush1.msra.mxu0 0.0
        %7566 = vmatprep.subr.mxu0 0.0
        %7567 = vmatpush1.msra.mxu0 0.0
        %7568 = vmatprep.subr.mxu0 0.0
        %7569 = vmatpush1.msra.mxu0 0.0
        %7570 = vmatprep.mubr.f32.mxu0 0.0
        %7571 = vmatmul.mubr.f32.gmra.mrb[0].mxu0 %v7498
        %v7572 = vpop.f32.mrb[0].mxu0
        %v7573 = vadd.f32 0.0, %v7572
        %v7574 = vpop.f32.mrb[0].mxu0
        %v7575 = vadd.f32 0.0, %v7574
        %7576 = vdwg.mxu0
        %v7577 = vadd.f32 %v7493, %v7573
        %v7578 = vadd.f32 %v7494, %v7575
        %7579 = vrot.lane.b32.xlu0 %v7130, 127
        %v7580 = vpop.permute.xlu0 %7579
        %7581 = vrot.lane.b32.xlu0 %v7131, 127
        %v7582 = vpop.permute.xlu0 %7581
        %v7583 = vsel %vm842, %v7580, %v7582
        %v7584 = vsel %vm842, %v7582, %v7580
        %v7585 = vmul.f32 %v7583, %v851
        %v7586 = vmul.f32 %v7584, %v855
        %s7587 = scalar_lea.vmem %s17, 40
        %v7588 = vld [vmem:[%s7587] sm:$0x7f]
        %v7590 = vsel %vm3670, %v7588, 0
        %v7593 = vsel %vm1962, %v7585, 0
        %v7596 = vsel %vm1962, %v7586, 0
        %7598 = vmatprep.subr.mxu0 %v7596
        %7599 = vmatpush1.msra.mxu0 %v7593
        %7600 = vmatprep.subr.mxu0 0.0
        %7601 = vmatpush1.msra.mxu0 0.0
        %7602 = vmatprep.subr.mxu0 0.0
        %7603 = vmatpush1.msra.mxu0 0.0
        %7604 = vmatprep.subr.mxu0 0.0
        %7605 = vmatpush1.msra.mxu0 0.0
        %7606 = vmatprep.subr.mxu0 0.0
        %7607 = vmatpush1.msra.mxu0 0.0
        %7608 = vmatprep.subr.mxu0 0.0
        %7609 = vmatpush1.msra.mxu0 0.0
        %7610 = vmatprep.subr.mxu0 0.0
        %7611 = vmatpush1.msra.mxu0 0.0
        %7612 = vmatprep.subr.mxu0 0.0
        %7613 = vmatpush1.msra.mxu0 0.0
        %7614 = vmatprep.subr.mxu0 0.0
        %7615 = vmatpush1.msra.mxu0 0.0
        %7616 = vmatprep.subr.mxu0 0.0
        %7617 = vmatpush1.msra.mxu0 0.0
        %7618 = vmatprep.subr.mxu0 0.0
        %7619 = vmatpush1.msra.mxu0 0.0
        %7620 = vmatprep.subr.mxu0 0.0
        %7621 = vmatpush1.msra.mxu0 0.0
        %7622 = vmatprep.subr.mxu0 0.0
        %7623 = vmatpush1.msra.mxu0 0.0
        %7624 = vmatprep.subr.mxu0 0.0
        %7625 = vmatpush1.msra.mxu0 0.0
        %7626 = vmatprep.subr.mxu0 0.0
        %7627 = vmatpush1.msra.mxu0 0.0
        %7628 = vmatprep.subr.mxu0 0.0
        %7629 = vmatpush1.msra.mxu0 0.0
        %7630 = vmatprep.subr.mxu0 0.0
        %7631 = vmatpush1.msra.mxu0 0.0
        %7632 = vmatprep.subr.mxu0 0.0
        %7633 = vmatpush1.msra.mxu0 0.0
        %7634 = vmatprep.subr.mxu0 0.0
        %7635 = vmatpush1.msra.mxu0 0.0
        %7636 = vmatprep.subr.mxu0 0.0
        %7637 = vmatpush1.msra.mxu0 0.0
        %7638 = vmatprep.subr.mxu0 0.0
        %7639 = vmatpush1.msra.mxu0 0.0
        %7640 = vmatprep.subr.mxu0 0.0
        %7641 = vmatpush1.msra.mxu0 0.0
        %7642 = vmatprep.subr.mxu0 0.0
        %7643 = vmatpush1.msra.mxu0 0.0
        %7644 = vmatprep.subr.mxu0 0.0
        %7645 = vmatpush1.msra.mxu0 0.0
        %7646 = vmatprep.subr.mxu0 0.0
        %7647 = vmatpush1.msra.mxu0 0.0
        %7648 = vmatprep.subr.mxu0 0.0
        %7649 = vmatpush1.msra.mxu0 0.0
        %7650 = vmatprep.subr.mxu0 0.0
        %7651 = vmatpush1.msra.mxu0 0.0
        %7652 = vmatprep.subr.mxu0 0.0
        %7653 = vmatpush1.msra.mxu0 0.0
        %7654 = vmatprep.subr.mxu0 0.0
        %7655 = vmatpush1.msra.mxu0 0.0
        %7656 = vmatprep.subr.mxu0 0.0
        %7657 = vmatpush1.msra.mxu0 0.0
        %7658 = vmatprep.subr.mxu0 0.0
        %7659 = vmatpush1.msra.mxu0 0.0
        %7660 = vmatprep.subr.mxu0 0.0
        %7661 = vmatpush1.msra.mxu0 0.0
        %7662 = vmatprep.mubr.f32.mxu0 0.0
        %7663 = vmatmul.mubr.f32.gmra.mrb[0].mxu0 %v7590
        %v7664 = vpop.f32.mrb[0].mxu0
        %v7665 = vadd.f32 0.0, %v7664
        %v7666 = vpop.f32.mrb[0].mxu0
        %v7667 = vadd.f32 0.0, %v7666
        %7668 = vdwg.mxu0
        %v7669 = vadd.f32 %v7577, %v7665
        %v7670 = vadd.f32 %v7578, %v7667
        %7671 = vrot.lane.b32.xlu0 %v7130, 113
        %v7672 = vpop.permute.xlu0 %7671
        %7673 = vrot.lane.b32.xlu0 %v7131, 113
        %v7674 = vpop.permute.xlu0 %7673
        %v7675 = vsel %vm883, %v7672, %v7674
        %v7676 = vsel %vm883, %v7674, %v7672
        %v7677 = vmul.f32 %v7675, %v892
        %v7678 = vmul.f32 %v7676, %v896
        %s7679 = scalar_lea.vmem %s17, 48
        %v7680 = vld [vmem:[%s7679] sm:$0x7f]
        %v7682 = vsel %vm3670, %v7680, 0
        %v7685 = vsel %vm1962, %v7677, 0
        %v7688 = vsel %vm1962, %v7678, 0
        %7690 = vmatprep.subr.mxu0 %v7688
        %7691 = vmatpush1.msra.mxu0 %v7685
        %7692 = vmatprep.subr.mxu0 0.0
        %7693 = vmatpush1.msra.mxu0 0.0
        %7694 = vmatprep.subr.mxu0 0.0
        %7695 = vmatpush1.msra.mxu0 0.0
        %7696 = vmatprep.subr.mxu0 0.0
        %7697 = vmatpush1.msra.mxu0 0.0
        %7698 = vmatprep.subr.mxu0 0.0
        %7699 = vmatpush1.msra.mxu0 0.0
        %7700 = vmatprep.subr.mxu0 0.0
        %7701 = vmatpush1.msra.mxu0 0.0
        %7702 = vmatprep.subr.mxu0 0.0
        %7703 = vmatpush1.msra.mxu0 0.0
        %7704 = vmatprep.subr.mxu0 0.0
        %7705 = vmatpush1.msra.mxu0 0.0
        %7706 = vmatprep.subr.mxu0 0.0
        %7707 = vmatpush1.msra.mxu0 0.0
        %7708 = vmatprep.subr.mxu0 0.0
        %7709 = vmatpush1.msra.mxu0 0.0
        %7710 = vmatprep.subr.mxu0 0.0
        %7711 = vmatpush1.msra.mxu0 0.0
        %7712 = vmatprep.subr.mxu0 0.0
        %7713 = vmatpush1.msra.mxu0 0.0
        %7714 = vmatprep.subr.mxu0 0.0
        %7715 = vmatpush1.msra.mxu0 0.0
        %7716 = vmatprep.subr.mxu0 0.0
        %7717 = vmatpush1.msra.mxu0 0.0
        %7718 = vmatprep.subr.mxu0 0.0
        %7719 = vmatpush1.msra.mxu0 0.0
        %7720 = vmatprep.subr.mxu0 0.0
        %7721 = vmatpush1.msra.mxu0 0.0
        %7722 = vmatprep.subr.mxu0 0.0
        %7723 = vmatpush1.msra.mxu0 0.0
        %7724 = vmatprep.subr.mxu0 0.0
        %7725 = vmatpush1.msra.mxu0 0.0
        %7726 = vmatprep.subr.mxu0 0.0
        %7727 = vmatpush1.msra.mxu0 0.0
        %7728 = vmatprep.subr.mxu0 0.0
        %7729 = vmatpush1.msra.mxu0 0.0
        %7730 = vmatprep.subr.mxu0 0.0
        %7731 = vmatpush1.msra.mxu0 0.0
        %7732 = vmatprep.subr.mxu0 0.0
        %7733 = vmatpush1.msra.mxu0 0.0
        %7734 = vmatprep.subr.mxu0 0.0
        %7735 = vmatpush1.msra.mxu0 0.0
        %7736 = vmatprep.subr.mxu0 0.0
        %7737 = vmatpush1.msra.mxu0 0.0
        %7738 = vmatprep.subr.mxu0 0.0
        %7739 = vmatpush1.msra.mxu0 0.0
        %7740 = vmatprep.subr.mxu0 0.0
        %7741 = vmatpush1.msra.mxu0 0.0
        %7742 = vmatprep.subr.mxu0 0.0
        %7743 = vmatpush1.msra.mxu0 0.0
        %7744 = vmatprep.subr.mxu0 0.0
        %7745 = vmatpush1.msra.mxu0 0.0
        %7746 = vmatprep.subr.mxu0 0.0
        %7747 = vmatpush1.msra.mxu0 0.0
        %7748 = vmatprep.subr.mxu0 0.0
        %7749 = vmatpush1.msra.mxu0 0.0
        %7750 = vmatprep.subr.mxu0 0.0
        %7751 = vmatpush1.msra.mxu0 0.0
        %7752 = vmatprep.subr.mxu0 0.0
        %7753 = vmatpush1.msra.mxu0 0.0
        %7754 = vmatprep.mubr.f32.mxu0 0.0
        %7755 = vmatmul.mubr.f32.gmra.mrb[0].mxu0 %v7682
        %v7756 = vpop.f32.mrb[0].mxu0
        %v7757 = vadd.f32 0.0, %v7756
        %v7758 = vpop.f32.mrb[0].mxu0
        %v7759 = vadd.f32 0.0, %v7758
        %7760 = vdwg.mxu0
        %v7761 = vadd.f32 %v7669, %v7757
        %v7762 = vadd.f32 %v7670, %v7759
        %7763 = vrot.lane.b32.xlu0 %v7130, 112
        %v7764 = vpop.permute.xlu0 %7763
        %7765 = vrot.lane.b32.xlu0 %v7131, 112
        %v7766 = vpop.permute.xlu0 %7765
        %v7767 = vsel %vm924, %v7764, %v7766
        %v7768 = vsel %vm924, %v7766, %v7764
        %v7769 = vmul.f32 %v7767, %v933
        %v7770 = vmul.f32 %v7768, %v937
        %s7771 = scalar_lea.vmem %s17, 56
        %v7772 = vld [vmem:[%s7771] sm:$0x7f]
        %v7774 = vsel %vm3670, %v7772, 0
        %v7777 = vsel %vm1962, %v7769, 0
        %v7780 = vsel %vm1962, %v7770, 0
        %7782 = vmatprep.subr.mxu0 %v7780
        %7783 = vmatpush1.msra.mxu0 %v7777
        %7784 = vmatprep.subr.mxu0 0.0
        %7785 = vmatpush1.msra.mxu0 0.0
        %7786 = vmatprep.subr.mxu0 0.0
        %7787 = vmatpush1.msra.mxu0 0.0
        %7788 = vmatprep.subr.mxu0 0.0
        %7789 = vmatpush1.msra.mxu0 0.0
        %7790 = vmatprep.subr.mxu0 0.0
        %7791 = vmatpush1.msra.mxu0 0.0
        %7792 = vmatprep.subr.mxu0 0.0
        %7793 = vmatpush1.msra.mxu0 0.0
        %7794 = vmatprep.subr.mxu0 0.0
        %7795 = vmatpush1.msra.mxu0 0.0
        %7796 = vmatprep.subr.mxu0 0.0
        %7797 = vmatpush1.msra.mxu0 0.0
        %7798 = vmatprep.subr.mxu0 0.0
        %7799 = vmatpush1.msra.mxu0 0.0
        %7800 = vmatprep.subr.mxu0 0.0
        %7801 = vmatpush1.msra.mxu0 0.0
        %7802 = vmatprep.subr.mxu0 0.0
        %7803 = vmatpush1.msra.mxu0 0.0
        %7804 = vmatprep.subr.mxu0 0.0
        %7805 = vmatpush1.msra.mxu0 0.0
        %7806 = vmatprep.subr.mxu0 0.0
        %7807 = vmatpush1.msra.mxu0 0.0
        %7808 = vmatprep.subr.mxu0 0.0
        %7809 = vmatpush1.msra.mxu0 0.0
        %7810 = vmatprep.subr.mxu0 0.0
        %7811 = vmatpush1.msra.mxu0 0.0
        %7812 = vmatprep.subr.mxu0 0.0
        %7813 = vmatpush1.msra.mxu0 0.0
        %7814 = vmatprep.subr.mxu0 0.0
        %7815 = vmatpush1.msra.mxu0 0.0
        %7816 = vmatprep.subr.mxu0 0.0
        %7817 = vmatpush1.msra.mxu0 0.0
        %7818 = vmatprep.subr.mxu0 0.0
        %7819 = vmatpush1.msra.mxu0 0.0
        %7820 = vmatprep.subr.mxu0 0.0
        %7821 = vmatpush1.msra.mxu0 0.0
        %7822 = vmatprep.subr.mxu0 0.0
        %7823 = vmatpush1.msra.mxu0 0.0
        %7824 = vmatprep.subr.mxu0 0.0
        %7825 = vmatpush1.msra.mxu0 0.0
        %7826 = vmatprep.subr.mxu0 0.0
        %7827 = vmatpush1.msra.mxu0 0.0
        %7828 = vmatprep.subr.mxu0 0.0
        %7829 = vmatpush1.msra.mxu0 0.0
        %7830 = vmatprep.subr.mxu0 0.0
        %7831 = vmatpush1.msra.mxu0 0.0
        %7832 = vmatprep.subr.mxu0 0.0
        %7833 = vmatpush1.msra.mxu0 0.0
        %7834 = vmatprep.subr.mxu0 0.0
        %7835 = vmatpush1.msra.mxu0 0.0
        %7836 = vmatprep.subr.mxu0 0.0
        %7837 = vmatpush1.msra.mxu0 0.0
        %7838 = vmatprep.subr.mxu0 0.0
        %7839 = vmatpush1.msra.mxu0 0.0
        %7840 = vmatprep.subr.mxu0 0.0
        %7841 = vmatpush1.msra.mxu0 0.0
        %7842 = vmatprep.subr.mxu0 0.0
        %7843 = vmatpush1.msra.mxu0 0.0
        %7844 = vmatprep.subr.mxu0 0.0
        %7845 = vmatpush1.msra.mxu0 0.0
        %7846 = vmatprep.mubr.f32.mxu0 0.0
        %7847 = vmatmul.mubr.f32.gmra.mrb[0].mxu0 %v7774
        %v7848 = vpop.f32.mrb[0].mxu0
        %v7849 = vadd.f32 0.0, %v7848
        %v7850 = vpop.f32.mrb[0].mxu0
        %v7851 = vadd.f32 0.0, %v7850
        %7852 = vdwg.mxu0
        %v7853 = vadd.f32 %v7761, %v7849
        %v7854 = vadd.f32 %v7762, %v7851
        %7855 = vrot.lane.b32.xlu0 %v7130, 111
        %v7856 = vpop.permute.xlu0 %7855
        %7857 = vrot.lane.b32.xlu0 %v7131, 111
        %v7858 = vpop.permute.xlu0 %7857
        %v7859 = vsel %vm965, %v7856, %v7858
        %v7860 = vsel %vm965, %v7858, %v7856
        %v7861 = vmul.f32 %v7859, %v974
        %v7862 = vmul.f32 %v7860, %v978
        %s7863 = scalar_lea.vmem %s17, 64
        %v7864 = vld [vmem:[%s7863] sm:$0x7f]
        %v7866 = vsel %vm3670, %v7864, 0
        %v7869 = vsel %vm1962, %v7861, 0
        %v7872 = vsel %vm1962, %v7862, 0
        %7874 = vmatprep.subr.mxu0 %v7872
        %7875 = vmatpush1.msra.mxu0 %v7869
        %7876 = vmatprep.subr.mxu0 0.0
        %7877 = vmatpush1.msra.mxu0 0.0
        %7878 = vmatprep.subr.mxu0 0.0
        %7879 = vmatpush1.msra.mxu0 0.0
        %7880 = vmatprep.subr.mxu0 0.0
        %7881 = vmatpush1.msra.mxu0 0.0
        %7882 = vmatprep.subr.mxu0 0.0
        %7883 = vmatpush1.msra.mxu0 0.0
        %7884 = vmatprep.subr.mxu0 0.0
        %7885 = vmatpush1.msra.mxu0 0.0
        %7886 = vmatprep.subr.mxu0 0.0
        %7887 = vmatpush1.msra.mxu0 0.0
        %7888 = vmatprep.subr.mxu0 0.0
        %7889 = vmatpush1.msra.mxu0 0.0
        %7890 = vmatprep.subr.mxu0 0.0
        %7891 = vmatpush1.msra.mxu0 0.0
        %7892 = vmatprep.subr.mxu0 0.0
        %7893 = vmatpush1.msra.mxu0 0.0
        %7894 = vmatprep.subr.mxu0 0.0
        %7895 = vmatpush1.msra.mxu0 0.0
        %7896 = vmatprep.subr.mxu0 0.0
        %7897 = vmatpush1.msra.mxu0 0.0
        %7898 = vmatprep.subr.mxu0 0.0
        %7899 = vmatpush1.msra.mxu0 0.0
        %7900 = vmatprep.subr.mxu0 0.0
        %7901 = vmatpush1.msra.mxu0 0.0
        %7902 = vmatprep.subr.mxu0 0.0
        %7903 = vmatpush1.msra.mxu0 0.0
        %7904 = vmatprep.subr.mxu0 0.0
        %7905 = vmatpush1.msra.mxu0 0.0
        %7906 = vmatprep.subr.mxu0 0.0
        %7907 = vmatpush1.msra.mxu0 0.0
        %7908 = vmatprep.subr.mxu0 0.0
        %7909 = vmatpush1.msra.mxu0 0.0
        %7910 = vmatprep.subr.mxu0 0.0
        %7911 = vmatpush1.msra.mxu0 0.0
        %7912 = vmatprep.subr.mxu0 0.0
        %7913 = vmatpush1.msra.mxu0 0.0
        %7914 = vmatprep.subr.mxu0 0.0
        %7915 = vmatpush1.msra.mxu0 0.0
        %7916 = vmatprep.subr.mxu0 0.0
        %7917 = vmatpush1.msra.mxu0 0.0
        %7918 = vmatprep.subr.mxu0 0.0
        %7919 = vmatpush1.msra.mxu0 0.0
        %7920 = vmatprep.subr.mxu0 0.0
        %7921 = vmatpush1.msra.mxu0 0.0
        %7922 = vmatprep.subr.mxu0 0.0
        %7923 = vmatpush1.msra.mxu0 0.0
        %7924 = vmatprep.subr.mxu0 0.0
        %7925 = vmatpush1.msra.mxu0 0.0
        %7926 = vmatprep.subr.mxu0 0.0
        %7927 = vmatpush1.msra.mxu0 0.0
        %7928 = vmatprep.subr.mxu0 0.0
        %7929 = vmatpush1.msra.mxu0 0.0
        %7930 = vmatprep.subr.mxu0 0.0
        %7931 = vmatpush1.msra.mxu0 0.0
        %7932 = vmatprep.subr.mxu0 0.0
        %7933 = vmatpush1.msra.mxu0 0.0
        %7934 = vmatprep.subr.mxu0 0.0
        %7935 = vmatpush1.msra.mxu0 0.0
        %7936 = vmatprep.subr.mxu0 0.0
        %7937 = vmatpush1.msra.mxu0 0.0
        %7938 = vmatprep.mubr.f32.mxu0 0.0
        %7939 = vmatmul.mubr.f32.gmra.mrb[0].mxu0 %v7866
        %v7940 = vpop.f32.mrb[0].mxu0
        %v7941 = vadd.f32 0.0, %v7940
        %v7942 = vpop.f32.mrb[0].mxu0
        %v7943 = vadd.f32 0.0, %v7942
        %7944 = vdwg.mxu0
        %v7945 = vadd.f32 %v7853, %v7941
        %v7946 = vadd.f32 %v7854, %v7943
        %v7947 = vld [vmem:[%s18] sm:$0x7f]
        %7949 = vset.pattern.permute.xlu0 0
        %7950 = vperm.xlu0 %7949, %v7947
        %v7951 = vpop.permute.xlu0 %7950
        %v7953 = vadd.f32 %v7945, %v7951
        %v7954 = vadd.f32 %v7946, %v7951
        %v7955 = vxor.u32 %v7953, 2147483648
        %v7956 = vxor.u32 %v7954, 2147483648
        %v7957 = vmul.f32 %v7955, 1.442695
        %v7958 = vpow.pop %v7957
        %v7959 = vmul.f32 %v7956, 1.442695
        %v7960 = vpow.pop %v7959
        %v7961 = vadd.f32 %v7958, 1.0
        %v7962 = vadd.f32 %v7960, 1.0
        %v7963 = vrcp.pop %v7961
        %v7964 = vmul.f32 1.0, %v7963
        %v7965 = vrcp.pop %v7962
        %v7966 = vmul.f32 1.0, %v7965
        %v7967 = vmul.f32 %v4489, %v7964
        %v7968 = vmul.f32 %v4490, %v7966
        %v7969 = vadd.f32 %v7967, %v4489
        %v7970 = vadd.f32 %v7968, %v4490
        %7971 = vrot.lane.b32.xlu0 %v7969, 17
        %v7972 = vpop.permute.xlu0 %7971
        %7973 = vrot.lane.b32.xlu0 %v7970, 17
        %v7974 = vpop.permute.xlu0 %7973
        %v7975 = vsel %vm669, %v7972, %v7974
        %v7976 = vsel %vm669, %v7974, %v7972
        %v7977 = vmul.f32 %v7976, %v677
        %v7978 = vmul.f32 %v7975, %v681
        %v7979 = vld [vmem:[%s19] sm:$0xff]
        %v7980 = vld [vmem:[%s19 + $0x8] sm:$0xff]
        %v7981 = vld [vmem:[%s19 + $0x10] sm:$0x1]
        %7982 = vrot.lane.b32.xlu0 %v7969, 16
        %v7983 = vpop.permute.xlu0 %7982
        %7984 = vrot.lane.b32.xlu0 %v7970, 16
        %v7985 = vpop.permute.xlu0 %7984
        %v7986 = vsel %vm708, %v7983, %v7985
        %v7987 = vsel %vm708, %v7985, %v7983
        %v7988 = vmul.f32 %v7987, %v717
        %v7989 = vmul.f32 %v7986, %v721
        %s7990 = scalar_lea.vmem %s19, 24
        %v7991 = vld [vmem:[%s7990] sm:$0xff]
        %v7992 = vld [vmem:[%s7990 + $0x8] sm:$0xff]
        %v7993 = vld [vmem:[%s7990 + $0x10] sm:$0x1]
        %v7995 = vsel %vm1025, %v7991, 0
        %v7998 = vsel %vm1025, %v7992, 0
        %v8001 = vsel %vm1025, %v7993, 0
        %v8004 = vsel %vm1032, %v7988, 0
        %v8007 = vsel %vm1032, %v7989, 0
        %8009 = vmatprep.subr.mxu0 %v8007
        %8010 = vmatpush1.msra.mxu0 %v8004
        %8011 = vmatprep.subr.mxu0 0.0
        %8012 = vmatpush1.msra.mxu0 0.0
        %8013 = vmatprep.subr.mxu0 0.0
        %8014 = vmatpush1.msra.mxu0 0.0
        %8015 = vmatprep.subr.mxu0 0.0
        %8016 = vmatpush1.msra.mxu0 0.0
        %8017 = vmatprep.subr.mxu0 0.0
        %8018 = vmatpush1.msra.mxu0 0.0
        %8019 = vmatprep.subr.mxu0 0.0
        %8020 = vmatpush1.msra.mxu0 0.0
        %8021 = vmatprep.subr.mxu0 0.0
        %8022 = vmatpush1.msra.mxu0 0.0
        %8023 = vmatprep.subr.mxu0 0.0
        %8024 = vmatpush1.msra.mxu0 0.0
        %8025 = vmatprep.subr.mxu0 0.0
        %8026 = vmatpush1.msra.mxu0 0.0
        %8027 = vmatprep.subr.mxu0 0.0
        %8028 = vmatpush1.msra.mxu0 0.0
        %8029 = vmatprep.subr.mxu0 0.0
        %8030 = vmatpush1.msra.mxu0 0.0
        %8031 = vmatprep.subr.mxu0 0.0
        %8032 = vmatpush1.msra.mxu0 0.0
        %8033 = vmatprep.subr.mxu0 0.0
        %8034 = vmatpush1.msra.mxu0 0.0
        %8035 = vmatprep.subr.mxu0 0.0
        %8036 = vmatpush1.msra.mxu0 0.0
        %8037 = vmatprep.subr.mxu0 0.0
        %8038 = vmatpush1.msra.mxu0 0.0
        %8039 = vmatprep.subr.mxu0 0.0
        %8040 = vmatpush1.msra.mxu0 0.0
        %8041 = vmatprep.subr.mxu0 0.0
        %8042 = vmatpush1.msra.mxu0 0.0
        %8043 = vmatprep.subr.mxu0 0.0
        %8044 = vmatpush1.msra.mxu0 0.0
        %8045 = vmatprep.subr.mxu0 0.0
        %8046 = vmatpush1.msra.mxu0 0.0
        %8047 = vmatprep.subr.mxu0 0.0
        %8048 = vmatpush1.msra.mxu0 0.0
        %8049 = vmatprep.subr.mxu0 0.0
        %8050 = vmatpush1.msra.mxu0 0.0
        %8051 = vmatprep.subr.mxu0 0.0
        %8052 = vmatpush1.msra.mxu0 0.0
        %8053 = vmatprep.subr.mxu0 0.0
        %8054 = vmatpush1.msra.mxu0 0.0
        %8055 = vmatprep.subr.mxu0 0.0
        %8056 = vmatpush1.msra.mxu0 0.0
        %8057 = vmatprep.subr.mxu0 0.0
        %8058 = vmatpush1.msra.mxu0 0.0
        %8059 = vmatprep.subr.mxu0 0.0
        %8060 = vmatpush1.msra.mxu0 0.0
        %8061 = vmatprep.subr.mxu0 0.0
        %8062 = vmatpush1.msra.mxu0 0.0
        %8063 = vmatprep.subr.mxu0 0.0
        %8064 = vmatpush1.msra.mxu0 0.0
        %8065 = vmatprep.subr.mxu0 0.0
        %8066 = vmatpush1.msra.mxu0 0.0
        %8067 = vmatprep.subr.mxu0 0.0
        %8068 = vmatpush1.msra.mxu0 0.0
        %8069 = vmatprep.subr.mxu0 0.0
        %8070 = vmatpush1.msra.mxu0 0.0
        %8071 = vmatprep.subr.mxu0 0.0
        %8072 = vmatpush1.msra.mxu0 0.0
        %8073 = vmatprep.mubr.f32.mxu0 0.0
        %8074 = vmatmul.mubr.f32.gmra.mrb[0].mxu0 %v7995
        %v8075 = vpop.f32.mrb[0].mxu0
        %v8076 = vadd.f32 0.0, %v8075
        %v8077 = vpop.f32.mrb[0].mxu0
        %v8078 = vadd.f32 0.0, %v8077
        %8079 = vmatprep.mubr.f32.mxu0 0.0
        %8080 = vmatmul.mubr.f32.gmra.mrb[0].mxu0 %v7998
        %v8081 = vpop.f32.mrb[0].mxu0
        %v8082 = vadd.f32 0.0, %v8081
        %v8083 = vpop.f32.mrb[0].mxu0
        %v8084 = vadd.f32 0.0, %v8083
        %8085 = vmatprep.mubr.f32.mxu0 0.0
        %8086 = vmatmul.mubr.f32.gmra.mrb[0].mxu0 %v8001
        %v8087 = vpop.f32.mrb[0].mxu0
        %v8088 = vadd.f32 0.0, %v8087
        %v8089 = vpop.f32.mrb[0].mxu0
        %v8090 = vadd.f32 0.0, %v8089
        %8091 = vdwg.mxu0
        %v8093 = vsel %vm1025, %v7979, 0
        %v8096 = vsel %vm1025, %v7980, 0
        %v8099 = vsel %vm1025, %v7981, 0
        %v8102 = vsel %vm1032, %v7977, 0
        %v8105 = vsel %vm1032, %v7978, 0
        %8107 = vmatprep.subr.mxu0 %v8105
        %8108 = vmatpush1.msra.mxu0 %v8102
        %8109 = vmatprep.subr.mxu0 0.0
        %8110 = vmatpush1.msra.mxu0 0.0
        %8111 = vmatprep.subr.mxu0 0.0
        %8112 = vmatpush1.msra.mxu0 0.0
        %8113 = vmatprep.subr.mxu0 0.0
        %8114 = vmatpush1.msra.mxu0 0.0
        %8115 = vmatprep.subr.mxu0 0.0
        %8116 = vmatpush1.msra.mxu0 0.0
        %8117 = vmatprep.subr.mxu0 0.0
        %8118 = vmatpush1.msra.mxu0 0.0
        %8119 = vmatprep.subr.mxu0 0.0
        %8120 = vmatpush1.msra.mxu0 0.0
        %8121 = vmatprep.subr.mxu0 0.0
        %8122 = vmatpush1.msra.mxu0 0.0
        %8123 = vmatprep.subr.mxu0 0.0
        %8124 = vmatpush1.msra.mxu0 0.0
        %8125 = vmatprep.subr.mxu0 0.0
        %8126 = vmatpush1.msra.mxu0 0.0
        %8127 = vmatprep.subr.mxu0 0.0
        %8128 = vmatpush1.msra.mxu0 0.0
        %8129 = vmatprep.subr.mxu0 0.0
        %8130 = vmatpush1.msra.mxu0 0.0
        %8131 = vmatprep.subr.mxu0 0.0
        %8132 = vmatpush1.msra.mxu0 0.0
        %8133 = vmatprep.subr.mxu0 0.0
        %8134 = vmatpush1.msra.mxu0 0.0
        %8135 = vmatprep.subr.mxu0 0.0
        %8136 = vmatpush1.msra.mxu0 0.0
        %8137 = vmatprep.subr.mxu0 0.0
        %8138 = vmatpush1.msra.mxu0 0.0
        %8139 = vmatprep.subr.mxu0 0.0
        %8140 = vmatpush1.msra.mxu0 0.0
        %8141 = vmatprep.subr.mxu0 0.0
        %8142 = vmatpush1.msra.mxu0 0.0
        %8143 = vmatprep.subr.mxu0 0.0
        %8144 = vmatpush1.msra.mxu0 0.0
        %8145 = vmatprep.subr.mxu0 0.0
        %8146 = vmatpush1.msra.mxu0 0.0
        %8147 = vmatprep.subr.mxu0 0.0
        %8148 = vmatpush1.msra.mxu0 0.0
        %8149 = vmatprep.subr.mxu0 0.0
        %8150 = vmatpush1.msra.mxu0 0.0
        %8151 = vmatprep.subr.mxu0 0.0
        %8152 = vmatpush1.msra.mxu0 0.0
        %8153 = vmatprep.subr.mxu0 0.0
        %8154 = vmatpush1.msra.mxu0 0.0
        %8155 = vmatprep.subr.mxu0 0.0
        %8156 = vmatpush1.msra.mxu0 0.0
        %8157 = vmatprep.subr.mxu0 0.0
        %8158 = vmatpush1.msra.mxu0 0.0
        %8159 = vmatprep.subr.mxu0 0.0
        %8160 = vmatpush1.msra.mxu0 0.0
        %8161 = vmatprep.subr.mxu0 0.0
        %8162 = vmatpush1.msra.mxu0 0.0
        %8163 = vmatprep.subr.mxu0 0.0
        %8164 = vmatpush1.msra.mxu0 0.0
        %8165 = vmatprep.subr.mxu0 0.0
        %8166 = vmatpush1.msra.mxu0 0.0
        %8167 = vmatprep.subr.mxu0 0.0
        %8168 = vmatpush1.msra.mxu0 0.0
        %8169 = vmatprep.subr.mxu0 0.0
        %8170 = vmatpush1.msra.mxu0 0.0
        %8171 = vmatprep.mubr.f32.mxu0 0.0
        %8172 = vmatmul.mubr.f32.gmra.mrb[0].mxu0 %v8093
        %v8173 = vpop.f32.mrb[0].mxu0
        %v8174 = vadd.f32 %v8076, %v8173
        %v8175 = vpop.f32.mrb[0].mxu0
        %v8176 = vadd.f32 %v8078, %v8175
        %8177 = vmatprep.mubr.f32.mxu0 0.0
        %8178 = vmatmul.mubr.f32.gmra.mrb[0].mxu0 %v8096
        %v8179 = vpop.f32.mrb[0].mxu0
        %v8180 = vadd.f32 %v8082, %v8179
        %v8181 = vpop.f32.mrb[0].mxu0
        %v8182 = vadd.f32 %v8084, %v8181
        %8183 = vmatprep.mubr.f32.mxu0 0.0
        %8184 = vmatmul.mubr.f32.gmra.mrb[0].mxu0 %v8099
        %v8185 = vpop.f32.mrb[0].mxu0
        %v8186 = vadd.f32 %v8088, %v8185
        %v8187 = vpop.f32.mrb[0].mxu0
        %v8188 = vadd.f32 %v8090, %v8187
        %8189 = vdwg.mxu0
        %8190 = vrot.lane.b32.xlu0 %v7969, 15
        %v8191 = vpop.permute.xlu0 %8190
        %8192 = vrot.lane.b32.xlu0 %v7970, 15
        %v8193 = vpop.permute.xlu0 %8192
        %v8194 = vsel %vm749, %v8191, %v8193
        %v8195 = vsel %vm749, %v8193, %v8191
        %v8196 = vmul.f32 %v8195, %v758
        %v8197 = vmul.f32 %v8194, %v762
        %s8198 = scalar_lea.vmem %s19, 48
        %v8199 = vld [vmem:[%s8198] sm:$0xff]
        %v8200 = vld [vmem:[%s8198 + $0x8] sm:$0xff]
        %v8201 = vld [vmem:[%s8198 + $0x10] sm:$0x1]
        %v8203 = vsel %vm1025, %v8199, 0
        %v8206 = vsel %vm1025, %v8200, 0
        %v8209 = vsel %vm1025, %v8201, 0
        %v8212 = vsel %vm1032, %v8196, 0
        %v8215 = vsel %vm1032, %v8197, 0
        %8217 = vmatprep.subr.mxu0 %v8215
        %8218 = vmatpush1.msra.mxu0 %v8212
        %8219 = vmatprep.subr.mxu0 0.0
        %8220 = vmatpush1.msra.mxu0 0.0
        %8221 = vmatprep.subr.mxu0 0.0
        %8222 = vmatpush1.msra.mxu0 0.0
        %8223 = vmatprep.subr.mxu0 0.0
        %8224 = vmatpush1.msra.mxu0 0.0
        %8225 = vmatprep.subr.mxu0 0.0
        %8226 = vmatpush1.msra.mxu0 0.0
        %8227 = vmatprep.subr.mxu0 0.0
        %8228 = vmatpush1.msra.mxu0 0.0
        %8229 = vmatprep.subr.mxu0 0.0
        %8230 = vmatpush1.msra.mxu0 0.0
        %8231 = vmatprep.subr.mxu0 0.0
        %8232 = vmatpush1.msra.mxu0 0.0
        %8233 = vmatprep.subr.mxu0 0.0
        %8234 = vmatpush1.msra.mxu0 0.0
        %8235 = vmatprep.subr.mxu0 0.0
        %8236 = vmatpush1.msra.mxu0 0.0
        %8237 = vmatprep.subr.mxu0 0.0
        %8238 = vmatpush1.msra.mxu0 0.0
        %8239 = vmatprep.subr.mxu0 0.0
        %8240 = vmatpush1.msra.mxu0 0.0
        %8241 = vmatprep.subr.mxu0 0.0
        %8242 = vmatpush1.msra.mxu0 0.0
        %8243 = vmatprep.subr.mxu0 0.0
        %8244 = vmatpush1.msra.mxu0 0.0
        %8245 = vmatprep.subr.mxu0 0.0
        %8246 = vmatpush1.msra.mxu0 0.0
        %8247 = vmatprep.subr.mxu0 0.0
        %8248 = vmatpush1.msra.mxu0 0.0
        %8249 = vmatprep.subr.mxu0 0.0
        %8250 = vmatpush1.msra.mxu0 0.0
        %8251 = vmatprep.subr.mxu0 0.0
        %8252 = vmatpush1.msra.mxu0 0.0
        %8253 = vmatprep.subr.mxu0 0.0
        %8254 = vmatpush1.msra.mxu0 0.0
        %8255 = vmatprep.subr.mxu0 0.0
        %8256 = vmatpush1.msra.mxu0 0.0
        %8257 = vmatprep.subr.mxu0 0.0
        %8258 = vmatpush1.msra.mxu0 0.0
        %8259 = vmatprep.subr.mxu0 0.0
        %8260 = vmatpush1.msra.mxu0 0.0
        %8261 = vmatprep.subr.mxu0 0.0
        %8262 = vmatpush1.msra.mxu0 0.0
        %8263 = vmatprep.subr.mxu0 0.0
        %8264 = vmatpush1.msra.mxu0 0.0
        %8265 = vmatprep.subr.mxu0 0.0
        %8266 = vmatpush1.msra.mxu0 0.0
        %8267 = vmatprep.subr.mxu0 0.0
        %8268 = vmatpush1.msra.mxu0 0.0
        %8269 = vmatprep.subr.mxu0 0.0
        %8270 = vmatpush1.msra.mxu0 0.0
        %8271 = vmatprep.subr.mxu0 0.0
        %8272 = vmatpush1.msra.mxu0 0.0
        %8273 = vmatprep.subr.mxu0 0.0
        %8274 = vmatpush1.msra.mxu0 0.0
        %8275 = vmatprep.subr.mxu0 0.0
        %8276 = vmatpush1.msra.mxu0 0.0
        %8277 = vmatprep.subr.mxu0 0.0
        %8278 = vmatpush1.msra.mxu0 0.0
        %8279 = vmatprep.subr.mxu0 0.0
        %8280 = vmatpush1.msra.mxu0 0.0
        %8281 = vmatprep.mubr.f32.mxu0 0.0
        %8282 = vmatmul.mubr.f32.gmra.mrb[0].mxu0 %v8203
        %v8283 = vpop.f32.mrb[0].mxu0
        %v8284 = vadd.f32 0.0, %v8283
        %v8285 = vpop.f32.mrb[0].mxu0
        %v8286 = vadd.f32 0.0, %v8285
        %8287 = vmatprep.mubr.f32.mxu0 0.0
        %8288 = vmatmul.mubr.f32.gmra.mrb[0].mxu0 %v8206
        %v8289 = vpop.f32.mrb[0].mxu0
        %v8290 = vadd.f32 0.0, %v8289
        %v8291 = vpop.f32.mrb[0].mxu0
        %v8292 = vadd.f32 0.0, %v8291
        %8293 = vmatprep.mubr.f32.mxu0 0.0
        %8294 = vmatmul.mubr.f32.gmra.mrb[0].mxu0 %v8209
        %v8295 = vpop.f32.mrb[0].mxu0
        %v8296 = vadd.f32 0.0, %v8295
        %v8297 = vpop.f32.mrb[0].mxu0
        %v8298 = vadd.f32 0.0, %v8297
        %8299 = vdwg.mxu0
        %v8300 = vadd.f32 %v8174, %v8284
        %v8301 = vadd.f32 %v8176, %v8286
        %v8302 = vadd.f32 %v8180, %v8290
        %v8303 = vadd.f32 %v8182, %v8292
        %v8304 = vadd.f32 %v8186, %v8296
        %v8305 = vadd.f32 %v8188, %v8298
        %8306 = vrot.lane.b32.xlu0 %v7969, 1
        %v8307 = vpop.permute.xlu0 %8306
        %8308 = vrot.lane.b32.xlu0 %v7970, 1
        %v8309 = vpop.permute.xlu0 %8308
        %v8310 = vsel %vm790, %v8307, %v8309
        %v8311 = vsel %vm790, %v8309, %v8307
        %v8312 = vmul.f32 %v8311, %v799
        %v8313 = vmul.f32 %v8310, %v803
        %s8314 = scalar_lea.vmem %s19, 72
        %v8315 = vld [vmem:[%s8314] sm:$0xff]
        %v8316 = vld [vmem:[%s8314 + $0x8] sm:$0xff]
        %v8317 = vld [vmem:[%s8314 + $0x10] sm:$0x1]
        %v8319 = vsel %vm1025, %v8315, 0
        %v8322 = vsel %vm1025, %v8316, 0
        %v8325 = vsel %vm1025, %v8317, 0
        %v8328 = vsel %vm1032, %v8312, 0
        %v8331 = vsel %vm1032, %v8313, 0
        %8333 = vmatprep.subr.mxu0 %v8331
        %8334 = vmatpush1.msra.mxu0 %v8328
        %8335 = vmatprep.subr.mxu0 0.0
        %8336 = vmatpush1.msra.mxu0 0.0
        %8337 = vmatprep.subr.mxu0 0.0
        %8338 = vmatpush1.msra.mxu0 0.0
        %8339 = vmatprep.subr.mxu0 0.0
        %8340 = vmatpush1.msra.mxu0 0.0
        %8341 = vmatprep.subr.mxu0 0.0
        %8342 = vmatpush1.msra.mxu0 0.0
        %8343 = vmatprep.subr.mxu0 0.0
        %8344 = vmatpush1.msra.mxu0 0.0
        %8345 = vmatprep.subr.mxu0 0.0
        %8346 = vmatpush1.msra.mxu0 0.0
        %8347 = vmatprep.subr.mxu0 0.0
        %8348 = vmatpush1.msra.mxu0 0.0
        %8349 = vmatprep.subr.mxu0 0.0
        %8350 = vmatpush1.msra.mxu0 0.0
        %8351 = vmatprep.subr.mxu0 0.0
        %8352 = vmatpush1.msra.mxu0 0.0
        %8353 = vmatprep.subr.mxu0 0.0
        %8354 = vmatpush1.msra.mxu0 0.0
        %8355 = vmatprep.subr.mxu0 0.0
        %8356 = vmatpush1.msra.mxu0 0.0
        %8357 = vmatprep.subr.mxu0 0.0
        %8358 = vmatpush1.msra.mxu0 0.0
        %8359 = vmatprep.subr.mxu0 0.0
        %8360 = vmatpush1.msra.mxu0 0.0
        %8361 = vmatprep.subr.mxu0 0.0
        %8362 = vmatpush1.msra.mxu0 0.0
        %8363 = vmatprep.subr.mxu0 0.0
        %8364 = vmatpush1.msra.mxu0 0.0
        %8365 = vmatprep.subr.mxu0 0.0
        %8366 = vmatpush1.msra.mxu0 0.0
        %8367 = vmatprep.subr.mxu0 0.0
        %8368 = vmatpush1.msra.mxu0 0.0
        %8369 = vmatprep.subr.mxu0 0.0
        %8370 = vmatpush1.msra.mxu0 0.0
        %8371 = vmatprep.subr.mxu0 0.0
        %8372 = vmatpush1.msra.mxu0 0.0
        %8373 = vmatprep.subr.mxu0 0.0
        %8374 = vmatpush1.msra.mxu0 0.0
        %8375 = vmatprep.subr.mxu0 0.0
        %8376 = vmatpush1.msra.mxu0 0.0
        %8377 = vmatprep.subr.mxu0 0.0
        %8378 = vmatpush1.msra.mxu0 0.0
        %8379 = vmatprep.subr.mxu0 0.0
        %8380 = vmatpush1.msra.mxu0 0.0
        %8381 = vmatprep.subr.mxu0 0.0
        %8382 = vmatpush1.msra.mxu0 0.0
        %8383 = vmatprep.subr.mxu0 0.0
        %8384 = vmatpush1.msra.mxu0 0.0
        %8385 = vmatprep.subr.mxu0 0.0
        %8386 = vmatpush1.msra.mxu0 0.0
        %8387 = vmatprep.subr.mxu0 0.0
        %8388 = vmatpush1.msra.mxu0 0.0
        %8389 = vmatprep.subr.mxu0 0.0
        %8390 = vmatpush1.msra.mxu0 0.0
        %8391 = vmatprep.subr.mxu0 0.0
        %8392 = vmatpush1.msra.mxu0 0.0
        %8393 = vmatprep.subr.mxu0 0.0
        %8394 = vmatpush1.msra.mxu0 0.0
        %8395 = vmatprep.subr.mxu0 0.0
        %8396 = vmatpush1.msra.mxu0 0.0
        %8397 = vmatprep.mubr.f32.mxu0 0.0
        %8398 = vmatmul.mubr.f32.gmra.mrb[0].mxu0 %v8319
        %v8399 = vpop.f32.mrb[0].mxu0
        %v8400 = vadd.f32 0.0, %v8399
        %v8401 = vpop.f32.mrb[0].mxu0
        %v8402 = vadd.f32 0.0, %v8401
        %8403 = vmatprep.mubr.f32.mxu0 0.0
        %8404 = vmatmul.mubr.f32.gmra.mrb[0].mxu0 %v8322
        %v8405 = vpop.f32.mrb[0].mxu0
        %v8406 = vadd.f32 0.0, %v8405
        %v8407 = vpop.f32.mrb[0].mxu0
        %v8408 = vadd.f32 0.0, %v8407
        %8409 = vmatprep.mubr.f32.mxu0 0.0
        %8410 = vmatmul.mubr.f32.gmra.mrb[0].mxu0 %v8325
        %v8411 = vpop.f32.mrb[0].mxu0
        %v8412 = vadd.f32 0.0, %v8411
        %v8413 = vpop.f32.mrb[0].mxu0
        %v8414 = vadd.f32 0.0, %v8413
        %8415 = vdwg.mxu0
        %v8416 = vadd.f32 %v8300, %v8400
        %v8417 = vadd.f32 %v8301, %v8402
        %v8418 = vadd.f32 %v8302, %v8406
        %v8419 = vadd.f32 %v8303, %v8408
        %v8420 = vadd.f32 %v8304, %v8412
        %v8421 = vadd.f32 %v8305, %v8414
        %s8422 = scalar_lea.vmem %s19, 96
        %v8423 = vld [vmem:[%s8422] sm:$0xff]
        %v8424 = vld [vmem:[%s8422 + $0x8] sm:$0xff]
        %v8425 = vld [vmem:[%s8422 + $0x10] sm:$0x1]
        %v8427 = vsel %vm1025, %v8423, 0
        %v8430 = vsel %vm1025, %v8424, 0
        %v8433 = vsel %vm1025, %v8425, 0
        %v8436 = vsel %vm1032, %v7969, 0
        %v8439 = vsel %vm1032, %v7970, 0
        %8441 = vmatprep.subr.mxu0 %v8439
        %8442 = vmatpush1.msra.mxu0 %v8436
        %8443 = vmatprep.subr.mxu0 0.0
        %8444 = vmatpush1.msra.mxu0 0.0
        %8445 = vmatprep.subr.mxu0 0.0
        %8446 = vmatpush1.msra.mxu0 0.0
        %8447 = vmatprep.subr.mxu0 0.0
        %8448 = vmatpush1.msra.mxu0 0.0
        %8449 = vmatprep.subr.mxu0 0.0
        %8450 = vmatpush1.msra.mxu0 0.0
        %8451 = vmatprep.subr.mxu0 0.0
        %8452 = vmatpush1.msra.mxu0 0.0
        %8453 = vmatprep.subr.mxu0 0.0
        %8454 = vmatpush1.msra.mxu0 0.0
        %8455 = vmatprep.subr.mxu0 0.0
        %8456 = vmatpush1.msra.mxu0 0.0
        %8457 = vmatprep.subr.mxu0 0.0
        %8458 = vmatpush1.msra.mxu0 0.0
        %8459 = vmatprep.subr.mxu0 0.0
        %8460 = vmatpush1.msra.mxu0 0.0
        %8461 = vmatprep.subr.mxu0 0.0
        %8462 = vmatpush1.msra.mxu0 0.0
        %8463 = vmatprep.subr.mxu0 0.0
        %8464 = vmatpush1.msra.mxu0 0.0
        %8465 = vmatprep.subr.mxu0 0.0
        %8466 = vmatpush1.msra.mxu0 0.0
        %8467 = vmatprep.subr.mxu0 0.0
        %8468 = vmatpush1.msra.mxu0 0.0
        %8469 = vmatprep.subr.mxu0 0.0
        %8470 = vmatpush1.msra.mxu0 0.0
        %8471 = vmatprep.subr.mxu0 0.0
        %8472 = vmatpush1.msra.mxu0 0.0
        %8473 = vmatprep.subr.mxu0 0.0
        %8474 = vmatpush1.msra.mxu0 0.0
        %8475 = vmatprep.subr.mxu0 0.0
        %8476 = vmatpush1.msra.mxu0 0.0
        %8477 = vmatprep.subr.mxu0 0.0
        %8478 = vmatpush1.msra.mxu0 0.0
        %8479 = vmatprep.subr.mxu0 0.0
        %8480 = vmatpush1.msra.mxu0 0.0
        %8481 = vmatprep.subr.mxu0 0.0
        %8482 = vmatpush1.msra.mxu0 0.0
        %8483 = vmatprep.subr.mxu0 0.0
        %8484 = vmatpush1.msra.mxu0 0.0
        %8485 = vmatprep.subr.mxu0 0.0
        %8486 = vmatpush1.msra.mxu0 0.0
        %8487 = vmatprep.subr.mxu0 0.0
        %8488 = vmatpush1.msra.mxu0 0.0
        %8489 = vmatprep.subr.mxu0 0.0
        %8490 = vmatpush1.msra.mxu0 0.0
        %8491 = vmatprep.subr.mxu0 0.0
        %8492 = vmatpush1.msra.mxu0 0.0
        %8493 = vmatprep.subr.mxu0 0.0
        %8494 = vmatpush1.msra.mxu0 0.0
        %8495 = vmatprep.subr.mxu0 0.0
        %8496 = vmatpush1.msra.mxu0 0.0
        %8497 = vmatprep.subr.mxu0 0.0
        %8498 = vmatpush1.msra.mxu0 0.0
        %8499 = vmatprep.subr.mxu0 0.0
        %8500 = vmatpush1.msra.mxu0 0.0
        %8501 = vmatprep.subr.mxu0 0.0
        %8502 = vmatpush1.msra.mxu0 0.0
        %8503 = vmatprep.subr.mxu0 0.0
        %8504 = vmatpush1.msra.mxu0 0.0
        %8505 = vmatprep.mubr.f32.mxu0 0.0
        %8506 = vmatmul.mubr.f32.gmra.mrb[0].mxu0 %v8427
        %v8507 = vpop.f32.mrb[0].mxu0
        %v8508 = vadd.f32 0.0, %v8507
        %v8509 = vpop.f32.mrb[0].mxu0
        %v8510 = vadd.f32 0.0, %v8509
        %8511 = vmatprep.mubr.f32.mxu0 0.0
        %8512 = vmatmul.mubr.f32.gmra.mrb[0].mxu0 %v8430
        %v8513 = vpop.f32.mrb[0].mxu0
        %v8514 = vadd.f32 0.0, %v8513
        %v8515 = vpop.f32.mrb[0].mxu0
        %v8516 = vadd.f32 0.0, %v8515
        %8517 = vmatprep.mubr.f32.mxu0 0.0
        %8518 = vmatmul.mubr.f32.gmra.mrb[0].mxu0 %v8433
        %v8519 = vpop.f32.mrb[0].mxu0
        %v8520 = vadd.f32 0.0, %v8519
        %v8521 = vpop.f32.mrb[0].mxu0
        %v8522 = vadd.f32 0.0, %v8521
        %8523 = vdwg.mxu0
        %v8524 = vadd.f32 %v8416, %v8508
        %v8525 = vadd.f32 %v8417, %v8510
        %v8526 = vadd.f32 %v8418, %v8514
        %v8527 = vadd.f32 %v8419, %v8516
        %v8528 = vadd.f32 %v8420, %v8520
        %v8529 = vadd.f32 %v8421, %v8522
        %8530 = vrot.lane.b32.xlu0 %v7969, 127
        %v8531 = vpop.permute.xlu0 %8530
        %8532 = vrot.lane.b32.xlu0 %v7970, 127
        %v8533 = vpop.permute.xlu0 %8532
        %v8534 = vsel %vm842, %v8531, %v8533
        %v8535 = vsel %vm842, %v8533, %v8531
        %v8536 = vmul.f32 %v8534, %v851
        %v8537 = vmul.f32 %v8535, %v855
        %s8538 = scalar_lea.vmem %s19, 120
        %v8539 = vld [vmem:[%s8538] sm:$0xff]
        %v8540 = vld [vmem:[%s8538 + $0x8] sm:$0xff]
        %v8541 = vld [vmem:[%s8538 + $0x10] sm:$0x1]
        %v8543 = vsel %vm1025, %v8539, 0
        %v8546 = vsel %vm1025, %v8540, 0
        %v8549 = vsel %vm1025, %v8541, 0
        %v8552 = vsel %vm1032, %v8536, 0
        %v8555 = vsel %vm1032, %v8537, 0
        %8557 = vmatprep.subr.mxu0 %v8555
        %8558 = vmatpush1.msra.mxu0 %v8552
        %8559 = vmatprep.subr.mxu0 0.0
        %8560 = vmatpush1.msra.mxu0 0.0
        %8561 = vmatprep.subr.mxu0 0.0
        %8562 = vmatpush1.msra.mxu0 0.0
        %8563 = vmatprep.subr.mxu0 0.0
        %8564 = vmatpush1.msra.mxu0 0.0
        %8565 = vmatprep.subr.mxu0 0.0
        %8566 = vmatpush1.msra.mxu0 0.0
        %8567 = vmatprep.subr.mxu0 0.0
        %8568 = vmatpush1.msra.mxu0 0.0
        %8569 = vmatprep.subr.mxu0 0.0
        %8570 = vmatpush1.msra.mxu0 0.0
        %8571 = vmatprep.subr.mxu0 0.0
        %8572 = vmatpush1.msra.mxu0 0.0
        %8573 = vmatprep.subr.mxu0 0.0
        %8574 = vmatpush1.msra.mxu0 0.0
        %8575 = vmatprep.subr.mxu0 0.0
        %8576 = vmatpush1.msra.mxu0 0.0
        %8577 = vmatprep.subr.mxu0 0.0
        %8578 = vmatpush1.msra.mxu0 0.0
        %8579 = vmatprep.subr.mxu0 0.0
        %8580 = vmatpush1.msra.mxu0 0.0
        %8581 = vmatprep.subr.mxu0 0.0
        %8582 = vmatpush1.msra.mxu0 0.0
        %8583 = vmatprep.subr.mxu0 0.0
        %8584 = vmatpush1.msra.mxu0 0.0
        %8585 = vmatprep.subr.mxu0 0.0
        %8586 = vmatpush1.msra.mxu0 0.0
        %8587 = vmatprep.subr.mxu0 0.0
        %8588 = vmatpush1.msra.mxu0 0.0
        %8589 = vmatprep.subr.mxu0 0.0
        %8590 = vmatpush1.msra.mxu0 0.0
        %8591 = vmatprep.subr.mxu0 0.0
        %8592 = vmatpush1.msra.mxu0 0.0
        %8593 = vmatprep.subr.mxu0 0.0
        %8594 = vmatpush1.msra.mxu0 0.0
        %8595 = vmatprep.subr.mxu0 0.0
        %8596 = vmatpush1.msra.mxu0 0.0
        %8597 = vmatprep.subr.mxu0 0.0
        %8598 = vmatpush1.msra.mxu0 0.0
        %8599 = vmatprep.subr.mxu0 0.0
        %8600 = vmatpush1.msra.mxu0 0.0
        %8601 = vmatprep.subr.mxu0 0.0
        %8602 = vmatpush1.msra.mxu0 0.0
        %8603 = vmatprep.subr.mxu0 0.0
        %8604 = vmatpush1.msra.mxu0 0.0
        %8605 = vmatprep.subr.mxu0 0.0
        %8606 = vmatpush1.msra.mxu0 0.0
        %8607 = vmatprep.subr.mxu0 0.0
        %8608 = vmatpush1.msra.mxu0 0.0
        %8609 = vmatprep.subr.mxu0 0.0
        %8610 = vmatpush1.msra.mxu0 0.0
        %8611 = vmatprep.subr.mxu0 0.0
        %8612 = vmatpush1.msra.mxu0 0.0
        %8613 = vmatprep.subr.mxu0 0.0
        %8614 = vmatpush1.msra.mxu0 0.0
        %8615 = vmatprep.subr.mxu0 0.0
        %8616 = vmatpush1.msra.mxu0 0.0
        %8617 = vmatprep.subr.mxu0 0.0
        %8618 = vmatpush1.msra.mxu0 0.0
        %8619 = vmatprep.subr.mxu0 0.0
        %8620 = vmatpush1.msra.mxu0 0.0
        %8621 = vmatprep.mubr.f32.mxu0 0.0
        %8622 = vmatmul.mubr.f32.gmra.mrb[0].mxu0 %v8543
        %v8623 = vpop.f32.mrb[0].mxu0
        %v8624 = vadd.f32 0.0, %v8623
        %v8625 = vpop.f32.mrb[0].mxu0
        %v8626 = vadd.f32 0.0, %v8625
        %8627 = vmatprep.mubr.f32.mxu0 0.0
        %8628 = vmatmul.mubr.f32.gmra.mrb[0].mxu0 %v8546
        %v8629 = vpop.f32.mrb[0].mxu0
        %v8630 = vadd.f32 0.0, %v8629
        %v8631 = vpop.f32.mrb[0].mxu0
        %v8632 = vadd.f32 0.0, %v8631
        %8633 = vmatprep.mubr.f32.mxu0 0.0
        %8634 = vmatmul.mubr.f32.gmra.mrb[0].mxu0 %v8549
        %v8635 = vpop.f32.mrb[0].mxu0
        %v8636 = vadd.f32 0.0, %v8635
        %v8637 = vpop.f32.mrb[0].mxu0
        %v8638 = vadd.f32 0.0, %v8637
        %8639 = vdwg.mxu0
        %v8640 = vadd.f32 %v8524, %v8624
        %v8641 = vadd.f32 %v8525, %v8626
        %v8642 = vadd.f32 %v8526, %v8630
        %v8643 = vadd.f32 %v8527, %v8632
        %v8644 = vadd.f32 %v8528, %v8636
        %v8645 = vadd.f32 %v8529, %v8638
        %8646 = vrot.lane.b32.xlu0 %v7969, 113
        %v8647 = vpop.permute.xlu0 %8646
        %8648 = vrot.lane.b32.xlu0 %v7970, 113
        %v8649 = vpop.permute.xlu0 %8648
        %v8650 = vsel %vm883, %v8647, %v8649
        %v8651 = vsel %vm883, %v8649, %v8647
        %v8652 = vmul.f32 %v8650, %v892
        %v8653 = vmul.f32 %v8651, %v896
        %s8654 = scalar_lea.vmem %s19, 144
        %v8655 = vld [vmem:[%s8654] sm:$0xff]
        %v8656 = vld [vmem:[%s8654 + $0x8] sm:$0xff]
        %v8657 = vld [vmem:[%s8654 + $0x10] sm:$0x1]
        %v8659 = vsel %vm1025, %v8655, 0
        %v8662 = vsel %vm1025, %v8656, 0
        %v8665 = vsel %vm1025, %v8657, 0
        %v8668 = vsel %vm1032, %v8652, 0
        %v8671 = vsel %vm1032, %v8653, 0
        %8673 = vmatprep.subr.mxu0 %v8671
        %8674 = vmatpush1.msra.mxu0 %v8668
        %8675 = vmatprep.subr.mxu0 0.0
        %8676 = vmatpush1.msra.mxu0 0.0
        %8677 = vmatprep.subr.mxu0 0.0
        %8678 = vmatpush1.msra.mxu0 0.0
        %8679 = vmatprep.subr.mxu0 0.0
        %8680 = vmatpush1.msra.mxu0 0.0
        %8681 = vmatprep.subr.mxu0 0.0
        %8682 = vmatpush1.msra.mxu0 0.0
        %8683 = vmatprep.subr.mxu0 0.0
        %8684 = vmatpush1.msra.mxu0 0.0
        %8685 = vmatprep.subr.mxu0 0.0
        %8686 = vmatpush1.msra.mxu0 0.0
        %8687 = vmatprep.subr.mxu0 0.0
        %8688 = vmatpush1.msra.mxu0 0.0
        %8689 = vmatprep.subr.mxu0 0.0
        %8690 = vmatpush1.msra.mxu0 0.0
        %8691 = vmatprep.subr.mxu0 0.0
        %8692 = vmatpush1.msra.mxu0 0.0
        %8693 = vmatprep.subr.mxu0 0.0
        %8694 = vmatpush1.msra.mxu0 0.0
        %8695 = vmatprep.subr.mxu0 0.0
        %8696 = vmatpush1.msra.mxu0 0.0
        %8697 = vmatprep.subr.mxu0 0.0
        %8698 = vmatpush1.msra.mxu0 0.0
        %8699 = vmatprep.subr.mxu0 0.0
        %8700 = vmatpush1.msra.mxu0 0.0
        %8701 = vmatprep.subr.mxu0 0.0
        %8702 = vmatpush1.msra.mxu0 0.0
        %8703 = vmatprep.subr.mxu0 0.0
        %8704 = vmatpush1.msra.mxu0 0.0
        %8705 = vmatprep.subr.mxu0 0.0
        %8706 = vmatpush1.msra.mxu0 0.0
        %8707 = vmatprep.subr.mxu0 0.0
        %8708 = vmatpush1.msra.mxu0 0.0
        %8709 = vmatprep.subr.mxu0 0.0
        %8710 = vmatpush1.msra.mxu0 0.0
        %8711 = vmatprep.subr.mxu0 0.0
        %8712 = vmatpush1.msra.mxu0 0.0
        %8713 = vmatprep.subr.mxu0 0.0
        %8714 = vmatpush1.msra.mxu0 0.0
        %8715 = vmatprep.subr.mxu0 0.0
        %8716 = vmatpush1.msra.mxu0 0.0
        %8717 = vmatprep.subr.mxu0 0.0
        %8718 = vmatpush1.msra.mxu0 0.0
        %8719 = vmatprep.subr.mxu0 0.0
        %8720 = vmatpush1.msra.mxu0 0.0
        %8721 = vmatprep.subr.mxu0 0.0
        %8722 = vmatpush1.msra.mxu0 0.0
        %8723 = vmatprep.subr.mxu0 0.0
        %8724 = vmatpush1.msra.mxu0 0.0
        %8725 = vmatprep.subr.mxu0 0.0
        %8726 = vmatpush1.msra.mxu0 0.0
        %8727 = vmatprep.subr.mxu0 0.0
        %8728 = vmatpush1.msra.mxu0 0.0
        %8729 = vmatprep.subr.mxu0 0.0
        %8730 = vmatpush1.msra.mxu0 0.0
        %8731 = vmatprep.subr.mxu0 0.0
        %8732 = vmatpush1.msra.mxu0 0.0
        %8733 = vmatprep.subr.mxu0 0.0
        %8734 = vmatpush1.msra.mxu0 0.0
        %8735 = vmatprep.subr.mxu0 0.0
        %8736 = vmatpush1.msra.mxu0 0.0
        %8737 = vmatprep.mubr.f32.mxu0 0.0
        %8738 = vmatmul.mubr.f32.gmra.mrb[0].mxu0 %v8659
        %v8739 = vpop.f32.mrb[0].mxu0
        %v8740 = vadd.f32 0.0, %v8739
        %v8741 = vpop.f32.mrb[0].mxu0
        %v8742 = vadd.f32 0.0, %v8741
        %8743 = vmatprep.mubr.f32.mxu0 0.0
        %8744 = vmatmul.mubr.f32.gmra.mrb[0].mxu0 %v8662
        %v8745 = vpop.f32.mrb[0].mxu0
        %v8746 = vadd.f32 0.0, %v8745
        %v8747 = vpop.f32.mrb[0].mxu0
        %v8748 = vadd.f32 0.0, %v8747
        %8749 = vmatprep.mubr.f32.mxu0 0.0
        %8750 = vmatmul.mubr.f32.gmra.mrb[0].mxu0 %v8665
        %v8751 = vpop.f32.mrb[0].mxu0
        %v8752 = vadd.f32 0.0, %v8751
        %v8753 = vpop.f32.mrb[0].mxu0
        %v8754 = vadd.f32 0.0, %v8753
        %8755 = vdwg.mxu0
        %v8756 = vadd.f32 %v8640, %v8740
        %v8757 = vadd.f32 %v8641, %v8742
        %v8758 = vadd.f32 %v8642, %v8746
        %v8759 = vadd.f32 %v8643, %v8748
        %v8760 = vadd.f32 %v8644, %v8752
        %v8761 = vadd.f32 %v8645, %v8754
        %8762 = vrot.lane.b32.xlu0 %v7969, 112
        %v8763 = vpop.permute.xlu0 %8762
        %8764 = vrot.lane.b32.xlu0 %v7970, 112
        %v8765 = vpop.permute.xlu0 %8764
        %v8766 = vsel %vm924, %v8763, %v8765
        %v8767 = vsel %vm924, %v8765, %v8763
        %v8768 = vmul.f32 %v8766, %v933
        %v8769 = vmul.f32 %v8767, %v937
        %s8770 = scalar_lea.vmem %s19, 168
        %v8771 = vld [vmem:[%s8770] sm:$0xff]
        %v8772 = vld [vmem:[%s8770 + $0x8] sm:$0xff]
        %v8773 = vld [vmem:[%s8770 + $0x10] sm:$0x1]
        %v8775 = vsel %vm1025, %v8771, 0
        %v8778 = vsel %vm1025, %v8772, 0
        %v8781 = vsel %vm1025, %v8773, 0
        %v8784 = vsel %vm1032, %v8768, 0
        %v8787 = vsel %vm1032, %v8769, 0
        %8789 = vmatprep.subr.mxu0 %v8787
        %8790 = vmatpush1.msra.mxu0 %v8784
        %8791 = vmatprep.subr.mxu0 0.0
        %8792 = vmatpush1.msra.mxu0 0.0
        %8793 = vmatprep.subr.mxu0 0.0
        %8794 = vmatpush1.msra.mxu0 0.0
        %8795 = vmatprep.subr.mxu0 0.0
        %8796 = vmatpush1.msra.mxu0 0.0
        %8797 = vmatprep.subr.mxu0 0.0
        %8798 = vmatpush1.msra.mxu0 0.0
        %8799 = vmatprep.subr.mxu0 0.0
        %8800 = vmatpush1.msra.mxu0 0.0
        %8801 = vmatprep.subr.mxu0 0.0
        %8802 = vmatpush1.msra.mxu0 0.0
        %8803 = vmatprep.subr.mxu0 0.0
        %8804 = vmatpush1.msra.mxu0 0.0
        %8805 = vmatprep.subr.mxu0 0.0
        %8806 = vmatpush1.msra.mxu0 0.0
        %8807 = vmatprep.subr.mxu0 0.0
        %8808 = vmatpush1.msra.mxu0 0.0
        %8809 = vmatprep.subr.mxu0 0.0
        %8810 = vmatpush1.msra.mxu0 0.0
        %8811 = vmatprep.subr.mxu0 0.0
        %8812 = vmatpush1.msra.mxu0 0.0
        %8813 = vmatprep.subr.mxu0 0.0
        %8814 = vmatpush1.msra.mxu0 0.0
        %8815 = vmatprep.subr.mxu0 0.0
        %8816 = vmatpush1.msra.mxu0 0.0
        %8817 = vmatprep.subr.mxu0 0.0
        %8818 = vmatpush1.msra.mxu0 0.0
        %8819 = vmatprep.subr.mxu0 0.0
        %8820 = vmatpush1.msra.mxu0 0.0
        %8821 = vmatprep.subr.mxu0 0.0
        %8822 = vmatpush1.msra.mxu0 0.0
        %8823 = vmatprep.subr.mxu0 0.0
        %8824 = vmatpush1.msra.mxu0 0.0
        %8825 = vmatprep.subr.mxu0 0.0
        %8826 = vmatpush1.msra.mxu0 0.0
        %8827 = vmatprep.subr.mxu0 0.0
        %8828 = vmatpush1.msra.mxu0 0.0
        %8829 = vmatprep.subr.mxu0 0.0
        %8830 = vmatpush1.msra.mxu0 0.0
        %8831 = vmatprep.subr.mxu0 0.0
        %8832 = vmatpush1.msra.mxu0 0.0
        %8833 = vmatprep.subr.mxu0 0.0
        %8834 = vmatpush1.msra.mxu0 0.0
        %8835 = vmatprep.subr.mxu0 0.0
        %8836 = vmatpush1.msra.mxu0 0.0
        %8837 = vmatprep.subr.mxu0 0.0
        %8838 = vmatpush1.msra.mxu0 0.0
        %8839 = vmatprep.subr.mxu0 0.0
        %8840 = vmatpush1.msra.mxu0 0.0
        %8841 = vmatprep.subr.mxu0 0.0
        %8842 = vmatpush1.msra.mxu0 0.0
        %8843 = vmatprep.subr.mxu0 0.0
        %8844 = vmatpush1.msra.mxu0 0.0
        %8845 = vmatprep.subr.mxu0 0.0
        %8846 = vmatpush1.msra.mxu0 0.0
        %8847 = vmatprep.subr.mxu0 0.0
        %8848 = vmatpush1.msra.mxu0 0.0
        %8849 = vmatprep.subr.mxu0 0.0
        %8850 = vmatpush1.msra.mxu0 0.0
        %8851 = vmatprep.subr.mxu0 0.0
        %8852 = vmatpush1.msra.mxu0 0.0
        %8853 = vmatprep.mubr.f32.mxu0 0.0
        %8854 = vmatmul.mubr.f32.gmra.mrb[0].mxu0 %v8775
        %v8855 = vpop.f32.mrb[0].mxu0
        %v8856 = vadd.f32 0.0, %v8855
        %v8857 = vpop.f32.mrb[0].mxu0
        %v8858 = vadd.f32 0.0, %v8857
        %8859 = vmatprep.mubr.f32.mxu0 0.0
        %8860 = vmatmul.mubr.f32.gmra.mrb[0].mxu0 %v8778
        %v8861 = vpop.f32.mrb[0].mxu0
        %v8862 = vadd.f32 0.0, %v8861
        %v8863 = vpop.f32.mrb[0].mxu0
        %v8864 = vadd.f32 0.0, %v8863
        %8865 = vmatprep.mubr.f32.mxu0 0.0
        %8866 = vmatmul.mubr.f32.gmra.mrb[0].mxu0 %v8781
        %v8867 = vpop.f32.mrb[0].mxu0
        %v8868 = vadd.f32 0.0, %v8867
        %v8869 = vpop.f32.mrb[0].mxu0
        %v8870 = vadd.f32 0.0, %v8869
        %8871 = vdwg.mxu0
        %v8872 = vadd.f32 %v8756, %v8856
        %v8873 = vadd.f32 %v8757, %v8858
        %v8874 = vadd.f32 %v8758, %v8862
        %v8875 = vadd.f32 %v8759, %v8864
        %v8876 = vadd.f32 %v8760, %v8868
        %v8877 = vadd.f32 %v8761, %v8870
        %8878 = vrot.lane.b32.xlu0 %v7969, 111
        %v8879 = vpop.permute.xlu0 %8878
        %8880 = vrot.lane.b32.xlu0 %v7970, 111
        %v8881 = vpop.permute.xlu0 %8880
        %v8882 = vsel %vm965, %v8879, %v8881
        %v8883 = vsel %vm965, %v8881, %v8879
        %v8884 = vmul.f32 %v8882, %v974
        %v8885 = vmul.f32 %v8883, %v978
        %s8886 = scalar_lea.vmem %s19, 192
        %v8887 = vld [vmem:[%s8886] sm:$0xff]
        %v8888 = vld [vmem:[%s8886 + $0x8] sm:$0xff]
        %v8889 = vld [vmem:[%s8886 + $0x10] sm:$0x1]
        %v8891 = vsel %vm1025, %v8887, 0
        %v8894 = vsel %vm1025, %v8888, 0
        %v8897 = vsel %vm1025, %v8889, 0
        %v8900 = vsel %vm1032, %v8884, 0
        %v8903 = vsel %vm1032, %v8885, 0
        %8905 = vmatprep.subr.mxu0 %v8903
        %8906 = vmatpush1.msra.mxu0 %v8900
        %8907 = vmatprep.subr.mxu0 0.0
        %8908 = vmatpush1.msra.mxu0 0.0
        %8909 = vmatprep.subr.mxu0 0.0
        %8910 = vmatpush1.msra.mxu0 0.0
        %8911 = vmatprep.subr.mxu0 0.0
        %8912 = vmatpush1.msra.mxu0 0.0
        %8913 = vmatprep.subr.mxu0 0.0
        %8914 = vmatpush1.msra.mxu0 0.0
        %8915 = vmatprep.subr.mxu0 0.0
        %8916 = vmatpush1.msra.mxu0 0.0
        %8917 = vmatprep.subr.mxu0 0.0
        %8918 = vmatpush1.msra.mxu0 0.0
        %8919 = vmatprep.subr.mxu0 0.0
        %8920 = vmatpush1.msra.mxu0 0.0
        %8921 = vmatprep.subr.mxu0 0.0
        %8922 = vmatpush1.msra.mxu0 0.0
        %8923 = vmatprep.subr.mxu0 0.0
        %8924 = vmatpush1.msra.mxu0 0.0
        %8925 = vmatprep.subr.mxu0 0.0
        %8926 = vmatpush1.msra.mxu0 0.0
        %8927 = vmatprep.subr.mxu0 0.0
        %8928 = vmatpush1.msra.mxu0 0.0
        %8929 = vmatprep.subr.mxu0 0.0
        %8930 = vmatpush1.msra.mxu0 0.0
        %8931 = vmatprep.subr.mxu0 0.0
        %8932 = vmatpush1.msra.mxu0 0.0
        %8933 = vmatprep.subr.mxu0 0.0
        %8934 = vmatpush1.msra.mxu0 0.0
        %8935 = vmatprep.subr.mxu0 0.0
        %8936 = vmatpush1.msra.mxu0 0.0
        %8937 = vmatprep.subr.mxu0 0.0
        %8938 = vmatpush1.msra.mxu0 0.0
        %8939 = vmatprep.subr.mxu0 0.0
        %8940 = vmatpush1.msra.mxu0 0.0
        %8941 = vmatprep.subr.mxu0 0.0
        %8942 = vmatpush1.msra.mxu0 0.0
        %8943 = vmatprep.subr.mxu0 0.0
        %8944 = vmatpush1.msra.mxu0 0.0
        %8945 = vmatprep.subr.mxu0 0.0
        %8946 = vmatpush1.msra.mxu0 0.0
        %8947 = vmatprep.subr.mxu0 0.0
        %8948 = vmatpush1.msra.mxu0 0.0
        %8949 = vmatprep.subr.mxu0 0.0
        %8950 = vmatpush1.msra.mxu0 0.0
        %8951 = vmatprep.subr.mxu0 0.0
        %8952 = vmatpush1.msra.mxu0 0.0
        %8953 = vmatprep.subr.mxu0 0.0
        %8954 = vmatpush1.msra.mxu0 0.0
        %8955 = vmatprep.subr.mxu0 0.0
        %8956 = vmatpush1.msra.mxu0 0.0
        %8957 = vmatprep.subr.mxu0 0.0
        %8958 = vmatpush1.msra.mxu0 0.0
        %8959 = vmatprep.subr.mxu0 0.0
        %8960 = vmatpush1.msra.mxu0 0.0
        %8961 = vmatprep.subr.mxu0 0.0
        %8962 = vmatpush1.msra.mxu0 0.0
        %8963 = vmatprep.subr.mxu0 0.0
        %8964 = vmatpush1.msra.mxu0 0.0
        %8965 = vmatprep.subr.mxu0 0.0
        %8966 = vmatpush1.msra.mxu0 0.0
        %8967 = vmatprep.subr.mxu0 0.0
        %8968 = vmatpush1.msra.mxu0 0.0
        %8969 = vmatprep.mubr.f32.mxu0 0.0
        %8970 = vmatmul.mubr.f32.gmra.mrb[0].mxu0 %v8891
        %v8971 = vpop.f32.mrb[0].mxu0
        %v8972 = vadd.f32 0.0, %v8971
        %v8973 = vpop.f32.mrb[0].mxu0
        %v8974 = vadd.f32 0.0, %v8973
        %8975 = vmatprep.mubr.f32.mxu0 0.0
        %8976 = vmatmul.mubr.f32.gmra.mrb[0].mxu0 %v8894
        %v8977 = vpop.f32.mrb[0].mxu0
        %v8978 = vadd.f32 0.0, %v8977
        %v8979 = vpop.f32.mrb[0].mxu0
        %v8980 = vadd.f32 0.0, %v8979
        %8981 = vmatprep.mubr.f32.mxu0 0.0
        %8982 = vmatmul.mubr.f32.gmra.mrb[0].mxu0 %v8897
        %v8983 = vpop.f32.mrb[0].mxu0
        %v8984 = vadd.f32 0.0, %v8983
        %v8985 = vpop.f32.mrb[0].mxu0
        %v8986 = vadd.f32 0.0, %v8985
        %8987 = vdwg.mxu0
        %v8988 = vadd.f32 %v8872, %v8972
        %v8989 = vadd.f32 %v8873, %v8974
        %v8990 = vadd.f32 %v8874, %v8978
        %v8991 = vadd.f32 %v8875, %v8980
        %v8992 = vadd.f32 %v8876, %v8984
        %v8993 = vadd.f32 %v8877, %v8986
        %v8994 = vmax.f32 %v8988, 0.0
        %v8995 = vmax.f32 %v8989, 0.0
        %v8996 = vmax.f32 %v8990, 0.0
        %v8997 = vmax.f32 %v8991, 0.0
        %v8998 = vmax.f32 %v8992, 0.0
        %v8999 = vmax.f32 %v8993, 0.0
        %v9000 = vadd.f32 %v8994, %v8995
        %9001 = vadd.xlane.f32.xlu0 %v9000
        %v9002 = vpop.xlane.xlu0 %9001
        %v9003 = vadd.f32 %v8996, %v8997
        %9004 = vadd.xlane.f32.xlu0 %v9003
        %v9005 = vpop.xlane.xlu0 %9004
        %vm9006 = vcmask 1040384
        %v9007 = vsel %vm9006, %v8998, 0.0
        %v9008 = vsel %vm9006, %v8999, 0.0
        %v9009 = vadd.f32 %v9007, %v9008
        %9010 = vadd.xlane.f32.xlu0 %v9009
        %v9011 = vpop.xlane.xlu0 %9010
        %v9012 = vmul.f32 %v9002, 0.00390625
        %v9013 = vmul.f32 %v9005, 0.00390625
        %v9014 = vmul.f32 %v9011, 0.00390625
        %v9015 = vmul.f32 %v9012, %v9012
        %v9016 = vmul.f32 %v9013, %v9013
        %v9017 = vmul.f32 %v9014, %v9014
        %v9018 = vadd.f32 %v9015, %v9016
        %v9019 = vsel %vm9006, %v9017, 0.0
        %v9020 = vadd.f32 %v9018, %v9019
        %v9021 = vrot.slane %v9020, 4
        %v9022 = vadd.f32 %v9020, %v9021
        %v9023 = vrot.slane %v9022, 2
        %v9024 = vadd.f32 %v9022, %v9023
        %v9025 = vrot.slane %v9024, 1
        %v9026 = vadd.f32 %v9024, %v9025
        %v9027 = vrcp.pop 17.0
        %v9028 = vmul.f32 %v9026, %v9027
        %v9029 = vadd.f32 %v9028, 1e-06
        %v9030 = vrsqrt.pop %v9029
        %v9031 = vmul.f32 %v9012, %v9030
        %v9032 = vmul.f32 %v9013, %v9030
        %v9033 = vmul.f32 %v9014, %v9030
        %v9034 = vld [vmem:[%s20] sm:$0xff]
        %v9035 = vld [vmem:[%s20 + $0x8] sm:$0xff]
        %v9036 = vld [vmem:[%s20 + $0x10] sm:$0x1]
        %v9037 = vmul.f32 %v9034, %v9031
        %v9038 = vmul.f32 %v9035, %v9032
        %v9039 = vmul.f32 %v9036, %v9033
        %vm9040 = vcmask 80896
        %v9041 = vsel %vm9040, %v9037, 0.0
        %v9042 = vsel %vm9040, %v9038, 0.0
        %v9043 = vadd.f32 %v9041, %v9042
        %vm9044 = vcmask 73728
        %v9045 = vsel %vm9044, %v9039, 0.0
        %v9046 = vadd.f32 %v9043, %v9045
        %v9047 = vrot.slane %v9046, 4
        %v9048 = vadd.f32 %v9046, %v9047
        %v9049 = vrot.slane %v9048, 2
        %v9050 = vadd.f32 %v9048, %v9049
        %v9051 = vrot.slane %v9050, 1
        %v9052 = vadd.f32 %v9050, %v9051
        %9053 = vst.msk [vmem:[%s646] sm:$0x1] %vm9044, %v9052
        %s9054 = sand.u32 %s489, 1
        %s9055 = scalar_lea.sflag [#allocation3], %s9054
        %s9056 = sand.u32 %s489, 1
        %s9057 = scalar_lea.vmem [#allocation2], %s9056
        // Predicated region
        $region105: #{qtinyspeech_forward.1} parent=103 // pred_check
          %p9058 = pneg %p499
        $region106: #{qtinyspeech_forward.1} parent=103 // pred_check_branch
          %9060 = sbr.rel (%p9058) target = $region108
        $region107: #{qtinyspeech_forward.1} parent=103 // pred_region
          %s9062 = ssub.s32 16, 16
          %9063 = vsyncadd %s9055, %s9062
          %s9064 = smul.addr %s35, 16
          %s9065 = scalar_lea.hbm %s21, %s9064
          %s9067 = sshll.u32 %s9057, 4
          %s9068 = int_to_ptr.vmem [resolvable:$true] %s9067
          %9070 = dma.vmem_to_hbm [thread:$0]  %s9068, 16, %s9065, %s9055
        $region108: #{qtinyspeech_forward.1} parent=103 // pred_fallthru
          _
      $region104: #{qtinyspeech_forward.1} parent=5 // pred_fallthru
        _
      %p9071 = scmp.le.s32.totalorder 2, %s30
      // Predicated region
      $region109: #{qtinyspeech_forward.1} parent=5 // pred_check
        %p9072 = pneg %p9071
      $region110: #{qtinyspeech_forward.1} parent=5 // pred_check_branch
        %9074 = sbr.rel (%p9072) target = $region112
      $region111: #{qtinyspeech_forward.1} parent=5 // pred_region
        %s9075 = ssub.s32 %s30, 2
        // Predicated region
        $region113: #{qtinyspeech_forward.1} parent=111 // pred_check
          %p9076 = pneg %p505
        $region114: #{qtinyspeech_forward.1} parent=111 // pred_check_branch
          %9078 = sbr.rel (%p9076) target = $region116
        $region115: #{qtinyspeech_forward.1} parent=111 // pred_region
          %s9079 = sand.u32 %s490, 1
          %s9080 = scalar_lea.sflag [#allocation3], %s9079
          %s9081 = sand.u32 %s490, 1
          %s9082 = scalar_lea.vmem [#allocation2], %s9081
          %9083 = dma.done %s9080, 16
        $region116: #{qtinyspeech_forward.1} parent=111 // pred_fallthru
          _
      $region112: #{qtinyspeech_forward.1} parent=5 // pred_fallthru
        _
    $region6: #{qtinyspeech_forward.1} parent=1 // loop_footer
      %s34 = sadd.s32 1, %s30
    $region7: #{qtinyspeech_forward.1} parent=1 // loop_footer_branch
      %29 = sbr.rel target = $region3
    $region8: #{qtinyspeech_forward.1} parent=1 // loop_exit
      _
    %9084 = vsyncpa [#allocation3], 1
    %s9085 = scalar_lea.sflag [#allocation3], 1
    %9086 = vsyncpa %s9085, 1

</llo_original>
